<compile_context>
chip_gen: v7x
topology: tpu7x:2x2x1
jax: 0.10.0
libtpu: 0.0.40
codegen_flags: <defaults>
</compile_context>

<pallas_src>
import functools

import jax
import jax.numpy as jnp
from jax import lax
from jax.experimental import pallas as pl
from jax.experimental.pallas import tpu as pltpu

# Small config consistent with MalConv.__init__ (window/seq scaled down).
OUT_SIZE = 2
CHANNELS = 128
WINDOW = 16        # window_size (kernel == stride), scaled down from 512
EMBD = 8           # embd_size
VOCAB = 257
VOCAB_PAD = 384    # vocab padded to a lane multiple for the one-hot matmul
BATCH = 2
SEQ_LEN = 256      # -> 16 non-overlapping windows
PAD_OUT = 128      # lane-dense head width (sliced back to OUT_SIZE outside)
TILE_WIN = 8       # windows per grid step (reduction-axis tile)
B_SUB = 8          # batch rows per group (sublane-full accumulator / head)


def malconv_kernel(tok_ref, ew12_ref, b12_ref, f1w_ref, f1b_ref, f2w_ref,
                   f2b_ref, out_ref, acc_ref, *, tile_win, channels, window,
                   vocab_pad):
    """Per grid step: fused embedding-gather + gated conv for one window tile,
    running max-pool into a VMEM accumulator; MLP head on the last tile."""
    k = pl.program_id(1)
    n_k = pl.num_programs(1)

    @pl.when(k == 0)
    def _init():
        acc_ref[...] = jnp.full(acc_ref.shape, -jnp.inf, dtype=acc_ref.dtype)

    tok = tok_ref[0, 0]                                # (ROWS, WINDOW) int32
    rows = tok.shape[0]                                # B_SUB * tile_win

    # Fused byte->embedding gather + conv1/conv2 (value || gate):
    #   y[r, :] = b12 + sum_p ew12[p, tok[r, p], :]
    # realized as one one-hot bf16 MXU matmul per window position with f32
    # accumulation.  Elementwise math below stays f32 (v5e-safe).
    vocab_iota = lax.broadcasted_iota(jnp.int32, (rows, vocab_pad), 1)
    y = jnp.zeros((rows, 2 * channels), jnp.float32)
    for p in range(window):
        onehot = jnp.where(tok[:, p:p + 1] == vocab_iota, 1.0, 0.0
                           ).astype(jnp.bfloat16)      # (ROWS, VOCAB_PAD) bf16
        y = y + jnp.dot(onehot, ew12_ref[p],
                        preferred_element_type=jnp.float32)
    y = y + b12_ref[...]                               # (ROWS, 2C) f32

    value = y[:, :channels]
    gate = jax.nn.sigmoid(y[:, channels:])             # f32 sigmoid on EUP
    gated = (value * gate).reshape(B_SUB, tile_win, channels)

    # Running AdaptiveMaxPool1d(1) across window tiles (reduction grid axis).
    acc_ref[...] = jnp.maximum(acc_ref[...], jnp.max(gated, axis=1))

    @pl.when(k == n_k - 1)
    def _head():
        pooled = acc_ref[...].astype(jnp.bfloat16)     # (8, C)
        h = jnp.dot(pooled, f1w_ref[...],
                    preferred_element_type=jnp.float32) + f1b_ref[...]
        h = jnp.maximum(h, 0.0).astype(jnp.bfloat16)   # ReLU
        out_ref[...] = (jnp.dot(h, f2w_ref[...],
                                preferred_element_type=jnp.float32)
                        + f2b_ref[...])                # (8, PAD_OUT) f32


def prepare_params(params):
    """One-time weight layout work (hoisted out of the per-call path)."""
    hi = lax.Precision.HIGHEST
    K = WINDOW * EMBD
    # Conv weights as matmul weights, value+gate fused along the output dim.
    w1 = params["conv1_w"].transpose(2, 1, 0).reshape(K, CHANNELS)   # [(p,e), c]
    w2 = params["conv2_w"].transpose(2, 1, 0).reshape(K, CHANNELS)
    w12 = jnp.concatenate([w1, w2], axis=1)                          # (K, 2C)

    # Fold the (257, 8) embedding table into the conv weights, per window
    # position:  ew12[p, v, :] = embd[v] @ W12[p].  Vocab padded to 384 lanes.
    # TODO(synk): at production window_size=512 this folded table is ~100 MB;
    # keep the raw (257, 8) table VMEM-resident and use a real in-kernel
    # gather instead.
    embd_pad = jnp.zeros((VOCAB_PAD, EMBD), jnp.float32).at[:VOCAB].set(
        params["embd"])
    ew12 = jnp.einsum("ve,pec->pvc", embd_pad,
                      w12.reshape(WINDOW, EMBD, 2 * CHANNELS),
                      precision=hi).astype(jnp.bfloat16)             # (W,Vp,2C)
    b12 = jnp.concatenate([params["conv1_b"],
                           params["conv2_b"]]).reshape(1, 2 * CHANNELS)

    f1w = params["fc1_w"].T.astype(jnp.bfloat16)                     # (C, C)
    f1b = params["fc1_b"].reshape(1, CHANNELS)
    # Pad the OUT_SIZE=2 head to 128 lanes -> lane-dense output store.
    f2w = jnp.zeros((CHANNELS, PAD_OUT), jnp.float32)
    f2w = f2w.at[:, :OUT_SIZE].set(params["fc2_w"].T).astype(jnp.bfloat16)
    f2b = jnp.zeros((1, PAD_OUT), jnp.float32)
    f2b = f2b.at[:, :OUT_SIZE].set(params["fc2_b"])
    return {"ew12": ew12, "b12": b12, "f1w": f1w, "f1b": f1b,
            "f2w": f2w, "f2b": f2b}


def malconv_forward(tokens, prep, *, window=WINDOW, tile_win=TILE_WIN):
    """tokens: int (B, L).  prep: output of prepare_params.  -> f32 (B, OUT_SIZE)."""
    B, L = tokens.shape
    # Conv1d(stride=kernel) drops the sequence tail (VALID), same as PyTorch.
    n_windows = L // window
    assert n_windows % tile_win == 0, "choose tile_win to divide n_windows"
    n_k = n_windows // tile_win
    b_pad = max(B_SUB, ((B + B_SUB - 1) // B_SUB) * B_SUB)
    G = b_pad // B_SUB
    rows = B_SUB * tile_win

    # Token plumbing only (4 B/byte HBM stream; the gather happens in-kernel).
    tok = tokens[:, :n_windows * window].astype(jnp.int32)
    tok = jnp.pad(tok, ((0, b_pad - B), (0, 0)))       # token 0 -> zero embd row
    tok = tok.reshape(G, B_SUB, n_k, tile_win, window)
    tok = tok.transpose(0, 2, 1, 3, 4).reshape(G, n_k, rows, window)

    kernel = functools.partial(malconv_kernel, tile_win=tile_win,
                               channels=CHANNELS, window=window,
                               vocab_pad=VOCAB_PAD)

    # Tile sizing: per-step streamed input is rows*window int32 (= 4 KiB here);
    # resident weights ~3 MiB bf16.  Double-buffered inputs + weights + f32
    # accumulator stay far below v7x's 64 MiB VMEM; on v6e, larger tile_win /
    # batch groups amortize the ~0.35 us per-grid-step overhead.
    grid_spec = pltpu.PrefetchScalarGridSpec(
        num_scalar_prefetch=0,
        grid=(G, n_k),
        in_specs=[
            pl.BlockSpec((1, 1, rows, window), lambda g, k: (g, k, 0, 0)),
            pl.BlockSpec((window, VOCAB_PAD, 2 * CHANNELS),
                         lambda g, k: (0, 0, 0)),
            pl.BlockSpec((1, 2 * CHANNELS), lambda g, k: (0, 0)),
            pl.BlockSpec((CHANNELS, CHANNELS), lambda g, k: (0, 0)),
            pl.BlockSpec((1, CHANNELS), lambda g, k: (0, 0)),
            pl.BlockSpec((CHANNELS, PAD_OUT), lambda g, k: (0, 0)),
            pl.BlockSpec((1, PAD_OUT), lambda g, k: (0, 0)),
        ],
        out_specs=pl.BlockSpec((B_SUB, PAD_OUT), lambda g, k: (g, 0)),
        scratch_shapes=[pltpu.VMEM((B_SUB, CHANNELS), jnp.float32)],
    )

    out = pl.pallas_call(
        kernel,
        out_shape=jax.ShapeDtypeStruct((b_pad, PAD_OUT), jnp.float32),
        grid_spec=grid_spec,
        compiler_params=pltpu.CompilerParams(
            dimension_semantics=("parallel", "arbitrary"),
            vmem_limit_bytes=32 * 1024 * 1024,
        ),
    )(tok, prep["ew12"], prep["b12"], prep["f1w"], prep["f1b"],
      prep["f2w"], prep["f2b"])
    return out[:B, :OUT_SIZE]


def malconv_reference(tokens, params, *, window=WINDOW):
    """Pure-JAX reference mirroring the PyTorch forward (NCL conv, HIGHEST)."""
    hi = lax.Precision.HIGHEST
    emb = params["embd"][tokens]                       # (B, L, E)
    x = jnp.transpose(emb, (0, 2, 1))                  # (B, E, L)
    dn = ("NCH", "OIH", "NCH")
    c1 = lax.conv_general_dilated(x, params["conv1_w"], (window,), "VALID",
                                  dimension_numbers=dn, precision=hi)
    c2 = lax.conv_general_dilated(x, params["conv2_w"], (window,), "VALID",
                                  dimension_numbers=dn, precision=hi)
    c1 = c1 + params["conv1_b"][None, :, None]
    c2 = c2 + params["conv2_b"][None, :, None]
    g = c1 * jax.nn.sigmoid(c2)                        # (B, C, N)
    pooled = jnp.max(g, axis=-1)                       # AdaptiveMaxPool1d(1) + view
    h = jax.nn.relu(jnp.dot(pooled, params["fc1_w"].T, precision=hi)
                    + params["fc1_b"])
    return jnp.dot(h, params["fc2_w"].T, precision=hi) + params["fc2_b"]


def init_params(key):
    ks = jax.random.split(key, 9)
    embd = jax.random.normal(ks[0], (VOCAB, EMBD), jnp.float32)
    embd = embd.at[0].set(0.0)   # nn.Embedding padding_idx=0 -> zero row
    scale = 0.05
    return {
        "embd": embd,
        "conv1_w": scale * jax.random.normal(ks[1], (CHANNELS, EMBD, WINDOW), jnp.float32),
        "conv1_b": scale * jax.random.normal(ks[2], (CHANNELS,), jnp.float32),
        "conv2_w": scale * jax.random.normal(ks[3], (CHANNELS, EMBD, WINDOW), jnp.float32),
        "conv2_b": scale * jax.random.normal(ks[4], (CHANNELS,), jnp.float32),
        "fc1_w": scale * jax.random.normal(ks[5], (CHANNELS, CHANNELS), jnp.float32),
        "fc1_b": scale * jax.random.normal(ks[6], (CHANNELS,), jnp.float32),
        "fc2_w": scale * jax.random.normal(ks[7], (OUT_SIZE, CHANNELS), jnp.float32),
        "fc2_b": scale * jax.random.normal(ks[8], (OUT_SIZE,), jnp.float32),
    }


if __name__ == "__main__":
    key = jax.random.PRNGKey(0)
    pkey, tkey = jax.random.split(key)
    params = init_params(pkey)
    prep = prepare_params(params)   # one-time weight layout work (hoisted)
    tokens = jax.random.randint(tkey, (BATCH, SEQ_LEN), 0, VOCAB, dtype=jnp.int32)

    out = malconv_forward(tokens, prep)
    out = jax.block_until_ready(out)

    ref = malconv_reference(tokens, params)
    assert out.shape == (BATCH, OUT_SIZE), out.shape
    # Kernel uses bf16 MXU operands (f32 accumulation) vs HIGHEST f32 reference;
    # the tolerance covers the operand-rounding difference.
    assert jnp.allclose(out, ref, atol=2e-2, rtol=2e-2), (out, ref)
    print("KERNEL_OK")
</pallas_src>

<mosaic_0001>
module attributes {stable_mosaic.version = 11 : i64} {
  func.func @malconv_kernel(%arg0: i32, %arg1: i32, %arg2: memref<1x1x64x16xi32, #tpu.memory_space<vmem>>, %arg3: memref<16x384x256xbf16, #tpu.memory_space<vmem>>, %arg4: memref<1x256xf32, #tpu.memory_space<vmem>>, %arg5: memref<128x128xbf16, #tpu.memory_space<vmem>>, %arg6: memref<1x128xf32, #tpu.memory_space<vmem>>, %arg7: memref<128x128xbf16, #tpu.memory_space<vmem>>, %arg8: memref<1x128xf32, #tpu.memory_space<vmem>>, %arg9: memref<8x128xf32, #tpu.memory_space<vmem>>, %arg10: memref<8x128xf32, #tpu.memory_space<vmem>>) attributes {dimension_semantics = [#tpu.dimension_semantics<parallel>, #tpu.dimension_semantics<arbitrary>], iteration_bounds = array<i64: 1, 2>, scalar_prefetch = 0 : i64, scratch_operands = 1 : i64, tpu.core_type = #tpu.core_type<tc>, window_params = [{transform_indices = @transform_0, window_bounds = array<i64: 1, 1, 64, 16>}, {pipeline_mode = #tpu.pipeline_mode<synchronous>, transform_indices = @transform_1, window_bounds = array<i64: 16, 384, 256>}, {pipeline_mode = #tpu.pipeline_mode<synchronous>, transform_indices = @transform_2, window_bounds = array<i64: 1, 256>}, {pipeline_mode = #tpu.pipeline_mode<synchronous>, transform_indices = @transform_3, window_bounds = array<i64: 128, 128>}, {pipeline_mode = #tpu.pipeline_mode<synchronous>, transform_indices = @transform_4, window_bounds = array<i64: 1, 128>}, {pipeline_mode = #tpu.pipeline_mode<synchronous>, transform_indices = @transform_5, window_bounds = array<i64: 128, 128>}, {pipeline_mode = #tpu.pipeline_mode<synchronous>, transform_indices = @transform_6, window_bounds = array<i64: 1, 128>}, {transform_indices = @transform_7, window_bounds = array<i64: 8, 128>}]} {
    %c0_i32 = arith.constant 0 : i32
    %0 = arith.cmpi eq, %arg1, %c0_i32 : i32
    %1 = arith.extui %0 : i1 to i32
    %c0_i32_0 = arith.constant 0 : i32
    %2 = arith.cmpi ne, %1, %c0_i32_0 : i32
    scf.if %2 {
      %cst_94 = arith.constant 0xFF800000 : f32
      %202 = vector.broadcast %cst_94 : f32 to vector<8x128xf32>
      %c0_95 = arith.constant 0 : index
      %c0_96 = arith.constant 0 : index
      %203 = vector.load %arg10[%c0_95, %c0_96] : memref<8x128xf32, #tpu.memory_space<vmem>>, vector<8x128xf32>
      tpu.vector_store %arg10[%c0_95, %c0_96], %202 {strides = array<i32>} : memref<8x128xf32, #tpu.memory_space<vmem>>, vector<8x128xf32>,
    } else {
    }
    %c0 = arith.constant 0 : index
    %c0_1 = arith.constant 0 : index
    %c0_2 = arith.constant 0 : index
    %c0_3 = arith.constant 0 : index
    %3 = vector.load %arg2[%c0, %c0_1, %c0_2, %c0_3] : memref<1x1x64x16xi32, #tpu.memory_space<vmem>>, vector<1x1x64x16xi32>
    %4 = vector.shape_cast %3 : vector<1x1x64x16xi32> to vector<64x16xi32>
    %5 = tpu.iota {dimensions = array<i32: 1>} : vector<64x384xi32>
    %cst = arith.constant 0.000000e+00 : f32
    %6 = vector.broadcast %cst : f32 to vector<64x256xf32>
    %7 = vector.extract_strided_slice %4 {offsets = [0, 0], sizes = [64, 1], strides = [1, 1]} : vector<64x16xi32> to vector<64x1xi32>
    %8 = vector.broadcast %7 : vector<64x1xi32> to vector<64x384xi32>
    %9 = arith.cmpi eq, %8, %5 : vector<64x384xi32>
    %cst_4 = arith.constant 1.000000e+00 : f32
    %cst_5 = arith.constant 0.000000e+00 : f32
    %10 = vector.broadcast %cst_4 : f32 to vector<64x384xf32>
    %11 = vector.broadcast %cst_5 : f32 to vector<64x384xf32>
    %12 = arith.select %9, %10, %11 : vector<64x384xi1>, vector<64x384xf32>
    %13 = arith.truncf %12 : vector<64x384xf32> to vector<64x384xbf16>
    %c0_6 = arith.constant 0 : index
    %c0_7 = arith.constant 0 : index
    %c0_8 = arith.constant 0 : index
    %14 = vector.load %arg3[%c0_6, %c0_7, %c0_8] : memref<16x384x256xbf16, #tpu.memory_space<vmem>>, vector<1x384x256xbf16>
    %15 = vector.shape_cast %14 : vector<1x384x256xbf16> to vector<384x256xbf16>
    %cst_9 = arith.constant dense<0.000000e+00> : vector<64x256xf32>
    %16 = tpu.matmul %13, %15, %cst_9 {dimension_numbers = #tpu.dot_dimension_numbers<[1], [0], [0], [1], [0, 0, 1, 1], [], []>} : vector<64x384xbf16>, vector<384x256xbf16>, vector<64x256xf32> -> vector<64x256xf32>
    %17 = arith.addf %6, %16 : vector<64x256xf32>
    %18 = vector.extract_strided_slice %4 {offsets = [0, 1], sizes = [64, 1], strides = [1, 1]} : vector<64x16xi32> to vector<64x1xi32>
    %19 = vector.broadcast %18 : vector<64x1xi32> to vector<64x384xi32>
    %20 = arith.cmpi eq, %19, %5 : vector<64x384xi32>
    %cst_10 = arith.constant 1.000000e+00 : f32
    %cst_11 = arith.constant 0.000000e+00 : f32
    %21 = vector.broadcast %cst_10 : f32 to vector<64x384xf32>
    %22 = vector.broadcast %cst_11 : f32 to vector<64x384xf32>
    %23 = arith.select %20, %21, %22 : vector<64x384xi1>, vector<64x384xf32>
    %24 = arith.truncf %23 : vector<64x384xf32> to vector<64x384xbf16>
    %c1 = arith.constant 1 : index
    %c0_12 = arith.constant 0 : index
    %c0_13 = arith.constant 0 : index
    %25 = vector.load %arg3[%c1, %c0_12, %c0_13] : memref<16x384x256xbf16, #tpu.memory_space<vmem>>, vector<1x384x256xbf16>
    %26 = vector.shape_cast %25 : vector<1x384x256xbf16> to vector<384x256xbf16>
    %cst_14 = arith.constant dense<0.000000e+00> : vector<64x256xf32>
    %27 = tpu.matmul %24, %26, %cst_14 {dimension_numbers = #tpu.dot_dimension_numbers<[1], [0], [0], [1], [0, 0, 1, 1], [], []>} : vector<64x384xbf16>, vector<384x256xbf16>, vector<64x256xf32> -> vector<64x256xf32>
    %28 = arith.addf %17, %27 : vector<64x256xf32>
    %29 = vector.extract_strided_slice %4 {offsets = [0, 2], sizes = [64, 1], strides = [1, 1]} : vector<64x16xi32> to vector<64x1xi32>
    %30 = vector.broadcast %29 : vector<64x1xi32> to vector<64x384xi32>
    %31 = arith.cmpi eq, %30, %5 : vector<64x384xi32>
    %cst_15 = arith.constant 1.000000e+00 : f32
    %cst_16 = arith.constant 0.000000e+00 : f32
    %32 = vector.broadcast %cst_15 : f32 to vector<64x384xf32>
    %33 = vector.broadcast %cst_16 : f32 to vector<64x384xf32>
    %34 = arith.select %31, %32, %33 : vector<64x384xi1>, vector<64x384xf32>
    %35 = arith.truncf %34 : vector<64x384xf32> to vector<64x384xbf16>
    %c2 = arith.constant 2 : index
    %c0_17 = arith.constant 0 : index
    %c0_18 = arith.constant 0 : index
    %36 = vector.load %arg3[%c2, %c0_17, %c0_18] : memref<16x384x256xbf16, #tpu.memory_space<vmem>>, vector<1x384x256xbf16>
    %37 = vector.shape_cast %36 : vector<1x384x256xbf16> to vector<384x256xbf16>
    %cst_19 = arith.constant dense<0.000000e+00> : vector<64x256xf32>
    %38 = tpu.matmul %35, %37, %cst_19 {dimension_numbers = #tpu.dot_dimension_numbers<[1], [0], [0], [1], [0, 0, 1, 1], [], []>} : vector<64x384xbf16>, vector<384x256xbf16>, vector<64x256xf32> -> vector<64x256xf32>
    %39 = arith.addf %28, %38 : vector<64x256xf32>
    %40 = vector.extract_strided_slice %4 {offsets = [0, 3], sizes = [64, 1], strides = [1, 1]} : vector<64x16xi32> to vector<64x1xi32>
    %41 = vector.broadcast %40 : vector<64x1xi32> to vector<64x384xi32>
    %42 = arith.cmpi eq, %41, %5 : vector<64x384xi32>
    %cst_20 = arith.constant 1.000000e+00 : f32
    %cst_21 = arith.constant 0.000000e+00 : f32
    %43 = vector.broadcast %cst_20 : f32 to vector<64x384xf32>
    %44 = vector.broadcast %cst_21 : f32 to vector<64x384xf32>
    %45 = arith.select %42, %43, %44 : vector<64x384xi1>, vector<64x384xf32>
    %46 = arith.truncf %45 : vector<64x384xf32> to vector<64x384xbf16>
    %c3 = arith.constant 3 : index
    %c0_22 = arith.constant 0 : index
    %c0_23 = arith.constant 0 : index
    %47 = vector.load %arg3[%c3, %c0_22, %c0_23] : memref<16x384x256xbf16, #tpu.memory_space<vmem>>, vector<1x384x256xbf16>
    %48 = vector.shape_cast %47 : vector<1x384x256xbf16> to vector<384x256xbf16>
    %cst_24 = arith.constant dense<0.000000e+00> : vector<64x256xf32>
    %49 = tpu.matmul %46, %48, %cst_24 {dimension_numbers = #tpu.dot_dimension_numbers<[1], [0], [0], [1], [0, 0, 1, 1], [], []>} : vector<64x384xbf16>, vector<384x256xbf16>, vector<64x256xf32> -> vector<64x256xf32>
    %50 = arith.addf %39, %49 : vector<64x256xf32>
    %51 = vector.extract_strided_slice %4 {offsets = [0, 4], sizes = [64, 1], strides = [1, 1]} : vector<64x16xi32> to vector<64x1xi32>
    %52 = vector.broadcast %51 : vector<64x1xi32> to vector<64x384xi32>
    %53 = arith.cmpi eq, %52, %5 : vector<64x384xi32>
    %cst_25 = arith.constant 1.000000e+00 : f32
    %cst_26 = arith.constant 0.000000e+00 : f32
    %54 = vector.broadcast %cst_25 : f32 to vector<64x384xf32>
    %55 = vector.broadcast %cst_26 : f32 to vector<64x384xf32>
    %56 = arith.select %53, %54, %55 : vector<64x384xi1>, vector<64x384xf32>
    %57 = arith.truncf %56 : vector<64x384xf32> to vector<64x384xbf16>
    %c4 = arith.constant 4 : index
    %c0_27 = arith.constant 0 : index
    %c0_28 = arith.constant 0 : index
    %58 = vector.load %arg3[%c4, %c0_27, %c0_28] : memref<16x384x256xbf16, #tpu.memory_space<vmem>>, vector<1x384x256xbf16>
    %59 = vector.shape_cast %58 : vector<1x384x256xbf16> to vector<384x256xbf16>
    %cst_29 = arith.constant dense<0.000000e+00> : vector<64x256xf32>
    %60 = tpu.matmul %57, %59, %cst_29 {dimension_numbers = #tpu.dot_dimension_numbers<[1], [0], [0], [1], [0, 0, 1, 1], [], []>} : vector<64x384xbf16>, vector<384x256xbf16>, vector<64x256xf32> -> vector<64x256xf32>
    %61 = arith.addf %50, %60 : vector<64x256xf32>
    %62 = vector.extract_strided_slice %4 {offsets = [0, 5], sizes = [64, 1], strides = [1, 1]} : vector<64x16xi32> to vector<64x1xi32>
    %63 = vector.broadcast %62 : vector<64x1xi32> to vector<64x384xi32>
    %64 = arith.cmpi eq, %63, %5 : vector<64x384xi32>
    %cst_30 = arith.constant 1.000000e+00 : f32
    %cst_31 = arith.constant 0.000000e+00 : f32
    %65 = vector.broadcast %cst_30 : f32 to vector<64x384xf32>
    %66 = vector.broadcast %cst_31 : f32 to vector<64x384xf32>
    %67 = arith.select %64, %65, %66 : vector<64x384xi1>, vector<64x384xf32>
    %68 = arith.truncf %67 : vector<64x384xf32> to vector<64x384xbf16>
    %c5 = arith.constant 5 : index
    %c0_32 = arith.constant 0 : index
    %c0_33 = arith.constant 0 : index
    %69 = vector.load %arg3[%c5, %c0_32, %c0_33] : memref<16x384x256xbf16, #tpu.memory_space<vmem>>, vector<1x384x256xbf16>
    %70 = vector.shape_cast %69 : vector<1x384x256xbf16> to vector<384x256xbf16>
    %cst_34 = arith.constant dense<0.000000e+00> : vector<64x256xf32>
    %71 = tpu.matmul %68, %70, %cst_34 {dimension_numbers = #tpu.dot_dimension_numbers<[1], [0], [0], [1], [0, 0, 1, 1], [], []>} : vector<64x384xbf16>, vector<384x256xbf16>, vector<64x256xf32> -> vector<64x256xf32>
    %72 = arith.addf %61, %71 : vector<64x256xf32>
    %73 = vector.extract_strided_slice %4 {offsets = [0, 6], sizes = [64, 1], strides = [1, 1]} : vector<64x16xi32> to vector<64x1xi32>
    %74 = vector.broadcast %73 : vector<64x1xi32> to vector<64x384xi32>
    %75 = arith.cmpi eq, %74, %5 : vector<64x384xi32>
    %cst_35 = arith.constant 1.000000e+00 : f32
    %cst_36 = arith.constant 0.000000e+00 : f32
    %76 = vector.broadcast %cst_35 : f32 to vector<64x384xf32>
    %77 = vector.broadcast %cst_36 : f32 to vector<64x384xf32>
    %78 = arith.select %75, %76, %77 : vector<64x384xi1>, vector<64x384xf32>
    %79 = arith.truncf %78 : vector<64x384xf32> to vector<64x384xbf16>
    %c6 = arith.constant 6 : index
    %c0_37 = arith.constant 0 : index
    %c0_38 = arith.constant 0 : index
    %80 = vector.load %arg3[%c6, %c0_37, %c0_38] : memref<16x384x256xbf16, #tpu.memory_space<vmem>>, vector<1x384x256xbf16>
    %81 = vector.shape_cast %80 : vector<1x384x256xbf16> to vector<384x256xbf16>
    %cst_39 = arith.constant dense<0.000000e+00> : vector<64x256xf32>
    %82 = tpu.matmul %79, %81, %cst_39 {dimension_numbers = #tpu.dot_dimension_numbers<[1], [0], [0], [1], [0, 0, 1, 1], [], []>} : vector<64x384xbf16>, vector<384x256xbf16>, vector<64x256xf32> -> vector<64x256xf32>
    %83 = arith.addf %72, %82 : vector<64x256xf32>
    %84 = vector.extract_strided_slice %4 {offsets = [0, 7], sizes = [64, 1], strides = [1, 1]} : vector<64x16xi32> to vector<64x1xi32>
    %85 = vector.broadcast %84 : vector<64x1xi32> to vector<64x384xi32>
    %86 = arith.cmpi eq, %85, %5 : vector<64x384xi32>
    %cst_40 = arith.constant 1.000000e+00 : f32
    %cst_41 = arith.constant 0.000000e+00 : f32
    %87 = vector.broadcast %cst_40 : f32 to vector<64x384xf32>
    %88 = vector.broadcast %cst_41 : f32 to vector<64x384xf32>
    %89 = arith.select %86, %87, %88 : vector<64x384xi1>, vector<64x384xf32>
    %90 = arith.truncf %89 : vector<64x384xf32> to vector<64x384xbf16>
    %c7 = arith.constant 7 : index
    %c0_42 = arith.constant 0 : index
    %c0_43 = arith.constant 0 : index
    %91 = vector.load %arg3[%c7, %c0_42, %c0_43] : memref<16x384x256xbf16, #tpu.memory_space<vmem>>, vector<1x384x256xbf16>
    %92 = vector.shape_cast %91 : vector<1x384x256xbf16> to vector<384x256xbf16>
    %cst_44 = arith.constant dense<0.000000e+00> : vector<64x256xf32>
    %93 = tpu.matmul %90, %92, %cst_44 {dimension_numbers = #tpu.dot_dimension_numbers<[1], [0], [0], [1], [0, 0, 1, 1], [], []>} : vector<64x384xbf16>, vector<384x256xbf16>, vector<64x256xf32> -> vector<64x256xf32>
    %94 = arith.addf %83, %93 : vector<64x256xf32>
    %95 = vector.extract_strided_slice %4 {offsets = [0, 8], sizes = [64, 1], strides = [1, 1]} : vector<64x16xi32> to vector<64x1xi32>
    %96 = vector.broadcast %95 : vector<64x1xi32> to vector<64x384xi32>
    %97 = arith.cmpi eq, %96, %5 : vector<64x384xi32>
    %cst_45 = arith.constant 1.000000e+00 : f32
    %cst_46 = arith.constant 0.000000e+00 : f32
    %98 = vector.broadcast %cst_45 : f32 to vector<64x384xf32>
    %99 = vector.broadcast %cst_46 : f32 to vector<64x384xf32>
    %100 = arith.select %97, %98, %99 : vector<64x384xi1>, vector<64x384xf32>
    %101 = arith.truncf %100 : vector<64x384xf32> to vector<64x384xbf16>
    %c8 = arith.constant 8 : index
    %c0_47 = arith.constant 0 : index
    %c0_48 = arith.constant 0 : index
    %102 = vector.load %arg3[%c8, %c0_47, %c0_48] : memref<16x384x256xbf16, #tpu.memory_space<vmem>>, vector<1x384x256xbf16>
    %103 = vector.shape_cast %102 : vector<1x384x256xbf16> to vector<384x256xbf16>
    %cst_49 = arith.constant dense<0.000000e+00> : vector<64x256xf32>
    %104 = tpu.matmul %101, %103, %cst_49 {dimension_numbers = #tpu.dot_dimension_numbers<[1], [0], [0], [1], [0, 0, 1, 1], [], []>} : vector<64x384xbf16>, vector<384x256xbf16>, vector<64x256xf32> -> vector<64x256xf32>
    %105 = arith.addf %94, %104 : vector<64x256xf32>
    %106 = vector.extract_strided_slice %4 {offsets = [0, 9], sizes = [64, 1], strides = [1, 1]} : vector<64x16xi32> to vector<64x1xi32>
    %107 = vector.broadcast %106 : vector<64x1xi32> to vector<64x384xi32>
    %108 = arith.cmpi eq, %107, %5 : vector<64x384xi32>
    %cst_50 = arith.constant 1.000000e+00 : f32
    %cst_51 = arith.constant 0.000000e+00 : f32
    %109 = vector.broadcast %cst_50 : f32 to vector<64x384xf32>
    %110 = vector.broadcast %cst_51 : f32 to vector<64x384xf32>
    %111 = arith.select %108, %109, %110 : vector<64x384xi1>, vector<64x384xf32>
    %112 = arith.truncf %111 : vector<64x384xf32> to vector<64x384xbf16>
    %c9 = arith.constant 9 : index
    %c0_52 = arith.constant 0 : index
    %c0_53 = arith.constant 0 : index
    %113 = vector.load %arg3[%c9, %c0_52, %c0_53] : memref<16x384x256xbf16, #tpu.memory_space<vmem>>, vector<1x384x256xbf16>
    %114 = vector.shape_cast %113 : vector<1x384x256xbf16> to vector<384x256xbf16>
    %cst_54 = arith.constant dense<0.000000e+00> : vector<64x256xf32>
    %115 = tpu.matmul %112, %114, %cst_54 {dimension_numbers = #tpu.dot_dimension_numbers<[1], [0], [0], [1], [0, 0, 1, 1], [], []>} : vector<64x384xbf16>, vector<384x256xbf16>, vector<64x256xf32> -> vector<64x256xf32>
    %116 = arith.addf %105, %115 : vector<64x256xf32>
    %117 = vector.extract_strided_slice %4 {offsets = [0, 10], sizes = [64, 1], strides = [1, 1]} : vector<64x16xi32> to vector<64x1xi32>
    %118 = vector.broadcast %117 : vector<64x1xi32> to vector<64x384xi32>
    %119 = arith.cmpi eq, %118, %5 : vector<64x384xi32>
    %cst_55 = arith.constant 1.000000e+00 : f32
    %cst_56 = arith.constant 0.000000e+00 : f32
    %120 = vector.broadcast %cst_55 : f32 to vector<64x384xf32>
    %121 = vector.broadcast %cst_56 : f32 to vector<64x384xf32>
    %122 = arith.select %119, %120, %121 : vector<64x384xi1>, vector<64x384xf32>
    %123 = arith.truncf %122 : vector<64x384xf32> to vector<64x384xbf16>
    %c10 = arith.constant 10 : index
    %c0_57 = arith.constant 0 : index
    %c0_58 = arith.constant 0 : index
    %124 = vector.load %arg3[%c10, %c0_57, %c0_58] : memref<16x384x256xbf16, #tpu.memory_space<vmem>>, vector<1x384x256xbf16>
    %125 = vector.shape_cast %124 : vector<1x384x256xbf16> to vector<384x256xbf16>
    %cst_59 = arith.constant dense<0.000000e+00> : vector<64x256xf32>
    %126 = tpu.matmul %123, %125, %cst_59 {dimension_numbers = #tpu.dot_dimension_numbers<[1], [0], [0], [1], [0, 0, 1, 1], [], []>} : vector<64x384xbf16>, vector<384x256xbf16>, vector<64x256xf32> -> vector<64x256xf32>
    %127 = arith.addf %116, %126 : vector<64x256xf32>
    %128 = vector.extract_strided_slice %4 {offsets = [0, 11], sizes = [64, 1], strides = [1, 1]} : vector<64x16xi32> to vector<64x1xi32>
    %129 = vector.broadcast %128 : vector<64x1xi32> to vector<64x384xi32>
    %130 = arith.cmpi eq, %129, %5 : vector<64x384xi32>
    %cst_60 = arith.constant 1.000000e+00 : f32
    %cst_61 = arith.constant 0.000000e+00 : f32
    %131 = vector.broadcast %cst_60 : f32 to vector<64x384xf32>
    %132 = vector.broadcast %cst_61 : f32 to vector<64x384xf32>
    %133 = arith.select %130, %131, %132 : vector<64x384xi1>, vector<64x384xf32>
    %134 = arith.truncf %133 : vector<64x384xf32> to vector<64x384xbf16>
    %c11 = arith.constant 11 : index
    %c0_62 = arith.constant 0 : index
    %c0_63 = arith.constant 0 : index
    %135 = vector.load %arg3[%c11, %c0_62, %c0_63] : memref<16x384x256xbf16, #tpu.memory_space<vmem>>, vector<1x384x256xbf16>
    %136 = vector.shape_cast %135 : vector<1x384x256xbf16> to vector<384x256xbf16>
    %cst_64 = arith.constant dense<0.000000e+00> : vector<64x256xf32>
    %137 = tpu.matmul %134, %136, %cst_64 {dimension_numbers = #tpu.dot_dimension_numbers<[1], [0], [0], [1], [0, 0, 1, 1], [], []>} : vector<64x384xbf16>, vector<384x256xbf16>, vector<64x256xf32> -> vector<64x256xf32>
    %138 = arith.addf %127, %137 : vector<64x256xf32>
    %139 = vector.extract_strided_slice %4 {offsets = [0, 12], sizes = [64, 1], strides = [1, 1]} : vector<64x16xi32> to vector<64x1xi32>
    %140 = vector.broadcast %139 : vector<64x1xi32> to vector<64x384xi32>
    %141 = arith.cmpi eq, %140, %5 : vector<64x384xi32>
    %cst_65 = arith.constant 1.000000e+00 : f32
    %cst_66 = arith.constant 0.000000e+00 : f32
    %142 = vector.broadcast %cst_65 : f32 to vector<64x384xf32>
    %143 = vector.broadcast %cst_66 : f32 to vector<64x384xf32>
    %144 = arith.select %141, %142, %143 : vector<64x384xi1>, vector<64x384xf32>
    %145 = arith.truncf %144 : vector<64x384xf32> to vector<64x384xbf16>
    %c12 = arith.constant 12 : index
    %c0_67 = arith.constant 0 : index
    %c0_68 = arith.constant 0 : index
    %146 = vector.load %arg3[%c12, %c0_67, %c0_68] : memref<16x384x256xbf16, #tpu.memory_space<vmem>>, vector<1x384x256xbf16>
    %147 = vector.shape_cast %146 : vector<1x384x256xbf16> to vector<384x256xbf16>
    %cst_69 = arith.constant dense<0.000000e+00> : vector<64x256xf32>
    %148 = tpu.matmul %145, %147, %cst_69 {dimension_numbers = #tpu.dot_dimension_numbers<[1], [0], [0], [1], [0, 0, 1, 1], [], []>} : vector<64x384xbf16>, vector<384x256xbf16>, vector<64x256xf32> -> vector<64x256xf32>
    %149 = arith.addf %138, %148 : vector<64x256xf32>
    %150 = vector.extract_strided_slice %4 {offsets = [0, 13], sizes = [64, 1], strides = [1, 1]} : vector<64x16xi32> to vector<64x1xi32>
    %151 = vector.broadcast %150 : vector<64x1xi32> to vector<64x384xi32>
    %152 = arith.cmpi eq, %151, %5 : vector<64x384xi32>
    %cst_70 = arith.constant 1.000000e+00 : f32
    %cst_71 = arith.constant 0.000000e+00 : f32
    %153 = vector.broadcast %cst_70 : f32 to vector<64x384xf32>
    %154 = vector.broadcast %cst_71 : f32 to vector<64x384xf32>
    %155 = arith.select %152, %153, %154 : vector<64x384xi1>, vector<64x384xf32>
    %156 = arith.truncf %155 : vector<64x384xf32> to vector<64x384xbf16>
    %c13 = arith.constant 13 : index
    %c0_72 = arith.constant 0 : index
    %c0_73 = arith.constant 0 : index
    %157 = vector.load %arg3[%c13, %c0_72, %c0_73] : memref<16x384x256xbf16, #tpu.memory_space<vmem>>, vector<1x384x256xbf16>
    %158 = vector.shape_cast %157 : vector<1x384x256xbf16> to vector<384x256xbf16>
    %cst_74 = arith.constant dense<0.000000e+00> : vector<64x256xf32>
    %159 = tpu.matmul %156, %158, %cst_74 {dimension_numbers = #tpu.dot_dimension_numbers<[1], [0], [0], [1], [0, 0, 1, 1], [], []>} : vector<64x384xbf16>, vector<384x256xbf16>, vector<64x256xf32> -> vector<64x256xf32>
    %160 = arith.addf %149, %159 : vector<64x256xf32>
    %161 = vector.extract_strided_slice %4 {offsets = [0, 14], sizes = [64, 1], strides = [1, 1]} : vector<64x16xi32> to vector<64x1xi32>
    %162 = vector.broadcast %161 : vector<64x1xi32> to vector<64x384xi32>
    %163 = arith.cmpi eq, %162, %5 : vector<64x384xi32>
    %cst_75 = arith.constant 1.000000e+00 : f32
    %cst_76 = arith.constant 0.000000e+00 : f32
    %164 = vector.broadcast %cst_75 : f32 to vector<64x384xf32>
    %165 = vector.broadcast %cst_76 : f32 to vector<64x384xf32>
    %166 = arith.select %163, %164, %165 : vector<64x384xi1>, vector<64x384xf32>
    %167 = arith.truncf %166 : vector<64x384xf32> to vector<64x384xbf16>
    %c14 = arith.constant 14 : index
    %c0_77 = arith.constant 0 : index
    %c0_78 = arith.constant 0 : index
    %168 = vector.load %arg3[%c14, %c0_77, %c0_78] : memref<16x384x256xbf16, #tpu.memory_space<vmem>>, vector<1x384x256xbf16>
    %169 = vector.shape_cast %168 : vector<1x384x256xbf16> to vector<384x256xbf16>
    %cst_79 = arith.constant dense<0.000000e+00> : vector<64x256xf32>
    %170 = tpu.matmul %167, %169, %cst_79 {dimension_numbers = #tpu.dot_dimension_numbers<[1], [0], [0], [1], [0, 0, 1, 1], [], []>} : vector<64x384xbf16>, vector<384x256xbf16>, vector<64x256xf32> -> vector<64x256xf32>
    %171 = arith.addf %160, %170 : vector<64x256xf32>
    %172 = vector.extract_strided_slice %4 {offsets = [0, 15], sizes = [64, 1], strides = [1, 1]} : vector<64x16xi32> to vector<64x1xi32>
    %173 = vector.broadcast %172 : vector<64x1xi32> to vector<64x384xi32>
    %174 = arith.cmpi eq, %173, %5 : vector<64x384xi32>
    %cst_80 = arith.constant 1.000000e+00 : f32
    %cst_81 = arith.constant 0.000000e+00 : f32
    %175 = vector.broadcast %cst_80 : f32 to vector<64x384xf32>
    %176 = vector.broadcast %cst_81 : f32 to vector<64x384xf32>
    %177 = arith.select %174, %175, %176 : vector<64x384xi1>, vector<64x384xf32>
    %178 = arith.truncf %177 : vector<64x384xf32> to vector<64x384xbf16>
    %c15 = arith.constant 15 : index
    %c0_82 = arith.constant 0 : index
    %c0_83 = arith.constant 0 : index
    %179 = vector.load %arg3[%c15, %c0_82, %c0_83] : memref<16x384x256xbf16, #tpu.memory_space<vmem>>, vector<1x384x256xbf16>
    %180 = vector.shape_cast %179 : vector<1x384x256xbf16> to vector<384x256xbf16>
    %cst_84 = arith.constant dense<0.000000e+00> : vector<64x256xf32>
    %181 = tpu.matmul %178, %180, %cst_84 {dimension_numbers = #tpu.dot_dimension_numbers<[1], [0], [0], [1], [0, 0, 1, 1], [], []>} : vector<64x384xbf16>, vector<384x256xbf16>, vector<64x256xf32> -> vector<64x256xf32>
    %182 = arith.addf %171, %181 : vector<64x256xf32>
    %c0_85 = arith.constant 0 : index
    %c0_86 = arith.constant 0 : index
    %183 = vector.load %arg4[%c0_85, %c0_86] : memref<1x256xf32, #tpu.memory_space<vmem>>, vector<1x256xf32>
    %184 = vector.broadcast %183 : vector<1x256xf32> to vector<64x256xf32>
    %185 = arith.addf %182, %184 : vector<64x256xf32>
    %186 = vector.extract_strided_slice %185 {offsets = [0, 0], sizes = [64, 128], strides = [1, 1]} : vector<64x256xf32> to vector<64x128xf32>
    %187 = vector.extract_strided_slice %185 {offsets = [0, 128], sizes = [64, 128], strides = [1, 1]} : vector<64x256xf32> to vector<64x128xf32>
    %188 = arith.negf %187 : vector<64x128xf32>
    %189 = math.exp %188 : vector<64x128xf32>
    %cst_87 = arith.constant 1.000000e+00 : f32
    %190 = vector.broadcast %cst_87 : f32 to vector<64x128xf32>
    %191 = arith.addf %190, %189 : vector<64x128xf32>
    %192 = arith.divf %190, %191 : vector<64x128xf32>
    %193 = arith.mulf %186, %192 : vector<64x128xf32>
    %194 = vector.shape_cast %193 : vector<64x128xf32> to vector<8x8x128xf32>
    %c0_88 = arith.constant 0 : index
    %c0_89 = arith.constant 0 : index
    %195 = vector.load %arg10[%c0_88, %c0_89] : memref<8x128xf32, #tpu.memory_space<vmem>>, vector<8x128xf32>
    %cst_90 = arith.constant dense<0xFF800000> : vector<8x128xf32>
    %196 = vector.multi_reduction <maximumf>, %194, %cst_90 [1] : vector<8x8x128xf32> to vector<8x128xf32>
    %197 = arith.maximumf %195, %196 : vector<8x128xf32>
    %c0_91 = arith.constant 0 : index
    %c0_92 = arith.constant 0 : index
    %198 = vector.load %arg10[%c0_91, %c0_92] : memref<8x128xf32, #tpu.memory_space<vmem>>, vector<8x128xf32>
    tpu.vector_store %arg10[%c0_91, %c0_92], %197 {strides = array<i32>} : memref<8x128xf32, #tpu.memory_space<vmem>>, vector<8x128xf32>,
    %c1_i32 = arith.constant 1 : i32
    %199 = arith.cmpi eq, %arg1, %c1_i32 : i32
    %200 = arith.extui %199 : i1 to i32
    %c0_i32_93 = arith.constant 0 : i32
    %201 = arith.cmpi ne, %200, %c0_i32_93 : i32
    scf.if %201 {
      %c0_94 = arith.constant 0 : index
      %c0_95 = arith.constant 0 : index
      %202 = vector.load %arg10[%c0_94, %c0_95] : memref<8x128xf32, #tpu.memory_space<vmem>>, vector<8x128xf32>
      %203 = arith.truncf %202 : vector<8x128xf32> to vector<8x128xbf16>
      %c0_96 = arith.constant 0 : index
      %c0_97 = arith.constant 0 : index
      %204 = vector.load %arg5[%c0_96, %c0_97] : memref<128x128xbf16, #tpu.memory_space<vmem>>, vector<128x128xbf16>
      %cst_98 = arith.constant dense<0.000000e+00> : vector<8x128xf32>
      %205 = tpu.matmul %203, %204, %cst_98 {dimension_numbers = #tpu.dot_dimension_numbers<[1], [0], [0], [1], [0, 0, 1, 1], [], []>} : vector<8x128xbf16>, vector<128x128xbf16>, vector<8x128xf32> -> vector<8x128xf32>
      %c0_99 = arith.constant 0 : index
      %c0_100 = arith.constant 0 : index
      %206 = vector.load %arg6[%c0_99, %c0_100] : memref<1x128xf32, #tpu.memory_space<vmem>>, vector<1x128xf32>
      %207 = vector.broadcast %206 : vector<1x128xf32> to vector<8x128xf32>
      %208 = arith.addf %205, %207 : vector<8x128xf32>
      %cst_101 = arith.constant 0.000000e+00 : f32
      %209 = vector.broadcast %cst_101 : f32 to vector<8x128xf32>
      %210 = arith.maximumf %208, %209 : vector<8x128xf32>
      %211 = arith.truncf %210 : vector<8x128xf32> to vector<8x128xbf16>
      %c0_102 = arith.constant 0 : index
      %c0_103 = arith.constant 0 : index
      %212 = vector.load %arg7[%c0_102, %c0_103] : memref<128x128xbf16, #tpu.memory_space<vmem>>, vector<128x128xbf16>
      %cst_104 = arith.constant dense<0.000000e+00> : vector<8x128xf32>
      %213 = tpu.matmul %211, %212, %cst_104 {dimension_numbers = #tpu.dot_dimension_numbers<[1], [0], [0], [1], [0, 0, 1, 1], [], []>} : vector<8x128xbf16>, vector<128x128xbf16>, vector<8x128xf32> -> vector<8x128xf32>
      %c0_105 = arith.constant 0 : index
      %c0_106 = arith.constant 0 : index
      %214 = vector.load %arg8[%c0_105, %c0_106] : memref<1x128xf32, #tpu.memory_space<vmem>>, vector<1x128xf32>
      %215 = vector.broadcast %214 : vector<1x128xf32> to vector<8x128xf32>
      %216 = arith.addf %213, %215 : vector<8x128xf32>
      %c0_107 = arith.constant 0 : index
      %c0_108 = arith.constant 0 : index
      %217 = vector.load %arg9[%c0_107, %c0_108] : memref<8x128xf32, #tpu.memory_space<vmem>>, vector<8x128xf32>
      tpu.vector_store %arg9[%c0_107, %c0_108], %216 {strides = array<i32>} : memref<8x128xf32, #tpu.memory_space<vmem>>, vector<8x128xf32>,
    } else {
    }
    return
  }
  func.func @transform_0(%arg0: i32, %arg1: i32) -> (i32, i32, i32, i32) {
    %c0_i32 = arith.constant 0 : i32
    %c0_i32_0 = arith.constant 0 : i32
    %c0_i32_1 = arith.constant 0 : i32
    return %arg0, %arg1, %c0_i32, %c0_i32_0 : i32, i32, i32, i32
  }
  func.func @transform_1(%arg0: i32, %arg1: i32) -> (i32, i32, i32) {
    %c0_i32 = arith.constant 0 : i32
    %c0_i32_0 = arith.constant 0 : i32
    %c0_i32_1 = arith.constant 0 : i32
    %c0_i32_2 = arith.constant 0 : i32
    return %c0_i32, %c0_i32_0, %c0_i32_1 : i32, i32, i32
  }
  func.func @transform_2(%arg0: i32, %arg1: i32) -> (i32, i32) {
    %c0_i32 = arith.constant 0 : i32
    %c0_i32_0 = arith.constant 0 : i32
    %c0_i32_1 = arith.constant 0 : i32
    return %c0_i32, %c0_i32_0 : i32, i32
  }
  func.func @transform_3(%arg0: i32, %arg1: i32) -> (i32, i32) {
    %c0_i32 = arith.constant 0 : i32
    %c0_i32_0 = arith.constant 0 : i32
    %c0_i32_1 = arith.constant 0 : i32
    return %c0_i32, %c0_i32_0 : i32, i32
  }
  func.func @transform_4(%arg0: i32, %arg1: i32) -> (i32, i32) {
    %c0_i32 = arith.constant 0 : i32
    %c0_i32_0 = arith.constant 0 : i32
    %c0_i32_1 = arith.constant 0 : i32
    return %c0_i32, %c0_i32_0 : i32, i32
  }
  func.func @transform_5(%arg0: i32, %arg1: i32) -> (i32, i32) {
    %c0_i32 = arith.constant 0 : i32
    %c0_i32_0 = arith.constant 0 : i32
    %c0_i32_1 = arith.constant 0 : i32
    return %c0_i32, %c0_i32_0 : i32, i32
  }
  func.func @transform_6(%arg0: i32, %arg1: i32) -> (i32, i32) {
    %c0_i32 = arith.constant 0 : i32
    %c0_i32_0 = arith.constant 0 : i32
    %c0_i32_1 = arith.constant 0 : i32
    return %c0_i32, %c0_i32_0 : i32, i32
  }
  func.func @transform_7(%arg0: i32, %arg1: i32) -> (i32, i32) {
    %c0_i32 = arith.constant 0 : i32
    %c0_i32_0 = arith.constant 0 : i32
    return %arg0, %c0_i32 : i32, i32
  }
}

</mosaic_0001>

<llo_original>
// kernel: tpu_custom_call.1
$region0: #{tpu_custom_call.1}
  #allocation0 [shape = 'u32[]', space=smem, size = 0x4, offset = 0x4, fixed_abs, tag = 'smem constant byte address 0x4 - core index']
  #allocation1 [shape = 'u32[144,128]{1,0:T(1,128)}', space=vmem, size = 0x12000, scoped, tag = 'internal scratch']
  #allocation2 [shape = 'f32[8,128]{1,0:T(8,128)}', space=vmem, size = 0x1000, scoped, tag = 'scratch operand']
  %s0 = inlined_call_operand.vmem [shape: s32[1,2,64,16], index: 0, kind: input, shape index: {}]
  %s1 = inlined_call_operand.hbm [shape: bf16[16,384,256], index: 1, kind: input, shape index: {}]
  %s2 = inlined_call_operand.hbm [shape: f32[1,256], index: 2, kind: input, shape index: {}]
  %s3 = inlined_call_operand.hbm [shape: bf16[128,128], index: 3, kind: input, shape index: {}]
  %s4 = inlined_call_operand.hbm [shape: f32[1,128], index: 4, kind: input, shape index: {}]
  %s5 = inlined_call_operand.hbm [shape: bf16[128,128], index: 5, kind: input, shape index: {}]
  %s6 = inlined_call_operand.hbm [shape: f32[1,128], index: 6, kind: input, shape index: {}]
  %s7 = inlined_call_operand.hbm [shape: f32[8,128], index: 7, kind: output, shape index: {}]
  %s8 = sld [smem:[#allocation0]]
  $region93: #{tpu_custom_call.1} parent=0
    _
  %s10 = ssub.s32 1, %s8
  %s11 = scalar_select 0, %s10, %s8
  $region1: #{tpu_custom_call.1} parent=0
    #allocation3 [shape = 'u8[3145728]{0}', space=vmem, size = 0x300000, scoped, tag = 'input window, operand 1, single buffered']
    #allocation4 [shape = 's32[2]{0}', space=sflag, size = 0x8, scoped, tag = 'scoped memory for tpu_custom_call.1']
    #allocation5 [shape = 's32[2]{0}', space=sflag, size = 0x8, scoped, tag = 'scoped memory for tpu_custom_call.1']
    #allocation6 [shape = 'u8[1024]{0}', space=vmem, size = 0x400, scoped, tag = 'input window, operand 2, single buffered']
    #allocation7 [shape = 's32[1]{0}', space=sflag, size = 0x4, scoped, tag = 'scoped memory for tpu_custom_call.1']
    #allocation8 [shape = 'u8[32768]{0}', space=vmem, size = 0x8000, scoped, tag = 'input window, operand 3, single buffered']
    #allocation9 [shape = 'u8[512]{0}', space=vmem, size = 0x400, scoped, tag = 'input window, operand 4, single buffered']
    #allocation10 [shape = 's32[1]{0}', space=sflag, size = 0x4, scoped, tag = 'scoped memory for tpu_custom_call.1']
    #allocation11 [shape = 'u8[32768]{0}', space=vmem, size = 0x8000, scoped, tag = 'input window, operand 5, single buffered']
    #allocation12 [shape = 'u8[512]{0}', space=vmem, size = 0x400, scoped, tag = 'input window, operand 6, single buffered']
    #allocation13 [shape = 's32[1]{0}', space=sflag, size = 0x4, scoped, tag = 'scoped memory for tpu_custom_call.1']
    #allocation14 [shape = 'u8[4096]{0}', space=vmem, size = 0x1000, scoped, tag = 'output window, operand 0, single buffered']
    %12 = vsyncpa [#allocation4], 0
    %13 = vsyncpa [#allocation7], 0
    %14 = vsyncpa [#allocation10], 0
    %15 = vsyncpa [#allocation13], 0
    %16 = vsyncpa [#allocation5], 0
    loop: start=0, step=1, limit=4
    $region2: #{tpu_custom_call.1} parent=1 // loop_pre_header
      _
    $region3: #{tpu_custom_call.1} parent=1 // loop_header
      %s18 = sphi 0, %s22
      %p19 = scmp.ge.s32.totalorder %s18, 4
      %s25 = sphi 0, %s37
      %s26 = sphi 0, %s33
      %s27 = sphi 0, %s25
      %s28 = sphi 0, %s26
      %s29 = sphi 0, %s27
      %s30 = sphi 0, %s28
      %s42 = sphi 0, %s44
      %s45 = sphi 0, %s42
      %s46 = sphi 0, %s45
      %s62 = sphi 0, %s46
      %s66 = sphi 0, %s66
      %s68 = sphi 0, %s66
      %s69 = sphi 0, %s68
      %s83 = sphi 0, %s69
      %s87 = sphi 0, %s87
      %s89 = sphi 0, %s87
      %s90 = sphi 0, %s89
      %s104 = sphi 0, %s90
      %s108 = sphi 0, %s108
      %s110 = sphi 0, %s108
      %s111 = sphi 0, %s110
      %s125 = sphi 0, %s111
      %s129 = sphi 0, %s129
      %s131 = sphi 0, %s129
      %s132 = sphi 0, %s131
      %s146 = sphi 0, %s132
      %s150 = sphi 0, %s150
      %s152 = sphi 0, %s150
      %s153 = sphi 0, %s152
      %s167 = sphi 0, %s153
      %s171 = sphi 0, %s171
      %s173 = sphi 0, %s171
      %s174 = sphi 0, %s173
      %s188 = sphi 0, %s174
      %s194 = sphi 0, %s196
      %s197 = sphi 0, %s194
      %s198 = sphi 0, %s197
      %s214 = sphi 0, %s198
    $region4: #{tpu_custom_call.1} parent=1 // loop_header_branch
      %21 = sbr.rel (%p19) target = $region8
    $region5: #{tpu_custom_call.1} parent=1 // loop_body
      %s23 = ssub.s32 %s18, 1
      %s24 = ssub.s32 %s18, 2
      %s31 = sadd.s32 1, %s26
      %p32 = scmp.ge.s32.totalorder %s31, 2
      %s33 = scalar_select %p32, 0, %s31
      %s34 = sadd.s32 1, %s25
      %s35 = scalar_select %p32, %s34, %s25
      %p36 = scmp.ge.s32.totalorder %s35, 1
      %s37 = scalar_select %p36, 0, %s35
      %s38 = ssub.s32 %s25, %s37
      %s39 = ssub.s32 %s26, %s33
      %s40 = sor.u32 %s38, %s39
      %p41 = scmp.eq.s32.totalorder %s40, 0
      %s43 = sadd.s32 %s42, 1
      %s44 = scalar_select %p41, %s42, %s43
      %p47 = pneg %p41
      %p48 = scmp.eq.s32.totalorder %s18, 1
      %p49 = por %p47, %p48
      %p50 = scmp.ne.s32.totalorder %s42, %s45
      %p51 = scmp.eq.s32.totalorder %s18, 0
      %p52 = por %p50, %p51
      %p53 = scmp.ne.s32.totalorder %s42, %s45
      %p54 = scmp.eq.s32.totalorder %s23, 1
      %p55 = por %p53, %p54
      %p56 = scmp.ne.s32.totalorder %s45, %s46
      %p57 = scmp.eq.s32.totalorder %s23, 0
      %p58 = por %p56, %p57
      %p59 = scmp.ne.s32.totalorder %s45, %s46
      %p60 = scmp.eq.s32.totalorder %s24, 1
      %p61 = por %p59, %p60
      %p63 = scmp.ne.s32.totalorder %s46, %s62
      %p64 = scmp.eq.s32.totalorder %s24, 0
      %p65 = por %p63, %p64
      %s67 = sadd.s32 %s66, 1
      %p70 = scmp.eq.s32.totalorder %s18, 1
      %p71 = scmp.ne.s32.totalorder %s66, %s68
      %p72 = scmp.eq.s32.totalorder %s18, 0
      %p73 = por %p71, %p72
      %p74 = scmp.ne.s32.totalorder %s66, %s68
      %p75 = scmp.eq.s32.totalorder %s23, 1
      %p76 = por %p74, %p75
      %p77 = scmp.ne.s32.totalorder %s68, %s69
      %p78 = scmp.eq.s32.totalorder %s23, 0
      %p79 = por %p77, %p78
      %p80 = scmp.ne.s32.totalorder %s68, %s69
      %p81 = scmp.eq.s32.totalorder %s24, 1
      %p82 = por %p80, %p81
      %p84 = scmp.ne.s32.totalorder %s69, %s83
      %p85 = scmp.eq.s32.totalorder %s24, 0
      %p86 = por %p84, %p85
      %s88 = sadd.s32 %s87, 1
      %p91 = scmp.eq.s32.totalorder %s18, 1
      %p92 = scmp.ne.s32.totalorder %s87, %s89
      %p93 = scmp.eq.s32.totalorder %s18, 0
      %p94 = por %p92, %p93
      %p95 = scmp.ne.s32.totalorder %s87, %s89
      %p96 = scmp.eq.s32.totalorder %s23, 1
      %p97 = por %p95, %p96
      %p98 = scmp.ne.s32.totalorder %s89, %s90
      %p99 = scmp.eq.s32.totalorder %s23, 0
      %p100 = por %p98, %p99
      %p101 = scmp.ne.s32.totalorder %s89, %s90
      %p102 = scmp.eq.s32.totalorder %s24, 1
      %p103 = por %p101, %p102
      %p105 = scmp.ne.s32.totalorder %s90, %s104
      %p106 = scmp.eq.s32.totalorder %s24, 0
      %p107 = por %p105, %p106
      %s109 = sadd.s32 %s108, 1
      %p112 = scmp.eq.s32.totalorder %s18, 1
      %p113 = scmp.ne.s32.totalorder %s108, %s110
      %p114 = scmp.eq.s32.totalorder %s18, 0
      %p115 = por %p113, %p114
      %p116 = scmp.ne.s32.totalorder %s108, %s110
      %p117 = scmp.eq.s32.totalorder %s23, 1
      %p118 = por %p116, %p117
      %p119 = scmp.ne.s32.totalorder %s110, %s111
      %p120 = scmp.eq.s32.totalorder %s23, 0
      %p121 = por %p119, %p120
      %p122 = scmp.ne.s32.totalorder %s110, %s111
      %p123 = scmp.eq.s32.totalorder %s24, 1
      %p124 = por %p122, %p123
      %p126 = scmp.ne.s32.totalorder %s111, %s125
      %p127 = scmp.eq.s32.totalorder %s24, 0
      %p128 = por %p126, %p127
      %s130 = sadd.s32 %s129, 1
      %p133 = scmp.eq.s32.totalorder %s18, 1
      %p134 = scmp.ne.s32.totalorder %s129, %s131
      %p135 = scmp.eq.s32.totalorder %s18, 0
      %p136 = por %p134, %p135
      %p137 = scmp.ne.s32.totalorder %s129, %s131
      %p138 = scmp.eq.s32.totalorder %s23, 1
      %p139 = por %p137, %p138
      %p140 = scmp.ne.s32.totalorder %s131, %s132
      %p141 = scmp.eq.s32.totalorder %s23, 0
      %p142 = por %p140, %p141
      %p143 = scmp.ne.s32.totalorder %s131, %s132
      %p144 = scmp.eq.s32.totalorder %s24, 1
      %p145 = por %p143, %p144
      %p147 = scmp.ne.s32.totalorder %s132, %s146
      %p148 = scmp.eq.s32.totalorder %s24, 0
      %p149 = por %p147, %p148
      %s151 = sadd.s32 %s150, 1
      %p154 = scmp.eq.s32.totalorder %s18, 1
      %p155 = scmp.ne.s32.totalorder %s150, %s152
      %p156 = scmp.eq.s32.totalorder %s18, 0
      %p157 = por %p155, %p156
      %p158 = scmp.ne.s32.totalorder %s150, %s152
      %p159 = scmp.eq.s32.totalorder %s23, 1
      %p160 = por %p158, %p159
      %p161 = scmp.ne.s32.totalorder %s152, %s153
      %p162 = scmp.eq.s32.totalorder %s23, 0
      %p163 = por %p161, %p162
      %p164 = scmp.ne.s32.totalorder %s152, %s153
      %p165 = scmp.eq.s32.totalorder %s24, 1
      %p166 = por %p164, %p165
      %p168 = scmp.ne.s32.totalorder %s153, %s167
      %p169 = scmp.eq.s32.totalorder %s24, 0
      %p170 = por %p168, %p169
      %s172 = sadd.s32 %s171, 1
      %p175 = scmp.eq.s32.totalorder %s18, 1
      %p176 = scmp.ne.s32.totalorder %s171, %s173
      %p177 = scmp.eq.s32.totalorder %s18, 0
      %p178 = por %p176, %p177
      %p179 = scmp.ne.s32.totalorder %s171, %s173
      %p180 = scmp.eq.s32.totalorder %s23, 1
      %p181 = por %p179, %p180
      %p182 = scmp.ne.s32.totalorder %s173, %s174
      %p183 = scmp.eq.s32.totalorder %s23, 0
      %p184 = por %p182, %p183
      %p185 = scmp.ne.s32.totalorder %s173, %s174
      %p186 = scmp.eq.s32.totalorder %s24, 1
      %p187 = por %p185, %p186
      %p189 = scmp.ne.s32.totalorder %s174, %s188
      %p190 = scmp.eq.s32.totalorder %s24, 0
      %p191 = por %p189, %p190
      %s192 = ssub.s32 %s25, %s37
      %p193 = scmp.eq.s32.totalorder %s192, 0
      %s195 = sadd.s32 %s194, 1
      %s196 = scalar_select %p193, %s194, %s195
      %p199 = pneg %p193
      %p200 = scmp.eq.s32.totalorder %s18, 1
      %p201 = por %p199, %p200
      %p202 = scmp.ne.s32.totalorder %s194, %s197
      %p203 = scmp.eq.s32.totalorder %s18, 0
      %p204 = por %p202, %p203
      %p205 = scmp.ne.s32.totalorder %s194, %s197
      %p206 = scmp.eq.s32.totalorder %s23, 1
      %p207 = por %p205, %p206
      %p208 = scmp.ne.s32.totalorder %s197, %s198
      %p209 = scmp.eq.s32.totalorder %s23, 0
      %p210 = por %p208, %p209
      %p211 = scmp.ne.s32.totalorder %s197, %s198
      %p212 = scmp.eq.s32.totalorder %s24, 1
      %p213 = por %p211, %p212
      %p215 = scmp.ne.s32.totalorder %s198, %s214
      %p216 = scmp.eq.s32.totalorder %s24, 0
      %p217 = por %p215, %p216
      %p218 = scmp.le.s32.totalorder 1, %s18
      %p219 = scmp.lt.s32.totalorder %s18, 3
      %p220 = pnand %p218, %p219
      %p221 = pneg %p220
      // Predicated region
      $region9: #{tpu_custom_call.1} parent=5 // pred_check
        _
      $region10: #{tpu_custom_call.1} parent=5 // pred_check_branch
        %223 = sbr.rel (%p220) target = $region12
      $region11: #{tpu_custom_call.1} parent=5 // pred_region
        %s224 = ssub.s32 %s18, 1
        // Predicated region
        $region13: #{tpu_custom_call.1} parent=11 // pred_check
          %p225 = pneg %p79
        $region14: #{tpu_custom_call.1} parent=11 // pred_check_branch
          %227 = sbr.rel (%p225) target = $region16
        $region15: #{tpu_custom_call.1} parent=11 // pred_region
          %s229 = ssub.s32 98304, 98304
          %230 = vsyncadd [#allocation4], %s229
          %s231 = sshll.u32 [#allocation3], 4
          %s232 = int_to_ptr.vmem [resolvable:$true] %s231
          %237 = dma.hbm_to_vmem [thread:$0]  %s1, 98304, %s232, [#allocation4], 128, 128, 8
        $region16: #{tpu_custom_call.1} parent=11 // pred_fallthru
          _
        // Predicated region
        $region17: #{tpu_custom_call.1} parent=11 // pred_check
          %p238 = pneg %p100
        $region18: #{tpu_custom_call.1} parent=11 // pred_check_branch
          %240 = sbr.rel (%p238) target = $region20
        $region19: #{tpu_custom_call.1} parent=11 // pred_region
          %s242 = ssub.s32 32, 32
          %243 = vsyncadd [#allocation7], %s242
          %s245 = sshll.u32 [#allocation6], 4
          %s246 = int_to_ptr.vmem [resolvable:$true] %s245
          %248 = dma.hbm_to_vmem [thread:$0]  %s2, 32, %s246, [#allocation7]
        $region20: #{tpu_custom_call.1} parent=11 // pred_fallthru
          _
        // Predicated region
        $region21: #{tpu_custom_call.1} parent=11 // pred_check
          %p249 = pneg %p121
        $region22: #{tpu_custom_call.1} parent=11 // pred_check_branch
          %251 = sbr.rel (%p249) target = $region24
        $region23: #{tpu_custom_call.1} parent=11 // pred_region
          %s253 = ssub.s32 1024, 1024
          %254 = vsyncadd [#allocation7], %s253
          %s255 = sshll.u32 [#allocation8], 4
          %s256 = int_to_ptr.vmem [resolvable:$true] %s255
          %261 = dma.hbm_to_vmem [thread:$0]  %s3, 1024, %s256, [#allocation7], 64, 64, 4
        $region24: #{tpu_custom_call.1} parent=11 // pred_fallthru
          _
        // Predicated region
        $region25: #{tpu_custom_call.1} parent=11 // pred_check
          %p262 = pneg %p142
        $region26: #{tpu_custom_call.1} parent=11 // pred_check_branch
          %264 = sbr.rel (%p262) target = $region28
        $region27: #{tpu_custom_call.1} parent=11 // pred_region
          %s266 = ssub.s32 16, 16
          %267 = vsyncadd [#allocation10], %s266
          %s269 = sshll.u32 [#allocation9], 4
          %s270 = int_to_ptr.vmem [resolvable:$true] %s269
          %272 = dma.hbm_to_vmem [thread:$0]  %s4, 16, %s270, [#allocation10]
        $region28: #{tpu_custom_call.1} parent=11 // pred_fallthru
          _
        // Predicated region
        $region29: #{tpu_custom_call.1} parent=11 // pred_check
          %p273 = pneg %p163
        $region30: #{tpu_custom_call.1} parent=11 // pred_check_branch
          %275 = sbr.rel (%p273) target = $region32
        $region31: #{tpu_custom_call.1} parent=11 // pred_region
          %s277 = ssub.s32 1024, 1024
          %278 = vsyncadd [#allocation10], %s277
          %s279 = sshll.u32 [#allocation11], 4
          %s280 = int_to_ptr.vmem [resolvable:$true] %s279
          %285 = dma.hbm_to_vmem [thread:$0]  %s5, 1024, %s280, [#allocation10], 64, 64, 4
        $region32: #{tpu_custom_call.1} parent=11 // pred_fallthru
          _
        // Predicated region
        $region33: #{tpu_custom_call.1} parent=11 // pred_check
          %p286 = pneg %p184
        $region34: #{tpu_custom_call.1} parent=11 // pred_check_branch
          %288 = sbr.rel (%p286) target = $region36
        $region35: #{tpu_custom_call.1} parent=11 // pred_region
          %s290 = ssub.s32 16, 16
          %291 = vsyncadd [#allocation13], %s290
          %s293 = sshll.u32 [#allocation12], 4
          %s294 = int_to_ptr.vmem [resolvable:$true] %s293
          %296 = dma.hbm_to_vmem [thread:$0]  %s6, 16, %s294, [#allocation13]
        $region36: #{tpu_custom_call.1} parent=11 // pred_fallthru
          _
      $region12: #{tpu_custom_call.1} parent=5 // pred_fallthru
        _
      %p297 = scmp.lt.s32.totalorder %s18, 2
      // Predicated region
      $region37: #{tpu_custom_call.1} parent=5 // pred_check
        %p298 = pneg %p297
      $region38: #{tpu_custom_call.1} parent=5 // pred_check_branch
        %300 = sbr.rel (%p298) target = $region40
      $region39: #{tpu_custom_call.1} parent=5 // pred_region
        // Predicated region
        $region41: #{tpu_custom_call.1} parent=39 // pred_check
          %p301 = pneg %p52
        $region42: #{tpu_custom_call.1} parent=39 // pred_check_branch
          %303 = sbr.rel (%p301) target = $region44
        $region43: #{tpu_custom_call.1} parent=39 // pred_region
          %p304 = scmp.lt.s32.totalorder %s25, 0
          %s305 = scalar_select %p304, %s25, 0
          %p306 = scmp.lt.s32.totalorder %s26, 1
          %s307 = scalar_select %p306, %s26, 1
          %s308 = smul.addr %s307, 8
          %s309 = smul.addr %s305, 16
          %s310 = sadd.s32 %s308, %s309
          %s311 = smul.addr %s310, 8
          %s312 = scalar_lea.vmem %s0, %s311
        $region44: #{tpu_custom_call.1} parent=39 // pred_fallthru
          _
      $region40: #{tpu_custom_call.1} parent=5 // pred_fallthru
        _
      %p313 = scmp.le.s32.totalorder 1, %s18
      %p314 = scmp.lt.s32.totalorder %s18, 3
      %p315 = pnand %p313, %p314
      %p316 = pneg %p315
      // Predicated region
      $region45: #{tpu_custom_call.1} parent=5 // pred_check
        _
      $region46: #{tpu_custom_call.1} parent=5 // pred_check_branch
        %318 = sbr.rel (%p315) target = $region48
      $region47: #{tpu_custom_call.1} parent=5 // pred_region
        %s319 = ssub.s32 %s18, 1
        // Predicated region
        $region49: #{tpu_custom_call.1} parent=47 // pred_check
          %p320 = pneg %p79
        $region50: #{tpu_custom_call.1} parent=47 // pred_check_branch
          %322 = sbr.rel (%p320) target = $region52
        $region51: #{tpu_custom_call.1} parent=47 // pred_region
          %323 = dma.done [#allocation4], 98304
        $region52: #{tpu_custom_call.1} parent=47 // pred_fallthru
          _
        // Predicated region
        $region53: #{tpu_custom_call.1} parent=47 // pred_check
          %p324 = pneg %p100
        $region54: #{tpu_custom_call.1} parent=47 // pred_check_branch
          %326 = sbr.rel (%p324) target = $region56
        $region55: #{tpu_custom_call.1} parent=47 // pred_region
          %327 = dma.done [#allocation7], 32
        $region56: #{tpu_custom_call.1} parent=47 // pred_fallthru
          _
        // Predicated region
        $region57: #{tpu_custom_call.1} parent=47 // pred_check
          %p328 = pneg %p121
        $region58: #{tpu_custom_call.1} parent=47 // pred_check_branch
          %330 = sbr.rel (%p328) target = $region60
        $region59: #{tpu_custom_call.1} parent=47 // pred_region
          %331 = dma.done [#allocation7], 1024
        $region60: #{tpu_custom_call.1} parent=47 // pred_fallthru
          _
        // Predicated region
        $region61: #{tpu_custom_call.1} parent=47 // pred_check
          %p332 = pneg %p142
        $region62: #{tpu_custom_call.1} parent=47 // pred_check_branch
          %334 = sbr.rel (%p332) target = $region64
        $region63: #{tpu_custom_call.1} parent=47 // pred_region
          %335 = dma.done [#allocation10], 16
        $region64: #{tpu_custom_call.1} parent=47 // pred_fallthru
          _
        // Predicated region
        $region65: #{tpu_custom_call.1} parent=47 // pred_check
          %p336 = pneg %p163
        $region66: #{tpu_custom_call.1} parent=47 // pred_check_branch
          %338 = sbr.rel (%p336) target = $region68
        $region67: #{tpu_custom_call.1} parent=47 // pred_region
          %339 = dma.done [#allocation10], 1024
        $region68: #{tpu_custom_call.1} parent=47 // pred_fallthru
          _
        // Predicated region
        $region69: #{tpu_custom_call.1} parent=47 // pred_check
          %p340 = pneg %p184
        $region70: #{tpu_custom_call.1} parent=47 // pred_check_branch
          %342 = sbr.rel (%p340) target = $region72
        $region71: #{tpu_custom_call.1} parent=47 // pred_region
          %343 = dma.done [#allocation13], 16
        $region72: #{tpu_custom_call.1} parent=47 // pred_fallthru
          _
        %p344 = scmp.lt.s32.totalorder %s27, 0
        %s345 = scalar_select %p344, %s27, 0
        %p346 = scmp.lt.s32.totalorder %s28, 1
        %s347 = scalar_select %p346, %s28, 1
        %s348 = smul.addr %s347, 8
        %s349 = smul.addr %s345, 16
        %s350 = sadd.s32 %s348, %s349
        %s351 = smul.addr %s350, 8
        %s352 = scalar_lea.vmem %s0, %s351
        %p353 = pneg %p58
        %p354 = pneg %p55
        %p355 = pneg %p79
        %p356 = pneg %p76
        %p357 = pneg %p100
        %p358 = pneg %p97
        %p359 = pneg %p121
        %p360 = pneg %p118
        %p361 = pneg %p142
        %p362 = pneg %p139
        %p363 = pneg %p163
        %p364 = pneg %p160
        %p365 = pneg %p184
        %p366 = pneg %p181
        %p367 = pneg %p210
        %p368 = pneg %p207
        %p369 = scmp.lt.s32.totalorder %s27, 0
        %s370 = scalar_select %p369, %s27, 0
        %p371 = scmp.lt.s32.totalorder %s28, 1
        %s372 = scalar_select %p371, %s28, 1
        %s373 = smul.addr %s372, 8
        %s374 = smul.addr %s370, 16
        %s375 = sadd.s32 %s373, %s374
        %s376 = smul.addr %s375, 8
        %s377 = scalar_lea.vmem %s0, %s376
        %p379 = scmp.eq.s32.totalorder %s28, 0
        // Predicated region
        $region73: #{tpu_custom_call.1} parent=47 // pred_check
          %p380 = pneg %p379
        $region74: #{tpu_custom_call.1} parent=47 // pred_check_branch
          %382 = sbr.rel (%p380) target = $region76
        $region75: #{tpu_custom_call.1} parent=47 // pred_region
          %383 = vst [vmem:[#allocation2] sm:$0xff] -inf
        $region76: #{tpu_custom_call.1} parent=47 // pred_fallthru
          _
        %v384 = vld [vmem:[%s377] sm:$0xff]
        %v385 = vld [vmem:[%s377 + $0x8] sm:$0xff]
        %v386 = vld [vmem:[%s377 + $0x10] sm:$0xff]
        %v387 = vld [vmem:[%s377 + $0x18] sm:$0xff]
        %v388 = vld [vmem:[%s377 + $0x20] sm:$0xff]
        %v389 = vld [vmem:[%s377 + $0x28] sm:$0xff]
        %v390 = vld [vmem:[%s377 + $0x30] sm:$0xff]
        %v391 = vld [vmem:[%s377 + $0x38] sm:$0xff]
        %v392 = vlaneseq
        %v393 = vand.u32 %v392, 127
        %v394 = vadd.s32 %v393, 128
        %v395 = vadd.s32 %v393, 256
        %396 = vset.pattern.permute.xlu0 0
        %397 = vperm.xlu0 %396, %v384
        %v398 = vpop.permute.xlu0 %397
        %399 = vset.pattern.permute.xlu0 0
        %400 = vperm.xlu0 %399, %v385
        %v401 = vpop.permute.xlu0 %400
        %402 = vset.pattern.permute.xlu0 0
        %403 = vperm.xlu0 %402, %v386
        %v404 = vpop.permute.xlu0 %403
        %405 = vset.pattern.permute.xlu0 0
        %406 = vperm.xlu0 %405, %v387
        %v407 = vpop.permute.xlu0 %406
        %408 = vset.pattern.permute.xlu0 0
        %409 = vperm.xlu0 %408, %v388
        %v410 = vpop.permute.xlu0 %409
        %411 = vset.pattern.permute.xlu0 0
        %412 = vperm.xlu0 %411, %v389
        %v413 = vpop.permute.xlu0 %412
        %414 = vset.pattern.permute.xlu0 0
        %415 = vperm.xlu0 %414, %v390
        %v416 = vpop.permute.xlu0 %415
        %417 = vset.pattern.permute.xlu0 0
        %418 = vperm.xlu0 %417, %v391
        %v419 = vpop.permute.xlu0 %418
        %vm420 = vcmp.eq.s32.totalorder %v398, %v393
        %vm421 = vcmp.eq.s32.totalorder %v398, %v394
        %vm422 = vcmp.eq.s32.totalorder %v398, %v395
        %vm423 = vcmp.eq.s32.totalorder %v401, %v393
        %vm424 = vcmp.eq.s32.totalorder %v401, %v394
        %vm425 = vcmp.eq.s32.totalorder %v401, %v395
        %vm426 = vcmp.eq.s32.totalorder %v404, %v393
        %vm427 = vcmp.eq.s32.totalorder %v404, %v394
        %vm428 = vcmp.eq.s32.totalorder %v404, %v395
        %vm429 = vcmp.eq.s32.totalorder %v407, %v393
        %vm430 = vcmp.eq.s32.totalorder %v407, %v394
        %vm431 = vcmp.eq.s32.totalorder %v407, %v395
        %vm432 = vcmp.eq.s32.totalorder %v410, %v393
        %vm433 = vcmp.eq.s32.totalorder %v410, %v394
        %vm434 = vcmp.eq.s32.totalorder %v410, %v395
        %vm435 = vcmp.eq.s32.totalorder %v413, %v393
        %vm436 = vcmp.eq.s32.totalorder %v413, %v394
        %vm437 = vcmp.eq.s32.totalorder %v413, %v395
        %vm438 = vcmp.eq.s32.totalorder %v416, %v393
        %vm439 = vcmp.eq.s32.totalorder %v416, %v394
        %vm440 = vcmp.eq.s32.totalorder %v416, %v395
        %vm441 = vcmp.eq.s32.totalorder %v419, %v393
        %vm442 = vcmp.eq.s32.totalorder %v419, %v394
        %vm443 = vcmp.eq.s32.totalorder %v419, %v395
        %v444 = vsel %vm420, 1.0, 0.0
        %v445 = vsel %vm421, 1.0, 0.0
        %v446 = vsel %vm422, 1.0, 0.0
        %v447 = vsel %vm423, 1.0, 0.0
        %v448 = vsel %vm424, 1.0, 0.0
        %v449 = vsel %vm425, 1.0, 0.0
        %v450 = vsel %vm426, 1.0, 0.0
        %v451 = vsel %vm427, 1.0, 0.0
        %v452 = vsel %vm428, 1.0, 0.0
        %v453 = vsel %vm429, 1.0, 0.0
        %v454 = vsel %vm430, 1.0, 0.0
        %v455 = vsel %vm431, 1.0, 0.0
        %v456 = vsel %vm432, 1.0, 0.0
        %v457 = vsel %vm433, 1.0, 0.0
        %v458 = vsel %vm434, 1.0, 0.0
        %v459 = vsel %vm435, 1.0, 0.0
        %v460 = vsel %vm436, 1.0, 0.0
        %v461 = vsel %vm437, 1.0, 0.0
        %v462 = vsel %vm438, 1.0, 0.0
        %v463 = vsel %vm439, 1.0, 0.0
        %v464 = vsel %vm440, 1.0, 0.0
        %v465 = vsel %vm441, 1.0, 0.0
        %v466 = vsel %vm442, 1.0, 0.0
        %v467 = vsel %vm443, 1.0, 0.0
        %v468 = vpack.c.bf16 %v447, %v444
        %v469 = vpack.c.bf16 %v448, %v445
        %v470 = vpack.c.bf16 %v449, %v446
        %v471 = vpack.c.bf16 %v453, %v450
        %v472 = vpack.c.bf16 %v454, %v451
        %v473 = vpack.c.bf16 %v455, %v452
        %v474 = vpack.c.bf16 %v459, %v456
        %v475 = vpack.c.bf16 %v460, %v457
        %v476 = vpack.c.bf16 %v461, %v458
        %v477 = vpack.c.bf16 %v465, %v462
        %v478 = vpack.c.bf16 %v466, %v463
        %v479 = vpack.c.bf16 %v467, %v464
        %v480 = vld [vmem:[#allocation3] sm:$0xff]
        %v481 = vld [vmem:[#allocation3 + $0x8] sm:$0xff]
        %v482 = vld [vmem:[#allocation3 + $0x10] sm:$0xff]
        %v483 = vld [vmem:[#allocation3 + $0x18] sm:$0xff]
        %v484 = vld [vmem:[#allocation3 + $0x20] sm:$0xff]
        %v485 = vld [vmem:[#allocation3 + $0x28] sm:$0xff]
        %v486 = vld [vmem:[#allocation3 + $0x30] sm:$0xff]
        %v487 = vld [vmem:[#allocation3 + $0x38] sm:$0xff]
        %v488 = vld [vmem:[#allocation3 + $0x40] sm:$0xff]
        %v489 = vld [vmem:[#allocation3 + $0x48] sm:$0xff]
        %v490 = vld [vmem:[#allocation3 + $0x50] sm:$0xff]
        %v491 = vld [vmem:[#allocation3 + $0x58] sm:$0xff]
        %v492 = vld [vmem:[#allocation3 + $0x60] sm:$0xff]
        %v493 = vld [vmem:[#allocation3 + $0x68] sm:$0xff]
        %v494 = vld [vmem:[#allocation3 + $0x70] sm:$0xff]
        %v495 = vld [vmem:[#allocation3 + $0x78] sm:$0xff]
        %v496 = vld [vmem:[#allocation3 + $0x80] sm:$0xff]
        %v497 = vld [vmem:[#allocation3 + $0x88] sm:$0xff]
        %v498 = vld [vmem:[#allocation3 + $0x90] sm:$0xff]
        %v499 = vld [vmem:[#allocation3 + $0x98] sm:$0xff]
        %v500 = vld [vmem:[#allocation3 + $0xa0] sm:$0xff]
        %v501 = vld [vmem:[#allocation3 + $0xa8] sm:$0xff]
        %v502 = vld [vmem:[#allocation3 + $0xb0] sm:$0xff]
        %v503 = vld [vmem:[#allocation3 + $0xb8] sm:$0xff]
        %v504 = vld [vmem:[#allocation3 + $0xc0] sm:$0xff]
        %v505 = vld [vmem:[#allocation3 + $0xc8] sm:$0xff]
        %v506 = vld [vmem:[#allocation3 + $0xd0] sm:$0xff]
        %v507 = vld [vmem:[#allocation3 + $0xd8] sm:$0xff]
        %v508 = vld [vmem:[#allocation3 + $0xe0] sm:$0xff]
        %v509 = vld [vmem:[#allocation3 + $0xe8] sm:$0xff]
        %v510 = vld [vmem:[#allocation3 + $0xf0] sm:$0xff]
        %v511 = vld [vmem:[#allocation3 + $0xf8] sm:$0xff]
        %v512 = vld [vmem:[#allocation3 + $0x100] sm:$0xff]
        %v513 = vld [vmem:[#allocation3 + $0x108] sm:$0xff]
        %v514 = vld [vmem:[#allocation3 + $0x110] sm:$0xff]
        %v515 = vld [vmem:[#allocation3 + $0x118] sm:$0xff]
        %v516 = vld [vmem:[#allocation3 + $0x120] sm:$0xff]
        %v517 = vld [vmem:[#allocation3 + $0x128] sm:$0xff]
        %v518 = vld [vmem:[#allocation3 + $0x130] sm:$0xff]
        %v519 = vld [vmem:[#allocation3 + $0x138] sm:$0xff]
        %v520 = vld [vmem:[#allocation3 + $0x140] sm:$0xff]
        %v521 = vld [vmem:[#allocation3 + $0x148] sm:$0xff]
        %v522 = vld [vmem:[#allocation3 + $0x150] sm:$0xff]
        %v523 = vld [vmem:[#allocation3 + $0x158] sm:$0xff]
        %v524 = vld [vmem:[#allocation3 + $0x160] sm:$0xff]
        %v525 = vld [vmem:[#allocation3 + $0x168] sm:$0xff]
        %v526 = vld [vmem:[#allocation3 + $0x170] sm:$0xff]
        %v527 = vld [vmem:[#allocation3 + $0x178] sm:$0xff]
        %528 = vset.pattern.permute.xlu0 1
        %529 = vperm.xlu0 %528, %v384
        %v530 = vpop.permute.xlu0 %529
        %531 = vset.pattern.permute.xlu0 1
        %532 = vperm.xlu0 %531, %v385
        %v533 = vpop.permute.xlu0 %532
        %534 = vset.pattern.permute.xlu0 1
        %535 = vperm.xlu0 %534, %v386
        %v536 = vpop.permute.xlu0 %535
        %537 = vset.pattern.permute.xlu0 1
        %538 = vperm.xlu0 %537, %v387
        %v539 = vpop.permute.xlu0 %538
        %540 = vset.pattern.permute.xlu0 1
        %541 = vperm.xlu0 %540, %v388
        %v542 = vpop.permute.xlu0 %541
        %543 = vset.pattern.permute.xlu0 1
        %544 = vperm.xlu0 %543, %v389
        %v545 = vpop.permute.xlu0 %544
        %546 = vset.pattern.permute.xlu0 1
        %547 = vperm.xlu0 %546, %v390
        %v548 = vpop.permute.xlu0 %547
        %549 = vset.pattern.permute.xlu0 1
        %550 = vperm.xlu0 %549, %v391
        %v551 = vpop.permute.xlu0 %550
        %vm552 = vcmp.eq.s32.totalorder %v530, %v393
        %vm553 = vcmp.eq.s32.totalorder %v530, %v394
        %vm554 = vcmp.eq.s32.totalorder %v530, %v395
        %vm555 = vcmp.eq.s32.totalorder %v533, %v393
        %vm556 = vcmp.eq.s32.totalorder %v533, %v394
        %vm557 = vcmp.eq.s32.totalorder %v533, %v395
        %vm558 = vcmp.eq.s32.totalorder %v536, %v393
        %vm559 = vcmp.eq.s32.totalorder %v536, %v394
        %vm560 = vcmp.eq.s32.totalorder %v536, %v395
        %vm561 = vcmp.eq.s32.totalorder %v539, %v393
        %vm562 = vcmp.eq.s32.totalorder %v539, %v394
        %vm563 = vcmp.eq.s32.totalorder %v539, %v395
        %vm564 = vcmp.eq.s32.totalorder %v542, %v393
        %vm565 = vcmp.eq.s32.totalorder %v542, %v394
        %vm566 = vcmp.eq.s32.totalorder %v542, %v395
        %vm567 = vcmp.eq.s32.totalorder %v545, %v393
        %vm568 = vcmp.eq.s32.totalorder %v545, %v394
        %vm569 = vcmp.eq.s32.totalorder %v545, %v395
        %vm570 = vcmp.eq.s32.totalorder %v548, %v393
        %vm571 = vcmp.eq.s32.totalorder %v548, %v394
        %vm572 = vcmp.eq.s32.totalorder %v548, %v395
        %vm573 = vcmp.eq.s32.totalorder %v551, %v393
        %vm574 = vcmp.eq.s32.totalorder %v551, %v394
        %vm575 = vcmp.eq.s32.totalorder %v551, %v395
        %v576 = vsel %vm552, 1.0, 0.0
        %v577 = vsel %vm553, 1.0, 0.0
        %v578 = vsel %vm554, 1.0, 0.0
        %v579 = vsel %vm555, 1.0, 0.0
        %v580 = vsel %vm556, 1.0, 0.0
        %v581 = vsel %vm557, 1.0, 0.0
        %v582 = vsel %vm558, 1.0, 0.0
        %v583 = vsel %vm559, 1.0, 0.0
        %v584 = vsel %vm560, 1.0, 0.0
        %v585 = vsel %vm561, 1.0, 0.0
        %v586 = vsel %vm562, 1.0, 0.0
        %v587 = vsel %vm563, 1.0, 0.0
        %v588 = vsel %vm564, 1.0, 0.0
        %v589 = vsel %vm565, 1.0, 0.0
        %v590 = vsel %vm566, 1.0, 0.0
        %v591 = vsel %vm567, 1.0, 0.0
        %v592 = vsel %vm568, 1.0, 0.0
        %v593 = vsel %vm569, 1.0, 0.0
        %v594 = vsel %vm570, 1.0, 0.0
        %v595 = vsel %vm571, 1.0, 0.0
        %v596 = vsel %vm572, 1.0, 0.0
        %v597 = vsel %vm573, 1.0, 0.0
        %v598 = vsel %vm574, 1.0, 0.0
        %v599 = vsel %vm575, 1.0, 0.0
        %v600 = vpack.c.bf16 %v579, %v576
        %v601 = vpack.c.bf16 %v580, %v577
        %v602 = vpack.c.bf16 %v581, %v578
        %v603 = vpack.c.bf16 %v585, %v582
        %v604 = vpack.c.bf16 %v586, %v583
        %v605 = vpack.c.bf16 %v587, %v584
        %v606 = vpack.c.bf16 %v591, %v588
        %v607 = vpack.c.bf16 %v592, %v589
        %v608 = vpack.c.bf16 %v593, %v590
        %v609 = vpack.c.bf16 %v597, %v594
        %v610 = vpack.c.bf16 %v598, %v595
        %v611 = vpack.c.bf16 %v599, %v596
        %s612 = scalar_lea.vmem [#allocation3], 384
        %v613 = vld [vmem:[%s612] sm:$0xff]
        %v614 = vld [vmem:[%s612 + $0x8] sm:$0xff]
        %v615 = vld [vmem:[%s612 + $0x10] sm:$0xff]
        %v616 = vld [vmem:[%s612 + $0x18] sm:$0xff]
        %v617 = vld [vmem:[%s612 + $0x20] sm:$0xff]
        %v618 = vld [vmem:[%s612 + $0x28] sm:$0xff]
        %v619 = vld [vmem:[%s612 + $0x30] sm:$0xff]
        %v620 = vld [vmem:[%s612 + $0x38] sm:$0xff]
        %v621 = vld [vmem:[%s612 + $0x40] sm:$0xff]
        %v622 = vld [vmem:[%s612 + $0x48] sm:$0xff]
        %v623 = vld [vmem:[%s612 + $0x50] sm:$0xff]
        %v624 = vld [vmem:[%s612 + $0x58] sm:$0xff]
        %v625 = vld [vmem:[%s612 + $0x60] sm:$0xff]
        %v626 = vld [vmem:[%s612 + $0x68] sm:$0xff]
        %v627 = vld [vmem:[%s612 + $0x70] sm:$0xff]
        %v628 = vld [vmem:[%s612 + $0x78] sm:$0xff]
        %v629 = vld [vmem:[%s612 + $0x80] sm:$0xff]
        %v630 = vld [vmem:[%s612 + $0x88] sm:$0xff]
        %v631 = vld [vmem:[%s612 + $0x90] sm:$0xff]
        %v632 = vld [vmem:[%s612 + $0x98] sm:$0xff]
        %v633 = vld [vmem:[%s612 + $0xa0] sm:$0xff]
        %v634 = vld [vmem:[%s612 + $0xa8] sm:$0xff]
        %v635 = vld [vmem:[%s612 + $0xb0] sm:$0xff]
        %v636 = vld [vmem:[%s612 + $0xb8] sm:$0xff]
        %v637 = vld [vmem:[%s612 + $0xc0] sm:$0xff]
        %v638 = vld [vmem:[%s612 + $0xc8] sm:$0xff]
        %v639 = vld [vmem:[%s612 + $0xd0] sm:$0xff]
        %v640 = vld [vmem:[%s612 + $0xd8] sm:$0xff]
        %v641 = vld [vmem:[%s612 + $0xe0] sm:$0xff]
        %v642 = vld [vmem:[%s612 + $0xe8] sm:$0xff]
        %v643 = vld [vmem:[%s612 + $0xf0] sm:$0xff]
        %v644 = vld [vmem:[%s612 + $0xf8] sm:$0xff]
        %v645 = vld [vmem:[%s612 + $0x100] sm:$0xff]
        %v646 = vld [vmem:[%s612 + $0x108] sm:$0xff]
        %v647 = vld [vmem:[%s612 + $0x110] sm:$0xff]
        %v648 = vld [vmem:[%s612 + $0x118] sm:$0xff]
        %v649 = vld [vmem:[%s612 + $0x120] sm:$0xff]
        %v650 = vld [vmem:[%s612 + $0x128] sm:$0xff]
        %v651 = vld [vmem:[%s612 + $0x130] sm:$0xff]
        %v652 = vld [vmem:[%s612 + $0x138] sm:$0xff]
        %v653 = vld [vmem:[%s612 + $0x140] sm:$0xff]
        %v654 = vld [vmem:[%s612 + $0x148] sm:$0xff]
        %v655 = vld [vmem:[%s612 + $0x150] sm:$0xff]
        %v656 = vld [vmem:[%s612 + $0x158] sm:$0xff]
        %v657 = vld [vmem:[%s612 + $0x160] sm:$0xff]
        %v658 = vld [vmem:[%s612 + $0x168] sm:$0xff]
        %v659 = vld [vmem:[%s612 + $0x170] sm:$0xff]
        %v660 = vld [vmem:[%s612 + $0x178] sm:$0xff]
        %v709 = vunpack.c.l.b16 %v613
        %v710 = vunpack.c.h.b16 %v613
        %v711 = vunpack.c.l.b16 %v614
        %v712 = vunpack.c.h.b16 %v614
        %v713 = vunpack.c.l.b16 %v615
        %v714 = vunpack.c.h.b16 %v615
        %v715 = vunpack.c.l.b16 %v616
        %v716 = vunpack.c.h.b16 %v616
        %v717 = vunpack.c.l.b16 %v617
        %v718 = vunpack.c.h.b16 %v617
        %v719 = vunpack.c.l.b16 %v618
        %v720 = vunpack.c.h.b16 %v618
        %v721 = vunpack.c.l.b16 %v619
        %v722 = vunpack.c.h.b16 %v619
        %v723 = vunpack.c.l.b16 %v620
        %v724 = vunpack.c.h.b16 %v620
        %v725 = vunpack.c.l.b16 %v621
        %v726 = vunpack.c.h.b16 %v621
        %v727 = vunpack.c.l.b16 %v622
        %v728 = vunpack.c.h.b16 %v622
        %v729 = vunpack.c.l.b16 %v623
        %v730 = vunpack.c.h.b16 %v623
        %v731 = vunpack.c.l.b16 %v624
        %v732 = vunpack.c.h.b16 %v624
        %v733 = vunpack.c.l.b16 %v625
        %v734 = vunpack.c.h.b16 %v625
        %v735 = vunpack.c.l.b16 %v626
        %v736 = vunpack.c.h.b16 %v626
        %v737 = vunpack.c.l.b16 %v627
        %v738 = vunpack.c.h.b16 %v627
        %v739 = vunpack.c.l.b16 %v628
        %v740 = vunpack.c.h.b16 %v628
        %v741 = vunpack.c.l.b16 %v629
        %v742 = vunpack.c.h.b16 %v629
        %v743 = vunpack.c.l.b16 %v630
        %v744 = vunpack.c.h.b16 %v630
        %v745 = vunpack.c.l.b16 %v631
        %v746 = vunpack.c.h.b16 %v631
        %v747 = vunpack.c.l.b16 %v632
        %v748 = vunpack.c.h.b16 %v632
        %v749 = vunpack.c.l.b16 %v633
        %v750 = vunpack.c.h.b16 %v633
        %v751 = vunpack.c.l.b16 %v634
        %v752 = vunpack.c.h.b16 %v634
        %v753 = vunpack.c.l.b16 %v635
        %v754 = vunpack.c.h.b16 %v635
        %v755 = vunpack.c.l.b16 %v636
        %v756 = vunpack.c.h.b16 %v636
        %v757 = vunpack.c.l.b16 %v637
        %v758 = vunpack.c.h.b16 %v637
        %v759 = vunpack.c.l.b16 %v638
        %v760 = vunpack.c.h.b16 %v638
        %v761 = vunpack.c.l.b16 %v639
        %v762 = vunpack.c.h.b16 %v639
        %v763 = vunpack.c.l.b16 %v640
        %v764 = vunpack.c.h.b16 %v640
        %v765 = vunpack.c.l.b16 %v641
        %v766 = vunpack.c.h.b16 %v641
        %v767 = vunpack.c.l.b16 %v642
        %v768 = vunpack.c.h.b16 %v642
        %v769 = vunpack.c.l.b16 %v643
        %v770 = vunpack.c.h.b16 %v643
        %v771 = vunpack.c.l.b16 %v644
        %v772 = vunpack.c.h.b16 %v644
        %v773 = vunpack.c.l.b16 %v645
        %v774 = vunpack.c.h.b16 %v645
        %v775 = vunpack.c.l.b16 %v646
        %v776 = vunpack.c.h.b16 %v646
        %v777 = vunpack.c.l.b16 %v647
        %v778 = vunpack.c.h.b16 %v647
        %v779 = vunpack.c.l.b16 %v648
        %v780 = vunpack.c.h.b16 %v648
        %v781 = vunpack.c.l.b16 %v649
        %v782 = vunpack.c.h.b16 %v649
        %v783 = vunpack.c.l.b16 %v650
        %v784 = vunpack.c.h.b16 %v650
        %v785 = vunpack.c.l.b16 %v651
        %v786 = vunpack.c.h.b16 %v651
        %v787 = vunpack.c.l.b16 %v652
        %v788 = vunpack.c.h.b16 %v652
        %v789 = vunpack.c.l.b16 %v653
        %v790 = vunpack.c.h.b16 %v653
        %v791 = vunpack.c.l.b16 %v654
        %v792 = vunpack.c.h.b16 %v654
        %v793 = vunpack.c.l.b16 %v655
        %v794 = vunpack.c.h.b16 %v655
        %v795 = vunpack.c.l.b16 %v656
        %v796 = vunpack.c.h.b16 %v656
        %v797 = vunpack.c.l.b16 %v657
        %v798 = vunpack.c.h.b16 %v657
        %v799 = vunpack.c.l.b16 %v658
        %v800 = vunpack.c.h.b16 %v658
        %v801 = vunpack.c.l.b16 %v659
        %v802 = vunpack.c.h.b16 %v659
        %v803 = vunpack.c.l.b16 %v660
        %v804 = vunpack.c.h.b16 %v660
        %v805 = vpack.c.b16 %v711, %v709
        %v806 = vpack.c.b16 %v712, %v710
        %v807 = vpack.c.b16 %v715, %v713
        %v808 = vpack.c.b16 %v716, %v714
        %v809 = vpack.c.b16 %v719, %v717
        %v810 = vpack.c.b16 %v720, %v718
        %v811 = vpack.c.b16 %v723, %v721
        %v812 = vpack.c.b16 %v724, %v722
        %v813 = vpack.c.b16 %v727, %v725
        %v814 = vpack.c.b16 %v728, %v726
        %v815 = vpack.c.b16 %v731, %v729
        %v816 = vpack.c.b16 %v732, %v730
        %v817 = vpack.c.b16 %v735, %v733
        %v818 = vpack.c.b16 %v736, %v734
        %v819 = vpack.c.b16 %v739, %v737
        %v820 = vpack.c.b16 %v740, %v738
        %v821 = vpack.c.b16 %v743, %v741
        %v822 = vpack.c.b16 %v744, %v742
        %v823 = vpack.c.b16 %v747, %v745
        %v824 = vpack.c.b16 %v748, %v746
        %v825 = vpack.c.b16 %v751, %v749
        %v826 = vpack.c.b16 %v752, %v750
        %v827 = vpack.c.b16 %v755, %v753
        %v828 = vpack.c.b16 %v756, %v754
        %v829 = vpack.c.b16 %v759, %v757
        %v830 = vpack.c.b16 %v760, %v758
        %v831 = vpack.c.b16 %v763, %v761
        %v832 = vpack.c.b16 %v764, %v762
        %v833 = vpack.c.b16 %v767, %v765
        %v834 = vpack.c.b16 %v768, %v766
        %v835 = vpack.c.b16 %v771, %v769
        %v836 = vpack.c.b16 %v772, %v770
        %v837 = vpack.c.b16 %v775, %v773
        %v838 = vpack.c.b16 %v776, %v774
        %v839 = vpack.c.b16 %v779, %v777
        %v840 = vpack.c.b16 %v780, %v778
        %v841 = vpack.c.b16 %v783, %v781
        %v842 = vpack.c.b16 %v784, %v782
        %v843 = vpack.c.b16 %v787, %v785
        %v844 = vpack.c.b16 %v788, %v786
        %v845 = vpack.c.b16 %v791, %v789
        %v846 = vpack.c.b16 %v792, %v790
        %v847 = vpack.c.b16 %v795, %v793
        %v848 = vpack.c.b16 %v796, %v794
        %v849 = vpack.c.b16 %v799, %v797
        %v850 = vpack.c.b16 %v800, %v798
        %v851 = vpack.c.b16 %v803, %v801
        %v852 = vpack.c.b16 %v804, %v802
        %901 = vmatprep.subr.bf16.mxu0 %v806
        %902 = vmatpush1.bf16.msra.mxu0 %v805
        %903 = vmatprep.subr.bf16.mxu0 %v808
        %904 = vmatpush1.bf16.msra.mxu0 %v807
        %905 = vmatprep.subr.bf16.mxu0 %v810
        %906 = vmatpush1.bf16.msra.mxu0 %v809
        %907 = vmatprep.subr.bf16.mxu0 %v812
        %908 = vmatpush1.bf16.msra.mxu0 %v811
        %909 = vmatprep.subr.bf16.mxu0 %v814
        %910 = vmatpush1.bf16.msra.mxu0 %v813
        %911 = vmatprep.subr.bf16.mxu0 %v816
        %912 = vmatpush1.bf16.msra.mxu0 %v815
        %913 = vmatprep.subr.bf16.mxu0 %v818
        %914 = vmatpush1.bf16.msra.mxu0 %v817
        %915 = vmatprep.subr.bf16.mxu0 %v820
        %916 = vmatpush1.bf16.msra.mxu0 %v819
        %917 = vmatprep.subr.bf16.mxu0 %v822
        %918 = vmatpush1.bf16.msra.mxu0 %v821
        %919 = vmatprep.subr.bf16.mxu0 %v824
        %920 = vmatpush1.bf16.msra.mxu0 %v823
        %921 = vmatprep.subr.bf16.mxu0 %v826
        %922 = vmatpush1.bf16.msra.mxu0 %v825
        %923 = vmatprep.subr.bf16.mxu0 %v828
        %924 = vmatpush1.bf16.msra.mxu0 %v827
        %925 = vmatprep.subr.bf16.mxu0 %v830
        %926 = vmatpush1.bf16.msra.mxu0 %v829
        %927 = vmatprep.subr.bf16.mxu0 %v832
        %928 = vmatpush1.bf16.msra.mxu0 %v831
        %929 = vmatprep.subr.bf16.mxu0 %v834
        %930 = vmatpush1.bf16.msra.mxu0 %v833
        %931 = vmatprep.subr.bf16.mxu0 %v836
        %932 = vmatpush1.bf16.msra.mxu0 %v835
        %933 = vmatprep.mubr.bf16.mxu0 %v601
        %934 = vmatmul.mubr.bf16.gmra.mrb[0].mxu0 %v600
        %v935 = vpop.f32.mrb[0].mxu0
        %v936 = vadd.f32 0.0, %v935
        %v937 = vpop.f32.mrb[0].mxu0
        %v938 = vadd.f32 0.0, %v937
        %v939 = vpop.f32.mrb[0].mxu0
        %v940 = vadd.f32 0.0, %v939
        %v941 = vpop.f32.mrb[0].mxu0
        %v942 = vadd.f32 0.0, %v941
        %943 = vmatprep.mubr.bf16.mxu0 %v604
        %944 = vmatmul.mubr.bf16.gmra.mrb[0].mxu0 %v603
        %v945 = vpop.f32.mrb[0].mxu0
        %v946 = vadd.f32 0.0, %v945
        %v947 = vpop.f32.mrb[0].mxu0
        %v948 = vadd.f32 0.0, %v947
        %v949 = vpop.f32.mrb[0].mxu0
        %v950 = vadd.f32 0.0, %v949
        %v951 = vpop.f32.mrb[0].mxu0
        %v952 = vadd.f32 0.0, %v951
        %953 = vmatprep.mubr.bf16.mxu0 %v607
        %954 = vmatmul.mubr.bf16.gmra.mrb[0].mxu0 %v606
        %v955 = vpop.f32.mrb[0].mxu0
        %v956 = vadd.f32 0.0, %v955
        %v957 = vpop.f32.mrb[0].mxu0
        %v958 = vadd.f32 0.0, %v957
        %v959 = vpop.f32.mrb[0].mxu0
        %v960 = vadd.f32 0.0, %v959
        %v961 = vpop.f32.mrb[0].mxu0
        %v962 = vadd.f32 0.0, %v961
        %963 = vmatprep.mubr.bf16.mxu0 %v610
        %964 = vmatmul.mubr.bf16.gmra.mrb[0].mxu0 %v609
        %v965 = vpop.f32.mrb[0].mxu0
        %v966 = vadd.f32 0.0, %v965
        %v967 = vpop.f32.mrb[0].mxu0
        %v968 = vadd.f32 0.0, %v967
        %v969 = vpop.f32.mrb[0].mxu0
        %v970 = vadd.f32 0.0, %v969
        %v971 = vpop.f32.mrb[0].mxu0
        %v972 = vadd.f32 0.0, %v971
        %973 = vdwg.mxu0
        %974 = vmatprep.subr.bf16.mxu0 %v838
        %975 = vmatpush1.bf16.msra.mxu0 %v837
        %976 = vmatprep.subr.bf16.mxu0 %v840
        %977 = vmatpush1.bf16.msra.mxu0 %v839
        %978 = vmatprep.subr.bf16.mxu0 %v842
        %979 = vmatpush1.bf16.msra.mxu0 %v841
        %980 = vmatprep.subr.bf16.mxu0 %v844
        %981 = vmatpush1.bf16.msra.mxu0 %v843
        %982 = vmatprep.subr.bf16.mxu0 %v846
        %983 = vmatpush1.bf16.msra.mxu0 %v845
        %984 = vmatprep.subr.bf16.mxu0 %v848
        %985 = vmatpush1.bf16.msra.mxu0 %v847
        %986 = vmatprep.subr.bf16.mxu0 %v850
        %987 = vmatpush1.bf16.msra.mxu0 %v849
        %988 = vmatprep.subr.bf16.mxu0 %v852
        %989 = vmatpush1.bf16.msra.mxu0 %v851
        %990 = vmatprep.subr.bf16.mxu0 0
        %991 = vmatpush1.bf16.msra.mxu0 0
        %992 = vmatprep.subr.bf16.mxu0 0
        %993 = vmatpush1.bf16.msra.mxu0 0
        %994 = vmatprep.subr.bf16.mxu0 0
        %995 = vmatpush1.bf16.msra.mxu0 0
        %996 = vmatprep.subr.bf16.mxu0 0
        %997 = vmatpush1.bf16.msra.mxu0 0
        %998 = vmatprep.subr.bf16.mxu0 0
        %999 = vmatpush1.bf16.msra.mxu0 0
        %1000 = vmatprep.subr.bf16.mxu0 0
        %1001 = vmatpush1.bf16.msra.mxu0 0
        %1002 = vmatprep.subr.bf16.mxu0 0
        %1003 = vmatpush1.bf16.msra.mxu0 0
        %1004 = vmatprep.subr.bf16.mxu0 0
        %1005 = vmatpush1.bf16.msra.mxu0 0
        %1006 = vmatprep.mubr.bf16.mxu0 0
        %1007 = vmatmul.mubr.bf16.gmra.mrb[0].mxu0 %v602
        %v1008 = vpop.f32.mrb[0].mxu0
        %v1009 = vadd.f32 %v936, %v1008
        %v1010 = vpop.f32.mrb[0].mxu0
        %v1011 = vadd.f32 %v938, %v1010
        %v1012 = vpop.f32.mrb[0].mxu0
        %v1013 = vadd.f32 %v940, %v1012
        %v1014 = vpop.f32.mrb[0].mxu0
        %v1015 = vadd.f32 %v942, %v1014
        %1016 = vmatprep.mubr.bf16.mxu0 0
        %1017 = vmatmul.mubr.bf16.gmra.mrb[0].mxu0 %v605
        %v1018 = vpop.f32.mrb[0].mxu0
        %v1019 = vadd.f32 %v946, %v1018
        %v1020 = vpop.f32.mrb[0].mxu0
        %v1021 = vadd.f32 %v948, %v1020
        %v1022 = vpop.f32.mrb[0].mxu0
        %v1023 = vadd.f32 %v950, %v1022
        %v1024 = vpop.f32.mrb[0].mxu0
        %v1025 = vadd.f32 %v952, %v1024
        %1026 = vmatprep.mubr.bf16.mxu0 0
        %1027 = vmatmul.mubr.bf16.gmra.mrb[0].mxu0 %v608
        %v1028 = vpop.f32.mrb[0].mxu0
        %v1029 = vadd.f32 %v956, %v1028
        %v1030 = vpop.f32.mrb[0].mxu0
        %v1031 = vadd.f32 %v958, %v1030
        %v1032 = vpop.f32.mrb[0].mxu0
        %v1033 = vadd.f32 %v960, %v1032
        %v1034 = vpop.f32.mrb[0].mxu0
        %v1035 = vadd.f32 %v962, %v1034
        %1036 = vmatprep.mubr.bf16.mxu0 0
        %1037 = vmatmul.mubr.bf16.gmra.mrb[0].mxu0 %v611
        %v1038 = vpop.f32.mrb[0].mxu0
        %v1039 = vadd.f32 %v966, %v1038
        %v1040 = vpop.f32.mrb[0].mxu0
        %v1041 = vadd.f32 %v968, %v1040
        %v1042 = vpop.f32.mrb[0].mxu0
        %v1043 = vadd.f32 %v970, %v1042
        %v1044 = vpop.f32.mrb[0].mxu0
        %v1045 = vadd.f32 %v972, %v1044
        %1046 = vdwg.mxu0
        %v1095 = vunpack.c.l.b16 %v480
        %v1096 = vunpack.c.h.b16 %v480
        %v1097 = vunpack.c.l.b16 %v481
        %v1098 = vunpack.c.h.b16 %v481
        %v1099 = vunpack.c.l.b16 %v482
        %v1100 = vunpack.c.h.b16 %v482
        %v1101 = vunpack.c.l.b16 %v483
        %v1102 = vunpack.c.h.b16 %v483
        %v1103 = vunpack.c.l.b16 %v484
        %v1104 = vunpack.c.h.b16 %v484
        %v1105 = vunpack.c.l.b16 %v485
        %v1106 = vunpack.c.h.b16 %v485
        %v1107 = vunpack.c.l.b16 %v486
        %v1108 = vunpack.c.h.b16 %v486
        %v1109 = vunpack.c.l.b16 %v487
        %v1110 = vunpack.c.h.b16 %v487
        %v1111 = vunpack.c.l.b16 %v488
        %v1112 = vunpack.c.h.b16 %v488
        %v1113 = vunpack.c.l.b16 %v489
        %v1114 = vunpack.c.h.b16 %v489
        %v1115 = vunpack.c.l.b16 %v490
        %v1116 = vunpack.c.h.b16 %v490
        %v1117 = vunpack.c.l.b16 %v491
        %v1118 = vunpack.c.h.b16 %v491
        %v1119 = vunpack.c.l.b16 %v492
        %v1120 = vunpack.c.h.b16 %v492
        %v1121 = vunpack.c.l.b16 %v493
        %v1122 = vunpack.c.h.b16 %v493
        %v1123 = vunpack.c.l.b16 %v494
        %v1124 = vunpack.c.h.b16 %v494
        %v1125 = vunpack.c.l.b16 %v495
        %v1126 = vunpack.c.h.b16 %v495
        %v1127 = vunpack.c.l.b16 %v496
        %v1128 = vunpack.c.h.b16 %v496
        %v1129 = vunpack.c.l.b16 %v497
        %v1130 = vunpack.c.h.b16 %v497
        %v1131 = vunpack.c.l.b16 %v498
        %v1132 = vunpack.c.h.b16 %v498
        %v1133 = vunpack.c.l.b16 %v499
        %v1134 = vunpack.c.h.b16 %v499
        %v1135 = vunpack.c.l.b16 %v500
        %v1136 = vunpack.c.h.b16 %v500
        %v1137 = vunpack.c.l.b16 %v501
        %v1138 = vunpack.c.h.b16 %v501
        %v1139 = vunpack.c.l.b16 %v502
        %v1140 = vunpack.c.h.b16 %v502
        %v1141 = vunpack.c.l.b16 %v503
        %v1142 = vunpack.c.h.b16 %v503
        %v1143 = vunpack.c.l.b16 %v504
        %v1144 = vunpack.c.h.b16 %v504
        %v1145 = vunpack.c.l.b16 %v505
        %v1146 = vunpack.c.h.b16 %v505
        %v1147 = vunpack.c.l.b16 %v506
        %v1148 = vunpack.c.h.b16 %v506
        %v1149 = vunpack.c.l.b16 %v507
        %v1150 = vunpack.c.h.b16 %v507
        %v1151 = vunpack.c.l.b16 %v508
        %v1152 = vunpack.c.h.b16 %v508
        %v1153 = vunpack.c.l.b16 %v509
        %v1154 = vunpack.c.h.b16 %v509
        %v1155 = vunpack.c.l.b16 %v510
        %v1156 = vunpack.c.h.b16 %v510
        %v1157 = vunpack.c.l.b16 %v511
        %v1158 = vunpack.c.h.b16 %v511
        %v1159 = vunpack.c.l.b16 %v512
        %v1160 = vunpack.c.h.b16 %v512
        %v1161 = vunpack.c.l.b16 %v513
        %v1162 = vunpack.c.h.b16 %v513
        %v1163 = vunpack.c.l.b16 %v514
        %v1164 = vunpack.c.h.b16 %v514
        %v1165 = vunpack.c.l.b16 %v515
        %v1166 = vunpack.c.h.b16 %v515
        %v1167 = vunpack.c.l.b16 %v516
        %v1168 = vunpack.c.h.b16 %v516
        %v1169 = vunpack.c.l.b16 %v517
        %v1170 = vunpack.c.h.b16 %v517
        %v1171 = vunpack.c.l.b16 %v518
        %v1172 = vunpack.c.h.b16 %v518
        %v1173 = vunpack.c.l.b16 %v519
        %v1174 = vunpack.c.h.b16 %v519
        %v1175 = vunpack.c.l.b16 %v520
        %v1176 = vunpack.c.h.b16 %v520
        %v1177 = vunpack.c.l.b16 %v521
        %v1178 = vunpack.c.h.b16 %v521
        %v1179 = vunpack.c.l.b16 %v522
        %v1180 = vunpack.c.h.b16 %v522
        %v1181 = vunpack.c.l.b16 %v523
        %v1182 = vunpack.c.h.b16 %v523
        %v1183 = vunpack.c.l.b16 %v524
        %v1184 = vunpack.c.h.b16 %v524
        %v1185 = vunpack.c.l.b16 %v525
        %v1186 = vunpack.c.h.b16 %v525
        %v1187 = vunpack.c.l.b16 %v526
        %v1188 = vunpack.c.h.b16 %v526
        %v1189 = vunpack.c.l.b16 %v527
        %v1190 = vunpack.c.h.b16 %v527
        %v1191 = vpack.c.b16 %v1097, %v1095
        %v1192 = vpack.c.b16 %v1098, %v1096
        %v1193 = vpack.c.b16 %v1101, %v1099
        %v1194 = vpack.c.b16 %v1102, %v1100
        %v1195 = vpack.c.b16 %v1105, %v1103
        %v1196 = vpack.c.b16 %v1106, %v1104
        %v1197 = vpack.c.b16 %v1109, %v1107
        %v1198 = vpack.c.b16 %v1110, %v1108
        %v1199 = vpack.c.b16 %v1113, %v1111
        %v1200 = vpack.c.b16 %v1114, %v1112
        %v1201 = vpack.c.b16 %v1117, %v1115
        %v1202 = vpack.c.b16 %v1118, %v1116
        %v1203 = vpack.c.b16 %v1121, %v1119
        %v1204 = vpack.c.b16 %v1122, %v1120
        %v1205 = vpack.c.b16 %v1125, %v1123
        %v1206 = vpack.c.b16 %v1126, %v1124
        %v1207 = vpack.c.b16 %v1129, %v1127
        %v1208 = vpack.c.b16 %v1130, %v1128
        %v1209 = vpack.c.b16 %v1133, %v1131
        %v1210 = vpack.c.b16 %v1134, %v1132
        %v1211 = vpack.c.b16 %v1137, %v1135
        %v1212 = vpack.c.b16 %v1138, %v1136
        %v1213 = vpack.c.b16 %v1141, %v1139
        %v1214 = vpack.c.b16 %v1142, %v1140
        %v1215 = vpack.c.b16 %v1145, %v1143
        %v1216 = vpack.c.b16 %v1146, %v1144
        %v1217 = vpack.c.b16 %v1149, %v1147
        %v1218 = vpack.c.b16 %v1150, %v1148
        %v1219 = vpack.c.b16 %v1153, %v1151
        %v1220 = vpack.c.b16 %v1154, %v1152
        %v1221 = vpack.c.b16 %v1157, %v1155
        %v1222 = vpack.c.b16 %v1158, %v1156
        %v1223 = vpack.c.b16 %v1161, %v1159
        %v1224 = vpack.c.b16 %v1162, %v1160
        %v1225 = vpack.c.b16 %v1165, %v1163
        %v1226 = vpack.c.b16 %v1166, %v1164
        %v1227 = vpack.c.b16 %v1169, %v1167
        %v1228 = vpack.c.b16 %v1170, %v1168
        %v1229 = vpack.c.b16 %v1173, %v1171
        %v1230 = vpack.c.b16 %v1174, %v1172
        %v1231 = vpack.c.b16 %v1177, %v1175
        %v1232 = vpack.c.b16 %v1178, %v1176
        %v1233 = vpack.c.b16 %v1181, %v1179
        %v1234 = vpack.c.b16 %v1182, %v1180
        %v1235 = vpack.c.b16 %v1185, %v1183
        %v1236 = vpack.c.b16 %v1186, %v1184
        %v1237 = vpack.c.b16 %v1189, %v1187
        %v1238 = vpack.c.b16 %v1190, %v1188
        %1287 = vmatprep.subr.bf16.mxu0 %v1192
        %1288 = vmatpush1.bf16.msra.mxu0 %v1191
        %1289 = vmatprep.subr.bf16.mxu0 %v1194
        %1290 = vmatpush1.bf16.msra.mxu0 %v1193
        %1291 = vmatprep.subr.bf16.mxu0 %v1196
        %1292 = vmatpush1.bf16.msra.mxu0 %v1195
        %1293 = vmatprep.subr.bf16.mxu0 %v1198
        %1294 = vmatpush1.bf16.msra.mxu0 %v1197
        %1295 = vmatprep.subr.bf16.mxu0 %v1200
        %1296 = vmatpush1.bf16.msra.mxu0 %v1199
        %1297 = vmatprep.subr.bf16.mxu0 %v1202
        %1298 = vmatpush1.bf16.msra.mxu0 %v1201
        %1299 = vmatprep.subr.bf16.mxu0 %v1204
        %1300 = vmatpush1.bf16.msra.mxu0 %v1203
        %1301 = vmatprep.subr.bf16.mxu0 %v1206
        %1302 = vmatpush1.bf16.msra.mxu0 %v1205
        %1303 = vmatprep.subr.bf16.mxu0 %v1208
        %1304 = vmatpush1.bf16.msra.mxu0 %v1207
        %1305 = vmatprep.subr.bf16.mxu0 %v1210
        %1306 = vmatpush1.bf16.msra.mxu0 %v1209
        %1307 = vmatprep.subr.bf16.mxu0 %v1212
        %1308 = vmatpush1.bf16.msra.mxu0 %v1211
        %1309 = vmatprep.subr.bf16.mxu0 %v1214
        %1310 = vmatpush1.bf16.msra.mxu0 %v1213
        %1311 = vmatprep.subr.bf16.mxu0 %v1216
        %1312 = vmatpush1.bf16.msra.mxu0 %v1215
        %1313 = vmatprep.subr.bf16.mxu0 %v1218
        %1314 = vmatpush1.bf16.msra.mxu0 %v1217
        %1315 = vmatprep.subr.bf16.mxu0 %v1220
        %1316 = vmatpush1.bf16.msra.mxu0 %v1219
        %1317 = vmatprep.subr.bf16.mxu0 %v1222
        %1318 = vmatpush1.bf16.msra.mxu0 %v1221
        %1319 = vmatprep.mubr.bf16.mxu0 %v469
        %1320 = vmatmul.mubr.bf16.gmra.mrb[0].mxu0 %v468
        %v1321 = vpop.f32.mrb[0].mxu0
        %v1322 = vadd.f32 %v1009, %v1321
        %v1323 = vpop.f32.mrb[0].mxu0
        %v1324 = vadd.f32 %v1011, %v1323
        %v1325 = vpop.f32.mrb[0].mxu0
        %v1326 = vadd.f32 %v1013, %v1325
        %v1327 = vpop.f32.mrb[0].mxu0
        %v1328 = vadd.f32 %v1015, %v1327
        %1329 = vmatprep.mubr.bf16.mxu0 %v472
        %1330 = vmatmul.mubr.bf16.gmra.mrb[0].mxu0 %v471
        %v1331 = vpop.f32.mrb[0].mxu0
        %v1332 = vadd.f32 %v1019, %v1331
        %v1333 = vpop.f32.mrb[0].mxu0
        %v1334 = vadd.f32 %v1021, %v1333
        %v1335 = vpop.f32.mrb[0].mxu0
        %v1336 = vadd.f32 %v1023, %v1335
        %v1337 = vpop.f32.mrb[0].mxu0
        %v1338 = vadd.f32 %v1025, %v1337
        %1339 = vmatprep.mubr.bf16.mxu0 %v475
        %1340 = vmatmul.mubr.bf16.gmra.mrb[0].mxu0 %v474
        %v1341 = vpop.f32.mrb[0].mxu0
        %v1342 = vadd.f32 %v1029, %v1341
        %v1343 = vpop.f32.mrb[0].mxu0
        %v1344 = vadd.f32 %v1031, %v1343
        %v1345 = vpop.f32.mrb[0].mxu0
        %v1346 = vadd.f32 %v1033, %v1345
        %v1347 = vpop.f32.mrb[0].mxu0
        %v1348 = vadd.f32 %v1035, %v1347
        %1349 = vmatprep.mubr.bf16.mxu0 %v478
        %1350 = vmatmul.mubr.bf16.gmra.mrb[0].mxu0 %v477
        %v1351 = vpop.f32.mrb[0].mxu0
        %v1352 = vadd.f32 %v1039, %v1351
        %v1353 = vpop.f32.mrb[0].mxu0
        %v1354 = vadd.f32 %v1041, %v1353
        %v1355 = vpop.f32.mrb[0].mxu0
        %v1356 = vadd.f32 %v1043, %v1355
        %v1357 = vpop.f32.mrb[0].mxu0
        %v1358 = vadd.f32 %v1045, %v1357
        %1359 = vdwg.mxu0
        %1360 = vmatprep.subr.bf16.mxu0 %v1224
        %1361 = vmatpush1.bf16.msra.mxu0 %v1223
        %1362 = vmatprep.subr.bf16.mxu0 %v1226
        %1363 = vmatpush1.bf16.msra.mxu0 %v1225
        %1364 = vmatprep.subr.bf16.mxu0 %v1228
        %1365 = vmatpush1.bf16.msra.mxu0 %v1227
        %1366 = vmatprep.subr.bf16.mxu0 %v1230
        %1367 = vmatpush1.bf16.msra.mxu0 %v1229
        %1368 = vmatprep.subr.bf16.mxu0 %v1232
        %1369 = vmatpush1.bf16.msra.mxu0 %v1231
        %1370 = vmatprep.subr.bf16.mxu0 %v1234
        %1371 = vmatpush1.bf16.msra.mxu0 %v1233
        %1372 = vmatprep.subr.bf16.mxu0 %v1236
        %1373 = vmatpush1.bf16.msra.mxu0 %v1235
        %1374 = vmatprep.subr.bf16.mxu0 %v1238
        %1375 = vmatpush1.bf16.msra.mxu0 %v1237
        %1376 = vmatprep.subr.bf16.mxu0 0
        %1377 = vmatpush1.bf16.msra.mxu0 0
        %1378 = vmatprep.subr.bf16.mxu0 0
        %1379 = vmatpush1.bf16.msra.mxu0 0
        %1380 = vmatprep.subr.bf16.mxu0 0
        %1381 = vmatpush1.bf16.msra.mxu0 0
        %1382 = vmatprep.subr.bf16.mxu0 0
        %1383 = vmatpush1.bf16.msra.mxu0 0
        %1384 = vmatprep.subr.bf16.mxu0 0
        %1385 = vmatpush1.bf16.msra.mxu0 0
        %1386 = vmatprep.subr.bf16.mxu0 0
        %1387 = vmatpush1.bf16.msra.mxu0 0
        %1388 = vmatprep.subr.bf16.mxu0 0
        %1389 = vmatpush1.bf16.msra.mxu0 0
        %1390 = vmatprep.subr.bf16.mxu0 0
        %1391 = vmatpush1.bf16.msra.mxu0 0
        %1392 = vmatprep.mubr.bf16.mxu0 0
        %1393 = vmatmul.mubr.bf16.gmra.mrb[0].mxu0 %v470
        %v1394 = vpop.f32.mrb[0].mxu0
        %v1395 = vadd.f32 %v1322, %v1394
        %v1396 = vpop.f32.mrb[0].mxu0
        %v1397 = vadd.f32 %v1324, %v1396
        %v1398 = vpop.f32.mrb[0].mxu0
        %v1399 = vadd.f32 %v1326, %v1398
        %v1400 = vpop.f32.mrb[0].mxu0
        %v1401 = vadd.f32 %v1328, %v1400
        %1402 = vmatprep.mubr.bf16.mxu0 0
        %1403 = vmatmul.mubr.bf16.gmra.mrb[0].mxu0 %v473
        %v1404 = vpop.f32.mrb[0].mxu0
        %v1405 = vadd.f32 %v1332, %v1404
        %v1406 = vpop.f32.mrb[0].mxu0
        %v1407 = vadd.f32 %v1334, %v1406
        %v1408 = vpop.f32.mrb[0].mxu0
        %v1409 = vadd.f32 %v1336, %v1408
        %v1410 = vpop.f32.mrb[0].mxu0
        %v1411 = vadd.f32 %v1338, %v1410
        %1412 = vmatprep.mubr.bf16.mxu0 0
        %1413 = vmatmul.mubr.bf16.gmra.mrb[0].mxu0 %v476
        %v1414 = vpop.f32.mrb[0].mxu0
        %v1415 = vadd.f32 %v1342, %v1414
        %v1416 = vpop.f32.mrb[0].mxu0
        %v1417 = vadd.f32 %v1344, %v1416
        %v1418 = vpop.f32.mrb[0].mxu0
        %v1419 = vadd.f32 %v1346, %v1418
        %v1420 = vpop.f32.mrb[0].mxu0
        %v1421 = vadd.f32 %v1348, %v1420
        %1422 = vmatprep.mubr.bf16.mxu0 0
        %1423 = vmatmul.mubr.bf16.gmra.mrb[0].mxu0 %v479
        %v1424 = vpop.f32.mrb[0].mxu0
        %v1425 = vadd.f32 %v1352, %v1424
        %v1426 = vpop.f32.mrb[0].mxu0
        %v1427 = vadd.f32 %v1354, %v1426
        %v1428 = vpop.f32.mrb[0].mxu0
        %v1429 = vadd.f32 %v1356, %v1428
        %v1430 = vpop.f32.mrb[0].mxu0
        %v1431 = vadd.f32 %v1358, %v1430
        %1432 = vdwg.mxu0
        %1433 = vset.pattern.permute.xlu0 2
        %1434 = vperm.xlu0 %1433, %v384
        %v1435 = vpop.permute.xlu0 %1434
        %1436 = vset.pattern.permute.xlu0 2
        %1437 = vperm.xlu0 %1436, %v385
        %v1438 = vpop.permute.xlu0 %1437
        %1439 = vset.pattern.permute.xlu0 2
        %1440 = vperm.xlu0 %1439, %v386
        %v1441 = vpop.permute.xlu0 %1440
        %1442 = vset.pattern.permute.xlu0 2
        %1443 = vperm.xlu0 %1442, %v387
        %v1444 = vpop.permute.xlu0 %1443
        %1445 = vset.pattern.permute.xlu0 2
        %1446 = vperm.xlu0 %1445, %v388
        %v1447 = vpop.permute.xlu0 %1446
        %1448 = vset.pattern.permute.xlu0 2
        %1449 = vperm.xlu0 %1448, %v389
        %v1450 = vpop.permute.xlu0 %1449
        %1451 = vset.pattern.permute.xlu0 2
        %1452 = vperm.xlu0 %1451, %v390
        %v1453 = vpop.permute.xlu0 %1452
        %1454 = vset.pattern.permute.xlu0 2
        %1455 = vperm.xlu0 %1454, %v391
        %v1456 = vpop.permute.xlu0 %1455
        %vm1457 = vcmp.eq.s32.totalorder %v1435, %v393
        %vm1458 = vcmp.eq.s32.totalorder %v1435, %v394
        %vm1459 = vcmp.eq.s32.totalorder %v1435, %v395
        %vm1460 = vcmp.eq.s32.totalorder %v1438, %v393
        %vm1461 = vcmp.eq.s32.totalorder %v1438, %v394
        %vm1462 = vcmp.eq.s32.totalorder %v1438, %v395
        %vm1463 = vcmp.eq.s32.totalorder %v1441, %v393
        %vm1464 = vcmp.eq.s32.totalorder %v1441, %v394
        %vm1465 = vcmp.eq.s32.totalorder %v1441, %v395
        %vm1466 = vcmp.eq.s32.totalorder %v1444, %v393
        %vm1467 = vcmp.eq.s32.totalorder %v1444, %v394
        %vm1468 = vcmp.eq.s32.totalorder %v1444, %v395
        %vm1469 = vcmp.eq.s32.totalorder %v1447, %v393
        %vm1470 = vcmp.eq.s32.totalorder %v1447, %v394
        %vm1471 = vcmp.eq.s32.totalorder %v1447, %v395
        %vm1472 = vcmp.eq.s32.totalorder %v1450, %v393
        %vm1473 = vcmp.eq.s32.totalorder %v1450, %v394
        %vm1474 = vcmp.eq.s32.totalorder %v1450, %v395
        %vm1475 = vcmp.eq.s32.totalorder %v1453, %v393
        %vm1476 = vcmp.eq.s32.totalorder %v1453, %v394
        %vm1477 = vcmp.eq.s32.totalorder %v1453, %v395
        %vm1478 = vcmp.eq.s32.totalorder %v1456, %v393
        %vm1479 = vcmp.eq.s32.totalorder %v1456, %v394
        %vm1480 = vcmp.eq.s32.totalorder %v1456, %v395
        %v1481 = vsel %vm1457, 1.0, 0.0
        %v1482 = vsel %vm1458, 1.0, 0.0
        %v1483 = vsel %vm1459, 1.0, 0.0
        %v1484 = vsel %vm1460, 1.0, 0.0
        %v1485 = vsel %vm1461, 1.0, 0.0
        %v1486 = vsel %vm1462, 1.0, 0.0
        %v1487 = vsel %vm1463, 1.0, 0.0
        %v1488 = vsel %vm1464, 1.0, 0.0
        %v1489 = vsel %vm1465, 1.0, 0.0
        %v1490 = vsel %vm1466, 1.0, 0.0
        %v1491 = vsel %vm1467, 1.0, 0.0
        %v1492 = vsel %vm1468, 1.0, 0.0
        %v1493 = vsel %vm1469, 1.0, 0.0
        %v1494 = vsel %vm1470, 1.0, 0.0
        %v1495 = vsel %vm1471, 1.0, 0.0
        %v1496 = vsel %vm1472, 1.0, 0.0
        %v1497 = vsel %vm1473, 1.0, 0.0
        %v1498 = vsel %vm1474, 1.0, 0.0
        %v1499 = vsel %vm1475, 1.0, 0.0
        %v1500 = vsel %vm1476, 1.0, 0.0
        %v1501 = vsel %vm1477, 1.0, 0.0
        %v1502 = vsel %vm1478, 1.0, 0.0
        %v1503 = vsel %vm1479, 1.0, 0.0
        %v1504 = vsel %vm1480, 1.0, 0.0
        %v1505 = vpack.c.bf16 %v1484, %v1481
        %v1506 = vpack.c.bf16 %v1485, %v1482
        %v1507 = vpack.c.bf16 %v1486, %v1483
        %v1508 = vpack.c.bf16 %v1490, %v1487
        %v1509 = vpack.c.bf16 %v1491, %v1488
        %v1510 = vpack.c.bf16 %v1492, %v1489
        %v1511 = vpack.c.bf16 %v1496, %v1493
        %v1512 = vpack.c.bf16 %v1497, %v1494
        %v1513 = vpack.c.bf16 %v1498, %v1495
        %v1514 = vpack.c.bf16 %v1502, %v1499
        %v1515 = vpack.c.bf16 %v1503, %v1500
        %v1516 = vpack.c.bf16 %v1504, %v1501
        %s1517 = scalar_lea.vmem [#allocation3], 768
        %v1518 = vld [vmem:[%s1517] sm:$0xff]
        %v1519 = vld [vmem:[%s1517 + $0x8] sm:$0xff]
        %v1520 = vld [vmem:[%s1517 + $0x10] sm:$0xff]
        %v1521 = vld [vmem:[%s1517 + $0x18] sm:$0xff]
        %v1522 = vld [vmem:[%s1517 + $0x20] sm:$0xff]
        %v1523 = vld [vmem:[%s1517 + $0x28] sm:$0xff]
        %v1524 = vld [vmem:[%s1517 + $0x30] sm:$0xff]
        %v1525 = vld [vmem:[%s1517 + $0x38] sm:$0xff]
        %v1526 = vld [vmem:[%s1517 + $0x40] sm:$0xff]
        %v1527 = vld [vmem:[%s1517 + $0x48] sm:$0xff]
        %v1528 = vld [vmem:[%s1517 + $0x50] sm:$0xff]
        %v1529 = vld [vmem:[%s1517 + $0x58] sm:$0xff]
        %v1530 = vld [vmem:[%s1517 + $0x60] sm:$0xff]
        %v1531 = vld [vmem:[%s1517 + $0x68] sm:$0xff]
        %v1532 = vld [vmem:[%s1517 + $0x70] sm:$0xff]
        %v1533 = vld [vmem:[%s1517 + $0x78] sm:$0xff]
        %v1534 = vld [vmem:[%s1517 + $0x80] sm:$0xff]
        %v1535 = vld [vmem:[%s1517 + $0x88] sm:$0xff]
        %v1536 = vld [vmem:[%s1517 + $0x90] sm:$0xff]
        %v1537 = vld [vmem:[%s1517 + $0x98] sm:$0xff]
        %v1538 = vld [vmem:[%s1517 + $0xa0] sm:$0xff]
        %v1539 = vld [vmem:[%s1517 + $0xa8] sm:$0xff]
        %v1540 = vld [vmem:[%s1517 + $0xb0] sm:$0xff]
        %v1541 = vld [vmem:[%s1517 + $0xb8] sm:$0xff]
        %v1542 = vld [vmem:[%s1517 + $0xc0] sm:$0xff]
        %v1543 = vld [vmem:[%s1517 + $0xc8] sm:$0xff]
        %v1544 = vld [vmem:[%s1517 + $0xd0] sm:$0xff]
        %v1545 = vld [vmem:[%s1517 + $0xd8] sm:$0xff]
        %v1546 = vld [vmem:[%s1517 + $0xe0] sm:$0xff]
        %v1547 = vld [vmem:[%s1517 + $0xe8] sm:$0xff]
        %v1548 = vld [vmem:[%s1517 + $0xf0] sm:$0xff]
        %v1549 = vld [vmem:[%s1517 + $0xf8] sm:$0xff]
        %v1550 = vld [vmem:[%s1517 + $0x100] sm:$0xff]
        %v1551 = vld [vmem:[%s1517 + $0x108] sm:$0xff]
        %v1552 = vld [vmem:[%s1517 + $0x110] sm:$0xff]
        %v1553 = vld [vmem:[%s1517 + $0x118] sm:$0xff]
        %v1554 = vld [vmem:[%s1517 + $0x120] sm:$0xff]
        %v1555 = vld [vmem:[%s1517 + $0x128] sm:$0xff]
        %v1556 = vld [vmem:[%s1517 + $0x130] sm:$0xff]
        %v1557 = vld [vmem:[%s1517 + $0x138] sm:$0xff]
        %v1558 = vld [vmem:[%s1517 + $0x140] sm:$0xff]
        %v1559 = vld [vmem:[%s1517 + $0x148] sm:$0xff]
        %v1560 = vld [vmem:[%s1517 + $0x150] sm:$0xff]
        %v1561 = vld [vmem:[%s1517 + $0x158] sm:$0xff]
        %v1562 = vld [vmem:[%s1517 + $0x160] sm:$0xff]
        %v1563 = vld [vmem:[%s1517 + $0x168] sm:$0xff]
        %v1564 = vld [vmem:[%s1517 + $0x170] sm:$0xff]
        %v1565 = vld [vmem:[%s1517 + $0x178] sm:$0xff]
        %v1614 = vunpack.c.l.b16 %v1518
        %v1615 = vunpack.c.h.b16 %v1518
        %v1616 = vunpack.c.l.b16 %v1519
        %v1617 = vunpack.c.h.b16 %v1519
        %v1618 = vunpack.c.l.b16 %v1520
        %v1619 = vunpack.c.h.b16 %v1520
        %v1620 = vunpack.c.l.b16 %v1521
        %v1621 = vunpack.c.h.b16 %v1521
        %v1622 = vunpack.c.l.b16 %v1522
        %v1623 = vunpack.c.h.b16 %v1522
        %v1624 = vunpack.c.l.b16 %v1523
        %v1625 = vunpack.c.h.b16 %v1523
        %v1626 = vunpack.c.l.b16 %v1524
        %v1627 = vunpack.c.h.b16 %v1524
        %v1628 = vunpack.c.l.b16 %v1525
        %v1629 = vunpack.c.h.b16 %v1525
        %v1630 = vunpack.c.l.b16 %v1526
        %v1631 = vunpack.c.h.b16 %v1526
        %v1632 = vunpack.c.l.b16 %v1527
        %v1633 = vunpack.c.h.b16 %v1527
        %v1634 = vunpack.c.l.b16 %v1528
        %v1635 = vunpack.c.h.b16 %v1528
        %v1636 = vunpack.c.l.b16 %v1529
        %v1637 = vunpack.c.h.b16 %v1529
        %v1638 = vunpack.c.l.b16 %v1530
        %v1639 = vunpack.c.h.b16 %v1530
        %v1640 = vunpack.c.l.b16 %v1531
        %v1641 = vunpack.c.h.b16 %v1531
        %v1642 = vunpack.c.l.b16 %v1532
        %v1643 = vunpack.c.h.b16 %v1532
        %v1644 = vunpack.c.l.b16 %v1533
        %v1645 = vunpack.c.h.b16 %v1533
        %v1646 = vunpack.c.l.b16 %v1534
        %v1647 = vunpack.c.h.b16 %v1534
        %v1648 = vunpack.c.l.b16 %v1535
        %v1649 = vunpack.c.h.b16 %v1535
        %v1650 = vunpack.c.l.b16 %v1536
        %v1651 = vunpack.c.h.b16 %v1536
        %v1652 = vunpack.c.l.b16 %v1537
        %v1653 = vunpack.c.h.b16 %v1537
        %v1654 = vunpack.c.l.b16 %v1538
        %v1655 = vunpack.c.h.b16 %v1538
        %v1656 = vunpack.c.l.b16 %v1539
        %v1657 = vunpack.c.h.b16 %v1539
        %v1658 = vunpack.c.l.b16 %v1540
        %v1659 = vunpack.c.h.b16 %v1540
        %v1660 = vunpack.c.l.b16 %v1541
        %v1661 = vunpack.c.h.b16 %v1541
        %v1662 = vunpack.c.l.b16 %v1542
        %v1663 = vunpack.c.h.b16 %v1542
        %v1664 = vunpack.c.l.b16 %v1543
        %v1665 = vunpack.c.h.b16 %v1543
        %v1666 = vunpack.c.l.b16 %v1544
        %v1667 = vunpack.c.h.b16 %v1544
        %v1668 = vunpack.c.l.b16 %v1545
        %v1669 = vunpack.c.h.b16 %v1545
        %v1670 = vunpack.c.l.b16 %v1546
        %v1671 = vunpack.c.h.b16 %v1546
        %v1672 = vunpack.c.l.b16 %v1547
        %v1673 = vunpack.c.h.b16 %v1547
        %v1674 = vunpack.c.l.b16 %v1548
        %v1675 = vunpack.c.h.b16 %v1548
        %v1676 = vunpack.c.l.b16 %v1549
        %v1677 = vunpack.c.h.b16 %v1549
        %v1678 = vunpack.c.l.b16 %v1550
        %v1679 = vunpack.c.h.b16 %v1550
        %v1680 = vunpack.c.l.b16 %v1551
        %v1681 = vunpack.c.h.b16 %v1551
        %v1682 = vunpack.c.l.b16 %v1552
        %v1683 = vunpack.c.h.b16 %v1552
        %v1684 = vunpack.c.l.b16 %v1553
        %v1685 = vunpack.c.h.b16 %v1553
        %v1686 = vunpack.c.l.b16 %v1554
        %v1687 = vunpack.c.h.b16 %v1554
        %v1688 = vunpack.c.l.b16 %v1555
        %v1689 = vunpack.c.h.b16 %v1555
        %v1690 = vunpack.c.l.b16 %v1556
        %v1691 = vunpack.c.h.b16 %v1556
        %v1692 = vunpack.c.l.b16 %v1557
        %v1693 = vunpack.c.h.b16 %v1557
        %v1694 = vunpack.c.l.b16 %v1558
        %v1695 = vunpack.c.h.b16 %v1558
        %v1696 = vunpack.c.l.b16 %v1559
        %v1697 = vunpack.c.h.b16 %v1559
        %v1698 = vunpack.c.l.b16 %v1560
        %v1699 = vunpack.c.h.b16 %v1560
        %v1700 = vunpack.c.l.b16 %v1561
        %v1701 = vunpack.c.h.b16 %v1561
        %v1702 = vunpack.c.l.b16 %v1562
        %v1703 = vunpack.c.h.b16 %v1562
        %v1704 = vunpack.c.l.b16 %v1563
        %v1705 = vunpack.c.h.b16 %v1563
        %v1706 = vunpack.c.l.b16 %v1564
        %v1707 = vunpack.c.h.b16 %v1564
        %v1708 = vunpack.c.l.b16 %v1565
        %v1709 = vunpack.c.h.b16 %v1565
        %v1710 = vpack.c.b16 %v1616, %v1614
        %v1711 = vpack.c.b16 %v1617, %v1615
        %v1712 = vpack.c.b16 %v1620, %v1618
        %v1713 = vpack.c.b16 %v1621, %v1619
        %v1714 = vpack.c.b16 %v1624, %v1622
        %v1715 = vpack.c.b16 %v1625, %v1623
        %v1716 = vpack.c.b16 %v1628, %v1626
        %v1717 = vpack.c.b16 %v1629, %v1627
        %v1718 = vpack.c.b16 %v1632, %v1630
        %v1719 = vpack.c.b16 %v1633, %v1631
        %v1720 = vpack.c.b16 %v1636, %v1634
        %v1721 = vpack.c.b16 %v1637, %v1635
        %v1722 = vpack.c.b16 %v1640, %v1638
        %v1723 = vpack.c.b16 %v1641, %v1639
        %v1724 = vpack.c.b16 %v1644, %v1642
        %v1725 = vpack.c.b16 %v1645, %v1643
        %v1726 = vpack.c.b16 %v1648, %v1646
        %v1727 = vpack.c.b16 %v1649, %v1647
        %v1728 = vpack.c.b16 %v1652, %v1650
        %v1729 = vpack.c.b16 %v1653, %v1651
        %v1730 = vpack.c.b16 %v1656, %v1654
        %v1731 = vpack.c.b16 %v1657, %v1655
        %v1732 = vpack.c.b16 %v1660, %v1658
        %v1733 = vpack.c.b16 %v1661, %v1659
        %v1734 = vpack.c.b16 %v1664, %v1662
        %v1735 = vpack.c.b16 %v1665, %v1663
        %v1736 = vpack.c.b16 %v1668, %v1666
        %v1737 = vpack.c.b16 %v1669, %v1667
        %v1738 = vpack.c.b16 %v1672, %v1670
        %v1739 = vpack.c.b16 %v1673, %v1671
        %v1740 = vpack.c.b16 %v1676, %v1674
        %v1741 = vpack.c.b16 %v1677, %v1675
        %v1742 = vpack.c.b16 %v1680, %v1678
        %v1743 = vpack.c.b16 %v1681, %v1679
        %v1744 = vpack.c.b16 %v1684, %v1682
        %v1745 = vpack.c.b16 %v1685, %v1683
        %v1746 = vpack.c.b16 %v1688, %v1686
        %v1747 = vpack.c.b16 %v1689, %v1687
        %v1748 = vpack.c.b16 %v1692, %v1690
        %v1749 = vpack.c.b16 %v1693, %v1691
        %v1750 = vpack.c.b16 %v1696, %v1694
        %v1751 = vpack.c.b16 %v1697, %v1695
        %v1752 = vpack.c.b16 %v1700, %v1698
        %v1753 = vpack.c.b16 %v1701, %v1699
        %v1754 = vpack.c.b16 %v1704, %v1702
        %v1755 = vpack.c.b16 %v1705, %v1703
        %v1756 = vpack.c.b16 %v1708, %v1706
        %v1757 = vpack.c.b16 %v1709, %v1707
        %1806 = vmatprep.subr.bf16.mxu0 %v1711
        %1807 = vmatpush1.bf16.msra.mxu0 %v1710
        %1808 = vmatprep.subr.bf16.mxu0 %v1713
        %1809 = vmatpush1.bf16.msra.mxu0 %v1712
        %1810 = vmatprep.subr.bf16.mxu0 %v1715
        %1811 = vmatpush1.bf16.msra.mxu0 %v1714
        %1812 = vmatprep.subr.bf16.mxu0 %v1717
        %1813 = vmatpush1.bf16.msra.mxu0 %v1716
        %1814 = vmatprep.subr.bf16.mxu0 %v1719
        %1815 = vmatpush1.bf16.msra.mxu0 %v1718
        %1816 = vmatprep.subr.bf16.mxu0 %v1721
        %1817 = vmatpush1.bf16.msra.mxu0 %v1720
        %1818 = vmatprep.subr.bf16.mxu0 %v1723
        %1819 = vmatpush1.bf16.msra.mxu0 %v1722
        %1820 = vmatprep.subr.bf16.mxu0 %v1725
        %1821 = vmatpush1.bf16.msra.mxu0 %v1724
        %1822 = vmatprep.subr.bf16.mxu0 %v1727
        %1823 = vmatpush1.bf16.msra.mxu0 %v1726
        %1824 = vmatprep.subr.bf16.mxu0 %v1729
        %1825 = vmatpush1.bf16.msra.mxu0 %v1728
        %1826 = vmatprep.subr.bf16.mxu0 %v1731
        %1827 = vmatpush1.bf16.msra.mxu0 %v1730
        %1828 = vmatprep.subr.bf16.mxu0 %v1733
        %1829 = vmatpush1.bf16.msra.mxu0 %v1732
        %1830 = vmatprep.subr.bf16.mxu0 %v1735
        %1831 = vmatpush1.bf16.msra.mxu0 %v1734
        %1832 = vmatprep.subr.bf16.mxu0 %v1737
        %1833 = vmatpush1.bf16.msra.mxu0 %v1736
        %1834 = vmatprep.subr.bf16.mxu0 %v1739
        %1835 = vmatpush1.bf16.msra.mxu0 %v1738
        %1836 = vmatprep.subr.bf16.mxu0 %v1741
        %1837 = vmatpush1.bf16.msra.mxu0 %v1740
        %1838 = vmatprep.mubr.bf16.mxu0 %v1506
        %1839 = vmatmul.mubr.bf16.gmra.mrb[0].mxu0 %v1505
        %v1840 = vpop.f32.mrb[0].mxu0
        %v1841 = vadd.f32 0.0, %v1840
        %v1842 = vpop.f32.mrb[0].mxu0
        %v1843 = vadd.f32 0.0, %v1842
        %v1844 = vpop.f32.mrb[0].mxu0
        %v1845 = vadd.f32 0.0, %v1844
        %v1846 = vpop.f32.mrb[0].mxu0
        %v1847 = vadd.f32 0.0, %v1846
        %1848 = vmatprep.mubr.bf16.mxu0 %v1509
        %1849 = vmatmul.mubr.bf16.gmra.mrb[0].mxu0 %v1508
        %v1850 = vpop.f32.mrb[0].mxu0
        %v1851 = vadd.f32 0.0, %v1850
        %v1852 = vpop.f32.mrb[0].mxu0
        %v1853 = vadd.f32 0.0, %v1852
        %v1854 = vpop.f32.mrb[0].mxu0
        %v1855 = vadd.f32 0.0, %v1854
        %v1856 = vpop.f32.mrb[0].mxu0
        %v1857 = vadd.f32 0.0, %v1856
        %1858 = vmatprep.mubr.bf16.mxu0 %v1512
        %1859 = vmatmul.mubr.bf16.gmra.mrb[0].mxu0 %v1511
        %v1860 = vpop.f32.mrb[0].mxu0
        %v1861 = vadd.f32 0.0, %v1860
        %v1862 = vpop.f32.mrb[0].mxu0
        %v1863 = vadd.f32 0.0, %v1862
        %v1864 = vpop.f32.mrb[0].mxu0
        %v1865 = vadd.f32 0.0, %v1864
        %v1866 = vpop.f32.mrb[0].mxu0
        %v1867 = vadd.f32 0.0, %v1866
        %1868 = vmatprep.mubr.bf16.mxu0 %v1515
        %1869 = vmatmul.mubr.bf16.gmra.mrb[0].mxu0 %v1514
        %v1870 = vpop.f32.mrb[0].mxu0
        %v1871 = vadd.f32 0.0, %v1870
        %v1872 = vpop.f32.mrb[0].mxu0
        %v1873 = vadd.f32 0.0, %v1872
        %v1874 = vpop.f32.mrb[0].mxu0
        %v1875 = vadd.f32 0.0, %v1874
        %v1876 = vpop.f32.mrb[0].mxu0
        %v1877 = vadd.f32 0.0, %v1876
        %1878 = vdwg.mxu0
        %1879 = vmatprep.subr.bf16.mxu0 %v1743
        %1880 = vmatpush1.bf16.msra.mxu0 %v1742
        %1881 = vmatprep.subr.bf16.mxu0 %v1745
        %1882 = vmatpush1.bf16.msra.mxu0 %v1744
        %1883 = vmatprep.subr.bf16.mxu0 %v1747
        %1884 = vmatpush1.bf16.msra.mxu0 %v1746
        %1885 = vmatprep.subr.bf16.mxu0 %v1749
        %1886 = vmatpush1.bf16.msra.mxu0 %v1748
        %1887 = vmatprep.subr.bf16.mxu0 %v1751
        %1888 = vmatpush1.bf16.msra.mxu0 %v1750
        %1889 = vmatprep.subr.bf16.mxu0 %v1753
        %1890 = vmatpush1.bf16.msra.mxu0 %v1752
        %1891 = vmatprep.subr.bf16.mxu0 %v1755
        %1892 = vmatpush1.bf16.msra.mxu0 %v1754
        %1893 = vmatprep.subr.bf16.mxu0 %v1757
        %1894 = vmatpush1.bf16.msra.mxu0 %v1756
        %1895 = vmatprep.subr.bf16.mxu0 0
        %1896 = vmatpush1.bf16.msra.mxu0 0
        %1897 = vmatprep.subr.bf16.mxu0 0
        %1898 = vmatpush1.bf16.msra.mxu0 0
        %1899 = vmatprep.subr.bf16.mxu0 0
        %1900 = vmatpush1.bf16.msra.mxu0 0
        %1901 = vmatprep.subr.bf16.mxu0 0
        %1902 = vmatpush1.bf16.msra.mxu0 0
        %1903 = vmatprep.subr.bf16.mxu0 0
        %1904 = vmatpush1.bf16.msra.mxu0 0
        %1905 = vmatprep.subr.bf16.mxu0 0
        %1906 = vmatpush1.bf16.msra.mxu0 0
        %1907 = vmatprep.subr.bf16.mxu0 0
        %1908 = vmatpush1.bf16.msra.mxu0 0
        %1909 = vmatprep.subr.bf16.mxu0 0
        %1910 = vmatpush1.bf16.msra.mxu0 0
        %1911 = vmatprep.mubr.bf16.mxu0 0
        %1912 = vmatmul.mubr.bf16.gmra.mrb[0].mxu0 %v1507
        %v1913 = vpop.f32.mrb[0].mxu0
        %v1914 = vadd.f32 %v1841, %v1913
        %v1915 = vpop.f32.mrb[0].mxu0
        %v1916 = vadd.f32 %v1843, %v1915
        %v1917 = vpop.f32.mrb[0].mxu0
        %v1918 = vadd.f32 %v1845, %v1917
        %v1919 = vpop.f32.mrb[0].mxu0
        %v1920 = vadd.f32 %v1847, %v1919
        %1921 = vmatprep.mubr.bf16.mxu0 0
        %1922 = vmatmul.mubr.bf16.gmra.mrb[0].mxu0 %v1510
        %v1923 = vpop.f32.mrb[0].mxu0
        %v1924 = vadd.f32 %v1851, %v1923
        %v1925 = vpop.f32.mrb[0].mxu0
        %v1926 = vadd.f32 %v1853, %v1925
        %v1927 = vpop.f32.mrb[0].mxu0
        %v1928 = vadd.f32 %v1855, %v1927
        %v1929 = vpop.f32.mrb[0].mxu0
        %v1930 = vadd.f32 %v1857, %v1929
        %1931 = vmatprep.mubr.bf16.mxu0 0
        %1932 = vmatmul.mubr.bf16.gmra.mrb[0].mxu0 %v1513
        %v1933 = vpop.f32.mrb[0].mxu0
        %v1934 = vadd.f32 %v1861, %v1933
        %v1935 = vpop.f32.mrb[0].mxu0
        %v1936 = vadd.f32 %v1863, %v1935
        %v1937 = vpop.f32.mrb[0].mxu0
        %v1938 = vadd.f32 %v1865, %v1937
        %v1939 = vpop.f32.mrb[0].mxu0
        %v1940 = vadd.f32 %v1867, %v1939
        %1941 = vmatprep.mubr.bf16.mxu0 0
        %1942 = vmatmul.mubr.bf16.gmra.mrb[0].mxu0 %v1516
        %v1943 = vpop.f32.mrb[0].mxu0
        %v1944 = vadd.f32 %v1871, %v1943
        %v1945 = vpop.f32.mrb[0].mxu0
        %v1946 = vadd.f32 %v1873, %v1945
        %v1947 = vpop.f32.mrb[0].mxu0
        %v1948 = vadd.f32 %v1875, %v1947
        %v1949 = vpop.f32.mrb[0].mxu0
        %v1950 = vadd.f32 %v1877, %v1949
        %1951 = vdwg.mxu0
        %v1952 = vadd.f32 %v1395, %v1914
        %v1953 = vadd.f32 %v1397, %v1916
        %v1954 = vadd.f32 %v1399, %v1918
        %v1955 = vadd.f32 %v1401, %v1920
        %v1956 = vadd.f32 %v1405, %v1924
        %v1957 = vadd.f32 %v1407, %v1926
        %v1958 = vadd.f32 %v1409, %v1928
        %v1959 = vadd.f32 %v1411, %v1930
        %v1960 = vadd.f32 %v1415, %v1934
        %v1961 = vadd.f32 %v1417, %v1936
        %v1962 = vadd.f32 %v1419, %v1938
        %v1963 = vadd.f32 %v1421, %v1940
        %v1964 = vadd.f32 %v1425, %v1944
        %v1965 = vadd.f32 %v1427, %v1946
        %v1966 = vadd.f32 %v1429, %v1948
        %v1967 = vadd.f32 %v1431, %v1950
        %1968 = vset.pattern.permute.xlu0 3
        %1969 = vperm.xlu0 %1968, %v384
        %v1970 = vpop.permute.xlu0 %1969
        %1971 = vset.pattern.permute.xlu0 3
        %1972 = vperm.xlu0 %1971, %v385
        %v1973 = vpop.permute.xlu0 %1972
        %1974 = vset.pattern.permute.xlu0 3
        %1975 = vperm.xlu0 %1974, %v386
        %v1976 = vpop.permute.xlu0 %1975
        %1977 = vset.pattern.permute.xlu0 3
        %1978 = vperm.xlu0 %1977, %v387
        %v1979 = vpop.permute.xlu0 %1978
        %1980 = vset.pattern.permute.xlu0 3
        %1981 = vperm.xlu0 %1980, %v388
        %v1982 = vpop.permute.xlu0 %1981
        %1983 = vset.pattern.permute.xlu0 3
        %1984 = vperm.xlu0 %1983, %v389
        %v1985 = vpop.permute.xlu0 %1984
        %1986 = vset.pattern.permute.xlu0 3
        %1987 = vperm.xlu0 %1986, %v390
        %v1988 = vpop.permute.xlu0 %1987
        %1989 = vset.pattern.permute.xlu0 3
        %1990 = vperm.xlu0 %1989, %v391
        %v1991 = vpop.permute.xlu0 %1990
        %vm1992 = vcmp.eq.s32.totalorder %v1970, %v393
        %vm1993 = vcmp.eq.s32.totalorder %v1970, %v394
        %vm1994 = vcmp.eq.s32.totalorder %v1970, %v395
        %vm1995 = vcmp.eq.s32.totalorder %v1973, %v393
        %vm1996 = vcmp.eq.s32.totalorder %v1973, %v394
        %vm1997 = vcmp.eq.s32.totalorder %v1973, %v395
        %vm1998 = vcmp.eq.s32.totalorder %v1976, %v393
        %vm1999 = vcmp.eq.s32.totalorder %v1976, %v394
        %vm2000 = vcmp.eq.s32.totalorder %v1976, %v395
        %vm2001 = vcmp.eq.s32.totalorder %v1979, %v393
        %vm2002 = vcmp.eq.s32.totalorder %v1979, %v394
        %vm2003 = vcmp.eq.s32.totalorder %v1979, %v395
        %vm2004 = vcmp.eq.s32.totalorder %v1982, %v393
        %vm2005 = vcmp.eq.s32.totalorder %v1982, %v394
        %vm2006 = vcmp.eq.s32.totalorder %v1982, %v395
        %vm2007 = vcmp.eq.s32.totalorder %v1985, %v393
        %vm2008 = vcmp.eq.s32.totalorder %v1985, %v394
        %vm2009 = vcmp.eq.s32.totalorder %v1985, %v395
        %vm2010 = vcmp.eq.s32.totalorder %v1988, %v393
        %vm2011 = vcmp.eq.s32.totalorder %v1988, %v394
        %vm2012 = vcmp.eq.s32.totalorder %v1988, %v395
        %vm2013 = vcmp.eq.s32.totalorder %v1991, %v393
        %vm2014 = vcmp.eq.s32.totalorder %v1991, %v394
        %vm2015 = vcmp.eq.s32.totalorder %v1991, %v395
        %v2016 = vsel %vm1992, 1.0, 0.0
        %v2017 = vsel %vm1993, 1.0, 0.0
        %v2018 = vsel %vm1994, 1.0, 0.0
        %v2019 = vsel %vm1995, 1.0, 0.0
        %v2020 = vsel %vm1996, 1.0, 0.0
        %v2021 = vsel %vm1997, 1.0, 0.0
        %v2022 = vsel %vm1998, 1.0, 0.0
        %v2023 = vsel %vm1999, 1.0, 0.0
        %v2024 = vsel %vm2000, 1.0, 0.0
        %v2025 = vsel %vm2001, 1.0, 0.0
        %v2026 = vsel %vm2002, 1.0, 0.0
        %v2027 = vsel %vm2003, 1.0, 0.0
        %v2028 = vsel %vm2004, 1.0, 0.0
        %v2029 = vsel %vm2005, 1.0, 0.0
        %v2030 = vsel %vm2006, 1.0, 0.0
        %v2031 = vsel %vm2007, 1.0, 0.0
        %v2032 = vsel %vm2008, 1.0, 0.0
        %v2033 = vsel %vm2009, 1.0, 0.0
        %v2034 = vsel %vm2010, 1.0, 0.0
        %v2035 = vsel %vm2011, 1.0, 0.0
        %v2036 = vsel %vm2012, 1.0, 0.0
        %v2037 = vsel %vm2013, 1.0, 0.0
        %v2038 = vsel %vm2014, 1.0, 0.0
        %v2039 = vsel %vm2015, 1.0, 0.0
        %v2040 = vpack.c.bf16 %v2019, %v2016
        %v2041 = vpack.c.bf16 %v2020, %v2017
        %v2042 = vpack.c.bf16 %v2021, %v2018
        %v2043 = vpack.c.bf16 %v2025, %v2022
        %v2044 = vpack.c.bf16 %v2026, %v2023
        %v2045 = vpack.c.bf16 %v2027, %v2024
        %v2046 = vpack.c.bf16 %v2031, %v2028
        %v2047 = vpack.c.bf16 %v2032, %v2029
        %v2048 = vpack.c.bf16 %v2033, %v2030
        %v2049 = vpack.c.bf16 %v2037, %v2034
        %v2050 = vpack.c.bf16 %v2038, %v2035
        %v2051 = vpack.c.bf16 %v2039, %v2036
        %s2052 = scalar_lea.vmem [#allocation3], 1152
        %v2053 = vld [vmem:[%s2052] sm:$0xff]
        %v2054 = vld [vmem:[%s2052 + $0x8] sm:$0xff]
        %v2055 = vld [vmem:[%s2052 + $0x10] sm:$0xff]
        %v2056 = vld [vmem:[%s2052 + $0x18] sm:$0xff]
        %v2057 = vld [vmem:[%s2052 + $0x20] sm:$0xff]
        %v2058 = vld [vmem:[%s2052 + $0x28] sm:$0xff]
        %v2059 = vld [vmem:[%s2052 + $0x30] sm:$0xff]
        %v2060 = vld [vmem:[%s2052 + $0x38] sm:$0xff]
        %v2061 = vld [vmem:[%s2052 + $0x40] sm:$0xff]
        %v2062 = vld [vmem:[%s2052 + $0x48] sm:$0xff]
        %v2063 = vld [vmem:[%s2052 + $0x50] sm:$0xff]
        %v2064 = vld [vmem:[%s2052 + $0x58] sm:$0xff]
        %v2065 = vld [vmem:[%s2052 + $0x60] sm:$0xff]
        %v2066 = vld [vmem:[%s2052 + $0x68] sm:$0xff]
        %v2067 = vld [vmem:[%s2052 + $0x70] sm:$0xff]
        %v2068 = vld [vmem:[%s2052 + $0x78] sm:$0xff]
        %v2069 = vld [vmem:[%s2052 + $0x80] sm:$0xff]
        %v2070 = vld [vmem:[%s2052 + $0x88] sm:$0xff]
        %v2071 = vld [vmem:[%s2052 + $0x90] sm:$0xff]
        %v2072 = vld [vmem:[%s2052 + $0x98] sm:$0xff]
        %v2073 = vld [vmem:[%s2052 + $0xa0] sm:$0xff]
        %v2074 = vld [vmem:[%s2052 + $0xa8] sm:$0xff]
        %v2075 = vld [vmem:[%s2052 + $0xb0] sm:$0xff]
        %v2076 = vld [vmem:[%s2052 + $0xb8] sm:$0xff]
        %v2077 = vld [vmem:[%s2052 + $0xc0] sm:$0xff]
        %v2078 = vld [vmem:[%s2052 + $0xc8] sm:$0xff]
        %v2079 = vld [vmem:[%s2052 + $0xd0] sm:$0xff]
        %v2080 = vld [vmem:[%s2052 + $0xd8] sm:$0xff]
        %v2081 = vld [vmem:[%s2052 + $0xe0] sm:$0xff]
        %v2082 = vld [vmem:[%s2052 + $0xe8] sm:$0xff]
        %v2083 = vld [vmem:[%s2052 + $0xf0] sm:$0xff]
        %v2084 = vld [vmem:[%s2052 + $0xf8] sm:$0xff]
        %v2085 = vld [vmem:[%s2052 + $0x100] sm:$0xff]
        %v2086 = vld [vmem:[%s2052 + $0x108] sm:$0xff]
        %v2087 = vld [vmem:[%s2052 + $0x110] sm:$0xff]
        %v2088 = vld [vmem:[%s2052 + $0x118] sm:$0xff]
        %v2089 = vld [vmem:[%s2052 + $0x120] sm:$0xff]
        %v2090 = vld [vmem:[%s2052 + $0x128] sm:$0xff]
        %v2091 = vld [vmem:[%s2052 + $0x130] sm:$0xff]
        %v2092 = vld [vmem:[%s2052 + $0x138] sm:$0xff]
        %v2093 = vld [vmem:[%s2052 + $0x140] sm:$0xff]
        %v2094 = vld [vmem:[%s2052 + $0x148] sm:$0xff]
        %v2095 = vld [vmem:[%s2052 + $0x150] sm:$0xff]
        %v2096 = vld [vmem:[%s2052 + $0x158] sm:$0xff]
        %v2097 = vld [vmem:[%s2052 + $0x160] sm:$0xff]
        %v2098 = vld [vmem:[%s2052 + $0x168] sm:$0xff]
        %v2099 = vld [vmem:[%s2052 + $0x170] sm:$0xff]
        %v2100 = vld [vmem:[%s2052 + $0x178] sm:$0xff]
        %v2149 = vunpack.c.l.b16 %v2053
        %v2150 = vunpack.c.h.b16 %v2053
        %v2151 = vunpack.c.l.b16 %v2054
        %v2152 = vunpack.c.h.b16 %v2054
        %v2153 = vunpack.c.l.b16 %v2055
        %v2154 = vunpack.c.h.b16 %v2055
        %v2155 = vunpack.c.l.b16 %v2056
        %v2156 = vunpack.c.h.b16 %v2056
        %v2157 = vunpack.c.l.b16 %v2057
        %v2158 = vunpack.c.h.b16 %v2057
        %v2159 = vunpack.c.l.b16 %v2058
        %v2160 = vunpack.c.h.b16 %v2058
        %v2161 = vunpack.c.l.b16 %v2059
        %v2162 = vunpack.c.h.b16 %v2059
        %v2163 = vunpack.c.l.b16 %v2060
        %v2164 = vunpack.c.h.b16 %v2060
        %v2165 = vunpack.c.l.b16 %v2061
        %v2166 = vunpack.c.h.b16 %v2061
        %v2167 = vunpack.c.l.b16 %v2062
        %v2168 = vunpack.c.h.b16 %v2062
        %v2169 = vunpack.c.l.b16 %v2063
        %v2170 = vunpack.c.h.b16 %v2063
        %v2171 = vunpack.c.l.b16 %v2064
        %v2172 = vunpack.c.h.b16 %v2064
        %v2173 = vunpack.c.l.b16 %v2065
        %v2174 = vunpack.c.h.b16 %v2065
        %v2175 = vunpack.c.l.b16 %v2066
        %v2176 = vunpack.c.h.b16 %v2066
        %v2177 = vunpack.c.l.b16 %v2067
        %v2178 = vunpack.c.h.b16 %v2067
        %v2179 = vunpack.c.l.b16 %v2068
        %v2180 = vunpack.c.h.b16 %v2068
        %v2181 = vunpack.c.l.b16 %v2069
        %v2182 = vunpack.c.h.b16 %v2069
        %v2183 = vunpack.c.l.b16 %v2070
        %v2184 = vunpack.c.h.b16 %v2070
        %v2185 = vunpack.c.l.b16 %v2071
        %v2186 = vunpack.c.h.b16 %v2071
        %v2187 = vunpack.c.l.b16 %v2072
        %v2188 = vunpack.c.h.b16 %v2072
        %v2189 = vunpack.c.l.b16 %v2073
        %v2190 = vunpack.c.h.b16 %v2073
        %v2191 = vunpack.c.l.b16 %v2074
        %v2192 = vunpack.c.h.b16 %v2074
        %v2193 = vunpack.c.l.b16 %v2075
        %v2194 = vunpack.c.h.b16 %v2075
        %v2195 = vunpack.c.l.b16 %v2076
        %v2196 = vunpack.c.h.b16 %v2076
        %v2197 = vunpack.c.l.b16 %v2077
        %v2198 = vunpack.c.h.b16 %v2077
        %v2199 = vunpack.c.l.b16 %v2078
        %v2200 = vunpack.c.h.b16 %v2078
        %v2201 = vunpack.c.l.b16 %v2079
        %v2202 = vunpack.c.h.b16 %v2079
        %v2203 = vunpack.c.l.b16 %v2080
        %v2204 = vunpack.c.h.b16 %v2080
        %v2205 = vunpack.c.l.b16 %v2081
        %v2206 = vunpack.c.h.b16 %v2081
        %v2207 = vunpack.c.l.b16 %v2082
        %v2208 = vunpack.c.h.b16 %v2082
        %v2209 = vunpack.c.l.b16 %v2083
        %v2210 = vunpack.c.h.b16 %v2083
        %v2211 = vunpack.c.l.b16 %v2084
        %v2212 = vunpack.c.h.b16 %v2084
        %v2213 = vunpack.c.l.b16 %v2085
        %v2214 = vunpack.c.h.b16 %v2085
        %v2215 = vunpack.c.l.b16 %v2086
        %v2216 = vunpack.c.h.b16 %v2086
        %v2217 = vunpack.c.l.b16 %v2087
        %v2218 = vunpack.c.h.b16 %v2087
        %v2219 = vunpack.c.l.b16 %v2088
        %v2220 = vunpack.c.h.b16 %v2088
        %v2221 = vunpack.c.l.b16 %v2089
        %v2222 = vunpack.c.h.b16 %v2089
        %v2223 = vunpack.c.l.b16 %v2090
        %v2224 = vunpack.c.h.b16 %v2090
        %v2225 = vunpack.c.l.b16 %v2091
        %v2226 = vunpack.c.h.b16 %v2091
        %v2227 = vunpack.c.l.b16 %v2092
        %v2228 = vunpack.c.h.b16 %v2092
        %v2229 = vunpack.c.l.b16 %v2093
        %v2230 = vunpack.c.h.b16 %v2093
        %v2231 = vunpack.c.l.b16 %v2094
        %v2232 = vunpack.c.h.b16 %v2094
        %v2233 = vunpack.c.l.b16 %v2095
        %v2234 = vunpack.c.h.b16 %v2095
        %v2235 = vunpack.c.l.b16 %v2096
        %v2236 = vunpack.c.h.b16 %v2096
        %v2237 = vunpack.c.l.b16 %v2097
        %v2238 = vunpack.c.h.b16 %v2097
        %v2239 = vunpack.c.l.b16 %v2098
        %v2240 = vunpack.c.h.b16 %v2098
        %v2241 = vunpack.c.l.b16 %v2099
        %v2242 = vunpack.c.h.b16 %v2099
        %v2243 = vunpack.c.l.b16 %v2100
        %v2244 = vunpack.c.h.b16 %v2100
        %v2245 = vpack.c.b16 %v2151, %v2149
        %v2246 = vpack.c.b16 %v2152, %v2150
        %v2247 = vpack.c.b16 %v2155, %v2153
        %v2248 = vpack.c.b16 %v2156, %v2154
        %v2249 = vpack.c.b16 %v2159, %v2157
        %v2250 = vpack.c.b16 %v2160, %v2158
        %v2251 = vpack.c.b16 %v2163, %v2161
        %v2252 = vpack.c.b16 %v2164, %v2162
        %v2253 = vpack.c.b16 %v2167, %v2165
        %v2254 = vpack.c.b16 %v2168, %v2166
        %v2255 = vpack.c.b16 %v2171, %v2169
        %v2256 = vpack.c.b16 %v2172, %v2170
        %v2257 = vpack.c.b16 %v2175, %v2173
        %v2258 = vpack.c.b16 %v2176, %v2174
        %v2259 = vpack.c.b16 %v2179, %v2177
        %v2260 = vpack.c.b16 %v2180, %v2178
        %v2261 = vpack.c.b16 %v2183, %v2181
        %v2262 = vpack.c.b16 %v2184, %v2182
        %v2263 = vpack.c.b16 %v2187, %v2185
        %v2264 = vpack.c.b16 %v2188, %v2186
        %v2265 = vpack.c.b16 %v2191, %v2189
        %v2266 = vpack.c.b16 %v2192, %v2190
        %v2267 = vpack.c.b16 %v2195, %v2193
        %v2268 = vpack.c.b16 %v2196, %v2194
        %v2269 = vpack.c.b16 %v2199, %v2197
        %v2270 = vpack.c.b16 %v2200, %v2198
        %v2271 = vpack.c.b16 %v2203, %v2201
        %v2272 = vpack.c.b16 %v2204, %v2202
        %v2273 = vpack.c.b16 %v2207, %v2205
        %v2274 = vpack.c.b16 %v2208, %v2206
        %v2275 = vpack.c.b16 %v2211, %v2209
        %v2276 = vpack.c.b16 %v2212, %v2210
        %v2277 = vpack.c.b16 %v2215, %v2213
        %v2278 = vpack.c.b16 %v2216, %v2214
        %v2279 = vpack.c.b16 %v2219, %v2217
        %v2280 = vpack.c.b16 %v2220, %v2218
        %v2281 = vpack.c.b16 %v2223, %v2221
        %v2282 = vpack.c.b16 %v2224, %v2222
        %v2283 = vpack.c.b16 %v2227, %v2225
        %v2284 = vpack.c.b16 %v2228, %v2226
        %v2285 = vpack.c.b16 %v2231, %v2229
        %v2286 = vpack.c.b16 %v2232, %v2230
        %v2287 = vpack.c.b16 %v2235, %v2233
        %v2288 = vpack.c.b16 %v2236, %v2234
        %v2289 = vpack.c.b16 %v2239, %v2237
        %v2290 = vpack.c.b16 %v2240, %v2238
        %v2291 = vpack.c.b16 %v2243, %v2241
        %v2292 = vpack.c.b16 %v2244, %v2242
        %2341 = vmatprep.subr.bf16.mxu0 %v2246
        %2342 = vmatpush1.bf16.msra.mxu0 %v2245
        %2343 = vmatprep.subr.bf16.mxu0 %v2248
        %2344 = vmatpush1.bf16.msra.mxu0 %v2247
        %2345 = vmatprep.subr.bf16.mxu0 %v2250
        %2346 = vmatpush1.bf16.msra.mxu0 %v2249
        %2347 = vmatprep.subr.bf16.mxu0 %v2252
        %2348 = vmatpush1.bf16.msra.mxu0 %v2251
        %2349 = vmatprep.subr.bf16.mxu0 %v2254
        %2350 = vmatpush1.bf16.msra.mxu0 %v2253
        %2351 = vmatprep.subr.bf16.mxu0 %v2256
        %2352 = vmatpush1.bf16.msra.mxu0 %v2255
        %2353 = vmatprep.subr.bf16.mxu0 %v2258
        %2354 = vmatpush1.bf16.msra.mxu0 %v2257
        %2355 = vmatprep.subr.bf16.mxu0 %v2260
        %2356 = vmatpush1.bf16.msra.mxu0 %v2259
        %2357 = vmatprep.subr.bf16.mxu0 %v2262
        %2358 = vmatpush1.bf16.msra.mxu0 %v2261
        %2359 = vmatprep.subr.bf16.mxu0 %v2264
        %2360 = vmatpush1.bf16.msra.mxu0 %v2263
        %2361 = vmatprep.subr.bf16.mxu0 %v2266
        %2362 = vmatpush1.bf16.msra.mxu0 %v2265
        %2363 = vmatprep.subr.bf16.mxu0 %v2268
        %2364 = vmatpush1.bf16.msra.mxu0 %v2267
        %2365 = vmatprep.subr.bf16.mxu0 %v2270
        %2366 = vmatpush1.bf16.msra.mxu0 %v2269
        %2367 = vmatprep.subr.bf16.mxu0 %v2272
        %2368 = vmatpush1.bf16.msra.mxu0 %v2271
        %2369 = vmatprep.subr.bf16.mxu0 %v2274
        %2370 = vmatpush1.bf16.msra.mxu0 %v2273
        %2371 = vmatprep.subr.bf16.mxu0 %v2276
        %2372 = vmatpush1.bf16.msra.mxu0 %v2275
        %2373 = vmatprep.mubr.bf16.mxu0 %v2041
        %2374 = vmatmul.mubr.bf16.gmra.mrb[0].mxu0 %v2040
        %v2375 = vpop.f32.mrb[0].mxu0
        %v2376 = vadd.f32 0.0, %v2375
        %v2377 = vpop.f32.mrb[0].mxu0
        %v2378 = vadd.f32 0.0, %v2377
        %v2379 = vpop.f32.mrb[0].mxu0
        %v2380 = vadd.f32 0.0, %v2379
        %v2381 = vpop.f32.mrb[0].mxu0
        %v2382 = vadd.f32 0.0, %v2381
        %2383 = vmatprep.mubr.bf16.mxu0 %v2044
        %2384 = vmatmul.mubr.bf16.gmra.mrb[0].mxu0 %v2043
        %v2385 = vpop.f32.mrb[0].mxu0
        %v2386 = vadd.f32 0.0, %v2385
        %v2387 = vpop.f32.mrb[0].mxu0
        %v2388 = vadd.f32 0.0, %v2387
        %v2389 = vpop.f32.mrb[0].mxu0
        %v2390 = vadd.f32 0.0, %v2389
        %v2391 = vpop.f32.mrb[0].mxu0
        %v2392 = vadd.f32 0.0, %v2391
        %2393 = vmatprep.mubr.bf16.mxu0 %v2047
        %2394 = vmatmul.mubr.bf16.gmra.mrb[0].mxu0 %v2046
        %v2395 = vpop.f32.mrb[0].mxu0
        %v2396 = vadd.f32 0.0, %v2395
        %v2397 = vpop.f32.mrb[0].mxu0
        %v2398 = vadd.f32 0.0, %v2397
        %v2399 = vpop.f32.mrb[0].mxu0
        %v2400 = vadd.f32 0.0, %v2399
        %v2401 = vpop.f32.mrb[0].mxu0
        %v2402 = vadd.f32 0.0, %v2401
        %2403 = vmatprep.mubr.bf16.mxu0 %v2050
        %2404 = vmatmul.mubr.bf16.gmra.mrb[0].mxu0 %v2049
        %v2405 = vpop.f32.mrb[0].mxu0
        %v2406 = vadd.f32 0.0, %v2405
        %v2407 = vpop.f32.mrb[0].mxu0
        %v2408 = vadd.f32 0.0, %v2407
        %v2409 = vpop.f32.mrb[0].mxu0
        %v2410 = vadd.f32 0.0, %v2409
        %v2411 = vpop.f32.mrb[0].mxu0
        %v2412 = vadd.f32 0.0, %v2411
        %2413 = vdwg.mxu0
        %2414 = vmatprep.subr.bf16.mxu0 %v2278
        %2415 = vmatpush1.bf16.msra.mxu0 %v2277
        %2416 = vmatprep.subr.bf16.mxu0 %v2280
        %2417 = vmatpush1.bf16.msra.mxu0 %v2279
        %2418 = vmatprep.subr.bf16.mxu0 %v2282
        %2419 = vmatpush1.bf16.msra.mxu0 %v2281
        %2420 = vmatprep.subr.bf16.mxu0 %v2284
        %2421 = vmatpush1.bf16.msra.mxu0 %v2283
        %2422 = vmatprep.subr.bf16.mxu0 %v2286
        %2423 = vmatpush1.bf16.msra.mxu0 %v2285
        %2424 = vmatprep.subr.bf16.mxu0 %v2288
        %2425 = vmatpush1.bf16.msra.mxu0 %v2287
        %2426 = vmatprep.subr.bf16.mxu0 %v2290
        %2427 = vmatpush1.bf16.msra.mxu0 %v2289
        %2428 = vmatprep.subr.bf16.mxu0 %v2292
        %2429 = vmatpush1.bf16.msra.mxu0 %v2291
        %2430 = vmatprep.subr.bf16.mxu0 0
        %2431 = vmatpush1.bf16.msra.mxu0 0
        %2432 = vmatprep.subr.bf16.mxu0 0
        %2433 = vmatpush1.bf16.msra.mxu0 0
        %2434 = vmatprep.subr.bf16.mxu0 0
        %2435 = vmatpush1.bf16.msra.mxu0 0
        %2436 = vmatprep.subr.bf16.mxu0 0
        %2437 = vmatpush1.bf16.msra.mxu0 0
        %2438 = vmatprep.subr.bf16.mxu0 0
        %2439 = vmatpush1.bf16.msra.mxu0 0
        %2440 = vmatprep.subr.bf16.mxu0 0
        %2441 = vmatpush1.bf16.msra.mxu0 0
        %2442 = vmatprep.subr.bf16.mxu0 0
        %2443 = vmatpush1.bf16.msra.mxu0 0
        %2444 = vmatprep.subr.bf16.mxu0 0
        %2445 = vmatpush1.bf16.msra.mxu0 0
        %2446 = vmatprep.mubr.bf16.mxu0 0
        %2447 = vmatmul.mubr.bf16.gmra.mrb[0].mxu0 %v2042
        %v2448 = vpop.f32.mrb[0].mxu0
        %v2449 = vadd.f32 %v2376, %v2448
        %v2450 = vpop.f32.mrb[0].mxu0
        %v2451 = vadd.f32 %v2378, %v2450
        %v2452 = vpop.f32.mrb[0].mxu0
        %v2453 = vadd.f32 %v2380, %v2452
        %v2454 = vpop.f32.mrb[0].mxu0
        %v2455 = vadd.f32 %v2382, %v2454
        %2456 = vmatprep.mubr.bf16.mxu0 0
        %2457 = vmatmul.mubr.bf16.gmra.mrb[0].mxu0 %v2045
        %v2458 = vpop.f32.mrb[0].mxu0
        %v2459 = vadd.f32 %v2386, %v2458
        %v2460 = vpop.f32.mrb[0].mxu0
        %v2461 = vadd.f32 %v2388, %v2460
        %v2462 = vpop.f32.mrb[0].mxu0
        %v2463 = vadd.f32 %v2390, %v2462
        %v2464 = vpop.f32.mrb[0].mxu0
        %v2465 = vadd.f32 %v2392, %v2464
        %2466 = vmatprep.mubr.bf16.mxu0 0
        %2467 = vmatmul.mubr.bf16.gmra.mrb[0].mxu0 %v2048
        %v2468 = vpop.f32.mrb[0].mxu0
        %v2469 = vadd.f32 %v2396, %v2468
        %v2470 = vpop.f32.mrb[0].mxu0
        %v2471 = vadd.f32 %v2398, %v2470
        %v2472 = vpop.f32.mrb[0].mxu0
        %v2473 = vadd.f32 %v2400, %v2472
        %v2474 = vpop.f32.mrb[0].mxu0
        %v2475 = vadd.f32 %v2402, %v2474
        %2476 = vmatprep.mubr.bf16.mxu0 0
        %2477 = vmatmul.mubr.bf16.gmra.mrb[0].mxu0 %v2051
        %v2478 = vpop.f32.mrb[0].mxu0
        %v2479 = vadd.f32 %v2406, %v2478
        %v2480 = vpop.f32.mrb[0].mxu0
        %v2481 = vadd.f32 %v2408, %v2480
        %v2482 = vpop.f32.mrb[0].mxu0
        %v2483 = vadd.f32 %v2410, %v2482
        %v2484 = vpop.f32.mrb[0].mxu0
        %v2485 = vadd.f32 %v2412, %v2484
        %2486 = vdwg.mxu0
        %v2487 = vadd.f32 %v1952, %v2449
        %v2488 = vadd.f32 %v1953, %v2451
        %v2489 = vadd.f32 %v1954, %v2453
        %v2490 = vadd.f32 %v1955, %v2455
        %v2491 = vadd.f32 %v1956, %v2459
        %v2492 = vadd.f32 %v1957, %v2461
        %v2493 = vadd.f32 %v1958, %v2463
        %v2494 = vadd.f32 %v1959, %v2465
        %v2495 = vadd.f32 %v1960, %v2469
        %v2496 = vadd.f32 %v1961, %v2471
        %v2497 = vadd.f32 %v1962, %v2473
        %v2498 = vadd.f32 %v1963, %v2475
        %v2499 = vadd.f32 %v1964, %v2479
        %v2500 = vadd.f32 %v1965, %v2481
        %v2501 = vadd.f32 %v1966, %v2483
        %v2502 = vadd.f32 %v1967, %v2485
        %2503 = vset.pattern.permute.xlu0 4
        %2504 = vperm.xlu0 %2503, %v384
        %v2505 = vpop.permute.xlu0 %2504
        %2506 = vset.pattern.permute.xlu0 4
        %2507 = vperm.xlu0 %2506, %v385
        %v2508 = vpop.permute.xlu0 %2507
        %2509 = vset.pattern.permute.xlu0 4
        %2510 = vperm.xlu0 %2509, %v386
        %v2511 = vpop.permute.xlu0 %2510
        %2512 = vset.pattern.permute.xlu0 4
        %2513 = vperm.xlu0 %2512, %v387
        %v2514 = vpop.permute.xlu0 %2513
        %2515 = vset.pattern.permute.xlu0 4
        %2516 = vperm.xlu0 %2515, %v388
        %v2517 = vpop.permute.xlu0 %2516
        %2518 = vset.pattern.permute.xlu0 4
        %2519 = vperm.xlu0 %2518, %v389
        %v2520 = vpop.permute.xlu0 %2519
        %2521 = vset.pattern.permute.xlu0 4
        %2522 = vperm.xlu0 %2521, %v390
        %v2523 = vpop.permute.xlu0 %2522
        %2524 = vset.pattern.permute.xlu0 4
        %2525 = vperm.xlu0 %2524, %v391
        %v2526 = vpop.permute.xlu0 %2525
        %vm2527 = vcmp.eq.s32.totalorder %v2505, %v393
        %vm2528 = vcmp.eq.s32.totalorder %v2505, %v394
        %vm2529 = vcmp.eq.s32.totalorder %v2505, %v395
        %vm2530 = vcmp.eq.s32.totalorder %v2508, %v393
        %vm2531 = vcmp.eq.s32.totalorder %v2508, %v394
        %vm2532 = vcmp.eq.s32.totalorder %v2508, %v395
        %vm2533 = vcmp.eq.s32.totalorder %v2511, %v393
        %vm2534 = vcmp.eq.s32.totalorder %v2511, %v394
        %vm2535 = vcmp.eq.s32.totalorder %v2511, %v395
        %vm2536 = vcmp.eq.s32.totalorder %v2514, %v393
        %vm2537 = vcmp.eq.s32.totalorder %v2514, %v394
        %vm2538 = vcmp.eq.s32.totalorder %v2514, %v395
        %vm2539 = vcmp.eq.s32.totalorder %v2517, %v393
        %vm2540 = vcmp.eq.s32.totalorder %v2517, %v394
        %vm2541 = vcmp.eq.s32.totalorder %v2517, %v395
        %vm2542 = vcmp.eq.s32.totalorder %v2520, %v393
        %vm2543 = vcmp.eq.s32.totalorder %v2520, %v394
        %vm2544 = vcmp.eq.s32.totalorder %v2520, %v395
        %vm2545 = vcmp.eq.s32.totalorder %v2523, %v393
        %vm2546 = vcmp.eq.s32.totalorder %v2523, %v394
        %vm2547 = vcmp.eq.s32.totalorder %v2523, %v395
        %vm2548 = vcmp.eq.s32.totalorder %v2526, %v393
        %vm2549 = vcmp.eq.s32.totalorder %v2526, %v394
        %vm2550 = vcmp.eq.s32.totalorder %v2526, %v395
        %v2551 = vsel %vm2527, 1.0, 0.0
        %v2552 = vsel %vm2528, 1.0, 0.0
        %v2553 = vsel %vm2529, 1.0, 0.0
        %v2554 = vsel %vm2530, 1.0, 0.0
        %v2555 = vsel %vm2531, 1.0, 0.0
        %v2556 = vsel %vm2532, 1.0, 0.0
        %v2557 = vsel %vm2533, 1.0, 0.0
        %v2558 = vsel %vm2534, 1.0, 0.0
        %v2559 = vsel %vm2535, 1.0, 0.0
        %v2560 = vsel %vm2536, 1.0, 0.0
        %v2561 = vsel %vm2537, 1.0, 0.0
        %v2562 = vsel %vm2538, 1.0, 0.0
        %v2563 = vsel %vm2539, 1.0, 0.0
        %v2564 = vsel %vm2540, 1.0, 0.0
        %v2565 = vsel %vm2541, 1.0, 0.0
        %v2566 = vsel %vm2542, 1.0, 0.0
        %v2567 = vsel %vm2543, 1.0, 0.0
        %v2568 = vsel %vm2544, 1.0, 0.0
        %v2569 = vsel %vm2545, 1.0, 0.0
        %v2570 = vsel %vm2546, 1.0, 0.0
        %v2571 = vsel %vm2547, 1.0, 0.0
        %v2572 = vsel %vm2548, 1.0, 0.0
        %v2573 = vsel %vm2549, 1.0, 0.0
        %v2574 = vsel %vm2550, 1.0, 0.0
        %v2575 = vpack.c.bf16 %v2554, %v2551
        %v2576 = vpack.c.bf16 %v2555, %v2552
        %v2577 = vpack.c.bf16 %v2556, %v2553
        %v2578 = vpack.c.bf16 %v2560, %v2557
        %v2579 = vpack.c.bf16 %v2561, %v2558
        %v2580 = vpack.c.bf16 %v2562, %v2559
        %v2581 = vpack.c.bf16 %v2566, %v2563
        %v2582 = vpack.c.bf16 %v2567, %v2564
        %v2583 = vpack.c.bf16 %v2568, %v2565
        %v2584 = vpack.c.bf16 %v2572, %v2569
        %v2585 = vpack.c.bf16 %v2573, %v2570
        %v2586 = vpack.c.bf16 %v2574, %v2571
        %s2587 = scalar_lea.vmem [#allocation3], 1536
        %v2588 = vld [vmem:[%s2587] sm:$0xff]
        %v2589 = vld [vmem:[%s2587 + $0x8] sm:$0xff]
        %v2590 = vld [vmem:[%s2587 + $0x10] sm:$0xff]
        %v2591 = vld [vmem:[%s2587 + $0x18] sm:$0xff]
        %v2592 = vld [vmem:[%s2587 + $0x20] sm:$0xff]
        %v2593 = vld [vmem:[%s2587 + $0x28] sm:$0xff]
        %v2594 = vld [vmem:[%s2587 + $0x30] sm:$0xff]
        %v2595 = vld [vmem:[%s2587 + $0x38] sm:$0xff]
        %v2596 = vld [vmem:[%s2587 + $0x40] sm:$0xff]
        %v2597 = vld [vmem:[%s2587 + $0x48] sm:$0xff]
        %v2598 = vld [vmem:[%s2587 + $0x50] sm:$0xff]
        %v2599 = vld [vmem:[%s2587 + $0x58] sm:$0xff]
        %v2600 = vld [vmem:[%s2587 + $0x60] sm:$0xff]
        %v2601 = vld [vmem:[%s2587 + $0x68] sm:$0xff]
        %v2602 = vld [vmem:[%s2587 + $0x70] sm:$0xff]
        %v2603 = vld [vmem:[%s2587 + $0x78] sm:$0xff]
        %v2604 = vld [vmem:[%s2587 + $0x80] sm:$0xff]
        %v2605 = vld [vmem:[%s2587 + $0x88] sm:$0xff]
        %v2606 = vld [vmem:[%s2587 + $0x90] sm:$0xff]
        %v2607 = vld [vmem:[%s2587 + $0x98] sm:$0xff]
        %v2608 = vld [vmem:[%s2587 + $0xa0] sm:$0xff]
        %v2609 = vld [vmem:[%s2587 + $0xa8] sm:$0xff]
        %v2610 = vld [vmem:[%s2587 + $0xb0] sm:$0xff]
        %v2611 = vld [vmem:[%s2587 + $0xb8] sm:$0xff]
        %v2612 = vld [vmem:[%s2587 + $0xc0] sm:$0xff]
        %v2613 = vld [vmem:[%s2587 + $0xc8] sm:$0xff]
        %v2614 = vld [vmem:[%s2587 + $0xd0] sm:$0xff]
        %v2615 = vld [vmem:[%s2587 + $0xd8] sm:$0xff]
        %v2616 = vld [vmem:[%s2587 + $0xe0] sm:$0xff]
        %v2617 = vld [vmem:[%s2587 + $0xe8] sm:$0xff]
        %v2618 = vld [vmem:[%s2587 + $0xf0] sm:$0xff]
        %v2619 = vld [vmem:[%s2587 + $0xf8] sm:$0xff]
        %v2620 = vld [vmem:[%s2587 + $0x100] sm:$0xff]
        %v2621 = vld [vmem:[%s2587 + $0x108] sm:$0xff]
        %v2622 = vld [vmem:[%s2587 + $0x110] sm:$0xff]
        %v2623 = vld [vmem:[%s2587 + $0x118] sm:$0xff]
        %v2624 = vld [vmem:[%s2587 + $0x120] sm:$0xff]
        %v2625 = vld [vmem:[%s2587 + $0x128] sm:$0xff]
        %v2626 = vld [vmem:[%s2587 + $0x130] sm:$0xff]
        %v2627 = vld [vmem:[%s2587 + $0x138] sm:$0xff]
        %v2628 = vld [vmem:[%s2587 + $0x140] sm:$0xff]
        %v2629 = vld [vmem:[%s2587 + $0x148] sm:$0xff]
        %v2630 = vld [vmem:[%s2587 + $0x150] sm:$0xff]
        %v2631 = vld [vmem:[%s2587 + $0x158] sm:$0xff]
        %v2632 = vld [vmem:[%s2587 + $0x160] sm:$0xff]
        %v2633 = vld [vmem:[%s2587 + $0x168] sm:$0xff]
        %v2634 = vld [vmem:[%s2587 + $0x170] sm:$0xff]
        %v2635 = vld [vmem:[%s2587 + $0x178] sm:$0xff]
        %v2684 = vunpack.c.l.b16 %v2588
        %v2685 = vunpack.c.h.b16 %v2588
        %v2686 = vunpack.c.l.b16 %v2589
        %v2687 = vunpack.c.h.b16 %v2589
        %v2688 = vunpack.c.l.b16 %v2590
        %v2689 = vunpack.c.h.b16 %v2590
        %v2690 = vunpack.c.l.b16 %v2591
        %v2691 = vunpack.c.h.b16 %v2591
        %v2692 = vunpack.c.l.b16 %v2592
        %v2693 = vunpack.c.h.b16 %v2592
        %v2694 = vunpack.c.l.b16 %v2593
        %v2695 = vunpack.c.h.b16 %v2593
        %v2696 = vunpack.c.l.b16 %v2594
        %v2697 = vunpack.c.h.b16 %v2594
        %v2698 = vunpack.c.l.b16 %v2595
        %v2699 = vunpack.c.h.b16 %v2595
        %v2700 = vunpack.c.l.b16 %v2596
        %v2701 = vunpack.c.h.b16 %v2596
        %v2702 = vunpack.c.l.b16 %v2597
        %v2703 = vunpack.c.h.b16 %v2597
        %v2704 = vunpack.c.l.b16 %v2598
        %v2705 = vunpack.c.h.b16 %v2598
        %v2706 = vunpack.c.l.b16 %v2599
        %v2707 = vunpack.c.h.b16 %v2599
        %v2708 = vunpack.c.l.b16 %v2600
        %v2709 = vunpack.c.h.b16 %v2600
        %v2710 = vunpack.c.l.b16 %v2601
        %v2711 = vunpack.c.h.b16 %v2601
        %v2712 = vunpack.c.l.b16 %v2602
        %v2713 = vunpack.c.h.b16 %v2602
        %v2714 = vunpack.c.l.b16 %v2603
        %v2715 = vunpack.c.h.b16 %v2603
        %v2716 = vunpack.c.l.b16 %v2604
        %v2717 = vunpack.c.h.b16 %v2604
        %v2718 = vunpack.c.l.b16 %v2605
        %v2719 = vunpack.c.h.b16 %v2605
        %v2720 = vunpack.c.l.b16 %v2606
        %v2721 = vunpack.c.h.b16 %v2606
        %v2722 = vunpack.c.l.b16 %v2607
        %v2723 = vunpack.c.h.b16 %v2607
        %v2724 = vunpack.c.l.b16 %v2608
        %v2725 = vunpack.c.h.b16 %v2608
        %v2726 = vunpack.c.l.b16 %v2609
        %v2727 = vunpack.c.h.b16 %v2609
        %v2728 = vunpack.c.l.b16 %v2610
        %v2729 = vunpack.c.h.b16 %v2610
        %v2730 = vunpack.c.l.b16 %v2611
        %v2731 = vunpack.c.h.b16 %v2611
        %v2732 = vunpack.c.l.b16 %v2612
        %v2733 = vunpack.c.h.b16 %v2612
        %v2734 = vunpack.c.l.b16 %v2613
        %v2735 = vunpack.c.h.b16 %v2613
        %v2736 = vunpack.c.l.b16 %v2614
        %v2737 = vunpack.c.h.b16 %v2614
        %v2738 = vunpack.c.l.b16 %v2615
        %v2739 = vunpack.c.h.b16 %v2615
        %v2740 = vunpack.c.l.b16 %v2616
        %v2741 = vunpack.c.h.b16 %v2616
        %v2742 = vunpack.c.l.b16 %v2617
        %v2743 = vunpack.c.h.b16 %v2617
        %v2744 = vunpack.c.l.b16 %v2618
        %v2745 = vunpack.c.h.b16 %v2618
        %v2746 = vunpack.c.l.b16 %v2619
        %v2747 = vunpack.c.h.b16 %v2619
        %v2748 = vunpack.c.l.b16 %v2620
        %v2749 = vunpack.c.h.b16 %v2620
        %v2750 = vunpack.c.l.b16 %v2621
        %v2751 = vunpack.c.h.b16 %v2621
        %v2752 = vunpack.c.l.b16 %v2622
        %v2753 = vunpack.c.h.b16 %v2622
        %v2754 = vunpack.c.l.b16 %v2623
        %v2755 = vunpack.c.h.b16 %v2623
        %v2756 = vunpack.c.l.b16 %v2624
        %v2757 = vunpack.c.h.b16 %v2624
        %v2758 = vunpack.c.l.b16 %v2625
        %v2759 = vunpack.c.h.b16 %v2625
        %v2760 = vunpack.c.l.b16 %v2626
        %v2761 = vunpack.c.h.b16 %v2626
        %v2762 = vunpack.c.l.b16 %v2627
        %v2763 = vunpack.c.h.b16 %v2627
        %v2764 = vunpack.c.l.b16 %v2628
        %v2765 = vunpack.c.h.b16 %v2628
        %v2766 = vunpack.c.l.b16 %v2629
        %v2767 = vunpack.c.h.b16 %v2629
        %v2768 = vunpack.c.l.b16 %v2630
        %v2769 = vunpack.c.h.b16 %v2630
        %v2770 = vunpack.c.l.b16 %v2631
        %v2771 = vunpack.c.h.b16 %v2631
        %v2772 = vunpack.c.l.b16 %v2632
        %v2773 = vunpack.c.h.b16 %v2632
        %v2774 = vunpack.c.l.b16 %v2633
        %v2775 = vunpack.c.h.b16 %v2633
        %v2776 = vunpack.c.l.b16 %v2634
        %v2777 = vunpack.c.h.b16 %v2634
        %v2778 = vunpack.c.l.b16 %v2635
        %v2779 = vunpack.c.h.b16 %v2635
        %v2780 = vpack.c.b16 %v2686, %v2684
        %v2781 = vpack.c.b16 %v2687, %v2685
        %v2782 = vpack.c.b16 %v2690, %v2688
        %v2783 = vpack.c.b16 %v2691, %v2689
        %v2784 = vpack.c.b16 %v2694, %v2692
        %v2785 = vpack.c.b16 %v2695, %v2693
        %v2786 = vpack.c.b16 %v2698, %v2696
        %v2787 = vpack.c.b16 %v2699, %v2697
        %v2788 = vpack.c.b16 %v2702, %v2700
        %v2789 = vpack.c.b16 %v2703, %v2701
        %v2790 = vpack.c.b16 %v2706, %v2704
        %v2791 = vpack.c.b16 %v2707, %v2705
        %v2792 = vpack.c.b16 %v2710, %v2708
        %v2793 = vpack.c.b16 %v2711, %v2709
        %v2794 = vpack.c.b16 %v2714, %v2712
        %v2795 = vpack.c.b16 %v2715, %v2713
        %v2796 = vpack.c.b16 %v2718, %v2716
        %v2797 = vpack.c.b16 %v2719, %v2717
        %v2798 = vpack.c.b16 %v2722, %v2720
        %v2799 = vpack.c.b16 %v2723, %v2721
        %v2800 = vpack.c.b16 %v2726, %v2724
        %v2801 = vpack.c.b16 %v2727, %v2725
        %v2802 = vpack.c.b16 %v2730, %v2728
        %v2803 = vpack.c.b16 %v2731, %v2729
        %v2804 = vpack.c.b16 %v2734, %v2732
        %v2805 = vpack.c.b16 %v2735, %v2733
        %v2806 = vpack.c.b16 %v2738, %v2736
        %v2807 = vpack.c.b16 %v2739, %v2737
        %v2808 = vpack.c.b16 %v2742, %v2740
        %v2809 = vpack.c.b16 %v2743, %v2741
        %v2810 = vpack.c.b16 %v2746, %v2744
        %v2811 = vpack.c.b16 %v2747, %v2745
        %v2812 = vpack.c.b16 %v2750, %v2748
        %v2813 = vpack.c.b16 %v2751, %v2749
        %v2814 = vpack.c.b16 %v2754, %v2752
        %v2815 = vpack.c.b16 %v2755, %v2753
        %v2816 = vpack.c.b16 %v2758, %v2756
        %v2817 = vpack.c.b16 %v2759, %v2757
        %v2818 = vpack.c.b16 %v2762, %v2760
        %v2819 = vpack.c.b16 %v2763, %v2761
        %v2820 = vpack.c.b16 %v2766, %v2764
        %v2821 = vpack.c.b16 %v2767, %v2765
        %v2822 = vpack.c.b16 %v2770, %v2768
        %v2823 = vpack.c.b16 %v2771, %v2769
        %v2824 = vpack.c.b16 %v2774, %v2772
        %v2825 = vpack.c.b16 %v2775, %v2773
        %v2826 = vpack.c.b16 %v2778, %v2776
        %v2827 = vpack.c.b16 %v2779, %v2777
        %2876 = vmatprep.subr.bf16.mxu0 %v2781
        %2877 = vmatpush1.bf16.msra.mxu0 %v2780
        %2878 = vmatprep.subr.bf16.mxu0 %v2783
        %2879 = vmatpush1.bf16.msra.mxu0 %v2782
        %2880 = vmatprep.subr.bf16.mxu0 %v2785
        %2881 = vmatpush1.bf16.msra.mxu0 %v2784
        %2882 = vmatprep.subr.bf16.mxu0 %v2787
        %2883 = vmatpush1.bf16.msra.mxu0 %v2786
        %2884 = vmatprep.subr.bf16.mxu0 %v2789
        %2885 = vmatpush1.bf16.msra.mxu0 %v2788
        %2886 = vmatprep.subr.bf16.mxu0 %v2791
        %2887 = vmatpush1.bf16.msra.mxu0 %v2790
        %2888 = vmatprep.subr.bf16.mxu0 %v2793
        %2889 = vmatpush1.bf16.msra.mxu0 %v2792
        %2890 = vmatprep.subr.bf16.mxu0 %v2795
        %2891 = vmatpush1.bf16.msra.mxu0 %v2794
        %2892 = vmatprep.subr.bf16.mxu0 %v2797
        %2893 = vmatpush1.bf16.msra.mxu0 %v2796
        %2894 = vmatprep.subr.bf16.mxu0 %v2799
        %2895 = vmatpush1.bf16.msra.mxu0 %v2798
        %2896 = vmatprep.subr.bf16.mxu0 %v2801
        %2897 = vmatpush1.bf16.msra.mxu0 %v2800
        %2898 = vmatprep.subr.bf16.mxu0 %v2803
        %2899 = vmatpush1.bf16.msra.mxu0 %v2802
        %2900 = vmatprep.subr.bf16.mxu0 %v2805
        %2901 = vmatpush1.bf16.msra.mxu0 %v2804
        %2902 = vmatprep.subr.bf16.mxu0 %v2807
        %2903 = vmatpush1.bf16.msra.mxu0 %v2806
        %2904 = vmatprep.subr.bf16.mxu0 %v2809
        %2905 = vmatpush1.bf16.msra.mxu0 %v2808
        %2906 = vmatprep.subr.bf16.mxu0 %v2811
        %2907 = vmatpush1.bf16.msra.mxu0 %v2810
        %2908 = vmatprep.mubr.bf16.mxu0 %v2576
        %2909 = vmatmul.mubr.bf16.gmra.mrb[0].mxu0 %v2575
        %v2910 = vpop.f32.mrb[0].mxu0
        %v2911 = vadd.f32 0.0, %v2910
        %v2912 = vpop.f32.mrb[0].mxu0
        %v2913 = vadd.f32 0.0, %v2912
        %v2914 = vpop.f32.mrb[0].mxu0
        %v2915 = vadd.f32 0.0, %v2914
        %v2916 = vpop.f32.mrb[0].mxu0
        %v2917 = vadd.f32 0.0, %v2916
        %2918 = vmatprep.mubr.bf16.mxu0 %v2579
        %2919 = vmatmul.mubr.bf16.gmra.mrb[0].mxu0 %v2578
        %v2920 = vpop.f32.mrb[0].mxu0
        %v2921 = vadd.f32 0.0, %v2920
        %v2922 = vpop.f32.mrb[0].mxu0
        %v2923 = vadd.f32 0.0, %v2922
        %v2924 = vpop.f32.mrb[0].mxu0
        %v2925 = vadd.f32 0.0, %v2924
        %v2926 = vpop.f32.mrb[0].mxu0
        %v2927 = vadd.f32 0.0, %v2926
        %2928 = vmatprep.mubr.bf16.mxu0 %v2582
        %2929 = vmatmul.mubr.bf16.gmra.mrb[0].mxu0 %v2581
        %v2930 = vpop.f32.mrb[0].mxu0
        %v2931 = vadd.f32 0.0, %v2930
        %v2932 = vpop.f32.mrb[0].mxu0
        %v2933 = vadd.f32 0.0, %v2932
        %v2934 = vpop.f32.mrb[0].mxu0
        %v2935 = vadd.f32 0.0, %v2934
        %v2936 = vpop.f32.mrb[0].mxu0
        %v2937 = vadd.f32 0.0, %v2936
        %2938 = vmatprep.mubr.bf16.mxu0 %v2585
        %2939 = vmatmul.mubr.bf16.gmra.mrb[0].mxu0 %v2584
        %v2940 = vpop.f32.mrb[0].mxu0
        %v2941 = vadd.f32 0.0, %v2940
        %v2942 = vpop.f32.mrb[0].mxu0
        %v2943 = vadd.f32 0.0, %v2942
        %v2944 = vpop.f32.mrb[0].mxu0
        %v2945 = vadd.f32 0.0, %v2944
        %v2946 = vpop.f32.mrb[0].mxu0
        %v2947 = vadd.f32 0.0, %v2946
        %2948 = vdwg.mxu0
        %2949 = vmatprep.subr.bf16.mxu0 %v2813
        %2950 = vmatpush1.bf16.msra.mxu0 %v2812
        %2951 = vmatprep.subr.bf16.mxu0 %v2815
        %2952 = vmatpush1.bf16.msra.mxu0 %v2814
        %2953 = vmatprep.subr.bf16.mxu0 %v2817
        %2954 = vmatpush1.bf16.msra.mxu0 %v2816
        %2955 = vmatprep.subr.bf16.mxu0 %v2819
        %2956 = vmatpush1.bf16.msra.mxu0 %v2818
        %2957 = vmatprep.subr.bf16.mxu0 %v2821
        %2958 = vmatpush1.bf16.msra.mxu0 %v2820
        %2959 = vmatprep.subr.bf16.mxu0 %v2823
        %2960 = vmatpush1.bf16.msra.mxu0 %v2822
        %2961 = vmatprep.subr.bf16.mxu0 %v2825
        %2962 = vmatpush1.bf16.msra.mxu0 %v2824
        %2963 = vmatprep.subr.bf16.mxu0 %v2827
        %2964 = vmatpush1.bf16.msra.mxu0 %v2826
        %2965 = vmatprep.subr.bf16.mxu0 0
        %2966 = vmatpush1.bf16.msra.mxu0 0
        %2967 = vmatprep.subr.bf16.mxu0 0
        %2968 = vmatpush1.bf16.msra.mxu0 0
        %2969 = vmatprep.subr.bf16.mxu0 0
        %2970 = vmatpush1.bf16.msra.mxu0 0
        %2971 = vmatprep.subr.bf16.mxu0 0
        %2972 = vmatpush1.bf16.msra.mxu0 0
        %2973 = vmatprep.subr.bf16.mxu0 0
        %2974 = vmatpush1.bf16.msra.mxu0 0
        %2975 = vmatprep.subr.bf16.mxu0 0
        %2976 = vmatpush1.bf16.msra.mxu0 0
        %2977 = vmatprep.subr.bf16.mxu0 0
        %2978 = vmatpush1.bf16.msra.mxu0 0
        %2979 = vmatprep.subr.bf16.mxu0 0
        %2980 = vmatpush1.bf16.msra.mxu0 0
        %2981 = vmatprep.mubr.bf16.mxu0 0
        %2982 = vmatmul.mubr.bf16.gmra.mrb[0].mxu0 %v2577
        %v2983 = vpop.f32.mrb[0].mxu0
        %v2984 = vadd.f32 %v2911, %v2983
        %v2985 = vpop.f32.mrb[0].mxu0
        %v2986 = vadd.f32 %v2913, %v2985
        %v2987 = vpop.f32.mrb[0].mxu0
        %v2988 = vadd.f32 %v2915, %v2987
        %v2989 = vpop.f32.mrb[0].mxu0
        %v2990 = vadd.f32 %v2917, %v2989
        %2991 = vmatprep.mubr.bf16.mxu0 0
        %2992 = vmatmul.mubr.bf16.gmra.mrb[0].mxu0 %v2580
        %v2993 = vpop.f32.mrb[0].mxu0
        %v2994 = vadd.f32 %v2921, %v2993
        %v2995 = vpop.f32.mrb[0].mxu0
        %v2996 = vadd.f32 %v2923, %v2995
        %v2997 = vpop.f32.mrb[0].mxu0
        %v2998 = vadd.f32 %v2925, %v2997
        %v2999 = vpop.f32.mrb[0].mxu0
        %v3000 = vadd.f32 %v2927, %v2999
        %3001 = vmatprep.mubr.bf16.mxu0 0
        %3002 = vmatmul.mubr.bf16.gmra.mrb[0].mxu0 %v2583
        %v3003 = vpop.f32.mrb[0].mxu0
        %v3004 = vadd.f32 %v2931, %v3003
        %v3005 = vpop.f32.mrb[0].mxu0
        %v3006 = vadd.f32 %v2933, %v3005
        %v3007 = vpop.f32.mrb[0].mxu0
        %v3008 = vadd.f32 %v2935, %v3007
        %v3009 = vpop.f32.mrb[0].mxu0
        %v3010 = vadd.f32 %v2937, %v3009
        %3011 = vmatprep.mubr.bf16.mxu0 0
        %3012 = vmatmul.mubr.bf16.gmra.mrb[0].mxu0 %v2586
        %v3013 = vpop.f32.mrb[0].mxu0
        %v3014 = vadd.f32 %v2941, %v3013
        %v3015 = vpop.f32.mrb[0].mxu0
        %v3016 = vadd.f32 %v2943, %v3015
        %v3017 = vpop.f32.mrb[0].mxu0
        %v3018 = vadd.f32 %v2945, %v3017
        %v3019 = vpop.f32.mrb[0].mxu0
        %v3020 = vadd.f32 %v2947, %v3019
        %3021 = vdwg.mxu0
        %v3022 = vadd.f32 %v2487, %v2984
        %v3023 = vadd.f32 %v2488, %v2986
        %v3024 = vadd.f32 %v2489, %v2988
        %v3025 = vadd.f32 %v2490, %v2990
        %v3026 = vadd.f32 %v2491, %v2994
        %v3027 = vadd.f32 %v2492, %v2996
        %v3028 = vadd.f32 %v2493, %v2998
        %v3029 = vadd.f32 %v2494, %v3000
        %v3030 = vadd.f32 %v2495, %v3004
        %v3031 = vadd.f32 %v2496, %v3006
        %v3032 = vadd.f32 %v2497, %v3008
        %v3033 = vadd.f32 %v2498, %v3010
        %v3034 = vadd.f32 %v2499, %v3014
        %v3035 = vadd.f32 %v2500, %v3016
        %v3036 = vadd.f32 %v2501, %v3018
        %v3037 = vadd.f32 %v2502, %v3020
        %3038 = vset.pattern.permute.xlu0 5
        %3039 = vperm.xlu0 %3038, %v384
        %v3040 = vpop.permute.xlu0 %3039
        %3041 = vset.pattern.permute.xlu0 5
        %3042 = vperm.xlu0 %3041, %v385
        %v3043 = vpop.permute.xlu0 %3042
        %3044 = vset.pattern.permute.xlu0 5
        %3045 = vperm.xlu0 %3044, %v386
        %v3046 = vpop.permute.xlu0 %3045
        %3047 = vset.pattern.permute.xlu0 5
        %3048 = vperm.xlu0 %3047, %v387
        %v3049 = vpop.permute.xlu0 %3048
        %3050 = vset.pattern.permute.xlu0 5
        %3051 = vperm.xlu0 %3050, %v388
        %v3052 = vpop.permute.xlu0 %3051
        %3053 = vset.pattern.permute.xlu0 5
        %3054 = vperm.xlu0 %3053, %v389
        %v3055 = vpop.permute.xlu0 %3054
        %3056 = vset.pattern.permute.xlu0 5
        %3057 = vperm.xlu0 %3056, %v390
        %v3058 = vpop.permute.xlu0 %3057
        %3059 = vset.pattern.permute.xlu0 5
        %3060 = vperm.xlu0 %3059, %v391
        %v3061 = vpop.permute.xlu0 %3060
        %vm3062 = vcmp.eq.s32.totalorder %v3040, %v393
        %vm3063 = vcmp.eq.s32.totalorder %v3040, %v394
        %vm3064 = vcmp.eq.s32.totalorder %v3040, %v395
        %vm3065 = vcmp.eq.s32.totalorder %v3043, %v393
        %vm3066 = vcmp.eq.s32.totalorder %v3043, %v394
        %vm3067 = vcmp.eq.s32.totalorder %v3043, %v395
        %vm3068 = vcmp.eq.s32.totalorder %v3046, %v393
        %vm3069 = vcmp.eq.s32.totalorder %v3046, %v394
        %vm3070 = vcmp.eq.s32.totalorder %v3046, %v395
        %vm3071 = vcmp.eq.s32.totalorder %v3049, %v393
        %vm3072 = vcmp.eq.s32.totalorder %v3049, %v394
        %vm3073 = vcmp.eq.s32.totalorder %v3049, %v395
        %vm3074 = vcmp.eq.s32.totalorder %v3052, %v393
        %vm3075 = vcmp.eq.s32.totalorder %v3052, %v394
        %vm3076 = vcmp.eq.s32.totalorder %v3052, %v395
        %vm3077 = vcmp.eq.s32.totalorder %v3055, %v393
        %vm3078 = vcmp.eq.s32.totalorder %v3055, %v394
        %vm3079 = vcmp.eq.s32.totalorder %v3055, %v395
        %vm3080 = vcmp.eq.s32.totalorder %v3058, %v393
        %vm3081 = vcmp.eq.s32.totalorder %v3058, %v394
        %vm3082 = vcmp.eq.s32.totalorder %v3058, %v395
        %vm3083 = vcmp.eq.s32.totalorder %v3061, %v393
        %vm3084 = vcmp.eq.s32.totalorder %v3061, %v394
        %vm3085 = vcmp.eq.s32.totalorder %v3061, %v395
        %v3086 = vsel %vm3062, 1.0, 0.0
        %v3087 = vsel %vm3063, 1.0, 0.0
        %v3088 = vsel %vm3064, 1.0, 0.0
        %v3089 = vsel %vm3065, 1.0, 0.0
        %v3090 = vsel %vm3066, 1.0, 0.0
        %v3091 = vsel %vm3067, 1.0, 0.0
        %v3092 = vsel %vm3068, 1.0, 0.0
        %v3093 = vsel %vm3069, 1.0, 0.0
        %v3094 = vsel %vm3070, 1.0, 0.0
        %v3095 = vsel %vm3071, 1.0, 0.0
        %v3096 = vsel %vm3072, 1.0, 0.0
        %v3097 = vsel %vm3073, 1.0, 0.0
        %v3098 = vsel %vm3074, 1.0, 0.0
        %v3099 = vsel %vm3075, 1.0, 0.0
        %v3100 = vsel %vm3076, 1.0, 0.0
        %v3101 = vsel %vm3077, 1.0, 0.0
        %v3102 = vsel %vm3078, 1.0, 0.0
        %v3103 = vsel %vm3079, 1.0, 0.0
        %v3104 = vsel %vm3080, 1.0, 0.0
        %v3105 = vsel %vm3081, 1.0, 0.0
        %v3106 = vsel %vm3082, 1.0, 0.0
        %v3107 = vsel %vm3083, 1.0, 0.0
        %v3108 = vsel %vm3084, 1.0, 0.0
        %v3109 = vsel %vm3085, 1.0, 0.0
        %v3110 = vpack.c.bf16 %v3089, %v3086
        %v3111 = vpack.c.bf16 %v3090, %v3087
        %v3112 = vpack.c.bf16 %v3091, %v3088
        %v3113 = vpack.c.bf16 %v3095, %v3092
        %v3114 = vpack.c.bf16 %v3096, %v3093
        %v3115 = vpack.c.bf16 %v3097, %v3094
        %v3116 = vpack.c.bf16 %v3101, %v3098
        %v3117 = vpack.c.bf16 %v3102, %v3099
        %v3118 = vpack.c.bf16 %v3103, %v3100
        %v3119 = vpack.c.bf16 %v3107, %v3104
        %v3120 = vpack.c.bf16 %v3108, %v3105
        %v3121 = vpack.c.bf16 %v3109, %v3106
        %s3122 = scalar_lea.vmem [#allocation3], 1920
        %v3123 = vld [vmem:[%s3122] sm:$0xff]
        %v3124 = vld [vmem:[%s3122 + $0x8] sm:$0xff]
        %v3125 = vld [vmem:[%s3122 + $0x10] sm:$0xff]
        %v3126 = vld [vmem:[%s3122 + $0x18] sm:$0xff]
        %v3127 = vld [vmem:[%s3122 + $0x20] sm:$0xff]
        %v3128 = vld [vmem:[%s3122 + $0x28] sm:$0xff]
        %v3129 = vld [vmem:[%s3122 + $0x30] sm:$0xff]
        %v3130 = vld [vmem:[%s3122 + $0x38] sm:$0xff]
        %v3131 = vld [vmem:[%s3122 + $0x40] sm:$0xff]
        %v3132 = vld [vmem:[%s3122 + $0x48] sm:$0xff]
        %v3133 = vld [vmem:[%s3122 + $0x50] sm:$0xff]
        %v3134 = vld [vmem:[%s3122 + $0x58] sm:$0xff]
        %v3135 = vld [vmem:[%s3122 + $0x60] sm:$0xff]
        %v3136 = vld [vmem:[%s3122 + $0x68] sm:$0xff]
        %v3137 = vld [vmem:[%s3122 + $0x70] sm:$0xff]
        %v3138 = vld [vmem:[%s3122 + $0x78] sm:$0xff]
        %v3139 = vld [vmem:[%s3122 + $0x80] sm:$0xff]
        %v3140 = vld [vmem:[%s3122 + $0x88] sm:$0xff]
        %v3141 = vld [vmem:[%s3122 + $0x90] sm:$0xff]
        %v3142 = vld [vmem:[%s3122 + $0x98] sm:$0xff]
        %v3143 = vld [vmem:[%s3122 + $0xa0] sm:$0xff]
        %v3144 = vld [vmem:[%s3122 + $0xa8] sm:$0xff]
        %v3145 = vld [vmem:[%s3122 + $0xb0] sm:$0xff]
        %v3146 = vld [vmem:[%s3122 + $0xb8] sm:$0xff]
        %v3147 = vld [vmem:[%s3122 + $0xc0] sm:$0xff]
        %v3148 = vld [vmem:[%s3122 + $0xc8] sm:$0xff]
        %v3149 = vld [vmem:[%s3122 + $0xd0] sm:$0xff]
        %v3150 = vld [vmem:[%s3122 + $0xd8] sm:$0xff]
        %v3151 = vld [vmem:[%s3122 + $0xe0] sm:$0xff]
        %v3152 = vld [vmem:[%s3122 + $0xe8] sm:$0xff]
        %v3153 = vld [vmem:[%s3122 + $0xf0] sm:$0xff]
        %v3154 = vld [vmem:[%s3122 + $0xf8] sm:$0xff]
        %v3155 = vld [vmem:[%s3122 + $0x100] sm:$0xff]
        %v3156 = vld [vmem:[%s3122 + $0x108] sm:$0xff]
        %v3157 = vld [vmem:[%s3122 + $0x110] sm:$0xff]
        %v3158 = vld [vmem:[%s3122 + $0x118] sm:$0xff]
        %v3159 = vld [vmem:[%s3122 + $0x120] sm:$0xff]
        %v3160 = vld [vmem:[%s3122 + $0x128] sm:$0xff]
        %v3161 = vld [vmem:[%s3122 + $0x130] sm:$0xff]
        %v3162 = vld [vmem:[%s3122 + $0x138] sm:$0xff]
        %v3163 = vld [vmem:[%s3122 + $0x140] sm:$0xff]
        %v3164 = vld [vmem:[%s3122 + $0x148] sm:$0xff]
        %v3165 = vld [vmem:[%s3122 + $0x150] sm:$0xff]
        %v3166 = vld [vmem:[%s3122 + $0x158] sm:$0xff]
        %v3167 = vld [vmem:[%s3122 + $0x160] sm:$0xff]
        %v3168 = vld [vmem:[%s3122 + $0x168] sm:$0xff]
        %v3169 = vld [vmem:[%s3122 + $0x170] sm:$0xff]
        %v3170 = vld [vmem:[%s3122 + $0x178] sm:$0xff]
        %v3219 = vunpack.c.l.b16 %v3123
        %v3220 = vunpack.c.h.b16 %v3123
        %v3221 = vunpack.c.l.b16 %v3124
        %v3222 = vunpack.c.h.b16 %v3124
        %v3223 = vunpack.c.l.b16 %v3125
        %v3224 = vunpack.c.h.b16 %v3125
        %v3225 = vunpack.c.l.b16 %v3126
        %v3226 = vunpack.c.h.b16 %v3126
        %v3227 = vunpack.c.l.b16 %v3127
        %v3228 = vunpack.c.h.b16 %v3127
        %v3229 = vunpack.c.l.b16 %v3128
        %v3230 = vunpack.c.h.b16 %v3128
        %v3231 = vunpack.c.l.b16 %v3129
        %v3232 = vunpack.c.h.b16 %v3129
        %v3233 = vunpack.c.l.b16 %v3130
        %v3234 = vunpack.c.h.b16 %v3130
        %v3235 = vunpack.c.l.b16 %v3131
        %v3236 = vunpack.c.h.b16 %v3131
        %v3237 = vunpack.c.l.b16 %v3132
        %v3238 = vunpack.c.h.b16 %v3132
        %v3239 = vunpack.c.l.b16 %v3133
        %v3240 = vunpack.c.h.b16 %v3133
        %v3241 = vunpack.c.l.b16 %v3134
        %v3242 = vunpack.c.h.b16 %v3134
        %v3243 = vunpack.c.l.b16 %v3135
        %v3244 = vunpack.c.h.b16 %v3135
        %v3245 = vunpack.c.l.b16 %v3136
        %v3246 = vunpack.c.h.b16 %v3136
        %v3247 = vunpack.c.l.b16 %v3137
        %v3248 = vunpack.c.h.b16 %v3137
        %v3249 = vunpack.c.l.b16 %v3138
        %v3250 = vunpack.c.h.b16 %v3138
        %v3251 = vunpack.c.l.b16 %v3139
        %v3252 = vunpack.c.h.b16 %v3139
        %v3253 = vunpack.c.l.b16 %v3140
        %v3254 = vunpack.c.h.b16 %v3140
        %v3255 = vunpack.c.l.b16 %v3141
        %v3256 = vunpack.c.h.b16 %v3141
        %v3257 = vunpack.c.l.b16 %v3142
        %v3258 = vunpack.c.h.b16 %v3142
        %v3259 = vunpack.c.l.b16 %v3143
        %v3260 = vunpack.c.h.b16 %v3143
        %v3261 = vunpack.c.l.b16 %v3144
        %v3262 = vunpack.c.h.b16 %v3144
        %v3263 = vunpack.c.l.b16 %v3145
        %v3264 = vunpack.c.h.b16 %v3145
        %v3265 = vunpack.c.l.b16 %v3146
        %v3266 = vunpack.c.h.b16 %v3146
        %v3267 = vunpack.c.l.b16 %v3147
        %v3268 = vunpack.c.h.b16 %v3147
        %v3269 = vunpack.c.l.b16 %v3148
        %v3270 = vunpack.c.h.b16 %v3148
        %v3271 = vunpack.c.l.b16 %v3149
        %v3272 = vunpack.c.h.b16 %v3149
        %v3273 = vunpack.c.l.b16 %v3150
        %v3274 = vunpack.c.h.b16 %v3150
        %v3275 = vunpack.c.l.b16 %v3151
        %v3276 = vunpack.c.h.b16 %v3151
        %v3277 = vunpack.c.l.b16 %v3152
        %v3278 = vunpack.c.h.b16 %v3152
        %v3279 = vunpack.c.l.b16 %v3153
        %v3280 = vunpack.c.h.b16 %v3153
        %v3281 = vunpack.c.l.b16 %v3154
        %v3282 = vunpack.c.h.b16 %v3154
        %v3283 = vunpack.c.l.b16 %v3155
        %v3284 = vunpack.c.h.b16 %v3155
        %v3285 = vunpack.c.l.b16 %v3156
        %v3286 = vunpack.c.h.b16 %v3156
        %v3287 = vunpack.c.l.b16 %v3157
        %v3288 = vunpack.c.h.b16 %v3157
        %v3289 = vunpack.c.l.b16 %v3158
        %v3290 = vunpack.c.h.b16 %v3158
        %v3291 = vunpack.c.l.b16 %v3159
        %v3292 = vunpack.c.h.b16 %v3159
        %v3293 = vunpack.c.l.b16 %v3160
        %v3294 = vunpack.c.h.b16 %v3160
        %v3295 = vunpack.c.l.b16 %v3161
        %v3296 = vunpack.c.h.b16 %v3161
        %v3297 = vunpack.c.l.b16 %v3162
        %v3298 = vunpack.c.h.b16 %v3162
        %v3299 = vunpack.c.l.b16 %v3163
        %v3300 = vunpack.c.h.b16 %v3163
        %v3301 = vunpack.c.l.b16 %v3164
        %v3302 = vunpack.c.h.b16 %v3164
        %v3303 = vunpack.c.l.b16 %v3165
        %v3304 = vunpack.c.h.b16 %v3165
        %v3305 = vunpack.c.l.b16 %v3166
        %v3306 = vunpack.c.h.b16 %v3166
        %v3307 = vunpack.c.l.b16 %v3167
        %v3308 = vunpack.c.h.b16 %v3167
        %v3309 = vunpack.c.l.b16 %v3168
        %v3310 = vunpack.c.h.b16 %v3168
        %v3311 = vunpack.c.l.b16 %v3169
        %v3312 = vunpack.c.h.b16 %v3169
        %v3313 = vunpack.c.l.b16 %v3170
        %v3314 = vunpack.c.h.b16 %v3170
        %v3315 = vpack.c.b16 %v3221, %v3219
        %v3316 = vpack.c.b16 %v3222, %v3220
        %v3317 = vpack.c.b16 %v3225, %v3223
        %v3318 = vpack.c.b16 %v3226, %v3224
        %v3319 = vpack.c.b16 %v3229, %v3227
        %v3320 = vpack.c.b16 %v3230, %v3228
        %v3321 = vpack.c.b16 %v3233, %v3231
        %v3322 = vpack.c.b16 %v3234, %v3232
        %v3323 = vpack.c.b16 %v3237, %v3235
        %v3324 = vpack.c.b16 %v3238, %v3236
        %v3325 = vpack.c.b16 %v3241, %v3239
        %v3326 = vpack.c.b16 %v3242, %v3240
        %v3327 = vpack.c.b16 %v3245, %v3243
        %v3328 = vpack.c.b16 %v3246, %v3244
        %v3329 = vpack.c.b16 %v3249, %v3247
        %v3330 = vpack.c.b16 %v3250, %v3248
        %v3331 = vpack.c.b16 %v3253, %v3251
        %v3332 = vpack.c.b16 %v3254, %v3252
        %v3333 = vpack.c.b16 %v3257, %v3255
        %v3334 = vpack.c.b16 %v3258, %v3256
        %v3335 = vpack.c.b16 %v3261, %v3259
        %v3336 = vpack.c.b16 %v3262, %v3260
        %v3337 = vpack.c.b16 %v3265, %v3263
        %v3338 = vpack.c.b16 %v3266, %v3264
        %v3339 = vpack.c.b16 %v3269, %v3267
        %v3340 = vpack.c.b16 %v3270, %v3268
        %v3341 = vpack.c.b16 %v3273, %v3271
        %v3342 = vpack.c.b16 %v3274, %v3272
        %v3343 = vpack.c.b16 %v3277, %v3275
        %v3344 = vpack.c.b16 %v3278, %v3276
        %v3345 = vpack.c.b16 %v3281, %v3279
        %v3346 = vpack.c.b16 %v3282, %v3280
        %v3347 = vpack.c.b16 %v3285, %v3283
        %v3348 = vpack.c.b16 %v3286, %v3284
        %v3349 = vpack.c.b16 %v3289, %v3287
        %v3350 = vpack.c.b16 %v3290, %v3288
        %v3351 = vpack.c.b16 %v3293, %v3291
        %v3352 = vpack.c.b16 %v3294, %v3292
        %v3353 = vpack.c.b16 %v3297, %v3295
        %v3354 = vpack.c.b16 %v3298, %v3296
        %v3355 = vpack.c.b16 %v3301, %v3299
        %v3356 = vpack.c.b16 %v3302, %v3300
        %v3357 = vpack.c.b16 %v3305, %v3303
        %v3358 = vpack.c.b16 %v3306, %v3304
        %v3359 = vpack.c.b16 %v3309, %v3307
        %v3360 = vpack.c.b16 %v3310, %v3308
        %v3361 = vpack.c.b16 %v3313, %v3311
        %v3362 = vpack.c.b16 %v3314, %v3312
        %3411 = vmatprep.subr.bf16.mxu0 %v3316
        %3412 = vmatpush1.bf16.msra.mxu0 %v3315
        %3413 = vmatprep.subr.bf16.mxu0 %v3318
        %3414 = vmatpush1.bf16.msra.mxu0 %v3317
        %3415 = vmatprep.subr.bf16.mxu0 %v3320
        %3416 = vmatpush1.bf16.msra.mxu0 %v3319
        %3417 = vmatprep.subr.bf16.mxu0 %v3322
        %3418 = vmatpush1.bf16.msra.mxu0 %v3321
        %3419 = vmatprep.subr.bf16.mxu0 %v3324
        %3420 = vmatpush1.bf16.msra.mxu0 %v3323
        %3421 = vmatprep.subr.bf16.mxu0 %v3326
        %3422 = vmatpush1.bf16.msra.mxu0 %v3325
        %3423 = vmatprep.subr.bf16.mxu0 %v3328
        %3424 = vmatpush1.bf16.msra.mxu0 %v3327
        %3425 = vmatprep.subr.bf16.mxu0 %v3330
        %3426 = vmatpush1.bf16.msra.mxu0 %v3329
        %3427 = vmatprep.subr.bf16.mxu0 %v3332
        %3428 = vmatpush1.bf16.msra.mxu0 %v3331
        %3429 = vmatprep.subr.bf16.mxu0 %v3334
        %3430 = vmatpush1.bf16.msra.mxu0 %v3333
        %3431 = vmatprep.subr.bf16.mxu0 %v3336
        %3432 = vmatpush1.bf16.msra.mxu0 %v3335
        %3433 = vmatprep.subr.bf16.mxu0 %v3338
        %3434 = vmatpush1.bf16.msra.mxu0 %v3337
        %3435 = vmatprep.subr.bf16.mxu0 %v3340
        %3436 = vmatpush1.bf16.msra.mxu0 %v3339
        %3437 = vmatprep.subr.bf16.mxu0 %v3342
        %3438 = vmatpush1.bf16.msra.mxu0 %v3341
        %3439 = vmatprep.subr.bf16.mxu0 %v3344
        %3440 = vmatpush1.bf16.msra.mxu0 %v3343
        %3441 = vmatprep.subr.bf16.mxu0 %v3346
        %3442 = vmatpush1.bf16.msra.mxu0 %v3345
        %3443 = vmatprep.mubr.bf16.mxu0 %v3111
        %3444 = vmatmul.mubr.bf16.gmra.mrb[0].mxu0 %v3110
        %v3445 = vpop.f32.mrb[0].mxu0
        %v3446 = vadd.f32 0.0, %v3445
        %v3447 = vpop.f32.mrb[0].mxu0
        %v3448 = vadd.f32 0.0, %v3447
        %v3449 = vpop.f32.mrb[0].mxu0
        %v3450 = vadd.f32 0.0, %v3449
        %v3451 = vpop.f32.mrb[0].mxu0
        %v3452 = vadd.f32 0.0, %v3451
        %3453 = vmatprep.mubr.bf16.mxu0 %v3114
        %3454 = vmatmul.mubr.bf16.gmra.mrb[0].mxu0 %v3113
        %v3455 = vpop.f32.mrb[0].mxu0
        %v3456 = vadd.f32 0.0, %v3455
        %v3457 = vpop.f32.mrb[0].mxu0
        %v3458 = vadd.f32 0.0, %v3457
        %v3459 = vpop.f32.mrb[0].mxu0
        %v3460 = vadd.f32 0.0, %v3459
        %v3461 = vpop.f32.mrb[0].mxu0
        %v3462 = vadd.f32 0.0, %v3461
        %3463 = vmatprep.mubr.bf16.mxu0 %v3117
        %3464 = vmatmul.mubr.bf16.gmra.mrb[0].mxu0 %v3116
        %v3465 = vpop.f32.mrb[0].mxu0
        %v3466 = vadd.f32 0.0, %v3465
        %v3467 = vpop.f32.mrb[0].mxu0
        %v3468 = vadd.f32 0.0, %v3467
        %v3469 = vpop.f32.mrb[0].mxu0
        %v3470 = vadd.f32 0.0, %v3469
        %v3471 = vpop.f32.mrb[0].mxu0
        %v3472 = vadd.f32 0.0, %v3471
        %3473 = vmatprep.mubr.bf16.mxu0 %v3120
        %3474 = vmatmul.mubr.bf16.gmra.mrb[0].mxu0 %v3119
        %v3475 = vpop.f32.mrb[0].mxu0
        %v3476 = vadd.f32 0.0, %v3475
        %v3477 = vpop.f32.mrb[0].mxu0
        %v3478 = vadd.f32 0.0, %v3477
        %v3479 = vpop.f32.mrb[0].mxu0
        %v3480 = vadd.f32 0.0, %v3479
        %v3481 = vpop.f32.mrb[0].mxu0
        %v3482 = vadd.f32 0.0, %v3481
        %3483 = vdwg.mxu0
        %3484 = vmatprep.subr.bf16.mxu0 %v3348
        %3485 = vmatpush1.bf16.msra.mxu0 %v3347
        %3486 = vmatprep.subr.bf16.mxu0 %v3350
        %3487 = vmatpush1.bf16.msra.mxu0 %v3349
        %3488 = vmatprep.subr.bf16.mxu0 %v3352
        %3489 = vmatpush1.bf16.msra.mxu0 %v3351
        %3490 = vmatprep.subr.bf16.mxu0 %v3354
        %3491 = vmatpush1.bf16.msra.mxu0 %v3353
        %3492 = vmatprep.subr.bf16.mxu0 %v3356
        %3493 = vmatpush1.bf16.msra.mxu0 %v3355
        %3494 = vmatprep.subr.bf16.mxu0 %v3358
        %3495 = vmatpush1.bf16.msra.mxu0 %v3357
        %3496 = vmatprep.subr.bf16.mxu0 %v3360
        %3497 = vmatpush1.bf16.msra.mxu0 %v3359
        %3498 = vmatprep.subr.bf16.mxu0 %v3362
        %3499 = vmatpush1.bf16.msra.mxu0 %v3361
        %3500 = vmatprep.subr.bf16.mxu0 0
        %3501 = vmatpush1.bf16.msra.mxu0 0
        %3502 = vmatprep.subr.bf16.mxu0 0
        %3503 = vmatpush1.bf16.msra.mxu0 0
        %3504 = vmatprep.subr.bf16.mxu0 0
        %3505 = vmatpush1.bf16.msra.mxu0 0
        %3506 = vmatprep.subr.bf16.mxu0 0
        %3507 = vmatpush1.bf16.msra.mxu0 0
        %3508 = vmatprep.subr.bf16.mxu0 0
        %3509 = vmatpush1.bf16.msra.mxu0 0
        %3510 = vmatprep.subr.bf16.mxu0 0
        %3511 = vmatpush1.bf16.msra.mxu0 0
        %3512 = vmatprep.subr.bf16.mxu0 0
        %3513 = vmatpush1.bf16.msra.mxu0 0
        %3514 = vmatprep.subr.bf16.mxu0 0
        %3515 = vmatpush1.bf16.msra.mxu0 0
        %3516 = vmatprep.mubr.bf16.mxu0 0
        %3517 = vmatmul.mubr.bf16.gmra.mrb[0].mxu0 %v3112
        %v3518 = vpop.f32.mrb[0].mxu0
        %v3519 = vadd.f32 %v3446, %v3518
        %v3520 = vpop.f32.mrb[0].mxu0
        %v3521 = vadd.f32 %v3448, %v3520
        %v3522 = vpop.f32.mrb[0].mxu0
        %v3523 = vadd.f32 %v3450, %v3522
        %v3524 = vpop.f32.mrb[0].mxu0
        %v3525 = vadd.f32 %v3452, %v3524
        %3526 = vmatprep.mubr.bf16.mxu0 0
        %3527 = vmatmul.mubr.bf16.gmra.mrb[0].mxu0 %v3115
        %v3528 = vpop.f32.mrb[0].mxu0
        %v3529 = vadd.f32 %v3456, %v3528
        %v3530 = vpop.f32.mrb[0].mxu0
        %v3531 = vadd.f32 %v3458, %v3530
        %v3532 = vpop.f32.mrb[0].mxu0
        %v3533 = vadd.f32 %v3460, %v3532
        %v3534 = vpop.f32.mrb[0].mxu0
        %v3535 = vadd.f32 %v3462, %v3534
        %3536 = vmatprep.mubr.bf16.mxu0 0
        %3537 = vmatmul.mubr.bf16.gmra.mrb[0].mxu0 %v3118
        %v3538 = vpop.f32.mrb[0].mxu0
        %v3539 = vadd.f32 %v3466, %v3538
        %v3540 = vpop.f32.mrb[0].mxu0
        %v3541 = vadd.f32 %v3468, %v3540
        %v3542 = vpop.f32.mrb[0].mxu0
        %v3543 = vadd.f32 %v3470, %v3542
        %v3544 = vpop.f32.mrb[0].mxu0
        %v3545 = vadd.f32 %v3472, %v3544
        %3546 = vmatprep.mubr.bf16.mxu0 0
        %3547 = vmatmul.mubr.bf16.gmra.mrb[0].mxu0 %v3121
        %v3548 = vpop.f32.mrb[0].mxu0
        %v3549 = vadd.f32 %v3476, %v3548
        %v3550 = vpop.f32.mrb[0].mxu0
        %v3551 = vadd.f32 %v3478, %v3550
        %v3552 = vpop.f32.mrb[0].mxu0
        %v3553 = vadd.f32 %v3480, %v3552
        %v3554 = vpop.f32.mrb[0].mxu0
        %v3555 = vadd.f32 %v3482, %v3554
        %3556 = vdwg.mxu0
        %v3557 = vadd.f32 %v3022, %v3519
        %v3558 = vadd.f32 %v3023, %v3521
        %v3559 = vadd.f32 %v3024, %v3523
        %v3560 = vadd.f32 %v3025, %v3525
        %v3561 = vadd.f32 %v3026, %v3529
        %v3562 = vadd.f32 %v3027, %v3531
        %v3563 = vadd.f32 %v3028, %v3533
        %v3564 = vadd.f32 %v3029, %v3535
        %v3565 = vadd.f32 %v3030, %v3539
        %v3566 = vadd.f32 %v3031, %v3541
        %v3567 = vadd.f32 %v3032, %v3543
        %v3568 = vadd.f32 %v3033, %v3545
        %v3569 = vadd.f32 %v3034, %v3549
        %v3570 = vadd.f32 %v3035, %v3551
        %v3571 = vadd.f32 %v3036, %v3553
        %v3572 = vadd.f32 %v3037, %v3555
        %3573 = vset.pattern.permute.xlu0 6
        %3574 = vperm.xlu0 %3573, %v384
        %v3575 = vpop.permute.xlu0 %3574
        %3576 = vset.pattern.permute.xlu0 6
        %3577 = vperm.xlu0 %3576, %v385
        %v3578 = vpop.permute.xlu0 %3577
        %3579 = vset.pattern.permute.xlu0 6
        %3580 = vperm.xlu0 %3579, %v386
        %v3581 = vpop.permute.xlu0 %3580
        %3582 = vset.pattern.permute.xlu0 6
        %3583 = vperm.xlu0 %3582, %v387
        %v3584 = vpop.permute.xlu0 %3583
        %3585 = vset.pattern.permute.xlu0 6
        %3586 = vperm.xlu0 %3585, %v388
        %v3587 = vpop.permute.xlu0 %3586
        %3588 = vset.pattern.permute.xlu0 6
        %3589 = vperm.xlu0 %3588, %v389
        %v3590 = vpop.permute.xlu0 %3589
        %3591 = vset.pattern.permute.xlu0 6
        %3592 = vperm.xlu0 %3591, %v390
        %v3593 = vpop.permute.xlu0 %3592
        %3594 = vset.pattern.permute.xlu0 6
        %3595 = vperm.xlu0 %3594, %v391
        %v3596 = vpop.permute.xlu0 %3595
        %vm3597 = vcmp.eq.s32.totalorder %v3575, %v393
        %vm3598 = vcmp.eq.s32.totalorder %v3575, %v394
        %vm3599 = vcmp.eq.s32.totalorder %v3575, %v395
        %vm3600 = vcmp.eq.s32.totalorder %v3578, %v393
        %vm3601 = vcmp.eq.s32.totalorder %v3578, %v394
        %vm3602 = vcmp.eq.s32.totalorder %v3578, %v395
        %vm3603 = vcmp.eq.s32.totalorder %v3581, %v393
        %vm3604 = vcmp.eq.s32.totalorder %v3581, %v394
        %vm3605 = vcmp.eq.s32.totalorder %v3581, %v395
        %vm3606 = vcmp.eq.s32.totalorder %v3584, %v393
        %vm3607 = vcmp.eq.s32.totalorder %v3584, %v394
        %vm3608 = vcmp.eq.s32.totalorder %v3584, %v395
        %vm3609 = vcmp.eq.s32.totalorder %v3587, %v393
        %vm3610 = vcmp.eq.s32.totalorder %v3587, %v394
        %vm3611 = vcmp.eq.s32.totalorder %v3587, %v395
        %vm3612 = vcmp.eq.s32.totalorder %v3590, %v393
        %vm3613 = vcmp.eq.s32.totalorder %v3590, %v394
        %vm3614 = vcmp.eq.s32.totalorder %v3590, %v395
        %vm3615 = vcmp.eq.s32.totalorder %v3593, %v393
        %vm3616 = vcmp.eq.s32.totalorder %v3593, %v394
        %vm3617 = vcmp.eq.s32.totalorder %v3593, %v395
        %vm3618 = vcmp.eq.s32.totalorder %v3596, %v393
        %vm3619 = vcmp.eq.s32.totalorder %v3596, %v394
        %vm3620 = vcmp.eq.s32.totalorder %v3596, %v395
        %v3621 = vsel %vm3597, 1.0, 0.0
        %v3622 = vsel %vm3598, 1.0, 0.0
        %v3623 = vsel %vm3599, 1.0, 0.0
        %v3624 = vsel %vm3600, 1.0, 0.0
        %v3625 = vsel %vm3601, 1.0, 0.0
        %v3626 = vsel %vm3602, 1.0, 0.0
        %v3627 = vsel %vm3603, 1.0, 0.0
        %v3628 = vsel %vm3604, 1.0, 0.0
        %v3629 = vsel %vm3605, 1.0, 0.0
        %v3630 = vsel %vm3606, 1.0, 0.0
        %v3631 = vsel %vm3607, 1.0, 0.0
        %v3632 = vsel %vm3608, 1.0, 0.0
        %v3633 = vsel %vm3609, 1.0, 0.0
        %v3634 = vsel %vm3610, 1.0, 0.0
        %v3635 = vsel %vm3611, 1.0, 0.0
        %v3636 = vsel %vm3612, 1.0, 0.0
        %v3637 = vsel %vm3613, 1.0, 0.0
        %v3638 = vsel %vm3614, 1.0, 0.0
        %v3639 = vsel %vm3615, 1.0, 0.0
        %v3640 = vsel %vm3616, 1.0, 0.0
        %v3641 = vsel %vm3617, 1.0, 0.0
        %v3642 = vsel %vm3618, 1.0, 0.0
        %v3643 = vsel %vm3619, 1.0, 0.0
        %v3644 = vsel %vm3620, 1.0, 0.0
        %v3645 = vpack.c.bf16 %v3624, %v3621
        %v3646 = vpack.c.bf16 %v3625, %v3622
        %v3647 = vpack.c.bf16 %v3626, %v3623
        %v3648 = vpack.c.bf16 %v3630, %v3627
        %v3649 = vpack.c.bf16 %v3631, %v3628
        %v3650 = vpack.c.bf16 %v3632, %v3629
        %v3651 = vpack.c.bf16 %v3636, %v3633
        %v3652 = vpack.c.bf16 %v3637, %v3634
        %v3653 = vpack.c.bf16 %v3638, %v3635
        %v3654 = vpack.c.bf16 %v3642, %v3639
        %v3655 = vpack.c.bf16 %v3643, %v3640
        %v3656 = vpack.c.bf16 %v3644, %v3641
        %s3657 = scalar_lea.vmem [#allocation3], 2304
        %v3658 = vld [vmem:[%s3657] sm:$0xff]
        %v3659 = vld [vmem:[%s3657 + $0x8] sm:$0xff]
        %v3660 = vld [vmem:[%s3657 + $0x10] sm:$0xff]
        %v3661 = vld [vmem:[%s3657 + $0x18] sm:$0xff]
        %v3662 = vld [vmem:[%s3657 + $0x20] sm:$0xff]
        %v3663 = vld [vmem:[%s3657 + $0x28] sm:$0xff]
        %v3664 = vld [vmem:[%s3657 + $0x30] sm:$0xff]
        %v3665 = vld [vmem:[%s3657 + $0x38] sm:$0xff]
        %v3666 = vld [vmem:[%s3657 + $0x40] sm:$0xff]
        %v3667 = vld [vmem:[%s3657 + $0x48] sm:$0xff]
        %v3668 = vld [vmem:[%s3657 + $0x50] sm:$0xff]
        %v3669 = vld [vmem:[%s3657 + $0x58] sm:$0xff]
        %v3670 = vld [vmem:[%s3657 + $0x60] sm:$0xff]
        %v3671 = vld [vmem:[%s3657 + $0x68] sm:$0xff]
        %v3672 = vld [vmem:[%s3657 + $0x70] sm:$0xff]
        %v3673 = vld [vmem:[%s3657 + $0x78] sm:$0xff]
        %v3674 = vld [vmem:[%s3657 + $0x80] sm:$0xff]
        %v3675 = vld [vmem:[%s3657 + $0x88] sm:$0xff]
        %v3676 = vld [vmem:[%s3657 + $0x90] sm:$0xff]
        %v3677 = vld [vmem:[%s3657 + $0x98] sm:$0xff]
        %v3678 = vld [vmem:[%s3657 + $0xa0] sm:$0xff]
        %v3679 = vld [vmem:[%s3657 + $0xa8] sm:$0xff]
        %v3680 = vld [vmem:[%s3657 + $0xb0] sm:$0xff]
        %v3681 = vld [vmem:[%s3657 + $0xb8] sm:$0xff]
        %v3682 = vld [vmem:[%s3657 + $0xc0] sm:$0xff]
        %v3683 = vld [vmem:[%s3657 + $0xc8] sm:$0xff]
        %v3684 = vld [vmem:[%s3657 + $0xd0] sm:$0xff]
        %v3685 = vld [vmem:[%s3657 + $0xd8] sm:$0xff]
        %v3686 = vld [vmem:[%s3657 + $0xe0] sm:$0xff]
        %v3687 = vld [vmem:[%s3657 + $0xe8] sm:$0xff]
        %v3688 = vld [vmem:[%s3657 + $0xf0] sm:$0xff]
        %v3689 = vld [vmem:[%s3657 + $0xf8] sm:$0xff]
        %v3690 = vld [vmem:[%s3657 + $0x100] sm:$0xff]
        %v3691 = vld [vmem:[%s3657 + $0x108] sm:$0xff]
        %v3692 = vld [vmem:[%s3657 + $0x110] sm:$0xff]
        %v3693 = vld [vmem:[%s3657 + $0x118] sm:$0xff]
        %v3694 = vld [vmem:[%s3657 + $0x120] sm:$0xff]
        %v3695 = vld [vmem:[%s3657 + $0x128] sm:$0xff]
        %v3696 = vld [vmem:[%s3657 + $0x130] sm:$0xff]
        %v3697 = vld [vmem:[%s3657 + $0x138] sm:$0xff]
        %v3698 = vld [vmem:[%s3657 + $0x140] sm:$0xff]
        %v3699 = vld [vmem:[%s3657 + $0x148] sm:$0xff]
        %v3700 = vld [vmem:[%s3657 + $0x150] sm:$0xff]
        %v3701 = vld [vmem:[%s3657 + $0x158] sm:$0xff]
        %v3702 = vld [vmem:[%s3657 + $0x160] sm:$0xff]
        %v3703 = vld [vmem:[%s3657 + $0x168] sm:$0xff]
        %v3704 = vld [vmem:[%s3657 + $0x170] sm:$0xff]
        %v3705 = vld [vmem:[%s3657 + $0x178] sm:$0xff]
        %v3754 = vunpack.c.l.b16 %v3658
        %v3755 = vunpack.c.h.b16 %v3658
        %v3756 = vunpack.c.l.b16 %v3659
        %v3757 = vunpack.c.h.b16 %v3659
        %v3758 = vunpack.c.l.b16 %v3660
        %v3759 = vunpack.c.h.b16 %v3660
        %v3760 = vunpack.c.l.b16 %v3661
        %v3761 = vunpack.c.h.b16 %v3661
        %v3762 = vunpack.c.l.b16 %v3662
        %v3763 = vunpack.c.h.b16 %v3662
        %v3764 = vunpack.c.l.b16 %v3663
        %v3765 = vunpack.c.h.b16 %v3663
        %v3766 = vunpack.c.l.b16 %v3664
        %v3767 = vunpack.c.h.b16 %v3664
        %v3768 = vunpack.c.l.b16 %v3665
        %v3769 = vunpack.c.h.b16 %v3665
        %v3770 = vunpack.c.l.b16 %v3666
        %v3771 = vunpack.c.h.b16 %v3666
        %v3772 = vunpack.c.l.b16 %v3667
        %v3773 = vunpack.c.h.b16 %v3667
        %v3774 = vunpack.c.l.b16 %v3668
        %v3775 = vunpack.c.h.b16 %v3668
        %v3776 = vunpack.c.l.b16 %v3669
        %v3777 = vunpack.c.h.b16 %v3669
        %v3778 = vunpack.c.l.b16 %v3670
        %v3779 = vunpack.c.h.b16 %v3670
        %v3780 = vunpack.c.l.b16 %v3671
        %v3781 = vunpack.c.h.b16 %v3671
        %v3782 = vunpack.c.l.b16 %v3672
        %v3783 = vunpack.c.h.b16 %v3672
        %v3784 = vunpack.c.l.b16 %v3673
        %v3785 = vunpack.c.h.b16 %v3673
        %v3786 = vunpack.c.l.b16 %v3674
        %v3787 = vunpack.c.h.b16 %v3674
        %v3788 = vunpack.c.l.b16 %v3675
        %v3789 = vunpack.c.h.b16 %v3675
        %v3790 = vunpack.c.l.b16 %v3676
        %v3791 = vunpack.c.h.b16 %v3676
        %v3792 = vunpack.c.l.b16 %v3677
        %v3793 = vunpack.c.h.b16 %v3677
        %v3794 = vunpack.c.l.b16 %v3678
        %v3795 = vunpack.c.h.b16 %v3678
        %v3796 = vunpack.c.l.b16 %v3679
        %v3797 = vunpack.c.h.b16 %v3679
        %v3798 = vunpack.c.l.b16 %v3680
        %v3799 = vunpack.c.h.b16 %v3680
        %v3800 = vunpack.c.l.b16 %v3681
        %v3801 = vunpack.c.h.b16 %v3681
        %v3802 = vunpack.c.l.b16 %v3682
        %v3803 = vunpack.c.h.b16 %v3682
        %v3804 = vunpack.c.l.b16 %v3683
        %v3805 = vunpack.c.h.b16 %v3683
        %v3806 = vunpack.c.l.b16 %v3684
        %v3807 = vunpack.c.h.b16 %v3684
        %v3808 = vunpack.c.l.b16 %v3685
        %v3809 = vunpack.c.h.b16 %v3685
        %v3810 = vunpack.c.l.b16 %v3686
        %v3811 = vunpack.c.h.b16 %v3686
        %v3812 = vunpack.c.l.b16 %v3687
        %v3813 = vunpack.c.h.b16 %v3687
        %v3814 = vunpack.c.l.b16 %v3688
        %v3815 = vunpack.c.h.b16 %v3688
        %v3816 = vunpack.c.l.b16 %v3689
        %v3817 = vunpack.c.h.b16 %v3689
        %v3818 = vunpack.c.l.b16 %v3690
        %v3819 = vunpack.c.h.b16 %v3690
        %v3820 = vunpack.c.l.b16 %v3691
        %v3821 = vunpack.c.h.b16 %v3691
        %v3822 = vunpack.c.l.b16 %v3692
        %v3823 = vunpack.c.h.b16 %v3692
        %v3824 = vunpack.c.l.b16 %v3693
        %v3825 = vunpack.c.h.b16 %v3693
        %v3826 = vunpack.c.l.b16 %v3694
        %v3827 = vunpack.c.h.b16 %v3694
        %v3828 = vunpack.c.l.b16 %v3695
        %v3829 = vunpack.c.h.b16 %v3695
        %v3830 = vunpack.c.l.b16 %v3696
        %v3831 = vunpack.c.h.b16 %v3696
        %v3832 = vunpack.c.l.b16 %v3697
        %v3833 = vunpack.c.h.b16 %v3697
        %v3834 = vunpack.c.l.b16 %v3698
        %v3835 = vunpack.c.h.b16 %v3698
        %v3836 = vunpack.c.l.b16 %v3699
        %v3837 = vunpack.c.h.b16 %v3699
        %v3838 = vunpack.c.l.b16 %v3700
        %v3839 = vunpack.c.h.b16 %v3700
        %v3840 = vunpack.c.l.b16 %v3701
        %v3841 = vunpack.c.h.b16 %v3701
        %v3842 = vunpack.c.l.b16 %v3702
        %v3843 = vunpack.c.h.b16 %v3702
        %v3844 = vunpack.c.l.b16 %v3703
        %v3845 = vunpack.c.h.b16 %v3703
        %v3846 = vunpack.c.l.b16 %v3704
        %v3847 = vunpack.c.h.b16 %v3704
        %v3848 = vunpack.c.l.b16 %v3705
        %v3849 = vunpack.c.h.b16 %v3705
        %v3850 = vpack.c.b16 %v3756, %v3754
        %v3851 = vpack.c.b16 %v3757, %v3755
        %v3852 = vpack.c.b16 %v3760, %v3758
        %v3853 = vpack.c.b16 %v3761, %v3759
        %v3854 = vpack.c.b16 %v3764, %v3762
        %v3855 = vpack.c.b16 %v3765, %v3763
        %v3856 = vpack.c.b16 %v3768, %v3766
        %v3857 = vpack.c.b16 %v3769, %v3767
        %v3858 = vpack.c.b16 %v3772, %v3770
        %v3859 = vpack.c.b16 %v3773, %v3771
        %v3860 = vpack.c.b16 %v3776, %v3774
        %v3861 = vpack.c.b16 %v3777, %v3775
        %v3862 = vpack.c.b16 %v3780, %v3778
        %v3863 = vpack.c.b16 %v3781, %v3779
        %v3864 = vpack.c.b16 %v3784, %v3782
        %v3865 = vpack.c.b16 %v3785, %v3783
        %v3866 = vpack.c.b16 %v3788, %v3786
        %v3867 = vpack.c.b16 %v3789, %v3787
        %v3868 = vpack.c.b16 %v3792, %v3790
        %v3869 = vpack.c.b16 %v3793, %v3791
        %v3870 = vpack.c.b16 %v3796, %v3794
        %v3871 = vpack.c.b16 %v3797, %v3795
        %v3872 = vpack.c.b16 %v3800, %v3798
        %v3873 = vpack.c.b16 %v3801, %v3799
        %v3874 = vpack.c.b16 %v3804, %v3802
        %v3875 = vpack.c.b16 %v3805, %v3803
        %v3876 = vpack.c.b16 %v3808, %v3806
        %v3877 = vpack.c.b16 %v3809, %v3807
        %v3878 = vpack.c.b16 %v3812, %v3810
        %v3879 = vpack.c.b16 %v3813, %v3811
        %v3880 = vpack.c.b16 %v3816, %v3814
        %v3881 = vpack.c.b16 %v3817, %v3815
        %v3882 = vpack.c.b16 %v3820, %v3818
        %v3883 = vpack.c.b16 %v3821, %v3819
        %v3884 = vpack.c.b16 %v3824, %v3822
        %v3885 = vpack.c.b16 %v3825, %v3823
        %v3886 = vpack.c.b16 %v3828, %v3826
        %v3887 = vpack.c.b16 %v3829, %v3827
        %v3888 = vpack.c.b16 %v3832, %v3830
        %v3889 = vpack.c.b16 %v3833, %v3831
        %v3890 = vpack.c.b16 %v3836, %v3834
        %v3891 = vpack.c.b16 %v3837, %v3835
        %v3892 = vpack.c.b16 %v3840, %v3838
        %v3893 = vpack.c.b16 %v3841, %v3839
        %v3894 = vpack.c.b16 %v3844, %v3842
        %v3895 = vpack.c.b16 %v3845, %v3843
        %v3896 = vpack.c.b16 %v3848, %v3846
        %v3897 = vpack.c.b16 %v3849, %v3847
        %3946 = vmatprep.subr.bf16.mxu0 %v3851
        %3947 = vmatpush1.bf16.msra.mxu0 %v3850
        %3948 = vmatprep.subr.bf16.mxu0 %v3853
        %3949 = vmatpush1.bf16.msra.mxu0 %v3852
        %3950 = vmatprep.subr.bf16.mxu0 %v3855
        %3951 = vmatpush1.bf16.msra.mxu0 %v3854
        %3952 = vmatprep.subr.bf16.mxu0 %v3857
        %3953 = vmatpush1.bf16.msra.mxu0 %v3856
        %3954 = vmatprep.subr.bf16.mxu0 %v3859
        %3955 = vmatpush1.bf16.msra.mxu0 %v3858
        %3956 = vmatprep.subr.bf16.mxu0 %v3861
        %3957 = vmatpush1.bf16.msra.mxu0 %v3860
        %3958 = vmatprep.subr.bf16.mxu0 %v3863
        %3959 = vmatpush1.bf16.msra.mxu0 %v3862
        %3960 = vmatprep.subr.bf16.mxu0 %v3865
        %3961 = vmatpush1.bf16.msra.mxu0 %v3864
        %3962 = vmatprep.subr.bf16.mxu0 %v3867
        %3963 = vmatpush1.bf16.msra.mxu0 %v3866
        %3964 = vmatprep.subr.bf16.mxu0 %v3869
        %3965 = vmatpush1.bf16.msra.mxu0 %v3868
        %3966 = vmatprep.subr.bf16.mxu0 %v3871
        %3967 = vmatpush1.bf16.msra.mxu0 %v3870
        %3968 = vmatprep.subr.bf16.mxu0 %v3873
        %3969 = vmatpush1.bf16.msra.mxu0 %v3872
        %3970 = vmatprep.subr.bf16.mxu0 %v3875
        %3971 = vmatpush1.bf16.msra.mxu0 %v3874
        %3972 = vmatprep.subr.bf16.mxu0 %v3877
        %3973 = vmatpush1.bf16.msra.mxu0 %v3876
        %3974 = vmatprep.subr.bf16.mxu0 %v3879
        %3975 = vmatpush1.bf16.msra.mxu0 %v3878
        %3976 = vmatprep.subr.bf16.mxu0 %v3881
        %3977 = vmatpush1.bf16.msra.mxu0 %v3880
        %3978 = vmatprep.mubr.bf16.mxu0 %v3646
        %3979 = vmatmul.mubr.bf16.gmra.mrb[0].mxu0 %v3645
        %v3980 = vpop.f32.mrb[0].mxu0
        %v3981 = vadd.f32 0.0, %v3980
        %v3982 = vpop.f32.mrb[0].mxu0
        %v3983 = vadd.f32 0.0, %v3982
        %v3984 = vpop.f32.mrb[0].mxu0
        %v3985 = vadd.f32 0.0, %v3984
        %v3986 = vpop.f32.mrb[0].mxu0
        %v3987 = vadd.f32 0.0, %v3986
        %3988 = vmatprep.mubr.bf16.mxu0 %v3649
        %3989 = vmatmul.mubr.bf16.gmra.mrb[0].mxu0 %v3648
        %v3990 = vpop.f32.mrb[0].mxu0
        %v3991 = vadd.f32 0.0, %v3990
        %v3992 = vpop.f32.mrb[0].mxu0
        %v3993 = vadd.f32 0.0, %v3992
        %v3994 = vpop.f32.mrb[0].mxu0
        %v3995 = vadd.f32 0.0, %v3994
        %v3996 = vpop.f32.mrb[0].mxu0
        %v3997 = vadd.f32 0.0, %v3996
        %3998 = vmatprep.mubr.bf16.mxu0 %v3652
        %3999 = vmatmul.mubr.bf16.gmra.mrb[0].mxu0 %v3651
        %v4000 = vpop.f32.mrb[0].mxu0
        %v4001 = vadd.f32 0.0, %v4000
        %v4002 = vpop.f32.mrb[0].mxu0
        %v4003 = vadd.f32 0.0, %v4002
        %v4004 = vpop.f32.mrb[0].mxu0
        %v4005 = vadd.f32 0.0, %v4004
        %v4006 = vpop.f32.mrb[0].mxu0
        %v4007 = vadd.f32 0.0, %v4006
        %4008 = vmatprep.mubr.bf16.mxu0 %v3655
        %4009 = vmatmul.mubr.bf16.gmra.mrb[0].mxu0 %v3654
        %v4010 = vpop.f32.mrb[0].mxu0
        %v4011 = vadd.f32 0.0, %v4010
        %v4012 = vpop.f32.mrb[0].mxu0
        %v4013 = vadd.f32 0.0, %v4012
        %v4014 = vpop.f32.mrb[0].mxu0
        %v4015 = vadd.f32 0.0, %v4014
        %v4016 = vpop.f32.mrb[0].mxu0
        %v4017 = vadd.f32 0.0, %v4016
        %4018 = vdwg.mxu0
        %4019 = vmatprep.subr.bf16.mxu0 %v3883
        %4020 = vmatpush1.bf16.msra.mxu0 %v3882
        %4021 = vmatprep.subr.bf16.mxu0 %v3885
        %4022 = vmatpush1.bf16.msra.mxu0 %v3884
        %4023 = vmatprep.subr.bf16.mxu0 %v3887
        %4024 = vmatpush1.bf16.msra.mxu0 %v3886
        %4025 = vmatprep.subr.bf16.mxu0 %v3889
        %4026 = vmatpush1.bf16.msra.mxu0 %v3888
        %4027 = vmatprep.subr.bf16.mxu0 %v3891
        %4028 = vmatpush1.bf16.msra.mxu0 %v3890
        %4029 = vmatprep.subr.bf16.mxu0 %v3893
        %4030 = vmatpush1.bf16.msra.mxu0 %v3892
        %4031 = vmatprep.subr.bf16.mxu0 %v3895
        %4032 = vmatpush1.bf16.msra.mxu0 %v3894
        %4033 = vmatprep.subr.bf16.mxu0 %v3897
        %4034 = vmatpush1.bf16.msra.mxu0 %v3896
        %4035 = vmatprep.subr.bf16.mxu0 0
        %4036 = vmatpush1.bf16.msra.mxu0 0
        %4037 = vmatprep.subr.bf16.mxu0 0
        %4038 = vmatpush1.bf16.msra.mxu0 0
        %4039 = vmatprep.subr.bf16.mxu0 0
        %4040 = vmatpush1.bf16.msra.mxu0 0
        %4041 = vmatprep.subr.bf16.mxu0 0
        %4042 = vmatpush1.bf16.msra.mxu0 0
        %4043 = vmatprep.subr.bf16.mxu0 0
        %4044 = vmatpush1.bf16.msra.mxu0 0
        %4045 = vmatprep.subr.bf16.mxu0 0
        %4046 = vmatpush1.bf16.msra.mxu0 0
        %4047 = vmatprep.subr.bf16.mxu0 0
        %4048 = vmatpush1.bf16.msra.mxu0 0
        %4049 = vmatprep.subr.bf16.mxu0 0
        %4050 = vmatpush1.bf16.msra.mxu0 0
        %4051 = vmatprep.mubr.bf16.mxu0 0
        %4052 = vmatmul.mubr.bf16.gmra.mrb[0].mxu0 %v3647
        %v4053 = vpop.f32.mrb[0].mxu0
        %v4054 = vadd.f32 %v3981, %v4053
        %v4055 = vpop.f32.mrb[0].mxu0
        %v4056 = vadd.f32 %v3983, %v4055
        %v4057 = vpop.f32.mrb[0].mxu0
        %v4058 = vadd.f32 %v3985, %v4057
        %v4059 = vpop.f32.mrb[0].mxu0
        %v4060 = vadd.f32 %v3987, %v4059
        %4061 = vmatprep.mubr.bf16.mxu0 0
        %4062 = vmatmul.mubr.bf16.gmra.mrb[0].mxu0 %v3650
        %v4063 = vpop.f32.mrb[0].mxu0
        %v4064 = vadd.f32 %v3991, %v4063
        %v4065 = vpop.f32.mrb[0].mxu0
        %v4066 = vadd.f32 %v3993, %v4065
        %v4067 = vpop.f32.mrb[0].mxu0
        %v4068 = vadd.f32 %v3995, %v4067
        %v4069 = vpop.f32.mrb[0].mxu0
        %v4070 = vadd.f32 %v3997, %v4069
        %4071 = vmatprep.mubr.bf16.mxu0 0
        %4072 = vmatmul.mubr.bf16.gmra.mrb[0].mxu0 %v3653
        %v4073 = vpop.f32.mrb[0].mxu0
        %v4074 = vadd.f32 %v4001, %v4073
        %v4075 = vpop.f32.mrb[0].mxu0
        %v4076 = vadd.f32 %v4003, %v4075
        %v4077 = vpop.f32.mrb[0].mxu0
        %v4078 = vadd.f32 %v4005, %v4077
        %v4079 = vpop.f32.mrb[0].mxu0
        %v4080 = vadd.f32 %v4007, %v4079
        %4081 = vmatprep.mubr.bf16.mxu0 0
        %4082 = vmatmul.mubr.bf16.gmra.mrb[0].mxu0 %v3656
        %v4083 = vpop.f32.mrb[0].mxu0
        %v4084 = vadd.f32 %v4011, %v4083
        %v4085 = vpop.f32.mrb[0].mxu0
        %v4086 = vadd.f32 %v4013, %v4085
        %v4087 = vpop.f32.mrb[0].mxu0
        %v4088 = vadd.f32 %v4015, %v4087
        %v4089 = vpop.f32.mrb[0].mxu0
        %v4090 = vadd.f32 %v4017, %v4089
        %4091 = vdwg.mxu0
        %v4092 = vadd.f32 %v3557, %v4054
        %v4093 = vadd.f32 %v3558, %v4056
        %v4094 = vadd.f32 %v3559, %v4058
        %v4095 = vadd.f32 %v3560, %v4060
        %v4096 = vadd.f32 %v3561, %v4064
        %v4097 = vadd.f32 %v3562, %v4066
        %v4098 = vadd.f32 %v3563, %v4068
        %v4099 = vadd.f32 %v3564, %v4070
        %v4100 = vadd.f32 %v3565, %v4074
        %v4101 = vadd.f32 %v3566, %v4076
        %v4102 = vadd.f32 %v3567, %v4078
        %v4103 = vadd.f32 %v3568, %v4080
        %v4104 = vadd.f32 %v3569, %v4084
        %v4105 = vadd.f32 %v3570, %v4086
        %v4106 = vadd.f32 %v3571, %v4088
        %v4107 = vadd.f32 %v3572, %v4090
        %4108 = vset.pattern.permute.xlu0 7
        %4109 = vperm.xlu0 %4108, %v384
        %v4110 = vpop.permute.xlu0 %4109
        %4111 = vset.pattern.permute.xlu0 7
        %4112 = vperm.xlu0 %4111, %v385
        %v4113 = vpop.permute.xlu0 %4112
        %4114 = vset.pattern.permute.xlu0 7
        %4115 = vperm.xlu0 %4114, %v386
        %v4116 = vpop.permute.xlu0 %4115
        %4117 = vset.pattern.permute.xlu0 7
        %4118 = vperm.xlu0 %4117, %v387
        %v4119 = vpop.permute.xlu0 %4118
        %4120 = vset.pattern.permute.xlu0 7
        %4121 = vperm.xlu0 %4120, %v388
        %v4122 = vpop.permute.xlu0 %4121
        %4123 = vset.pattern.permute.xlu0 7
        %4124 = vperm.xlu0 %4123, %v389
        %v4125 = vpop.permute.xlu0 %4124
        %4126 = vset.pattern.permute.xlu0 7
        %4127 = vperm.xlu0 %4126, %v390
        %v4128 = vpop.permute.xlu0 %4127
        %4129 = vset.pattern.permute.xlu0 7
        %4130 = vperm.xlu0 %4129, %v391
        %v4131 = vpop.permute.xlu0 %4130
        %vm4132 = vcmp.eq.s32.totalorder %v4110, %v393
        %vm4133 = vcmp.eq.s32.totalorder %v4110, %v394
        %vm4134 = vcmp.eq.s32.totalorder %v4110, %v395
        %vm4135 = vcmp.eq.s32.totalorder %v4113, %v393
        %vm4136 = vcmp.eq.s32.totalorder %v4113, %v394
        %vm4137 = vcmp.eq.s32.totalorder %v4113, %v395
        %vm4138 = vcmp.eq.s32.totalorder %v4116, %v393
        %vm4139 = vcmp.eq.s32.totalorder %v4116, %v394
        %vm4140 = vcmp.eq.s32.totalorder %v4116, %v395
        %vm4141 = vcmp.eq.s32.totalorder %v4119, %v393
        %vm4142 = vcmp.eq.s32.totalorder %v4119, %v394
        %vm4143 = vcmp.eq.s32.totalorder %v4119, %v395
        %vm4144 = vcmp.eq.s32.totalorder %v4122, %v393
        %vm4145 = vcmp.eq.s32.totalorder %v4122, %v394
        %vm4146 = vcmp.eq.s32.totalorder %v4122, %v395
        %vm4147 = vcmp.eq.s32.totalorder %v4125, %v393
        %vm4148 = vcmp.eq.s32.totalorder %v4125, %v394
        %vm4149 = vcmp.eq.s32.totalorder %v4125, %v395
        %vm4150 = vcmp.eq.s32.totalorder %v4128, %v393
        %vm4151 = vcmp.eq.s32.totalorder %v4128, %v394
        %vm4152 = vcmp.eq.s32.totalorder %v4128, %v395
        %vm4153 = vcmp.eq.s32.totalorder %v4131, %v393
        %vm4154 = vcmp.eq.s32.totalorder %v4131, %v394
        %vm4155 = vcmp.eq.s32.totalorder %v4131, %v395
        %v4156 = vsel %vm4132, 1.0, 0.0
        %v4157 = vsel %vm4133, 1.0, 0.0
        %v4158 = vsel %vm4134, 1.0, 0.0
        %v4159 = vsel %vm4135, 1.0, 0.0
        %v4160 = vsel %vm4136, 1.0, 0.0
        %v4161 = vsel %vm4137, 1.0, 0.0
        %v4162 = vsel %vm4138, 1.0, 0.0
        %v4163 = vsel %vm4139, 1.0, 0.0
        %v4164 = vsel %vm4140, 1.0, 0.0
        %v4165 = vsel %vm4141, 1.0, 0.0
        %v4166 = vsel %vm4142, 1.0, 0.0
        %v4167 = vsel %vm4143, 1.0, 0.0
        %v4168 = vsel %vm4144, 1.0, 0.0
        %v4169 = vsel %vm4145, 1.0, 0.0
        %v4170 = vsel %vm4146, 1.0, 0.0
        %v4171 = vsel %vm4147, 1.0, 0.0
        %v4172 = vsel %vm4148, 1.0, 0.0
        %v4173 = vsel %vm4149, 1.0, 0.0
        %v4174 = vsel %vm4150, 1.0, 0.0
        %v4175 = vsel %vm4151, 1.0, 0.0
        %v4176 = vsel %vm4152, 1.0, 0.0
        %v4177 = vsel %vm4153, 1.0, 0.0
        %v4178 = vsel %vm4154, 1.0, 0.0
        %v4179 = vsel %vm4155, 1.0, 0.0
        %v4180 = vpack.c.bf16 %v4159, %v4156
        %v4181 = vpack.c.bf16 %v4160, %v4157
        %v4182 = vpack.c.bf16 %v4161, %v4158
        %v4183 = vpack.c.bf16 %v4165, %v4162
        %v4184 = vpack.c.bf16 %v4166, %v4163
        %v4185 = vpack.c.bf16 %v4167, %v4164
        %v4186 = vpack.c.bf16 %v4171, %v4168
        %v4187 = vpack.c.bf16 %v4172, %v4169
        %v4188 = vpack.c.bf16 %v4173, %v4170
        %v4189 = vpack.c.bf16 %v4177, %v4174
        %v4190 = vpack.c.bf16 %v4178, %v4175
        %v4191 = vpack.c.bf16 %v4179, %v4176
        %s4192 = scalar_lea.vmem [#allocation3], 2688
        %v4193 = vld [vmem:[%s4192] sm:$0xff]
        %v4194 = vld [vmem:[%s4192 + $0x8] sm:$0xff]
        %v4195 = vld [vmem:[%s4192 + $0x10] sm:$0xff]
        %v4196 = vld [vmem:[%s4192 + $0x18] sm:$0xff]
        %v4197 = vld [vmem:[%s4192 + $0x20] sm:$0xff]
        %v4198 = vld [vmem:[%s4192 + $0x28] sm:$0xff]
        %v4199 = vld [vmem:[%s4192 + $0x30] sm:$0xff]
        %v4200 = vld [vmem:[%s4192 + $0x38] sm:$0xff]
        %v4201 = vld [vmem:[%s4192 + $0x40] sm:$0xff]
        %v4202 = vld [vmem:[%s4192 + $0x48] sm:$0xff]
        %v4203 = vld [vmem:[%s4192 + $0x50] sm:$0xff]
        %v4204 = vld [vmem:[%s4192 + $0x58] sm:$0xff]
        %v4205 = vld [vmem:[%s4192 + $0x60] sm:$0xff]
        %v4206 = vld [vmem:[%s4192 + $0x68] sm:$0xff]
        %v4207 = vld [vmem:[%s4192 + $0x70] sm:$0xff]
        %v4208 = vld [vmem:[%s4192 + $0x78] sm:$0xff]
        %v4209 = vld [vmem:[%s4192 + $0x80] sm:$0xff]
        %v4210 = vld [vmem:[%s4192 + $0x88] sm:$0xff]
        %v4211 = vld [vmem:[%s4192 + $0x90] sm:$0xff]
        %v4212 = vld [vmem:[%s4192 + $0x98] sm:$0xff]
        %v4213 = vld [vmem:[%s4192 + $0xa0] sm:$0xff]
        %v4214 = vld [vmem:[%s4192 + $0xa8] sm:$0xff]
        %v4215 = vld [vmem:[%s4192 + $0xb0] sm:$0xff]
        %v4216 = vld [vmem:[%s4192 + $0xb8] sm:$0xff]
        %v4217 = vld [vmem:[%s4192 + $0xc0] sm:$0xff]
        %v4218 = vld [vmem:[%s4192 + $0xc8] sm:$0xff]
        %v4219 = vld [vmem:[%s4192 + $0xd0] sm:$0xff]
        %v4220 = vld [vmem:[%s4192 + $0xd8] sm:$0xff]
        %v4221 = vld [vmem:[%s4192 + $0xe0] sm:$0xff]
        %v4222 = vld [vmem:[%s4192 + $0xe8] sm:$0xff]
        %v4223 = vld [vmem:[%s4192 + $0xf0] sm:$0xff]
        %v4224 = vld [vmem:[%s4192 + $0xf8] sm:$0xff]
        %v4225 = vld [vmem:[%s4192 + $0x100] sm:$0xff]
        %v4226 = vld [vmem:[%s4192 + $0x108] sm:$0xff]
        %v4227 = vld [vmem:[%s4192 + $0x110] sm:$0xff]
        %v4228 = vld [vmem:[%s4192 + $0x118] sm:$0xff]
        %v4229 = vld [vmem:[%s4192 + $0x120] sm:$0xff]
        %v4230 = vld [vmem:[%s4192 + $0x128] sm:$0xff]
        %v4231 = vld [vmem:[%s4192 + $0x130] sm:$0xff]
        %v4232 = vld [vmem:[%s4192 + $0x138] sm:$0xff]
        %v4233 = vld [vmem:[%s4192 + $0x140] sm:$0xff]
        %v4234 = vld [vmem:[%s4192 + $0x148] sm:$0xff]
        %v4235 = vld [vmem:[%s4192 + $0x150] sm:$0xff]
        %v4236 = vld [vmem:[%s4192 + $0x158] sm:$0xff]
        %v4237 = vld [vmem:[%s4192 + $0x160] sm:$0xff]
        %v4238 = vld [vmem:[%s4192 + $0x168] sm:$0xff]
        %v4239 = vld [vmem:[%s4192 + $0x170] sm:$0xff]
        %v4240 = vld [vmem:[%s4192 + $0x178] sm:$0xff]
        %v4289 = vunpack.c.l.b16 %v4193
        %v4290 = vunpack.c.h.b16 %v4193
        %v4291 = vunpack.c.l.b16 %v4194
        %v4292 = vunpack.c.h.b16 %v4194
        %v4293 = vunpack.c.l.b16 %v4195
        %v4294 = vunpack.c.h.b16 %v4195
        %v4295 = vunpack.c.l.b16 %v4196
        %v4296 = vunpack.c.h.b16 %v4196
        %v4297 = vunpack.c.l.b16 %v4197
        %v4298 = vunpack.c.h.b16 %v4197
        %v4299 = vunpack.c.l.b16 %v4198
        %v4300 = vunpack.c.h.b16 %v4198
        %v4301 = vunpack.c.l.b16 %v4199
        %v4302 = vunpack.c.h.b16 %v4199
        %v4303 = vunpack.c.l.b16 %v4200
        %v4304 = vunpack.c.h.b16 %v4200
        %v4305 = vunpack.c.l.b16 %v4201
        %v4306 = vunpack.c.h.b16 %v4201
        %v4307 = vunpack.c.l.b16 %v4202
        %v4308 = vunpack.c.h.b16 %v4202
        %v4309 = vunpack.c.l.b16 %v4203
        %v4310 = vunpack.c.h.b16 %v4203
        %v4311 = vunpack.c.l.b16 %v4204
        %v4312 = vunpack.c.h.b16 %v4204
        %v4313 = vunpack.c.l.b16 %v4205
        %v4314 = vunpack.c.h.b16 %v4205
        %v4315 = vunpack.c.l.b16 %v4206
        %v4316 = vunpack.c.h.b16 %v4206
        %v4317 = vunpack.c.l.b16 %v4207
        %v4318 = vunpack.c.h.b16 %v4207
        %v4319 = vunpack.c.l.b16 %v4208
        %v4320 = vunpack.c.h.b16 %v4208
        %v4321 = vunpack.c.l.b16 %v4209
        %v4322 = vunpack.c.h.b16 %v4209
        %v4323 = vunpack.c.l.b16 %v4210
        %v4324 = vunpack.c.h.b16 %v4210
        %v4325 = vunpack.c.l.b16 %v4211
        %v4326 = vunpack.c.h.b16 %v4211
        %v4327 = vunpack.c.l.b16 %v4212
        %v4328 = vunpack.c.h.b16 %v4212
        %v4329 = vunpack.c.l.b16 %v4213
        %v4330 = vunpack.c.h.b16 %v4213
        %v4331 = vunpack.c.l.b16 %v4214
        %v4332 = vunpack.c.h.b16 %v4214
        %v4333 = vunpack.c.l.b16 %v4215
        %v4334 = vunpack.c.h.b16 %v4215
        %v4335 = vunpack.c.l.b16 %v4216
        %v4336 = vunpack.c.h.b16 %v4216
        %v4337 = vunpack.c.l.b16 %v4217
        %v4338 = vunpack.c.h.b16 %v4217
        %v4339 = vunpack.c.l.b16 %v4218
        %v4340 = vunpack.c.h.b16 %v4218
        %v4341 = vunpack.c.l.b16 %v4219
        %v4342 = vunpack.c.h.b16 %v4219
        %v4343 = vunpack.c.l.b16 %v4220
        %v4344 = vunpack.c.h.b16 %v4220
        %v4345 = vunpack.c.l.b16 %v4221
        %v4346 = vunpack.c.h.b16 %v4221
        %v4347 = vunpack.c.l.b16 %v4222
        %v4348 = vunpack.c.h.b16 %v4222
        %v4349 = vunpack.c.l.b16 %v4223
        %v4350 = vunpack.c.h.b16 %v4223
        %v4351 = vunpack.c.l.b16 %v4224
        %v4352 = vunpack.c.h.b16 %v4224
        %v4353 = vunpack.c.l.b16 %v4225
        %v4354 = vunpack.c.h.b16 %v4225
        %v4355 = vunpack.c.l.b16 %v4226
        %v4356 = vunpack.c.h.b16 %v4226
        %v4357 = vunpack.c.l.b16 %v4227
        %v4358 = vunpack.c.h.b16 %v4227
        %v4359 = vunpack.c.l.b16 %v4228
        %v4360 = vunpack.c.h.b16 %v4228
        %v4361 = vunpack.c.l.b16 %v4229
        %v4362 = vunpack.c.h.b16 %v4229
        %v4363 = vunpack.c.l.b16 %v4230
        %v4364 = vunpack.c.h.b16 %v4230
        %v4365 = vunpack.c.l.b16 %v4231
        %v4366 = vunpack.c.h.b16 %v4231
        %v4367 = vunpack.c.l.b16 %v4232
        %v4368 = vunpack.c.h.b16 %v4232
        %v4369 = vunpack.c.l.b16 %v4233
        %v4370 = vunpack.c.h.b16 %v4233
        %v4371 = vunpack.c.l.b16 %v4234
        %v4372 = vunpack.c.h.b16 %v4234
        %v4373 = vunpack.c.l.b16 %v4235
        %v4374 = vunpack.c.h.b16 %v4235
        %v4375 = vunpack.c.l.b16 %v4236
        %v4376 = vunpack.c.h.b16 %v4236
        %v4377 = vunpack.c.l.b16 %v4237
        %v4378 = vunpack.c.h.b16 %v4237
        %v4379 = vunpack.c.l.b16 %v4238
        %v4380 = vunpack.c.h.b16 %v4238
        %v4381 = vunpack.c.l.b16 %v4239
        %v4382 = vunpack.c.h.b16 %v4239
        %v4383 = vunpack.c.l.b16 %v4240
        %v4384 = vunpack.c.h.b16 %v4240
        %v4385 = vpack.c.b16 %v4291, %v4289
        %v4386 = vpack.c.b16 %v4292, %v4290
        %v4387 = vpack.c.b16 %v4295, %v4293
        %v4388 = vpack.c.b16 %v4296, %v4294
        %v4389 = vpack.c.b16 %v4299, %v4297
        %v4390 = vpack.c.b16 %v4300, %v4298
        %v4391 = vpack.c.b16 %v4303, %v4301
        %v4392 = vpack.c.b16 %v4304, %v4302
        %v4393 = vpack.c.b16 %v4307, %v4305
        %v4394 = vpack.c.b16 %v4308, %v4306
        %v4395 = vpack.c.b16 %v4311, %v4309
        %v4396 = vpack.c.b16 %v4312, %v4310
        %v4397 = vpack.c.b16 %v4315, %v4313
        %v4398 = vpack.c.b16 %v4316, %v4314
        %v4399 = vpack.c.b16 %v4319, %v4317
        %v4400 = vpack.c.b16 %v4320, %v4318
        %v4401 = vpack.c.b16 %v4323, %v4321
        %v4402 = vpack.c.b16 %v4324, %v4322
        %v4403 = vpack.c.b16 %v4327, %v4325
        %v4404 = vpack.c.b16 %v4328, %v4326
        %v4405 = vpack.c.b16 %v4331, %v4329
        %v4406 = vpack.c.b16 %v4332, %v4330
        %v4407 = vpack.c.b16 %v4335, %v4333
        %v4408 = vpack.c.b16 %v4336, %v4334
        %v4409 = vpack.c.b16 %v4339, %v4337
        %v4410 = vpack.c.b16 %v4340, %v4338
        %v4411 = vpack.c.b16 %v4343, %v4341
        %v4412 = vpack.c.b16 %v4344, %v4342
        %v4413 = vpack.c.b16 %v4347, %v4345
        %v4414 = vpack.c.b16 %v4348, %v4346
        %v4415 = vpack.c.b16 %v4351, %v4349
        %v4416 = vpack.c.b16 %v4352, %v4350
        %v4417 = vpack.c.b16 %v4355, %v4353
        %v4418 = vpack.c.b16 %v4356, %v4354
        %v4419 = vpack.c.b16 %v4359, %v4357
        %v4420 = vpack.c.b16 %v4360, %v4358
        %v4421 = vpack.c.b16 %v4363, %v4361
        %v4422 = vpack.c.b16 %v4364, %v4362
        %v4423 = vpack.c.b16 %v4367, %v4365
        %v4424 = vpack.c.b16 %v4368, %v4366
        %v4425 = vpack.c.b16 %v4371, %v4369
        %v4426 = vpack.c.b16 %v4372, %v4370
        %v4427 = vpack.c.b16 %v4375, %v4373
        %v4428 = vpack.c.b16 %v4376, %v4374
        %v4429 = vpack.c.b16 %v4379, %v4377
        %v4430 = vpack.c.b16 %v4380, %v4378
        %v4431 = vpack.c.b16 %v4383, %v4381
        %v4432 = vpack.c.b16 %v4384, %v4382
        %4481 = vmatprep.subr.bf16.mxu0 %v4386
        %4482 = vmatpush1.bf16.msra.mxu0 %v4385
        %4483 = vmatprep.subr.bf16.mxu0 %v4388
        %4484 = vmatpush1.bf16.msra.mxu0 %v4387
        %4485 = vmatprep.subr.bf16.mxu0 %v4390
        %4486 = vmatpush1.bf16.msra.mxu0 %v4389
        %4487 = vmatprep.subr.bf16.mxu0 %v4392
        %4488 = vmatpush1.bf16.msra.mxu0 %v4391
        %4489 = vmatprep.subr.bf16.mxu0 %v4394
        %4490 = vmatpush1.bf16.msra.mxu0 %v4393
        %4491 = vmatprep.subr.bf16.mxu0 %v4396
        %4492 = vmatpush1.bf16.msra.mxu0 %v4395
        %4493 = vmatprep.subr.bf16.mxu0 %v4398
        %4494 = vmatpush1.bf16.msra.mxu0 %v4397
        %4495 = vmatprep.subr.bf16.mxu0 %v4400
        %4496 = vmatpush1.bf16.msra.mxu0 %v4399
        %4497 = vmatprep.subr.bf16.mxu0 %v4402
        %4498 = vmatpush1.bf16.msra.mxu0 %v4401
        %4499 = vmatprep.subr.bf16.mxu0 %v4404
        %4500 = vmatpush1.bf16.msra.mxu0 %v4403
        %4501 = vmatprep.subr.bf16.mxu0 %v4406
        %4502 = vmatpush1.bf16.msra.mxu0 %v4405
        %4503 = vmatprep.subr.bf16.mxu0 %v4408
        %4504 = vmatpush1.bf16.msra.mxu0 %v4407
        %4505 = vmatprep.subr.bf16.mxu0 %v4410
        %4506 = vmatpush1.bf16.msra.mxu0 %v4409
        %4507 = vmatprep.subr.bf16.mxu0 %v4412
        %4508 = vmatpush1.bf16.msra.mxu0 %v4411
        %4509 = vmatprep.subr.bf16.mxu0 %v4414
        %4510 = vmatpush1.bf16.msra.mxu0 %v4413
        %4511 = vmatprep.subr.bf16.mxu0 %v4416
        %4512 = vmatpush1.bf16.msra.mxu0 %v4415
        %4513 = vmatprep.mubr.bf16.mxu0 %v4181
        %4514 = vmatmul.mubr.bf16.gmra.mrb[0].mxu0 %v4180
        %v4515 = vpop.f32.mrb[0].mxu0
        %v4516 = vadd.f32 0.0, %v4515
        %v4517 = vpop.f32.mrb[0].mxu0
        %v4518 = vadd.f32 0.0, %v4517
        %v4519 = vpop.f32.mrb[0].mxu0
        %v4520 = vadd.f32 0.0, %v4519
        %v4521 = vpop.f32.mrb[0].mxu0
        %v4522 = vadd.f32 0.0, %v4521
        %4523 = vmatprep.mubr.bf16.mxu0 %v4184
        %4524 = vmatmul.mubr.bf16.gmra.mrb[0].mxu0 %v4183
        %v4525 = vpop.f32.mrb[0].mxu0
        %v4526 = vadd.f32 0.0, %v4525
        %v4527 = vpop.f32.mrb[0].mxu0
        %v4528 = vadd.f32 0.0, %v4527
        %v4529 = vpop.f32.mrb[0].mxu0
        %v4530 = vadd.f32 0.0, %v4529
        %v4531 = vpop.f32.mrb[0].mxu0
        %v4532 = vadd.f32 0.0, %v4531
        %4533 = vmatprep.mubr.bf16.mxu0 %v4187
        %4534 = vmatmul.mubr.bf16.gmra.mrb[0].mxu0 %v4186
        %v4535 = vpop.f32.mrb[0].mxu0
        %v4536 = vadd.f32 0.0, %v4535
        %v4537 = vpop.f32.mrb[0].mxu0
        %v4538 = vadd.f32 0.0, %v4537
        %v4539 = vpop.f32.mrb[0].mxu0
        %v4540 = vadd.f32 0.0, %v4539
        %v4541 = vpop.f32.mrb[0].mxu0
        %v4542 = vadd.f32 0.0, %v4541
        %4543 = vmatprep.mubr.bf16.mxu0 %v4190
        %4544 = vmatmul.mubr.bf16.gmra.mrb[0].mxu0 %v4189
        %v4545 = vpop.f32.mrb[0].mxu0
        %v4546 = vadd.f32 0.0, %v4545
        %v4547 = vpop.f32.mrb[0].mxu0
        %v4548 = vadd.f32 0.0, %v4547
        %v4549 = vpop.f32.mrb[0].mxu0
        %v4550 = vadd.f32 0.0, %v4549
        %v4551 = vpop.f32.mrb[0].mxu0
        %v4552 = vadd.f32 0.0, %v4551
        %4553 = vdwg.mxu0
        %4554 = vmatprep.subr.bf16.mxu0 %v4418
        %4555 = vmatpush1.bf16.msra.mxu0 %v4417
        %4556 = vmatprep.subr.bf16.mxu0 %v4420
        %4557 = vmatpush1.bf16.msra.mxu0 %v4419
        %4558 = vmatprep.subr.bf16.mxu0 %v4422
        %4559 = vmatpush1.bf16.msra.mxu0 %v4421
        %4560 = vmatprep.subr.bf16.mxu0 %v4424
        %4561 = vmatpush1.bf16.msra.mxu0 %v4423
        %4562 = vmatprep.subr.bf16.mxu0 %v4426
        %4563 = vmatpush1.bf16.msra.mxu0 %v4425
        %4564 = vmatprep.subr.bf16.mxu0 %v4428
        %4565 = vmatpush1.bf16.msra.mxu0 %v4427
        %4566 = vmatprep.subr.bf16.mxu0 %v4430
        %4567 = vmatpush1.bf16.msra.mxu0 %v4429
        %4568 = vmatprep.subr.bf16.mxu0 %v4432
        %4569 = vmatpush1.bf16.msra.mxu0 %v4431
        %4570 = vmatprep.subr.bf16.mxu0 0
        %4571 = vmatpush1.bf16.msra.mxu0 0
        %4572 = vmatprep.subr.bf16.mxu0 0
        %4573 = vmatpush1.bf16.msra.mxu0 0
        %4574 = vmatprep.subr.bf16.mxu0 0
        %4575 = vmatpush1.bf16.msra.mxu0 0
        %4576 = vmatprep.subr.bf16.mxu0 0
        %4577 = vmatpush1.bf16.msra.mxu0 0
        %4578 = vmatprep.subr.bf16.mxu0 0
        %4579 = vmatpush1.bf16.msra.mxu0 0
        %4580 = vmatprep.subr.bf16.mxu0 0
        %4581 = vmatpush1.bf16.msra.mxu0 0
        %4582 = vmatprep.subr.bf16.mxu0 0
        %4583 = vmatpush1.bf16.msra.mxu0 0
        %4584 = vmatprep.subr.bf16.mxu0 0
        %4585 = vmatpush1.bf16.msra.mxu0 0
        %4586 = vmatprep.mubr.bf16.mxu0 0
        %4587 = vmatmul.mubr.bf16.gmra.mrb[0].mxu0 %v4182
        %v4588 = vpop.f32.mrb[0].mxu0
        %v4589 = vadd.f32 %v4516, %v4588
        %v4590 = vpop.f32.mrb[0].mxu0
        %v4591 = vadd.f32 %v4518, %v4590
        %v4592 = vpop.f32.mrb[0].mxu0
        %v4593 = vadd.f32 %v4520, %v4592
        %v4594 = vpop.f32.mrb[0].mxu0
        %v4595 = vadd.f32 %v4522, %v4594
        %4596 = vmatprep.mubr.bf16.mxu0 0
        %4597 = vmatmul.mubr.bf16.gmra.mrb[0].mxu0 %v4185
        %v4598 = vpop.f32.mrb[0].mxu0
        %v4599 = vadd.f32 %v4526, %v4598
        %v4600 = vpop.f32.mrb[0].mxu0
        %v4601 = vadd.f32 %v4528, %v4600
        %v4602 = vpop.f32.mrb[0].mxu0
        %v4603 = vadd.f32 %v4530, %v4602
        %v4604 = vpop.f32.mrb[0].mxu0
        %v4605 = vadd.f32 %v4532, %v4604
        %4606 = vmatprep.mubr.bf16.mxu0 0
        %4607 = vmatmul.mubr.bf16.gmra.mrb[0].mxu0 %v4188
        %v4608 = vpop.f32.mrb[0].mxu0
        %v4609 = vadd.f32 %v4536, %v4608
        %v4610 = vpop.f32.mrb[0].mxu0
        %v4611 = vadd.f32 %v4538, %v4610
        %v4612 = vpop.f32.mrb[0].mxu0
        %v4613 = vadd.f32 %v4540, %v4612
        %v4614 = vpop.f32.mrb[0].mxu0
        %v4615 = vadd.f32 %v4542, %v4614
        %4616 = vmatprep.mubr.bf16.mxu0 0
        %4617 = vmatmul.mubr.bf16.gmra.mrb[0].mxu0 %v4191
        %v4618 = vpop.f32.mrb[0].mxu0
        %v4619 = vadd.f32 %v4546, %v4618
        %v4620 = vpop.f32.mrb[0].mxu0
        %v4621 = vadd.f32 %v4548, %v4620
        %v4622 = vpop.f32.mrb[0].mxu0
        %v4623 = vadd.f32 %v4550, %v4622
        %v4624 = vpop.f32.mrb[0].mxu0
        %v4625 = vadd.f32 %v4552, %v4624
        %4626 = vdwg.mxu0
        %v4627 = vadd.f32 %v4092, %v4589
        %v4628 = vadd.f32 %v4093, %v4591
        %v4629 = vadd.f32 %v4094, %v4593
        %v4630 = vadd.f32 %v4095, %v4595
        %v4631 = vadd.f32 %v4096, %v4599
        %v4632 = vadd.f32 %v4097, %v4601
        %v4633 = vadd.f32 %v4098, %v4603
        %v4634 = vadd.f32 %v4099, %v4605
        %v4635 = vadd.f32 %v4100, %v4609
        %v4636 = vadd.f32 %v4101, %v4611
        %v4637 = vadd.f32 %v4102, %v4613
        %v4638 = vadd.f32 %v4103, %v4615
        %v4639 = vadd.f32 %v4104, %v4619
        %v4640 = vadd.f32 %v4105, %v4621
        %v4641 = vadd.f32 %v4106, %v4623
        %v4642 = vadd.f32 %v4107, %v4625
        %4643 = vset.pattern.permute.xlu0 8
        %4644 = vperm.xlu0 %4643, %v384
        %v4645 = vpop.permute.xlu0 %4644
        %4646 = vset.pattern.permute.xlu0 8
        %4647 = vperm.xlu0 %4646, %v385
        %v4648 = vpop.permute.xlu0 %4647
        %4649 = vset.pattern.permute.xlu0 8
        %4650 = vperm.xlu0 %4649, %v386
        %v4651 = vpop.permute.xlu0 %4650
        %4652 = vset.pattern.permute.xlu0 8
        %4653 = vperm.xlu0 %4652, %v387
        %v4654 = vpop.permute.xlu0 %4653
        %4655 = vset.pattern.permute.xlu0 8
        %4656 = vperm.xlu0 %4655, %v388
        %v4657 = vpop.permute.xlu0 %4656
        %4658 = vset.pattern.permute.xlu0 8
        %4659 = vperm.xlu0 %4658, %v389
        %v4660 = vpop.permute.xlu0 %4659
        %4661 = vset.pattern.permute.xlu0 8
        %4662 = vperm.xlu0 %4661, %v390
        %v4663 = vpop.permute.xlu0 %4662
        %4664 = vset.pattern.permute.xlu0 8
        %4665 = vperm.xlu0 %4664, %v391
        %v4666 = vpop.permute.xlu0 %4665
        %vm4667 = vcmp.eq.s32.totalorder %v4645, %v393
        %vm4668 = vcmp.eq.s32.totalorder %v4645, %v394
        %vm4669 = vcmp.eq.s32.totalorder %v4645, %v395
        %vm4670 = vcmp.eq.s32.totalorder %v4648, %v393
        %vm4671 = vcmp.eq.s32.totalorder %v4648, %v394
        %vm4672 = vcmp.eq.s32.totalorder %v4648, %v395
        %vm4673 = vcmp.eq.s32.totalorder %v4651, %v393
        %vm4674 = vcmp.eq.s32.totalorder %v4651, %v394
        %vm4675 = vcmp.eq.s32.totalorder %v4651, %v395
        %vm4676 = vcmp.eq.s32.totalorder %v4654, %v393
        %vm4677 = vcmp.eq.s32.totalorder %v4654, %v394
        %vm4678 = vcmp.eq.s32.totalorder %v4654, %v395
        %vm4679 = vcmp.eq.s32.totalorder %v4657, %v393
        %vm4680 = vcmp.eq.s32.totalorder %v4657, %v394
        %vm4681 = vcmp.eq.s32.totalorder %v4657, %v395
        %vm4682 = vcmp.eq.s32.totalorder %v4660, %v393
        %vm4683 = vcmp.eq.s32.totalorder %v4660, %v394
        %vm4684 = vcmp.eq.s32.totalorder %v4660, %v395
        %vm4685 = vcmp.eq.s32.totalorder %v4663, %v393
        %vm4686 = vcmp.eq.s32.totalorder %v4663, %v394
        %vm4687 = vcmp.eq.s32.totalorder %v4663, %v395
        %vm4688 = vcmp.eq.s32.totalorder %v4666, %v393
        %vm4689 = vcmp.eq.s32.totalorder %v4666, %v394
        %vm4690 = vcmp.eq.s32.totalorder %v4666, %v395
        %v4691 = vsel %vm4667, 1.0, 0.0
        %v4692 = vsel %vm4668, 1.0, 0.0
        %v4693 = vsel %vm4669, 1.0, 0.0
        %v4694 = vsel %vm4670, 1.0, 0.0
        %v4695 = vsel %vm4671, 1.0, 0.0
        %v4696 = vsel %vm4672, 1.0, 0.0
        %v4697 = vsel %vm4673, 1.0, 0.0
        %v4698 = vsel %vm4674, 1.0, 0.0
        %v4699 = vsel %vm4675, 1.0, 0.0
        %v4700 = vsel %vm4676, 1.0, 0.0
        %v4701 = vsel %vm4677, 1.0, 0.0
        %v4702 = vsel %vm4678, 1.0, 0.0
        %v4703 = vsel %vm4679, 1.0, 0.0
        %v4704 = vsel %vm4680, 1.0, 0.0
        %v4705 = vsel %vm4681, 1.0, 0.0
        %v4706 = vsel %vm4682, 1.0, 0.0
        %v4707 = vsel %vm4683, 1.0, 0.0
        %v4708 = vsel %vm4684, 1.0, 0.0
        %v4709 = vsel %vm4685, 1.0, 0.0
        %v4710 = vsel %vm4686, 1.0, 0.0
        %v4711 = vsel %vm4687, 1.0, 0.0
        %v4712 = vsel %vm4688, 1.0, 0.0
        %v4713 = vsel %vm4689, 1.0, 0.0
        %v4714 = vsel %vm4690, 1.0, 0.0
        %v4715 = vpack.c.bf16 %v4694, %v4691
        %v4716 = vpack.c.bf16 %v4695, %v4692
        %v4717 = vpack.c.bf16 %v4696, %v4693
        %v4718 = vpack.c.bf16 %v4700, %v4697
        %v4719 = vpack.c.bf16 %v4701, %v4698
        %v4720 = vpack.c.bf16 %v4702, %v4699
        %v4721 = vpack.c.bf16 %v4706, %v4703
        %v4722 = vpack.c.bf16 %v4707, %v4704
        %v4723 = vpack.c.bf16 %v4708, %v4705
        %v4724 = vpack.c.bf16 %v4712, %v4709
        %v4725 = vpack.c.bf16 %v4713, %v4710
        %v4726 = vpack.c.bf16 %v4714, %v4711
        %s4727 = scalar_lea.vmem [#allocation3], 3072
        %v4728 = vld [vmem:[%s4727] sm:$0xff]
        %v4729 = vld [vmem:[%s4727 + $0x8] sm:$0xff]
        %v4730 = vld [vmem:[%s4727 + $0x10] sm:$0xff]
        %v4731 = vld [vmem:[%s4727 + $0x18] sm:$0xff]
        %v4732 = vld [vmem:[%s4727 + $0x20] sm:$0xff]
        %v4733 = vld [vmem:[%s4727 + $0x28] sm:$0xff]
        %v4734 = vld [vmem:[%s4727 + $0x30] sm:$0xff]
        %v4735 = vld [vmem:[%s4727 + $0x38] sm:$0xff]
        %v4736 = vld [vmem:[%s4727 + $0x40] sm:$0xff]
        %v4737 = vld [vmem:[%s4727 + $0x48] sm:$0xff]
        %v4738 = vld [vmem:[%s4727 + $0x50] sm:$0xff]
        %v4739 = vld [vmem:[%s4727 + $0x58] sm:$0xff]
        %v4740 = vld [vmem:[%s4727 + $0x60] sm:$0xff]
        %v4741 = vld [vmem:[%s4727 + $0x68] sm:$0xff]
        %v4742 = vld [vmem:[%s4727 + $0x70] sm:$0xff]
        %v4743 = vld [vmem:[%s4727 + $0x78] sm:$0xff]
        %v4744 = vld [vmem:[%s4727 + $0x80] sm:$0xff]
        %v4745 = vld [vmem:[%s4727 + $0x88] sm:$0xff]
        %v4746 = vld [vmem:[%s4727 + $0x90] sm:$0xff]
        %v4747 = vld [vmem:[%s4727 + $0x98] sm:$0xff]
        %v4748 = vld [vmem:[%s4727 + $0xa0] sm:$0xff]
        %v4749 = vld [vmem:[%s4727 + $0xa8] sm:$0xff]
        %v4750 = vld [vmem:[%s4727 + $0xb0] sm:$0xff]
        %v4751 = vld [vmem:[%s4727 + $0xb8] sm:$0xff]
        %v4752 = vld [vmem:[%s4727 + $0xc0] sm:$0xff]
        %v4753 = vld [vmem:[%s4727 + $0xc8] sm:$0xff]
        %v4754 = vld [vmem:[%s4727 + $0xd0] sm:$0xff]
        %v4755 = vld [vmem:[%s4727 + $0xd8] sm:$0xff]
        %v4756 = vld [vmem:[%s4727 + $0xe0] sm:$0xff]
        %v4757 = vld [vmem:[%s4727 + $0xe8] sm:$0xff]
        %v4758 = vld [vmem:[%s4727 + $0xf0] sm:$0xff]
        %v4759 = vld [vmem:[%s4727 + $0xf8] sm:$0xff]
        %v4760 = vld [vmem:[%s4727 + $0x100] sm:$0xff]
        %v4761 = vld [vmem:[%s4727 + $0x108] sm:$0xff]
        %v4762 = vld [vmem:[%s4727 + $0x110] sm:$0xff]
        %v4763 = vld [vmem:[%s4727 + $0x118] sm:$0xff]
        %v4764 = vld [vmem:[%s4727 + $0x120] sm:$0xff]
        %v4765 = vld [vmem:[%s4727 + $0x128] sm:$0xff]
        %v4766 = vld [vmem:[%s4727 + $0x130] sm:$0xff]
        %v4767 = vld [vmem:[%s4727 + $0x138] sm:$0xff]
        %v4768 = vld [vmem:[%s4727 + $0x140] sm:$0xff]
        %v4769 = vld [vmem:[%s4727 + $0x148] sm:$0xff]
        %v4770 = vld [vmem:[%s4727 + $0x150] sm:$0xff]
        %v4771 = vld [vmem:[%s4727 + $0x158] sm:$0xff]
        %v4772 = vld [vmem:[%s4727 + $0x160] sm:$0xff]
        %v4773 = vld [vmem:[%s4727 + $0x168] sm:$0xff]
        %v4774 = vld [vmem:[%s4727 + $0x170] sm:$0xff]
        %v4775 = vld [vmem:[%s4727 + $0x178] sm:$0xff]
        %v4824 = vunpack.c.l.b16 %v4728
        %v4825 = vunpack.c.h.b16 %v4728
        %v4826 = vunpack.c.l.b16 %v4729
        %v4827 = vunpack.c.h.b16 %v4729
        %v4828 = vunpack.c.l.b16 %v4730
        %v4829 = vunpack.c.h.b16 %v4730
        %v4830 = vunpack.c.l.b16 %v4731
        %v4831 = vunpack.c.h.b16 %v4731
        %v4832 = vunpack.c.l.b16 %v4732
        %v4833 = vunpack.c.h.b16 %v4732
        %v4834 = vunpack.c.l.b16 %v4733
        %v4835 = vunpack.c.h.b16 %v4733
        %v4836 = vunpack.c.l.b16 %v4734
        %v4837 = vunpack.c.h.b16 %v4734
        %v4838 = vunpack.c.l.b16 %v4735
        %v4839 = vunpack.c.h.b16 %v4735
        %v4840 = vunpack.c.l.b16 %v4736
        %v4841 = vunpack.c.h.b16 %v4736
        %v4842 = vunpack.c.l.b16 %v4737
        %v4843 = vunpack.c.h.b16 %v4737
        %v4844 = vunpack.c.l.b16 %v4738
        %v4845 = vunpack.c.h.b16 %v4738
        %v4846 = vunpack.c.l.b16 %v4739
        %v4847 = vunpack.c.h.b16 %v4739
        %v4848 = vunpack.c.l.b16 %v4740
        %v4849 = vunpack.c.h.b16 %v4740
        %v4850 = vunpack.c.l.b16 %v4741
        %v4851 = vunpack.c.h.b16 %v4741
        %v4852 = vunpack.c.l.b16 %v4742
        %v4853 = vunpack.c.h.b16 %v4742
        %v4854 = vunpack.c.l.b16 %v4743
        %v4855 = vunpack.c.h.b16 %v4743
        %v4856 = vunpack.c.l.b16 %v4744
        %v4857 = vunpack.c.h.b16 %v4744
        %v4858 = vunpack.c.l.b16 %v4745
        %v4859 = vunpack.c.h.b16 %v4745
        %v4860 = vunpack.c.l.b16 %v4746
        %v4861 = vunpack.c.h.b16 %v4746
        %v4862 = vunpack.c.l.b16 %v4747
        %v4863 = vunpack.c.h.b16 %v4747
        %v4864 = vunpack.c.l.b16 %v4748
        %v4865 = vunpack.c.h.b16 %v4748
        %v4866 = vunpack.c.l.b16 %v4749
        %v4867 = vunpack.c.h.b16 %v4749
        %v4868 = vunpack.c.l.b16 %v4750
        %v4869 = vunpack.c.h.b16 %v4750
        %v4870 = vunpack.c.l.b16 %v4751
        %v4871 = vunpack.c.h.b16 %v4751
        %v4872 = vunpack.c.l.b16 %v4752
        %v4873 = vunpack.c.h.b16 %v4752
        %v4874 = vunpack.c.l.b16 %v4753
        %v4875 = vunpack.c.h.b16 %v4753
        %v4876 = vunpack.c.l.b16 %v4754
        %v4877 = vunpack.c.h.b16 %v4754
        %v4878 = vunpack.c.l.b16 %v4755
        %v4879 = vunpack.c.h.b16 %v4755
        %v4880 = vunpack.c.l.b16 %v4756
        %v4881 = vunpack.c.h.b16 %v4756
        %v4882 = vunpack.c.l.b16 %v4757
        %v4883 = vunpack.c.h.b16 %v4757
        %v4884 = vunpack.c.l.b16 %v4758
        %v4885 = vunpack.c.h.b16 %v4758
        %v4886 = vunpack.c.l.b16 %v4759
        %v4887 = vunpack.c.h.b16 %v4759
        %v4888 = vunpack.c.l.b16 %v4760
        %v4889 = vunpack.c.h.b16 %v4760
        %v4890 = vunpack.c.l.b16 %v4761
        %v4891 = vunpack.c.h.b16 %v4761
        %v4892 = vunpack.c.l.b16 %v4762
        %v4893 = vunpack.c.h.b16 %v4762
        %v4894 = vunpack.c.l.b16 %v4763
        %v4895 = vunpack.c.h.b16 %v4763
        %v4896 = vunpack.c.l.b16 %v4764
        %v4897 = vunpack.c.h.b16 %v4764
        %v4898 = vunpack.c.l.b16 %v4765
        %v4899 = vunpack.c.h.b16 %v4765
        %v4900 = vunpack.c.l.b16 %v4766
        %v4901 = vunpack.c.h.b16 %v4766
        %v4902 = vunpack.c.l.b16 %v4767
        %v4903 = vunpack.c.h.b16 %v4767
        %v4904 = vunpack.c.l.b16 %v4768
        %v4905 = vunpack.c.h.b16 %v4768
        %v4906 = vunpack.c.l.b16 %v4769
        %v4907 = vunpack.c.h.b16 %v4769
        %v4908 = vunpack.c.l.b16 %v4770
        %v4909 = vunpack.c.h.b16 %v4770
        %v4910 = vunpack.c.l.b16 %v4771
        %v4911 = vunpack.c.h.b16 %v4771
        %v4912 = vunpack.c.l.b16 %v4772
        %v4913 = vunpack.c.h.b16 %v4772
        %v4914 = vunpack.c.l.b16 %v4773
        %v4915 = vunpack.c.h.b16 %v4773
        %v4916 = vunpack.c.l.b16 %v4774
        %v4917 = vunpack.c.h.b16 %v4774
        %v4918 = vunpack.c.l.b16 %v4775
        %v4919 = vunpack.c.h.b16 %v4775
        %v4920 = vpack.c.b16 %v4826, %v4824
        %v4921 = vpack.c.b16 %v4827, %v4825
        %v4922 = vpack.c.b16 %v4830, %v4828
        %v4923 = vpack.c.b16 %v4831, %v4829
        %v4924 = vpack.c.b16 %v4834, %v4832
        %v4925 = vpack.c.b16 %v4835, %v4833
        %v4926 = vpack.c.b16 %v4838, %v4836
        %v4927 = vpack.c.b16 %v4839, %v4837
        %v4928 = vpack.c.b16 %v4842, %v4840
        %v4929 = vpack.c.b16 %v4843, %v4841
        %v4930 = vpack.c.b16 %v4846, %v4844
        %v4931 = vpack.c.b16 %v4847, %v4845
        %v4932 = vpack.c.b16 %v4850, %v4848
        %v4933 = vpack.c.b16 %v4851, %v4849
        %v4934 = vpack.c.b16 %v4854, %v4852
        %v4935 = vpack.c.b16 %v4855, %v4853
        %v4936 = vpack.c.b16 %v4858, %v4856
        %v4937 = vpack.c.b16 %v4859, %v4857
        %v4938 = vpack.c.b16 %v4862, %v4860
        %v4939 = vpack.c.b16 %v4863, %v4861
        %v4940 = vpack.c.b16 %v4866, %v4864
        %v4941 = vpack.c.b16 %v4867, %v4865
        %v4942 = vpack.c.b16 %v4870, %v4868
        %v4943 = vpack.c.b16 %v4871, %v4869
        %v4944 = vpack.c.b16 %v4874, %v4872
        %v4945 = vpack.c.b16 %v4875, %v4873
        %v4946 = vpack.c.b16 %v4878, %v4876
        %v4947 = vpack.c.b16 %v4879, %v4877
        %v4948 = vpack.c.b16 %v4882, %v4880
        %v4949 = vpack.c.b16 %v4883, %v4881
        %v4950 = vpack.c.b16 %v4886, %v4884
        %v4951 = vpack.c.b16 %v4887, %v4885
        %v4952 = vpack.c.b16 %v4890, %v4888
        %v4953 = vpack.c.b16 %v4891, %v4889
        %v4954 = vpack.c.b16 %v4894, %v4892
        %v4955 = vpack.c.b16 %v4895, %v4893
        %v4956 = vpack.c.b16 %v4898, %v4896
        %v4957 = vpack.c.b16 %v4899, %v4897
        %v4958 = vpack.c.b16 %v4902, %v4900
        %v4959 = vpack.c.b16 %v4903, %v4901
        %v4960 = vpack.c.b16 %v4906, %v4904
        %v4961 = vpack.c.b16 %v4907, %v4905
        %v4962 = vpack.c.b16 %v4910, %v4908
        %v4963 = vpack.c.b16 %v4911, %v4909
        %v4964 = vpack.c.b16 %v4914, %v4912
        %v4965 = vpack.c.b16 %v4915, %v4913
        %v4966 = vpack.c.b16 %v4918, %v4916
        %v4967 = vpack.c.b16 %v4919, %v4917
        %5016 = vmatprep.subr.bf16.mxu0 %v4921
        %5017 = vmatpush1.bf16.msra.mxu0 %v4920
        %5018 = vmatprep.subr.bf16.mxu0 %v4923
        %5019 = vmatpush1.bf16.msra.mxu0 %v4922
        %5020 = vmatprep.subr.bf16.mxu0 %v4925
        %5021 = vmatpush1.bf16.msra.mxu0 %v4924
        %5022 = vmatprep.subr.bf16.mxu0 %v4927
        %5023 = vmatpush1.bf16.msra.mxu0 %v4926
        %5024 = vmatprep.subr.bf16.mxu0 %v4929
        %5025 = vmatpush1.bf16.msra.mxu0 %v4928
        %5026 = vmatprep.subr.bf16.mxu0 %v4931
        %5027 = vmatpush1.bf16.msra.mxu0 %v4930
        %5028 = vmatprep.subr.bf16.mxu0 %v4933
        %5029 = vmatpush1.bf16.msra.mxu0 %v4932
        %5030 = vmatprep.subr.bf16.mxu0 %v4935
        %5031 = vmatpush1.bf16.msra.mxu0 %v4934
        %5032 = vmatprep.subr.bf16.mxu0 %v4937
        %5033 = vmatpush1.bf16.msra.mxu0 %v4936
        %5034 = vmatprep.subr.bf16.mxu0 %v4939
        %5035 = vmatpush1.bf16.msra.mxu0 %v4938
        %5036 = vmatprep.subr.bf16.mxu0 %v4941
        %5037 = vmatpush1.bf16.msra.mxu0 %v4940
        %5038 = vmatprep.subr.bf16.mxu0 %v4943
        %5039 = vmatpush1.bf16.msra.mxu0 %v4942
        %5040 = vmatprep.subr.bf16.mxu0 %v4945
        %5041 = vmatpush1.bf16.msra.mxu0 %v4944
        %5042 = vmatprep.subr.bf16.mxu0 %v4947
        %5043 = vmatpush1.bf16.msra.mxu0 %v4946
        %5044 = vmatprep.subr.bf16.mxu0 %v4949
        %5045 = vmatpush1.bf16.msra.mxu0 %v4948
        %5046 = vmatprep.subr.bf16.mxu0 %v4951
        %5047 = vmatpush1.bf16.msra.mxu0 %v4950
        %5048 = vmatprep.mubr.bf16.mxu0 %v4716
        %5049 = vmatmul.mubr.bf16.gmra.mrb[0].mxu0 %v4715
        %v5050 = vpop.f32.mrb[0].mxu0
        %v5051 = vadd.f32 0.0, %v5050
        %v5052 = vpop.f32.mrb[0].mxu0
        %v5053 = vadd.f32 0.0, %v5052
        %v5054 = vpop.f32.mrb[0].mxu0
        %v5055 = vadd.f32 0.0, %v5054
        %v5056 = vpop.f32.mrb[0].mxu0
        %v5057 = vadd.f32 0.0, %v5056
        %5058 = vmatprep.mubr.bf16.mxu0 %v4719
        %5059 = vmatmul.mubr.bf16.gmra.mrb[0].mxu0 %v4718
        %v5060 = vpop.f32.mrb[0].mxu0
        %v5061 = vadd.f32 0.0, %v5060
        %v5062 = vpop.f32.mrb[0].mxu0
        %v5063 = vadd.f32 0.0, %v5062
        %v5064 = vpop.f32.mrb[0].mxu0
        %v5065 = vadd.f32 0.0, %v5064
        %v5066 = vpop.f32.mrb[0].mxu0
        %v5067 = vadd.f32 0.0, %v5066
        %5068 = vmatprep.mubr.bf16.mxu0 %v4722
        %5069 = vmatmul.mubr.bf16.gmra.mrb[0].mxu0 %v4721
        %v5070 = vpop.f32.mrb[0].mxu0
        %v5071 = vadd.f32 0.0, %v5070
        %v5072 = vpop.f32.mrb[0].mxu0
        %v5073 = vadd.f32 0.0, %v5072
        %v5074 = vpop.f32.mrb[0].mxu0
        %v5075 = vadd.f32 0.0, %v5074
        %v5076 = vpop.f32.mrb[0].mxu0
        %v5077 = vadd.f32 0.0, %v5076
        %5078 = vmatprep.mubr.bf16.mxu0 %v4725
        %5079 = vmatmul.mubr.bf16.gmra.mrb[0].mxu0 %v4724
        %v5080 = vpop.f32.mrb[0].mxu0
        %v5081 = vadd.f32 0.0, %v5080
        %v5082 = vpop.f32.mrb[0].mxu0
        %v5083 = vadd.f32 0.0, %v5082
        %v5084 = vpop.f32.mrb[0].mxu0
        %v5085 = vadd.f32 0.0, %v5084
        %v5086 = vpop.f32.mrb[0].mxu0
        %v5087 = vadd.f32 0.0, %v5086
        %5088 = vdwg.mxu0
        %5089 = vmatprep.subr.bf16.mxu0 %v4953
        %5090 = vmatpush1.bf16.msra.mxu0 %v4952
        %5091 = vmatprep.subr.bf16.mxu0 %v4955
        %5092 = vmatpush1.bf16.msra.mxu0 %v4954
        %5093 = vmatprep.subr.bf16.mxu0 %v4957
        %5094 = vmatpush1.bf16.msra.mxu0 %v4956
        %5095 = vmatprep.subr.bf16.mxu0 %v4959
        %5096 = vmatpush1.bf16.msra.mxu0 %v4958
        %5097 = vmatprep.subr.bf16.mxu0 %v4961
        %5098 = vmatpush1.bf16.msra.mxu0 %v4960
        %5099 = vmatprep.subr.bf16.mxu0 %v4963
        %5100 = vmatpush1.bf16.msra.mxu0 %v4962
        %5101 = vmatprep.subr.bf16.mxu0 %v4965
        %5102 = vmatpush1.bf16.msra.mxu0 %v4964
        %5103 = vmatprep.subr.bf16.mxu0 %v4967
        %5104 = vmatpush1.bf16.msra.mxu0 %v4966
        %5105 = vmatprep.subr.bf16.mxu0 0
        %5106 = vmatpush1.bf16.msra.mxu0 0
        %5107 = vmatprep.subr.bf16.mxu0 0
        %5108 = vmatpush1.bf16.msra.mxu0 0
        %5109 = vmatprep.subr.bf16.mxu0 0
        %5110 = vmatpush1.bf16.msra.mxu0 0
        %5111 = vmatprep.subr.bf16.mxu0 0
        %5112 = vmatpush1.bf16.msra.mxu0 0
        %5113 = vmatprep.subr.bf16.mxu0 0
        %5114 = vmatpush1.bf16.msra.mxu0 0
        %5115 = vmatprep.subr.bf16.mxu0 0
        %5116 = vmatpush1.bf16.msra.mxu0 0
        %5117 = vmatprep.subr.bf16.mxu0 0
        %5118 = vmatpush1.bf16.msra.mxu0 0
        %5119 = vmatprep.subr.bf16.mxu0 0
        %5120 = vmatpush1.bf16.msra.mxu0 0
        %5121 = vmatprep.mubr.bf16.mxu0 0
        %5122 = vmatmul.mubr.bf16.gmra.mrb[0].mxu0 %v4717
        %v5123 = vpop.f32.mrb[0].mxu0
        %v5124 = vadd.f32 %v5051, %v5123
        %v5125 = vpop.f32.mrb[0].mxu0
        %v5126 = vadd.f32 %v5053, %v5125
        %v5127 = vpop.f32.mrb[0].mxu0
        %v5128 = vadd.f32 %v5055, %v5127
        %v5129 = vpop.f32.mrb[0].mxu0
        %v5130 = vadd.f32 %v5057, %v5129
        %5131 = vmatprep.mubr.bf16.mxu0 0
        %5132 = vmatmul.mubr.bf16.gmra.mrb[0].mxu0 %v4720
        %v5133 = vpop.f32.mrb[0].mxu0
        %v5134 = vadd.f32 %v5061, %v5133
        %v5135 = vpop.f32.mrb[0].mxu0
        %v5136 = vadd.f32 %v5063, %v5135
        %v5137 = vpop.f32.mrb[0].mxu0
        %v5138 = vadd.f32 %v5065, %v5137
        %v5139 = vpop.f32.mrb[0].mxu0
        %v5140 = vadd.f32 %v5067, %v5139
        %5141 = vmatprep.mubr.bf16.mxu0 0
        %5142 = vmatmul.mubr.bf16.gmra.mrb[0].mxu0 %v4723
        %v5143 = vpop.f32.mrb[0].mxu0
        %v5144 = vadd.f32 %v5071, %v5143
        %v5145 = vpop.f32.mrb[0].mxu0
        %v5146 = vadd.f32 %v5073, %v5145
        %v5147 = vpop.f32.mrb[0].mxu0
        %v5148 = vadd.f32 %v5075, %v5147
        %v5149 = vpop.f32.mrb[0].mxu0
        %v5150 = vadd.f32 %v5077, %v5149
        %5151 = vmatprep.mubr.bf16.mxu0 0
        %5152 = vmatmul.mubr.bf16.gmra.mrb[0].mxu0 %v4726
        %v5153 = vpop.f32.mrb[0].mxu0
        %v5154 = vadd.f32 %v5081, %v5153
        %v5155 = vpop.f32.mrb[0].mxu0
        %v5156 = vadd.f32 %v5083, %v5155
        %v5157 = vpop.f32.mrb[0].mxu0
        %v5158 = vadd.f32 %v5085, %v5157
        %v5159 = vpop.f32.mrb[0].mxu0
        %v5160 = vadd.f32 %v5087, %v5159
        %5161 = vdwg.mxu0
        %v5162 = vadd.f32 %v4627, %v5124
        %v5163 = vadd.f32 %v4628, %v5126
        %v5164 = vadd.f32 %v4629, %v5128
        %v5165 = vadd.f32 %v4630, %v5130
        %v5166 = vadd.f32 %v4631, %v5134
        %v5167 = vadd.f32 %v4632, %v5136
        %v5168 = vadd.f32 %v4633, %v5138
        %v5169 = vadd.f32 %v4634, %v5140
        %v5170 = vadd.f32 %v4635, %v5144
        %v5171 = vadd.f32 %v4636, %v5146
        %v5172 = vadd.f32 %v4637, %v5148
        %v5173 = vadd.f32 %v4638, %v5150
        %v5174 = vadd.f32 %v4639, %v5154
        %v5175 = vadd.f32 %v4640, %v5156
        %v5176 = vadd.f32 %v4641, %v5158
        %v5177 = vadd.f32 %v4642, %v5160
        %5178 = vset.pattern.permute.xlu0 9
        %5179 = vperm.xlu0 %5178, %v384
        %v5180 = vpop.permute.xlu0 %5179
        %5181 = vset.pattern.permute.xlu0 9
        %5182 = vperm.xlu0 %5181, %v385
        %v5183 = vpop.permute.xlu0 %5182
        %5184 = vset.pattern.permute.xlu0 9
        %5185 = vperm.xlu0 %5184, %v386
        %v5186 = vpop.permute.xlu0 %5185
        %5187 = vset.pattern.permute.xlu0 9
        %5188 = vperm.xlu0 %5187, %v387
        %v5189 = vpop.permute.xlu0 %5188
        %5190 = vset.pattern.permute.xlu0 9
        %5191 = vperm.xlu0 %5190, %v388
        %v5192 = vpop.permute.xlu0 %5191
        %5193 = vset.pattern.permute.xlu0 9
        %5194 = vperm.xlu0 %5193, %v389
        %v5195 = vpop.permute.xlu0 %5194
        %5196 = vset.pattern.permute.xlu0 9
        %5197 = vperm.xlu0 %5196, %v390
        %v5198 = vpop.permute.xlu0 %5197
        %5199 = vset.pattern.permute.xlu0 9
        %5200 = vperm.xlu0 %5199, %v391
        %v5201 = vpop.permute.xlu0 %5200
        %vm5202 = vcmp.eq.s32.totalorder %v5180, %v393
        %vm5203 = vcmp.eq.s32.totalorder %v5180, %v394
        %vm5204 = vcmp.eq.s32.totalorder %v5180, %v395
        %vm5205 = vcmp.eq.s32.totalorder %v5183, %v393
        %vm5206 = vcmp.eq.s32.totalorder %v5183, %v394
        %vm5207 = vcmp.eq.s32.totalorder %v5183, %v395
        %vm5208 = vcmp.eq.s32.totalorder %v5186, %v393
        %vm5209 = vcmp.eq.s32.totalorder %v5186, %v394
        %vm5210 = vcmp.eq.s32.totalorder %v5186, %v395
        %vm5211 = vcmp.eq.s32.totalorder %v5189, %v393
        %vm5212 = vcmp.eq.s32.totalorder %v5189, %v394
        %vm5213 = vcmp.eq.s32.totalorder %v5189, %v395
        %vm5214 = vcmp.eq.s32.totalorder %v5192, %v393
        %vm5215 = vcmp.eq.s32.totalorder %v5192, %v394
        %vm5216 = vcmp.eq.s32.totalorder %v5192, %v395
        %vm5217 = vcmp.eq.s32.totalorder %v5195, %v393
        %vm5218 = vcmp.eq.s32.totalorder %v5195, %v394
        %vm5219 = vcmp.eq.s32.totalorder %v5195, %v395
        %vm5220 = vcmp.eq.s32.totalorder %v5198, %v393
        %vm5221 = vcmp.eq.s32.totalorder %v5198, %v394
        %vm5222 = vcmp.eq.s32.totalorder %v5198, %v395
        %vm5223 = vcmp.eq.s32.totalorder %v5201, %v393
        %vm5224 = vcmp.eq.s32.totalorder %v5201, %v394
        %vm5225 = vcmp.eq.s32.totalorder %v5201, %v395
        %v5226 = vsel %vm5202, 1.0, 0.0
        %v5227 = vsel %vm5203, 1.0, 0.0
        %v5228 = vsel %vm5204, 1.0, 0.0
        %v5229 = vsel %vm5205, 1.0, 0.0
        %v5230 = vsel %vm5206, 1.0, 0.0
        %v5231 = vsel %vm5207, 1.0, 0.0
        %v5232 = vsel %vm5208, 1.0, 0.0
        %v5233 = vsel %vm5209, 1.0, 0.0
        %v5234 = vsel %vm5210, 1.0, 0.0
        %v5235 = vsel %vm5211, 1.0, 0.0
        %v5236 = vsel %vm5212, 1.0, 0.0
        %v5237 = vsel %vm5213, 1.0, 0.0
        %v5238 = vsel %vm5214, 1.0, 0.0
        %v5239 = vsel %vm5215, 1.0, 0.0
        %v5240 = vsel %vm5216, 1.0, 0.0
        %v5241 = vsel %vm5217, 1.0, 0.0
        %v5242 = vsel %vm5218, 1.0, 0.0
        %v5243 = vsel %vm5219, 1.0, 0.0
        %v5244 = vsel %vm5220, 1.0, 0.0
        %v5245 = vsel %vm5221, 1.0, 0.0
        %v5246 = vsel %vm5222, 1.0, 0.0
        %v5247 = vsel %vm5223, 1.0, 0.0
        %v5248 = vsel %vm5224, 1.0, 0.0
        %v5249 = vsel %vm5225, 1.0, 0.0
        %v5250 = vpack.c.bf16 %v5229, %v5226
        %v5251 = vpack.c.bf16 %v5230, %v5227
        %v5252 = vpack.c.bf16 %v5231, %v5228
        %v5253 = vpack.c.bf16 %v5235, %v5232
        %v5254 = vpack.c.bf16 %v5236, %v5233
        %v5255 = vpack.c.bf16 %v5237, %v5234
        %v5256 = vpack.c.bf16 %v5241, %v5238
        %v5257 = vpack.c.bf16 %v5242, %v5239
        %v5258 = vpack.c.bf16 %v5243, %v5240
        %v5259 = vpack.c.bf16 %v5247, %v5244
        %v5260 = vpack.c.bf16 %v5248, %v5245
        %v5261 = vpack.c.bf16 %v5249, %v5246
        %s5262 = scalar_lea.vmem [#allocation3], 3456
        %v5263 = vld [vmem:[%s5262] sm:$0xff]
        %v5264 = vld [vmem:[%s5262 + $0x8] sm:$0xff]
        %v5265 = vld [vmem:[%s5262 + $0x10] sm:$0xff]
        %v5266 = vld [vmem:[%s5262 + $0x18] sm:$0xff]
        %v5267 = vld [vmem:[%s5262 + $0x20] sm:$0xff]
        %v5268 = vld [vmem:[%s5262 + $0x28] sm:$0xff]
        %v5269 = vld [vmem:[%s5262 + $0x30] sm:$0xff]
        %v5270 = vld [vmem:[%s5262 + $0x38] sm:$0xff]
        %v5271 = vld [vmem:[%s5262 + $0x40] sm:$0xff]
        %v5272 = vld [vmem:[%s5262 + $0x48] sm:$0xff]
        %v5273 = vld [vmem:[%s5262 + $0x50] sm:$0xff]
        %v5274 = vld [vmem:[%s5262 + $0x58] sm:$0xff]
        %v5275 = vld [vmem:[%s5262 + $0x60] sm:$0xff]
        %v5276 = vld [vmem:[%s5262 + $0x68] sm:$0xff]
        %v5277 = vld [vmem:[%s5262 + $0x70] sm:$0xff]
        %v5278 = vld [vmem:[%s5262 + $0x78] sm:$0xff]
        %v5279 = vld [vmem:[%s5262 + $0x80] sm:$0xff]
        %v5280 = vld [vmem:[%s5262 + $0x88] sm:$0xff]
        %v5281 = vld [vmem:[%s5262 + $0x90] sm:$0xff]
        %v5282 = vld [vmem:[%s5262 + $0x98] sm:$0xff]
        %v5283 = vld [vmem:[%s5262 + $0xa0] sm:$0xff]
        %v5284 = vld [vmem:[%s5262 + $0xa8] sm:$0xff]
        %v5285 = vld [vmem:[%s5262 + $0xb0] sm:$0xff]
        %v5286 = vld [vmem:[%s5262 + $0xb8] sm:$0xff]
        %v5287 = vld [vmem:[%s5262 + $0xc0] sm:$0xff]
        %v5288 = vld [vmem:[%s5262 + $0xc8] sm:$0xff]
        %v5289 = vld [vmem:[%s5262 + $0xd0] sm:$0xff]
        %v5290 = vld [vmem:[%s5262 + $0xd8] sm:$0xff]
        %v5291 = vld [vmem:[%s5262 + $0xe0] sm:$0xff]
        %v5292 = vld [vmem:[%s5262 + $0xe8] sm:$0xff]
        %v5293 = vld [vmem:[%s5262 + $0xf0] sm:$0xff]
        %v5294 = vld [vmem:[%s5262 + $0xf8] sm:$0xff]
        %v5295 = vld [vmem:[%s5262 + $0x100] sm:$0xff]
        %v5296 = vld [vmem:[%s5262 + $0x108] sm:$0xff]
        %v5297 = vld [vmem:[%s5262 + $0x110] sm:$0xff]
        %v5298 = vld [vmem:[%s5262 + $0x118] sm:$0xff]
        %v5299 = vld [vmem:[%s5262 + $0x120] sm:$0xff]
        %v5300 = vld [vmem:[%s5262 + $0x128] sm:$0xff]
        %v5301 = vld [vmem:[%s5262 + $0x130] sm:$0xff]
        %v5302 = vld [vmem:[%s5262 + $0x138] sm:$0xff]
        %v5303 = vld [vmem:[%s5262 + $0x140] sm:$0xff]
        %v5304 = vld [vmem:[%s5262 + $0x148] sm:$0xff]
        %v5305 = vld [vmem:[%s5262 + $0x150] sm:$0xff]
        %v5306 = vld [vmem:[%s5262 + $0x158] sm:$0xff]
        %v5307 = vld [vmem:[%s5262 + $0x160] sm:$0xff]
        %v5308 = vld [vmem:[%s5262 + $0x168] sm:$0xff]
        %v5309 = vld [vmem:[%s5262 + $0x170] sm:$0xff]
        %v5310 = vld [vmem:[%s5262 + $0x178] sm:$0xff]
        %v5359 = vunpack.c.l.b16 %v5263
        %v5360 = vunpack.c.h.b16 %v5263
        %v5361 = vunpack.c.l.b16 %v5264
        %v5362 = vunpack.c.h.b16 %v5264
        %v5363 = vunpack.c.l.b16 %v5265
        %v5364 = vunpack.c.h.b16 %v5265
        %v5365 = vunpack.c.l.b16 %v5266
        %v5366 = vunpack.c.h.b16 %v5266
        %v5367 = vunpack.c.l.b16 %v5267
        %v5368 = vunpack.c.h.b16 %v5267
        %v5369 = vunpack.c.l.b16 %v5268
        %v5370 = vunpack.c.h.b16 %v5268
        %v5371 = vunpack.c.l.b16 %v5269
        %v5372 = vunpack.c.h.b16 %v5269
        %v5373 = vunpack.c.l.b16 %v5270
        %v5374 = vunpack.c.h.b16 %v5270
        %v5375 = vunpack.c.l.b16 %v5271
        %v5376 = vunpack.c.h.b16 %v5271
        %v5377 = vunpack.c.l.b16 %v5272
        %v5378 = vunpack.c.h.b16 %v5272
        %v5379 = vunpack.c.l.b16 %v5273
        %v5380 = vunpack.c.h.b16 %v5273
        %v5381 = vunpack.c.l.b16 %v5274
        %v5382 = vunpack.c.h.b16 %v5274
        %v5383 = vunpack.c.l.b16 %v5275
        %v5384 = vunpack.c.h.b16 %v5275
        %v5385 = vunpack.c.l.b16 %v5276
        %v5386 = vunpack.c.h.b16 %v5276
        %v5387 = vunpack.c.l.b16 %v5277
        %v5388 = vunpack.c.h.b16 %v5277
        %v5389 = vunpack.c.l.b16 %v5278
        %v5390 = vunpack.c.h.b16 %v5278
        %v5391 = vunpack.c.l.b16 %v5279
        %v5392 = vunpack.c.h.b16 %v5279
        %v5393 = vunpack.c.l.b16 %v5280
        %v5394 = vunpack.c.h.b16 %v5280
        %v5395 = vunpack.c.l.b16 %v5281
        %v5396 = vunpack.c.h.b16 %v5281
        %v5397 = vunpack.c.l.b16 %v5282
        %v5398 = vunpack.c.h.b16 %v5282
        %v5399 = vunpack.c.l.b16 %v5283
        %v5400 = vunpack.c.h.b16 %v5283
        %v5401 = vunpack.c.l.b16 %v5284
        %v5402 = vunpack.c.h.b16 %v5284
        %v5403 = vunpack.c.l.b16 %v5285
        %v5404 = vunpack.c.h.b16 %v5285
        %v5405 = vunpack.c.l.b16 %v5286
        %v5406 = vunpack.c.h.b16 %v5286
        %v5407 = vunpack.c.l.b16 %v5287
        %v5408 = vunpack.c.h.b16 %v5287
        %v5409 = vunpack.c.l.b16 %v5288
        %v5410 = vunpack.c.h.b16 %v5288
        %v5411 = vunpack.c.l.b16 %v5289
        %v5412 = vunpack.c.h.b16 %v5289
        %v5413 = vunpack.c.l.b16 %v5290
        %v5414 = vunpack.c.h.b16 %v5290
        %v5415 = vunpack.c.l.b16 %v5291
        %v5416 = vunpack.c.h.b16 %v5291
        %v5417 = vunpack.c.l.b16 %v5292
        %v5418 = vunpack.c.h.b16 %v5292
        %v5419 = vunpack.c.l.b16 %v5293
        %v5420 = vunpack.c.h.b16 %v5293
        %v5421 = vunpack.c.l.b16 %v5294
        %v5422 = vunpack.c.h.b16 %v5294
        %v5423 = vunpack.c.l.b16 %v5295
        %v5424 = vunpack.c.h.b16 %v5295
        %v5425 = vunpack.c.l.b16 %v5296
        %v5426 = vunpack.c.h.b16 %v5296
        %v5427 = vunpack.c.l.b16 %v5297
        %v5428 = vunpack.c.h.b16 %v5297
        %v5429 = vunpack.c.l.b16 %v5298
        %v5430 = vunpack.c.h.b16 %v5298
        %v5431 = vunpack.c.l.b16 %v5299
        %v5432 = vunpack.c.h.b16 %v5299
        %v5433 = vunpack.c.l.b16 %v5300
        %v5434 = vunpack.c.h.b16 %v5300
        %v5435 = vunpack.c.l.b16 %v5301
        %v5436 = vunpack.c.h.b16 %v5301
        %v5437 = vunpack.c.l.b16 %v5302
        %v5438 = vunpack.c.h.b16 %v5302
        %v5439 = vunpack.c.l.b16 %v5303
        %v5440 = vunpack.c.h.b16 %v5303
        %v5441 = vunpack.c.l.b16 %v5304
        %v5442 = vunpack.c.h.b16 %v5304
        %v5443 = vunpack.c.l.b16 %v5305
        %v5444 = vunpack.c.h.b16 %v5305
        %v5445 = vunpack.c.l.b16 %v5306
        %v5446 = vunpack.c.h.b16 %v5306
        %v5447 = vunpack.c.l.b16 %v5307
        %v5448 = vunpack.c.h.b16 %v5307
        %v5449 = vunpack.c.l.b16 %v5308
        %v5450 = vunpack.c.h.b16 %v5308
        %v5451 = vunpack.c.l.b16 %v5309
        %v5452 = vunpack.c.h.b16 %v5309
        %v5453 = vunpack.c.l.b16 %v5310
        %v5454 = vunpack.c.h.b16 %v5310
        %v5455 = vpack.c.b16 %v5361, %v5359
        %v5456 = vpack.c.b16 %v5362, %v5360
        %v5457 = vpack.c.b16 %v5365, %v5363
        %v5458 = vpack.c.b16 %v5366, %v5364
        %v5459 = vpack.c.b16 %v5369, %v5367
        %v5460 = vpack.c.b16 %v5370, %v5368
        %v5461 = vpack.c.b16 %v5373, %v5371
        %v5462 = vpack.c.b16 %v5374, %v5372
        %v5463 = vpack.c.b16 %v5377, %v5375
        %v5464 = vpack.c.b16 %v5378, %v5376
        %v5465 = vpack.c.b16 %v5381, %v5379
        %v5466 = vpack.c.b16 %v5382, %v5380
        %v5467 = vpack.c.b16 %v5385, %v5383
        %v5468 = vpack.c.b16 %v5386, %v5384
        %v5469 = vpack.c.b16 %v5389, %v5387
        %v5470 = vpack.c.b16 %v5390, %v5388
        %v5471 = vpack.c.b16 %v5393, %v5391
        %v5472 = vpack.c.b16 %v5394, %v5392
        %v5473 = vpack.c.b16 %v5397, %v5395
        %v5474 = vpack.c.b16 %v5398, %v5396
        %v5475 = vpack.c.b16 %v5401, %v5399
        %v5476 = vpack.c.b16 %v5402, %v5400
        %v5477 = vpack.c.b16 %v5405, %v5403
        %v5478 = vpack.c.b16 %v5406, %v5404
        %v5479 = vpack.c.b16 %v5409, %v5407
        %v5480 = vpack.c.b16 %v5410, %v5408
        %v5481 = vpack.c.b16 %v5413, %v5411
        %v5482 = vpack.c.b16 %v5414, %v5412
        %v5483 = vpack.c.b16 %v5417, %v5415
        %v5484 = vpack.c.b16 %v5418, %v5416
        %v5485 = vpack.c.b16 %v5421, %v5419
        %v5486 = vpack.c.b16 %v5422, %v5420
        %v5487 = vpack.c.b16 %v5425, %v5423
        %v5488 = vpack.c.b16 %v5426, %v5424
        %v5489 = vpack.c.b16 %v5429, %v5427
        %v5490 = vpack.c.b16 %v5430, %v5428
        %v5491 = vpack.c.b16 %v5433, %v5431
        %v5492 = vpack.c.b16 %v5434, %v5432
        %v5493 = vpack.c.b16 %v5437, %v5435
        %v5494 = vpack.c.b16 %v5438, %v5436
        %v5495 = vpack.c.b16 %v5441, %v5439
        %v5496 = vpack.c.b16 %v5442, %v5440
        %v5497 = vpack.c.b16 %v5445, %v5443
        %v5498 = vpack.c.b16 %v5446, %v5444
        %v5499 = vpack.c.b16 %v5449, %v5447
        %v5500 = vpack.c.b16 %v5450, %v5448
        %v5501 = vpack.c.b16 %v5453, %v5451
        %v5502 = vpack.c.b16 %v5454, %v5452
        %5551 = vmatprep.subr.bf16.mxu0 %v5456
        %5552 = vmatpush1.bf16.msra.mxu0 %v5455
        %5553 = vmatprep.subr.bf16.mxu0 %v5458
        %5554 = vmatpush1.bf16.msra.mxu0 %v5457
        %5555 = vmatprep.subr.bf16.mxu0 %v5460
        %5556 = vmatpush1.bf16.msra.mxu0 %v5459
        %5557 = vmatprep.subr.bf16.mxu0 %v5462
        %5558 = vmatpush1.bf16.msra.mxu0 %v5461
        %5559 = vmatprep.subr.bf16.mxu0 %v5464
        %5560 = vmatpush1.bf16.msra.mxu0 %v5463
        %5561 = vmatprep.subr.bf16.mxu0 %v5466
        %5562 = vmatpush1.bf16.msra.mxu0 %v5465
        %5563 = vmatprep.subr.bf16.mxu0 %v5468
        %5564 = vmatpush1.bf16.msra.mxu0 %v5467
        %5565 = vmatprep.subr.bf16.mxu0 %v5470
        %5566 = vmatpush1.bf16.msra.mxu0 %v5469
        %5567 = vmatprep.subr.bf16.mxu0 %v5472
        %5568 = vmatpush1.bf16.msra.mxu0 %v5471
        %5569 = vmatprep.subr.bf16.mxu0 %v5474
        %5570 = vmatpush1.bf16.msra.mxu0 %v5473
        %5571 = vmatprep.subr.bf16.mxu0 %v5476
        %5572 = vmatpush1.bf16.msra.mxu0 %v5475
        %5573 = vmatprep.subr.bf16.mxu0 %v5478
        %5574 = vmatpush1.bf16.msra.mxu0 %v5477
        %5575 = vmatprep.subr.bf16.mxu0 %v5480
        %5576 = vmatpush1.bf16.msra.mxu0 %v5479
        %5577 = vmatprep.subr.bf16.mxu0 %v5482
        %5578 = vmatpush1.bf16.msra.mxu0 %v5481
        %5579 = vmatprep.subr.bf16.mxu0 %v5484
        %5580 = vmatpush1.bf16.msra.mxu0 %v5483
        %5581 = vmatprep.subr.bf16.mxu0 %v5486
        %5582 = vmatpush1.bf16.msra.mxu0 %v5485
        %5583 = vmatprep.mubr.bf16.mxu0 %v5251
        %5584 = vmatmul.mubr.bf16.gmra.mrb[0].mxu0 %v5250
        %v5585 = vpop.f32.mrb[0].mxu0
        %v5586 = vadd.f32 0.0, %v5585
        %v5587 = vpop.f32.mrb[0].mxu0
        %v5588 = vadd.f32 0.0, %v5587
        %v5589 = vpop.f32.mrb[0].mxu0
        %v5590 = vadd.f32 0.0, %v5589
        %v5591 = vpop.f32.mrb[0].mxu0
        %v5592 = vadd.f32 0.0, %v5591
        %5593 = vmatprep.mubr.bf16.mxu0 %v5254
        %5594 = vmatmul.mubr.bf16.gmra.mrb[0].mxu0 %v5253
        %v5595 = vpop.f32.mrb[0].mxu0
        %v5596 = vadd.f32 0.0, %v5595
        %v5597 = vpop.f32.mrb[0].mxu0
        %v5598 = vadd.f32 0.0, %v5597
        %v5599 = vpop.f32.mrb[0].mxu0
        %v5600 = vadd.f32 0.0, %v5599
        %v5601 = vpop.f32.mrb[0].mxu0
        %v5602 = vadd.f32 0.0, %v5601
        %5603 = vmatprep.mubr.bf16.mxu0 %v5257
        %5604 = vmatmul.mubr.bf16.gmra.mrb[0].mxu0 %v5256
        %v5605 = vpop.f32.mrb[0].mxu0
        %v5606 = vadd.f32 0.0, %v5605
        %v5607 = vpop.f32.mrb[0].mxu0
        %v5608 = vadd.f32 0.0, %v5607
        %v5609 = vpop.f32.mrb[0].mxu0
        %v5610 = vadd.f32 0.0, %v5609
        %v5611 = vpop.f32.mrb[0].mxu0
        %v5612 = vadd.f32 0.0, %v5611
        %5613 = vmatprep.mubr.bf16.mxu0 %v5260
        %5614 = vmatmul.mubr.bf16.gmra.mrb[0].mxu0 %v5259
        %v5615 = vpop.f32.mrb[0].mxu0
        %v5616 = vadd.f32 0.0, %v5615
        %v5617 = vpop.f32.mrb[0].mxu0
        %v5618 = vadd.f32 0.0, %v5617
        %v5619 = vpop.f32.mrb[0].mxu0
        %v5620 = vadd.f32 0.0, %v5619
        %v5621 = vpop.f32.mrb[0].mxu0
        %v5622 = vadd.f32 0.0, %v5621
        %5623 = vdwg.mxu0
        %5624 = vmatprep.subr.bf16.mxu0 %v5488
        %5625 = vmatpush1.bf16.msra.mxu0 %v5487
        %5626 = vmatprep.subr.bf16.mxu0 %v5490
        %5627 = vmatpush1.bf16.msra.mxu0 %v5489
        %5628 = vmatprep.subr.bf16.mxu0 %v5492
        %5629 = vmatpush1.bf16.msra.mxu0 %v5491
        %5630 = vmatprep.subr.bf16.mxu0 %v5494
        %5631 = vmatpush1.bf16.msra.mxu0 %v5493
        %5632 = vmatprep.subr.bf16.mxu0 %v5496
        %5633 = vmatpush1.bf16.msra.mxu0 %v5495
        %5634 = vmatprep.subr.bf16.mxu0 %v5498
        %5635 = vmatpush1.bf16.msra.mxu0 %v5497
        %5636 = vmatprep.subr.bf16.mxu0 %v5500
        %5637 = vmatpush1.bf16.msra.mxu0 %v5499
        %5638 = vmatprep.subr.bf16.mxu0 %v5502
        %5639 = vmatpush1.bf16.msra.mxu0 %v5501
        %5640 = vmatprep.subr.bf16.mxu0 0
        %5641 = vmatpush1.bf16.msra.mxu0 0
        %5642 = vmatprep.subr.bf16.mxu0 0
        %5643 = vmatpush1.bf16.msra.mxu0 0
        %5644 = vmatprep.subr.bf16.mxu0 0
        %5645 = vmatpush1.bf16.msra.mxu0 0
        %5646 = vmatprep.subr.bf16.mxu0 0
        %5647 = vmatpush1.bf16.msra.mxu0 0
        %5648 = vmatprep.subr.bf16.mxu0 0
        %5649 = vmatpush1.bf16.msra.mxu0 0
        %5650 = vmatprep.subr.bf16.mxu0 0
        %5651 = vmatpush1.bf16.msra.mxu0 0
        %5652 = vmatprep.subr.bf16.mxu0 0
        %5653 = vmatpush1.bf16.msra.mxu0 0
        %5654 = vmatprep.subr.bf16.mxu0 0
        %5655 = vmatpush1.bf16.msra.mxu0 0
        %5656 = vmatprep.mubr.bf16.mxu0 0
        %5657 = vmatmul.mubr.bf16.gmra.mrb[0].mxu0 %v5252
        %v5658 = vpop.f32.mrb[0].mxu0
        %v5659 = vadd.f32 %v5586, %v5658
        %v5660 = vpop.f32.mrb[0].mxu0
        %v5661 = vadd.f32 %v5588, %v5660
        %v5662 = vpop.f32.mrb[0].mxu0
        %v5663 = vadd.f32 %v5590, %v5662
        %v5664 = vpop.f32.mrb[0].mxu0
        %v5665 = vadd.f32 %v5592, %v5664
        %5666 = vmatprep.mubr.bf16.mxu0 0
        %5667 = vmatmul.mubr.bf16.gmra.mrb[0].mxu0 %v5255
        %v5668 = vpop.f32.mrb[0].mxu0
        %v5669 = vadd.f32 %v5596, %v5668
        %v5670 = vpop.f32.mrb[0].mxu0
        %v5671 = vadd.f32 %v5598, %v5670
        %v5672 = vpop.f32.mrb[0].mxu0
        %v5673 = vadd.f32 %v5600, %v5672
        %v5674 = vpop.f32.mrb[0].mxu0
        %v5675 = vadd.f32 %v5602, %v5674
        %5676 = vmatprep.mubr.bf16.mxu0 0
        %5677 = vmatmul.mubr.bf16.gmra.mrb[0].mxu0 %v5258
        %v5678 = vpop.f32.mrb[0].mxu0
        %v5679 = vadd.f32 %v5606, %v5678
        %v5680 = vpop.f32.mrb[0].mxu0
        %v5681 = vadd.f32 %v5608, %v5680
        %v5682 = vpop.f32.mrb[0].mxu0
        %v5683 = vadd.f32 %v5610, %v5682
        %v5684 = vpop.f32.mrb[0].mxu0
        %v5685 = vadd.f32 %v5612, %v5684
        %5686 = vmatprep.mubr.bf16.mxu0 0
        %5687 = vmatmul.mubr.bf16.gmra.mrb[0].mxu0 %v5261
        %v5688 = vpop.f32.mrb[0].mxu0
        %v5689 = vadd.f32 %v5616, %v5688
        %v5690 = vpop.f32.mrb[0].mxu0
        %v5691 = vadd.f32 %v5618, %v5690
        %v5692 = vpop.f32.mrb[0].mxu0
        %v5693 = vadd.f32 %v5620, %v5692
        %v5694 = vpop.f32.mrb[0].mxu0
        %v5695 = vadd.f32 %v5622, %v5694
        %5696 = vdwg.mxu0
        %v5697 = vadd.f32 %v5162, %v5659
        %v5698 = vadd.f32 %v5163, %v5661
        %v5699 = vadd.f32 %v5164, %v5663
        %v5700 = vadd.f32 %v5165, %v5665
        %v5701 = vadd.f32 %v5166, %v5669
        %v5702 = vadd.f32 %v5167, %v5671
        %v5703 = vadd.f32 %v5168, %v5673
        %v5704 = vadd.f32 %v5169, %v5675
        %v5705 = vadd.f32 %v5170, %v5679
        %v5706 = vadd.f32 %v5171, %v5681
        %v5707 = vadd.f32 %v5172, %v5683
        %v5708 = vadd.f32 %v5173, %v5685
        %v5709 = vadd.f32 %v5174, %v5689
        %v5710 = vadd.f32 %v5175, %v5691
        %v5711 = vadd.f32 %v5176, %v5693
        %v5712 = vadd.f32 %v5177, %v5695
        %5713 = vset.pattern.permute.xlu0 10
        %5714 = vperm.xlu0 %5713, %v384
        %v5715 = vpop.permute.xlu0 %5714
        %5716 = vset.pattern.permute.xlu0 10
        %5717 = vperm.xlu0 %5716, %v385
        %v5718 = vpop.permute.xlu0 %5717
        %5719 = vset.pattern.permute.xlu0 10
        %5720 = vperm.xlu0 %5719, %v386
        %v5721 = vpop.permute.xlu0 %5720
        %5722 = vset.pattern.permute.xlu0 10
        %5723 = vperm.xlu0 %5722, %v387
        %v5724 = vpop.permute.xlu0 %5723
        %5725 = vset.pattern.permute.xlu0 10
        %5726 = vperm.xlu0 %5725, %v388
        %v5727 = vpop.permute.xlu0 %5726
        %5728 = vset.pattern.permute.xlu0 10
        %5729 = vperm.xlu0 %5728, %v389
        %v5730 = vpop.permute.xlu0 %5729
        %5731 = vset.pattern.permute.xlu0 10
        %5732 = vperm.xlu0 %5731, %v390
        %v5733 = vpop.permute.xlu0 %5732
        %5734 = vset.pattern.permute.xlu0 10
        %5735 = vperm.xlu0 %5734, %v391
        %v5736 = vpop.permute.xlu0 %5735
        %vm5737 = vcmp.eq.s32.totalorder %v5715, %v393
        %vm5738 = vcmp.eq.s32.totalorder %v5715, %v394
        %vm5739 = vcmp.eq.s32.totalorder %v5715, %v395
        %vm5740 = vcmp.eq.s32.totalorder %v5718, %v393
        %vm5741 = vcmp.eq.s32.totalorder %v5718, %v394
        %vm5742 = vcmp.eq.s32.totalorder %v5718, %v395
        %vm5743 = vcmp.eq.s32.totalorder %v5721, %v393
        %vm5744 = vcmp.eq.s32.totalorder %v5721, %v394
        %vm5745 = vcmp.eq.s32.totalorder %v5721, %v395
        %vm5746 = vcmp.eq.s32.totalorder %v5724, %v393
        %vm5747 = vcmp.eq.s32.totalorder %v5724, %v394
        %vm5748 = vcmp.eq.s32.totalorder %v5724, %v395
        %vm5749 = vcmp.eq.s32.totalorder %v5727, %v393
        %vm5750 = vcmp.eq.s32.totalorder %v5727, %v394
        %vm5751 = vcmp.eq.s32.totalorder %v5727, %v395
        %vm5752 = vcmp.eq.s32.totalorder %v5730, %v393
        %vm5753 = vcmp.eq.s32.totalorder %v5730, %v394
        %vm5754 = vcmp.eq.s32.totalorder %v5730, %v395
        %vm5755 = vcmp.eq.s32.totalorder %v5733, %v393
        %vm5756 = vcmp.eq.s32.totalorder %v5733, %v394
        %vm5757 = vcmp.eq.s32.totalorder %v5733, %v395
        %vm5758 = vcmp.eq.s32.totalorder %v5736, %v393
        %vm5759 = vcmp.eq.s32.totalorder %v5736, %v394
        %vm5760 = vcmp.eq.s32.totalorder %v5736, %v395
        %v5761 = vsel %vm5737, 1.0, 0.0
        %v5762 = vsel %vm5738, 1.0, 0.0
        %v5763 = vsel %vm5739, 1.0, 0.0
        %v5764 = vsel %vm5740, 1.0, 0.0
        %v5765 = vsel %vm5741, 1.0, 0.0
        %v5766 = vsel %vm5742, 1.0, 0.0
        %v5767 = vsel %vm5743, 1.0, 0.0
        %v5768 = vsel %vm5744, 1.0, 0.0
        %v5769 = vsel %vm5745, 1.0, 0.0
        %v5770 = vsel %vm5746, 1.0, 0.0
        %v5771 = vsel %vm5747, 1.0, 0.0
        %v5772 = vsel %vm5748, 1.0, 0.0
        %v5773 = vsel %vm5749, 1.0, 0.0
        %v5774 = vsel %vm5750, 1.0, 0.0
        %v5775 = vsel %vm5751, 1.0, 0.0
        %v5776 = vsel %vm5752, 1.0, 0.0
        %v5777 = vsel %vm5753, 1.0, 0.0
        %v5778 = vsel %vm5754, 1.0, 0.0
        %v5779 = vsel %vm5755, 1.0, 0.0
        %v5780 = vsel %vm5756, 1.0, 0.0
        %v5781 = vsel %vm5757, 1.0, 0.0
        %v5782 = vsel %vm5758, 1.0, 0.0
        %v5783 = vsel %vm5759, 1.0, 0.0
        %v5784 = vsel %vm5760, 1.0, 0.0
        %v5785 = vpack.c.bf16 %v5764, %v5761
        %v5786 = vpack.c.bf16 %v5765, %v5762
        %v5787 = vpack.c.bf16 %v5766, %v5763
        %v5788 = vpack.c.bf16 %v5770, %v5767
        %v5789 = vpack.c.bf16 %v5771, %v5768
        %v5790 = vpack.c.bf16 %v5772, %v5769
        %v5791 = vpack.c.bf16 %v5776, %v5773
        %v5792 = vpack.c.bf16 %v5777, %v5774
        %v5793 = vpack.c.bf16 %v5778, %v5775
        %v5794 = vpack.c.bf16 %v5782, %v5779
        %v5795 = vpack.c.bf16 %v5783, %v5780
        %v5796 = vpack.c.bf16 %v5784, %v5781
        %s5797 = scalar_lea.vmem [#allocation3], 3840
        %v5798 = vld [vmem:[%s5797] sm:$0xff]
        %v5799 = vld [vmem:[%s5797 + $0x8] sm:$0xff]
        %v5800 = vld [vmem:[%s5797 + $0x10] sm:$0xff]
        %v5801 = vld [vmem:[%s5797 + $0x18] sm:$0xff]
        %v5802 = vld [vmem:[%s5797 + $0x20] sm:$0xff]
        %v5803 = vld [vmem:[%s5797 + $0x28] sm:$0xff]
        %v5804 = vld [vmem:[%s5797 + $0x30] sm:$0xff]
        %v5805 = vld [vmem:[%s5797 + $0x38] sm:$0xff]
        %v5806 = vld [vmem:[%s5797 + $0x40] sm:$0xff]
        %v5807 = vld [vmem:[%s5797 + $0x48] sm:$0xff]
        %v5808 = vld [vmem:[%s5797 + $0x50] sm:$0xff]
        %v5809 = vld [vmem:[%s5797 + $0x58] sm:$0xff]
        %v5810 = vld [vmem:[%s5797 + $0x60] sm:$0xff]
        %v5811 = vld [vmem:[%s5797 + $0x68] sm:$0xff]
        %v5812 = vld [vmem:[%s5797 + $0x70] sm:$0xff]
        %v5813 = vld [vmem:[%s5797 + $0x78] sm:$0xff]
        %v5814 = vld [vmem:[%s5797 + $0x80] sm:$0xff]
        %v5815 = vld [vmem:[%s5797 + $0x88] sm:$0xff]
        %v5816 = vld [vmem:[%s5797 + $0x90] sm:$0xff]
        %v5817 = vld [vmem:[%s5797 + $0x98] sm:$0xff]
        %v5818 = vld [vmem:[%s5797 + $0xa0] sm:$0xff]
        %v5819 = vld [vmem:[%s5797 + $0xa8] sm:$0xff]
        %v5820 = vld [vmem:[%s5797 + $0xb0] sm:$0xff]
        %v5821 = vld [vmem:[%s5797 + $0xb8] sm:$0xff]
        %v5822 = vld [vmem:[%s5797 + $0xc0] sm:$0xff]
        %v5823 = vld [vmem:[%s5797 + $0xc8] sm:$0xff]
        %v5824 = vld [vmem:[%s5797 + $0xd0] sm:$0xff]
        %v5825 = vld [vmem:[%s5797 + $0xd8] sm:$0xff]
        %v5826 = vld [vmem:[%s5797 + $0xe0] sm:$0xff]
        %v5827 = vld [vmem:[%s5797 + $0xe8] sm:$0xff]
        %v5828 = vld [vmem:[%s5797 + $0xf0] sm:$0xff]
        %v5829 = vld [vmem:[%s5797 + $0xf8] sm:$0xff]
        %v5830 = vld [vmem:[%s5797 + $0x100] sm:$0xff]
        %v5831 = vld [vmem:[%s5797 + $0x108] sm:$0xff]
        %v5832 = vld [vmem:[%s5797 + $0x110] sm:$0xff]
        %v5833 = vld [vmem:[%s5797 + $0x118] sm:$0xff]
        %v5834 = vld [vmem:[%s5797 + $0x120] sm:$0xff]
        %v5835 = vld [vmem:[%s5797 + $0x128] sm:$0xff]
        %v5836 = vld [vmem:[%s5797 + $0x130] sm:$0xff]
        %v5837 = vld [vmem:[%s5797 + $0x138] sm:$0xff]
        %v5838 = vld [vmem:[%s5797 + $0x140] sm:$0xff]
        %v5839 = vld [vmem:[%s5797 + $0x148] sm:$0xff]
        %v5840 = vld [vmem:[%s5797 + $0x150] sm:$0xff]
        %v5841 = vld [vmem:[%s5797 + $0x158] sm:$0xff]
        %v5842 = vld [vmem:[%s5797 + $0x160] sm:$0xff]
        %v5843 = vld [vmem:[%s5797 + $0x168] sm:$0xff]
        %v5844 = vld [vmem:[%s5797 + $0x170] sm:$0xff]
        %v5845 = vld [vmem:[%s5797 + $0x178] sm:$0xff]
        %v5894 = vunpack.c.l.b16 %v5798
        %v5895 = vunpack.c.h.b16 %v5798
        %v5896 = vunpack.c.l.b16 %v5799
        %v5897 = vunpack.c.h.b16 %v5799
        %v5898 = vunpack.c.l.b16 %v5800
        %v5899 = vunpack.c.h.b16 %v5800
        %v5900 = vunpack.c.l.b16 %v5801
        %v5901 = vunpack.c.h.b16 %v5801
        %v5902 = vunpack.c.l.b16 %v5802
        %v5903 = vunpack.c.h.b16 %v5802
        %v5904 = vunpack.c.l.b16 %v5803
        %v5905 = vunpack.c.h.b16 %v5803
        %v5906 = vunpack.c.l.b16 %v5804
        %v5907 = vunpack.c.h.b16 %v5804
        %v5908 = vunpack.c.l.b16 %v5805
        %v5909 = vunpack.c.h.b16 %v5805
        %v5910 = vunpack.c.l.b16 %v5806
        %v5911 = vunpack.c.h.b16 %v5806
        %v5912 = vunpack.c.l.b16 %v5807
        %v5913 = vunpack.c.h.b16 %v5807
        %v5914 = vunpack.c.l.b16 %v5808
        %v5915 = vunpack.c.h.b16 %v5808
        %v5916 = vunpack.c.l.b16 %v5809
        %v5917 = vunpack.c.h.b16 %v5809
        %v5918 = vunpack.c.l.b16 %v5810
        %v5919 = vunpack.c.h.b16 %v5810
        %v5920 = vunpack.c.l.b16 %v5811
        %v5921 = vunpack.c.h.b16 %v5811
        %v5922 = vunpack.c.l.b16 %v5812
        %v5923 = vunpack.c.h.b16 %v5812
        %v5924 = vunpack.c.l.b16 %v5813
        %v5925 = vunpack.c.h.b16 %v5813
        %v5926 = vunpack.c.l.b16 %v5814
        %v5927 = vunpack.c.h.b16 %v5814
        %v5928 = vunpack.c.l.b16 %v5815
        %v5929 = vunpack.c.h.b16 %v5815
        %v5930 = vunpack.c.l.b16 %v5816
        %v5931 = vunpack.c.h.b16 %v5816
        %v5932 = vunpack.c.l.b16 %v5817
        %v5933 = vunpack.c.h.b16 %v5817
        %v5934 = vunpack.c.l.b16 %v5818
        %v5935 = vunpack.c.h.b16 %v5818
        %v5936 = vunpack.c.l.b16 %v5819
        %v5937 = vunpack.c.h.b16 %v5819
        %v5938 = vunpack.c.l.b16 %v5820
        %v5939 = vunpack.c.h.b16 %v5820
        %v5940 = vunpack.c.l.b16 %v5821
        %v5941 = vunpack.c.h.b16 %v5821
        %v5942 = vunpack.c.l.b16 %v5822
        %v5943 = vunpack.c.h.b16 %v5822
        %v5944 = vunpack.c.l.b16 %v5823
        %v5945 = vunpack.c.h.b16 %v5823
        %v5946 = vunpack.c.l.b16 %v5824
        %v5947 = vunpack.c.h.b16 %v5824
        %v5948 = vunpack.c.l.b16 %v5825
        %v5949 = vunpack.c.h.b16 %v5825
        %v5950 = vunpack.c.l.b16 %v5826
        %v5951 = vunpack.c.h.b16 %v5826
        %v5952 = vunpack.c.l.b16 %v5827
        %v5953 = vunpack.c.h.b16 %v5827
        %v5954 = vunpack.c.l.b16 %v5828
        %v5955 = vunpack.c.h.b16 %v5828
        %v5956 = vunpack.c.l.b16 %v5829
        %v5957 = vunpack.c.h.b16 %v5829
        %v5958 = vunpack.c.l.b16 %v5830
        %v5959 = vunpack.c.h.b16 %v5830
        %v5960 = vunpack.c.l.b16 %v5831
        %v5961 = vunpack.c.h.b16 %v5831
        %v5962 = vunpack.c.l.b16 %v5832
        %v5963 = vunpack.c.h.b16 %v5832
        %v5964 = vunpack.c.l.b16 %v5833
        %v5965 = vunpack.c.h.b16 %v5833
        %v5966 = vunpack.c.l.b16 %v5834
        %v5967 = vunpack.c.h.b16 %v5834
        %v5968 = vunpack.c.l.b16 %v5835
        %v5969 = vunpack.c.h.b16 %v5835
        %v5970 = vunpack.c.l.b16 %v5836
        %v5971 = vunpack.c.h.b16 %v5836
        %v5972 = vunpack.c.l.b16 %v5837
        %v5973 = vunpack.c.h.b16 %v5837
        %v5974 = vunpack.c.l.b16 %v5838
        %v5975 = vunpack.c.h.b16 %v5838
        %v5976 = vunpack.c.l.b16 %v5839
        %v5977 = vunpack.c.h.b16 %v5839
        %v5978 = vunpack.c.l.b16 %v5840
        %v5979 = vunpack.c.h.b16 %v5840
        %v5980 = vunpack.c.l.b16 %v5841
        %v5981 = vunpack.c.h.b16 %v5841
        %v5982 = vunpack.c.l.b16 %v5842
        %v5983 = vunpack.c.h.b16 %v5842
        %v5984 = vunpack.c.l.b16 %v5843
        %v5985 = vunpack.c.h.b16 %v5843
        %v5986 = vunpack.c.l.b16 %v5844
        %v5987 = vunpack.c.h.b16 %v5844
        %v5988 = vunpack.c.l.b16 %v5845
        %v5989 = vunpack.c.h.b16 %v5845
        %v5990 = vpack.c.b16 %v5896, %v5894
        %v5991 = vpack.c.b16 %v5897, %v5895
        %v5992 = vpack.c.b16 %v5900, %v5898
        %v5993 = vpack.c.b16 %v5901, %v5899
        %v5994 = vpack.c.b16 %v5904, %v5902
        %v5995 = vpack.c.b16 %v5905, %v5903
        %v5996 = vpack.c.b16 %v5908, %v5906
        %v5997 = vpack.c.b16 %v5909, %v5907
        %v5998 = vpack.c.b16 %v5912, %v5910
        %v5999 = vpack.c.b16 %v5913, %v5911
        %v6000 = vpack.c.b16 %v5916, %v5914
        %v6001 = vpack.c.b16 %v5917, %v5915
        %v6002 = vpack.c.b16 %v5920, %v5918
        %v6003 = vpack.c.b16 %v5921, %v5919
        %v6004 = vpack.c.b16 %v5924, %v5922
        %v6005 = vpack.c.b16 %v5925, %v5923
        %v6006 = vpack.c.b16 %v5928, %v5926
        %v6007 = vpack.c.b16 %v5929, %v5927
        %v6008 = vpack.c.b16 %v5932, %v5930
        %v6009 = vpack.c.b16 %v5933, %v5931
        %v6010 = vpack.c.b16 %v5936, %v5934
        %v6011 = vpack.c.b16 %v5937, %v5935
        %v6012 = vpack.c.b16 %v5940, %v5938
        %v6013 = vpack.c.b16 %v5941, %v5939
        %v6014 = vpack.c.b16 %v5944, %v5942
        %v6015 = vpack.c.b16 %v5945, %v5943
        %v6016 = vpack.c.b16 %v5948, %v5946
        %v6017 = vpack.c.b16 %v5949, %v5947
        %v6018 = vpack.c.b16 %v5952, %v5950
        %v6019 = vpack.c.b16 %v5953, %v5951
        %v6020 = vpack.c.b16 %v5956, %v5954
        %v6021 = vpack.c.b16 %v5957, %v5955
        %v6022 = vpack.c.b16 %v5960, %v5958
        %v6023 = vpack.c.b16 %v5961, %v5959
        %v6024 = vpack.c.b16 %v5964, %v5962
        %v6025 = vpack.c.b16 %v5965, %v5963
        %v6026 = vpack.c.b16 %v5968, %v5966
        %v6027 = vpack.c.b16 %v5969, %v5967
        %v6028 = vpack.c.b16 %v5972, %v5970
        %v6029 = vpack.c.b16 %v5973, %v5971
        %v6030 = vpack.c.b16 %v5976, %v5974
        %v6031 = vpack.c.b16 %v5977, %v5975
        %v6032 = vpack.c.b16 %v5980, %v5978
        %v6033 = vpack.c.b16 %v5981, %v5979
        %v6034 = vpack.c.b16 %v5984, %v5982
        %v6035 = vpack.c.b16 %v5985, %v5983
        %v6036 = vpack.c.b16 %v5988, %v5986
        %v6037 = vpack.c.b16 %v5989, %v5987
        %6086 = vmatprep.subr.bf16.mxu0 %v5991
        %6087 = vmatpush1.bf16.msra.mxu0 %v5990
        %6088 = vmatprep.subr.bf16.mxu0 %v5993
        %6089 = vmatpush1.bf16.msra.mxu0 %v5992
        %6090 = vmatprep.subr.bf16.mxu0 %v5995
        %6091 = vmatpush1.bf16.msra.mxu0 %v5994
        %6092 = vmatprep.subr.bf16.mxu0 %v5997
        %6093 = vmatpush1.bf16.msra.mxu0 %v5996
        %6094 = vmatprep.subr.bf16.mxu0 %v5999
        %6095 = vmatpush1.bf16.msra.mxu0 %v5998
        %6096 = vmatprep.subr.bf16.mxu0 %v6001
        %6097 = vmatpush1.bf16.msra.mxu0 %v6000
        %6098 = vmatprep.subr.bf16.mxu0 %v6003
        %6099 = vmatpush1.bf16.msra.mxu0 %v6002
        %6100 = vmatprep.subr.bf16.mxu0 %v6005
        %6101 = vmatpush1.bf16.msra.mxu0 %v6004
        %6102 = vmatprep.subr.bf16.mxu0 %v6007
        %6103 = vmatpush1.bf16.msra.mxu0 %v6006
        %6104 = vmatprep.subr.bf16.mxu0 %v6009
        %6105 = vmatpush1.bf16.msra.mxu0 %v6008
        %6106 = vmatprep.subr.bf16.mxu0 %v6011
        %6107 = vmatpush1.bf16.msra.mxu0 %v6010
        %6108 = vmatprep.subr.bf16.mxu0 %v6013
        %6109 = vmatpush1.bf16.msra.mxu0 %v6012
        %6110 = vmatprep.subr.bf16.mxu0 %v6015
        %6111 = vmatpush1.bf16.msra.mxu0 %v6014
        %6112 = vmatprep.subr.bf16.mxu0 %v6017
        %6113 = vmatpush1.bf16.msra.mxu0 %v6016
        %6114 = vmatprep.subr.bf16.mxu0 %v6019
        %6115 = vmatpush1.bf16.msra.mxu0 %v6018
        %6116 = vmatprep.subr.bf16.mxu0 %v6021
        %6117 = vmatpush1.bf16.msra.mxu0 %v6020
        %6118 = vmatprep.mubr.bf16.mxu0 %v5786
        %6119 = vmatmul.mubr.bf16.gmra.mrb[0].mxu0 %v5785
        %v6120 = vpop.f32.mrb[0].mxu0
        %v6121 = vadd.f32 0.0, %v6120
        %v6122 = vpop.f32.mrb[0].mxu0
        %v6123 = vadd.f32 0.0, %v6122
        %v6124 = vpop.f32.mrb[0].mxu0
        %v6125 = vadd.f32 0.0, %v6124
        %v6126 = vpop.f32.mrb[0].mxu0
        %v6127 = vadd.f32 0.0, %v6126
        %6128 = vmatprep.mubr.bf16.mxu0 %v5789
        %6129 = vmatmul.mubr.bf16.gmra.mrb[0].mxu0 %v5788
        %v6130 = vpop.f32.mrb[0].mxu0
        %v6131 = vadd.f32 0.0, %v6130
        %v6132 = vpop.f32.mrb[0].mxu0
        %v6133 = vadd.f32 0.0, %v6132
        %v6134 = vpop.f32.mrb[0].mxu0
        %v6135 = vadd.f32 0.0, %v6134
        %v6136 = vpop.f32.mrb[0].mxu0
        %v6137 = vadd.f32 0.0, %v6136
        %6138 = vmatprep.mubr.bf16.mxu0 %v5792
        %6139 = vmatmul.mubr.bf16.gmra.mrb[0].mxu0 %v5791
        %v6140 = vpop.f32.mrb[0].mxu0
        %v6141 = vadd.f32 0.0, %v6140
        %v6142 = vpop.f32.mrb[0].mxu0
        %v6143 = vadd.f32 0.0, %v6142
        %v6144 = vpop.f32.mrb[0].mxu0
        %v6145 = vadd.f32 0.0, %v6144
        %v6146 = vpop.f32.mrb[0].mxu0
        %v6147 = vadd.f32 0.0, %v6146
        %6148 = vmatprep.mubr.bf16.mxu0 %v5795
        %6149 = vmatmul.mubr.bf16.gmra.mrb[0].mxu0 %v5794
        %v6150 = vpop.f32.mrb[0].mxu0
        %v6151 = vadd.f32 0.0, %v6150
        %v6152 = vpop.f32.mrb[0].mxu0
        %v6153 = vadd.f32 0.0, %v6152
        %v6154 = vpop.f32.mrb[0].mxu0
        %v6155 = vadd.f32 0.0, %v6154
        %v6156 = vpop.f32.mrb[0].mxu0
        %v6157 = vadd.f32 0.0, %v6156
        %6158 = vdwg.mxu0
        %6159 = vmatprep.subr.bf16.mxu0 %v6023
        %6160 = vmatpush1.bf16.msra.mxu0 %v6022
        %6161 = vmatprep.subr.bf16.mxu0 %v6025
        %6162 = vmatpush1.bf16.msra.mxu0 %v6024
        %6163 = vmatprep.subr.bf16.mxu0 %v6027
        %6164 = vmatpush1.bf16.msra.mxu0 %v6026
        %6165 = vmatprep.subr.bf16.mxu0 %v6029
        %6166 = vmatpush1.bf16.msra.mxu0 %v6028
        %6167 = vmatprep.subr.bf16.mxu0 %v6031
        %6168 = vmatpush1.bf16.msra.mxu0 %v6030
        %6169 = vmatprep.subr.bf16.mxu0 %v6033
        %6170 = vmatpush1.bf16.msra.mxu0 %v6032
        %6171 = vmatprep.subr.bf16.mxu0 %v6035
        %6172 = vmatpush1.bf16.msra.mxu0 %v6034
        %6173 = vmatprep.subr.bf16.mxu0 %v6037
        %6174 = vmatpush1.bf16.msra.mxu0 %v6036
        %6175 = vmatprep.subr.bf16.mxu0 0
        %6176 = vmatpush1.bf16.msra.mxu0 0
        %6177 = vmatprep.subr.bf16.mxu0 0
        %6178 = vmatpush1.bf16.msra.mxu0 0
        %6179 = vmatprep.subr.bf16.mxu0 0
        %6180 = vmatpush1.bf16.msra.mxu0 0
        %6181 = vmatprep.subr.bf16.mxu0 0
        %6182 = vmatpush1.bf16.msra.mxu0 0
        %6183 = vmatprep.subr.bf16.mxu0 0
        %6184 = vmatpush1.bf16.msra.mxu0 0
        %6185 = vmatprep.subr.bf16.mxu0 0
        %6186 = vmatpush1.bf16.msra.mxu0 0
        %6187 = vmatprep.subr.bf16.mxu0 0
        %6188 = vmatpush1.bf16.msra.mxu0 0
        %6189 = vmatprep.subr.bf16.mxu0 0
        %6190 = vmatpush1.bf16.msra.mxu0 0
        %6191 = vmatprep.mubr.bf16.mxu0 0
        %6192 = vmatmul.mubr.bf16.gmra.mrb[0].mxu0 %v5787
        %v6193 = vpop.f32.mrb[0].mxu0
        %v6194 = vadd.f32 %v6121, %v6193
        %v6195 = vpop.f32.mrb[0].mxu0
        %v6196 = vadd.f32 %v6123, %v6195
        %v6197 = vpop.f32.mrb[0].mxu0
        %v6198 = vadd.f32 %v6125, %v6197
        %v6199 = vpop.f32.mrb[0].mxu0
        %v6200 = vadd.f32 %v6127, %v6199
        %6201 = vmatprep.mubr.bf16.mxu0 0
        %6202 = vmatmul.mubr.bf16.gmra.mrb[0].mxu0 %v5790
        %v6203 = vpop.f32.mrb[0].mxu0
        %v6204 = vadd.f32 %v6131, %v6203
        %v6205 = vpop.f32.mrb[0].mxu0
        %v6206 = vadd.f32 %v6133, %v6205
        %v6207 = vpop.f32.mrb[0].mxu0
        %v6208 = vadd.f32 %v6135, %v6207
        %v6209 = vpop.f32.mrb[0].mxu0
        %v6210 = vadd.f32 %v6137, %v6209
        %6211 = vmatprep.mubr.bf16.mxu0 0
        %6212 = vmatmul.mubr.bf16.gmra.mrb[0].mxu0 %v5793
        %v6213 = vpop.f32.mrb[0].mxu0
        %v6214 = vadd.f32 %v6141, %v6213
        %v6215 = vpop.f32.mrb[0].mxu0
        %v6216 = vadd.f32 %v6143, %v6215
        %v6217 = vpop.f32.mrb[0].mxu0
        %v6218 = vadd.f32 %v6145, %v6217
        %v6219 = vpop.f32.mrb[0].mxu0
        %v6220 = vadd.f32 %v6147, %v6219
        %6221 = vmatprep.mubr.bf16.mxu0 0
        %6222 = vmatmul.mubr.bf16.gmra.mrb[0].mxu0 %v5796
        %v6223 = vpop.f32.mrb[0].mxu0
        %v6224 = vadd.f32 %v6151, %v6223
        %v6225 = vpop.f32.mrb[0].mxu0
        %v6226 = vadd.f32 %v6153, %v6225
        %v6227 = vpop.f32.mrb[0].mxu0
        %v6228 = vadd.f32 %v6155, %v6227
        %v6229 = vpop.f32.mrb[0].mxu0
        %v6230 = vadd.f32 %v6157, %v6229
        %6231 = vdwg.mxu0
        %v6232 = vadd.f32 %v5697, %v6194
        %v6233 = vadd.f32 %v5698, %v6196
        %v6234 = vadd.f32 %v5699, %v6198
        %v6235 = vadd.f32 %v5700, %v6200
        %v6236 = vadd.f32 %v5701, %v6204
        %v6237 = vadd.f32 %v5702, %v6206
        %v6238 = vadd.f32 %v5703, %v6208
        %v6239 = vadd.f32 %v5704, %v6210
        %v6240 = vadd.f32 %v5705, %v6214
        %v6241 = vadd.f32 %v5706, %v6216
        %v6242 = vadd.f32 %v5707, %v6218
        %v6243 = vadd.f32 %v5708, %v6220
        %v6244 = vadd.f32 %v5709, %v6224
        %v6245 = vadd.f32 %v5710, %v6226
        %v6246 = vadd.f32 %v5711, %v6228
        %v6247 = vadd.f32 %v5712, %v6230
        %6248 = vset.pattern.permute.xlu0 11
        %6249 = vperm.xlu0 %6248, %v384
        %v6250 = vpop.permute.xlu0 %6249
        %6251 = vset.pattern.permute.xlu0 11
        %6252 = vperm.xlu0 %6251, %v385
        %v6253 = vpop.permute.xlu0 %6252
        %6254 = vset.pattern.permute.xlu0 11
        %6255 = vperm.xlu0 %6254, %v386
        %v6256 = vpop.permute.xlu0 %6255
        %6257 = vset.pattern.permute.xlu0 11
        %6258 = vperm.xlu0 %6257, %v387
        %v6259 = vpop.permute.xlu0 %6258
        %6260 = vset.pattern.permute.xlu0 11
        %6261 = vperm.xlu0 %6260, %v388
        %v6262 = vpop.permute.xlu0 %6261
        %6263 = vset.pattern.permute.xlu0 11
        %6264 = vperm.xlu0 %6263, %v389
        %v6265 = vpop.permute.xlu0 %6264
        %6266 = vset.pattern.permute.xlu0 11
        %6267 = vperm.xlu0 %6266, %v390
        %v6268 = vpop.permute.xlu0 %6267
        %6269 = vset.pattern.permute.xlu0 11
        %6270 = vperm.xlu0 %6269, %v391
        %v6271 = vpop.permute.xlu0 %6270
        %vm6272 = vcmp.eq.s32.totalorder %v6250, %v393
        %vm6273 = vcmp.eq.s32.totalorder %v6250, %v394
        %vm6274 = vcmp.eq.s32.totalorder %v6250, %v395
        %vm6275 = vcmp.eq.s32.totalorder %v6253, %v393
        %vm6276 = vcmp.eq.s32.totalorder %v6253, %v394
        %vm6277 = vcmp.eq.s32.totalorder %v6253, %v395
        %vm6278 = vcmp.eq.s32.totalorder %v6256, %v393
        %vm6279 = vcmp.eq.s32.totalorder %v6256, %v394
        %vm6280 = vcmp.eq.s32.totalorder %v6256, %v395
        %vm6281 = vcmp.eq.s32.totalorder %v6259, %v393
        %vm6282 = vcmp.eq.s32.totalorder %v6259, %v394
        %vm6283 = vcmp.eq.s32.totalorder %v6259, %v395
        %vm6284 = vcmp.eq.s32.totalorder %v6262, %v393
        %vm6285 = vcmp.eq.s32.totalorder %v6262, %v394
        %vm6286 = vcmp.eq.s32.totalorder %v6262, %v395
        %vm6287 = vcmp.eq.s32.totalorder %v6265, %v393
        %vm6288 = vcmp.eq.s32.totalorder %v6265, %v394
        %vm6289 = vcmp.eq.s32.totalorder %v6265, %v395
        %vm6290 = vcmp.eq.s32.totalorder %v6268, %v393
        %vm6291 = vcmp.eq.s32.totalorder %v6268, %v394
        %vm6292 = vcmp.eq.s32.totalorder %v6268, %v395
        %vm6293 = vcmp.eq.s32.totalorder %v6271, %v393
        %vm6294 = vcmp.eq.s32.totalorder %v6271, %v394
        %vm6295 = vcmp.eq.s32.totalorder %v6271, %v395
        %v6296 = vsel %vm6272, 1.0, 0.0
        %v6297 = vsel %vm6273, 1.0, 0.0
        %v6298 = vsel %vm6274, 1.0, 0.0
        %v6299 = vsel %vm6275, 1.0, 0.0
        %v6300 = vsel %vm6276, 1.0, 0.0
        %v6301 = vsel %vm6277, 1.0, 0.0
        %v6302 = vsel %vm6278, 1.0, 0.0
        %v6303 = vsel %vm6279, 1.0, 0.0
        %v6304 = vsel %vm6280, 1.0, 0.0
        %v6305 = vsel %vm6281, 1.0, 0.0
        %v6306 = vsel %vm6282, 1.0, 0.0
        %v6307 = vsel %vm6283, 1.0, 0.0
        %v6308 = vsel %vm6284, 1.0, 0.0
        %v6309 = vsel %vm6285, 1.0, 0.0
        %v6310 = vsel %vm6286, 1.0, 0.0
        %v6311 = vsel %vm6287, 1.0, 0.0
        %v6312 = vsel %vm6288, 1.0, 0.0
        %v6313 = vsel %vm6289, 1.0, 0.0
        %v6314 = vsel %vm6290, 1.0, 0.0
        %v6315 = vsel %vm6291, 1.0, 0.0
        %v6316 = vsel %vm6292, 1.0, 0.0
        %v6317 = vsel %vm6293, 1.0, 0.0
        %v6318 = vsel %vm6294, 1.0, 0.0
        %v6319 = vsel %vm6295, 1.0, 0.0
        %v6320 = vpack.c.bf16 %v6299, %v6296
        %v6321 = vpack.c.bf16 %v6300, %v6297
        %v6322 = vpack.c.bf16 %v6301, %v6298
        %v6323 = vpack.c.bf16 %v6305, %v6302
        %v6324 = vpack.c.bf16 %v6306, %v6303
        %v6325 = vpack.c.bf16 %v6307, %v6304
        %v6326 = vpack.c.bf16 %v6311, %v6308
        %v6327 = vpack.c.bf16 %v6312, %v6309
        %v6328 = vpack.c.bf16 %v6313, %v6310
        %v6329 = vpack.c.bf16 %v6317, %v6314
        %v6330 = vpack.c.bf16 %v6318, %v6315
        %v6331 = vpack.c.bf16 %v6319, %v6316
        %s6332 = scalar_lea.vmem [#allocation3], 4224
        %v6333 = vld [vmem:[%s6332] sm:$0xff]
        %v6334 = vld [vmem:[%s6332 + $0x8] sm:$0xff]
        %v6335 = vld [vmem:[%s6332 + $0x10] sm:$0xff]
        %v6336 = vld [vmem:[%s6332 + $0x18] sm:$0xff]
        %v6337 = vld [vmem:[%s6332 + $0x20] sm:$0xff]
        %v6338 = vld [vmem:[%s6332 + $0x28] sm:$0xff]
        %v6339 = vld [vmem:[%s6332 + $0x30] sm:$0xff]
        %v6340 = vld [vmem:[%s6332 + $0x38] sm:$0xff]
        %v6341 = vld [vmem:[%s6332 + $0x40] sm:$0xff]
        %v6342 = vld [vmem:[%s6332 + $0x48] sm:$0xff]
        %v6343 = vld [vmem:[%s6332 + $0x50] sm:$0xff]
        %v6344 = vld [vmem:[%s6332 + $0x58] sm:$0xff]
        %v6345 = vld [vmem:[%s6332 + $0x60] sm:$0xff]
        %v6346 = vld [vmem:[%s6332 + $0x68] sm:$0xff]
        %v6347 = vld [vmem:[%s6332 + $0x70] sm:$0xff]
        %v6348 = vld [vmem:[%s6332 + $0x78] sm:$0xff]
        %v6349 = vld [vmem:[%s6332 + $0x80] sm:$0xff]
        %v6350 = vld [vmem:[%s6332 + $0x88] sm:$0xff]
        %v6351 = vld [vmem:[%s6332 + $0x90] sm:$0xff]
        %v6352 = vld [vmem:[%s6332 + $0x98] sm:$0xff]
        %v6353 = vld [vmem:[%s6332 + $0xa0] sm:$0xff]
        %v6354 = vld [vmem:[%s6332 + $0xa8] sm:$0xff]
        %v6355 = vld [vmem:[%s6332 + $0xb0] sm:$0xff]
        %v6356 = vld [vmem:[%s6332 + $0xb8] sm:$0xff]
        %v6357 = vld [vmem:[%s6332 + $0xc0] sm:$0xff]
        %v6358 = vld [vmem:[%s6332 + $0xc8] sm:$0xff]
        %v6359 = vld [vmem:[%s6332 + $0xd0] sm:$0xff]
        %v6360 = vld [vmem:[%s6332 + $0xd8] sm:$0xff]
        %v6361 = vld [vmem:[%s6332 + $0xe0] sm:$0xff]
        %v6362 = vld [vmem:[%s6332 + $0xe8] sm:$0xff]
        %v6363 = vld [vmem:[%s6332 + $0xf0] sm:$0xff]
        %v6364 = vld [vmem:[%s6332 + $0xf8] sm:$0xff]
        %v6365 = vld [vmem:[%s6332 + $0x100] sm:$0xff]
        %v6366 = vld [vmem:[%s6332 + $0x108] sm:$0xff]
        %v6367 = vld [vmem:[%s6332 + $0x110] sm:$0xff]
        %v6368 = vld [vmem:[%s6332 + $0x118] sm:$0xff]
        %v6369 = vld [vmem:[%s6332 + $0x120] sm:$0xff]
        %v6370 = vld [vmem:[%s6332 + $0x128] sm:$0xff]
        %v6371 = vld [vmem:[%s6332 + $0x130] sm:$0xff]
        %v6372 = vld [vmem:[%s6332 + $0x138] sm:$0xff]
        %v6373 = vld [vmem:[%s6332 + $0x140] sm:$0xff]
        %v6374 = vld [vmem:[%s6332 + $0x148] sm:$0xff]
        %v6375 = vld [vmem:[%s6332 + $0x150] sm:$0xff]
        %v6376 = vld [vmem:[%s6332 + $0x158] sm:$0xff]
        %v6377 = vld [vmem:[%s6332 + $0x160] sm:$0xff]
        %v6378 = vld [vmem:[%s6332 + $0x168] sm:$0xff]
        %v6379 = vld [vmem:[%s6332 + $0x170] sm:$0xff]
        %v6380 = vld [vmem:[%s6332 + $0x178] sm:$0xff]
        %v6429 = vunpack.c.l.b16 %v6333
        %v6430 = vunpack.c.h.b16 %v6333
        %v6431 = vunpack.c.l.b16 %v6334
        %v6432 = vunpack.c.h.b16 %v6334
        %v6433 = vunpack.c.l.b16 %v6335
        %v6434 = vunpack.c.h.b16 %v6335
        %v6435 = vunpack.c.l.b16 %v6336
        %v6436 = vunpack.c.h.b16 %v6336
        %v6437 = vunpack.c.l.b16 %v6337
        %v6438 = vunpack.c.h.b16 %v6337
        %v6439 = vunpack.c.l.b16 %v6338
        %v6440 = vunpack.c.h.b16 %v6338
        %v6441 = vunpack.c.l.b16 %v6339
        %v6442 = vunpack.c.h.b16 %v6339
        %v6443 = vunpack.c.l.b16 %v6340
        %v6444 = vunpack.c.h.b16 %v6340
        %v6445 = vunpack.c.l.b16 %v6341
        %v6446 = vunpack.c.h.b16 %v6341
        %v6447 = vunpack.c.l.b16 %v6342
        %v6448 = vunpack.c.h.b16 %v6342
        %v6449 = vunpack.c.l.b16 %v6343
        %v6450 = vunpack.c.h.b16 %v6343
        %v6451 = vunpack.c.l.b16 %v6344
        %v6452 = vunpack.c.h.b16 %v6344
        %v6453 = vunpack.c.l.b16 %v6345
        %v6454 = vunpack.c.h.b16 %v6345
        %v6455 = vunpack.c.l.b16 %v6346
        %v6456 = vunpack.c.h.b16 %v6346
        %v6457 = vunpack.c.l.b16 %v6347
        %v6458 = vunpack.c.h.b16 %v6347
        %v6459 = vunpack.c.l.b16 %v6348
        %v6460 = vunpack.c.h.b16 %v6348
        %v6461 = vunpack.c.l.b16 %v6349
        %v6462 = vunpack.c.h.b16 %v6349
        %v6463 = vunpack.c.l.b16 %v6350
        %v6464 = vunpack.c.h.b16 %v6350
        %v6465 = vunpack.c.l.b16 %v6351
        %v6466 = vunpack.c.h.b16 %v6351
        %v6467 = vunpack.c.l.b16 %v6352
        %v6468 = vunpack.c.h.b16 %v6352
        %v6469 = vunpack.c.l.b16 %v6353
        %v6470 = vunpack.c.h.b16 %v6353
        %v6471 = vunpack.c.l.b16 %v6354
        %v6472 = vunpack.c.h.b16 %v6354
        %v6473 = vunpack.c.l.b16 %v6355
        %v6474 = vunpack.c.h.b16 %v6355
        %v6475 = vunpack.c.l.b16 %v6356
        %v6476 = vunpack.c.h.b16 %v6356
        %v6477 = vunpack.c.l.b16 %v6357
        %v6478 = vunpack.c.h.b16 %v6357
        %v6479 = vunpack.c.l.b16 %v6358
        %v6480 = vunpack.c.h.b16 %v6358
        %v6481 = vunpack.c.l.b16 %v6359
        %v6482 = vunpack.c.h.b16 %v6359
        %v6483 = vunpack.c.l.b16 %v6360
        %v6484 = vunpack.c.h.b16 %v6360
        %v6485 = vunpack.c.l.b16 %v6361
        %v6486 = vunpack.c.h.b16 %v6361
        %v6487 = vunpack.c.l.b16 %v6362
        %v6488 = vunpack.c.h.b16 %v6362
        %v6489 = vunpack.c.l.b16 %v6363
        %v6490 = vunpack.c.h.b16 %v6363
        %v6491 = vunpack.c.l.b16 %v6364
        %v6492 = vunpack.c.h.b16 %v6364
        %v6493 = vunpack.c.l.b16 %v6365
        %v6494 = vunpack.c.h.b16 %v6365
        %v6495 = vunpack.c.l.b16 %v6366
        %v6496 = vunpack.c.h.b16 %v6366
        %v6497 = vunpack.c.l.b16 %v6367
        %v6498 = vunpack.c.h.b16 %v6367
        %v6499 = vunpack.c.l.b16 %v6368
        %v6500 = vunpack.c.h.b16 %v6368
        %v6501 = vunpack.c.l.b16 %v6369
        %v6502 = vunpack.c.h.b16 %v6369
        %v6503 = vunpack.c.l.b16 %v6370
        %v6504 = vunpack.c.h.b16 %v6370
        %v6505 = vunpack.c.l.b16 %v6371
        %v6506 = vunpack.c.h.b16 %v6371
        %v6507 = vunpack.c.l.b16 %v6372
        %v6508 = vunpack.c.h.b16 %v6372
        %v6509 = vunpack.c.l.b16 %v6373
        %v6510 = vunpack.c.h.b16 %v6373
        %v6511 = vunpack.c.l.b16 %v6374
        %v6512 = vunpack.c.h.b16 %v6374
        %v6513 = vunpack.c.l.b16 %v6375
        %v6514 = vunpack.c.h.b16 %v6375
        %v6515 = vunpack.c.l.b16 %v6376
        %v6516 = vunpack.c.h.b16 %v6376
        %v6517 = vunpack.c.l.b16 %v6377
        %v6518 = vunpack.c.h.b16 %v6377
        %v6519 = vunpack.c.l.b16 %v6378
        %v6520 = vunpack.c.h.b16 %v6378
        %v6521 = vunpack.c.l.b16 %v6379
        %v6522 = vunpack.c.h.b16 %v6379
        %v6523 = vunpack.c.l.b16 %v6380
        %v6524 = vunpack.c.h.b16 %v6380
        %v6525 = vpack.c.b16 %v6431, %v6429
        %v6526 = vpack.c.b16 %v6432, %v6430
        %v6527 = vpack.c.b16 %v6435, %v6433
        %v6528 = vpack.c.b16 %v6436, %v6434
        %v6529 = vpack.c.b16 %v6439, %v6437
        %v6530 = vpack.c.b16 %v6440, %v6438
        %v6531 = vpack.c.b16 %v6443, %v6441
        %v6532 = vpack.c.b16 %v6444, %v6442
        %v6533 = vpack.c.b16 %v6447, %v6445
        %v6534 = vpack.c.b16 %v6448, %v6446
        %v6535 = vpack.c.b16 %v6451, %v6449
        %v6536 = vpack.c.b16 %v6452, %v6450
        %v6537 = vpack.c.b16 %v6455, %v6453
        %v6538 = vpack.c.b16 %v6456, %v6454
        %v6539 = vpack.c.b16 %v6459, %v6457
        %v6540 = vpack.c.b16 %v6460, %v6458
        %v6541 = vpack.c.b16 %v6463, %v6461
        %v6542 = vpack.c.b16 %v6464, %v6462
        %v6543 = vpack.c.b16 %v6467, %v6465
        %v6544 = vpack.c.b16 %v6468, %v6466
        %v6545 = vpack.c.b16 %v6471, %v6469
        %v6546 = vpack.c.b16 %v6472, %v6470
        %v6547 = vpack.c.b16 %v6475, %v6473
        %v6548 = vpack.c.b16 %v6476, %v6474
        %v6549 = vpack.c.b16 %v6479, %v6477
        %v6550 = vpack.c.b16 %v6480, %v6478
        %v6551 = vpack.c.b16 %v6483, %v6481
        %v6552 = vpack.c.b16 %v6484, %v6482
        %v6553 = vpack.c.b16 %v6487, %v6485
        %v6554 = vpack.c.b16 %v6488, %v6486
        %v6555 = vpack.c.b16 %v6491, %v6489
        %v6556 = vpack.c.b16 %v6492, %v6490
        %v6557 = vpack.c.b16 %v6495, %v6493
        %v6558 = vpack.c.b16 %v6496, %v6494
        %v6559 = vpack.c.b16 %v6499, %v6497
        %v6560 = vpack.c.b16 %v6500, %v6498
        %v6561 = vpack.c.b16 %v6503, %v6501
        %v6562 = vpack.c.b16 %v6504, %v6502
        %v6563 = vpack.c.b16 %v6507, %v6505
        %v6564 = vpack.c.b16 %v6508, %v6506
        %v6565 = vpack.c.b16 %v6511, %v6509
        %v6566 = vpack.c.b16 %v6512, %v6510
        %v6567 = vpack.c.b16 %v6515, %v6513
        %v6568 = vpack.c.b16 %v6516, %v6514
        %v6569 = vpack.c.b16 %v6519, %v6517
        %v6570 = vpack.c.b16 %v6520, %v6518
        %v6571 = vpack.c.b16 %v6523, %v6521
        %v6572 = vpack.c.b16 %v6524, %v6522
        %6621 = vmatprep.subr.bf16.mxu0 %v6526
        %6622 = vmatpush1.bf16.msra.mxu0 %v6525
        %6623 = vmatprep.subr.bf16.mxu0 %v6528
        %6624 = vmatpush1.bf16.msra.mxu0 %v6527
        %6625 = vmatprep.subr.bf16.mxu0 %v6530
        %6626 = vmatpush1.bf16.msra.mxu0 %v6529
        %6627 = vmatprep.subr.bf16.mxu0 %v6532
        %6628 = vmatpush1.bf16.msra.mxu0 %v6531
        %6629 = vmatprep.subr.bf16.mxu0 %v6534
        %6630 = vmatpush1.bf16.msra.mxu0 %v6533
        %6631 = vmatprep.subr.bf16.mxu0 %v6536
        %6632 = vmatpush1.bf16.msra.mxu0 %v6535
        %6633 = vmatprep.subr.bf16.mxu0 %v6538
        %6634 = vmatpush1.bf16.msra.mxu0 %v6537
        %6635 = vmatprep.subr.bf16.mxu0 %v6540
        %6636 = vmatpush1.bf16.msra.mxu0 %v6539
        %6637 = vmatprep.subr.bf16.mxu0 %v6542
        %6638 = vmatpush1.bf16.msra.mxu0 %v6541
        %6639 = vmatprep.subr.bf16.mxu0 %v6544
        %6640 = vmatpush1.bf16.msra.mxu0 %v6543
        %6641 = vmatprep.subr.bf16.mxu0 %v6546
        %6642 = vmatpush1.bf16.msra.mxu0 %v6545
        %6643 = vmatprep.subr.bf16.mxu0 %v6548
        %6644 = vmatpush1.bf16.msra.mxu0 %v6547
        %6645 = vmatprep.subr.bf16.mxu0 %v6550
        %6646 = vmatpush1.bf16.msra.mxu0 %v6549
        %6647 = vmatprep.subr.bf16.mxu0 %v6552
        %6648 = vmatpush1.bf16.msra.mxu0 %v6551
        %6649 = vmatprep.subr.bf16.mxu0 %v6554
        %6650 = vmatpush1.bf16.msra.mxu0 %v6553
        %6651 = vmatprep.subr.bf16.mxu0 %v6556
        %6652 = vmatpush1.bf16.msra.mxu0 %v6555
        %6653 = vmatprep.mubr.bf16.mxu0 %v6321
        %6654 = vmatmul.mubr.bf16.gmra.mrb[0].mxu0 %v6320
        %v6655 = vpop.f32.mrb[0].mxu0
        %v6656 = vadd.f32 0.0, %v6655
        %v6657 = vpop.f32.mrb[0].mxu0
        %v6658 = vadd.f32 0.0, %v6657
        %v6659 = vpop.f32.mrb[0].mxu0
        %v6660 = vadd.f32 0.0, %v6659
        %v6661 = vpop.f32.mrb[0].mxu0
        %v6662 = vadd.f32 0.0, %v6661
        %6663 = vmatprep.mubr.bf16.mxu0 %v6324
        %6664 = vmatmul.mubr.bf16.gmra.mrb[0].mxu0 %v6323
        %v6665 = vpop.f32.mrb[0].mxu0
        %v6666 = vadd.f32 0.0, %v6665
        %v6667 = vpop.f32.mrb[0].mxu0
        %v6668 = vadd.f32 0.0, %v6667
        %v6669 = vpop.f32.mrb[0].mxu0
        %v6670 = vadd.f32 0.0, %v6669
        %v6671 = vpop.f32.mrb[0].mxu0
        %v6672 = vadd.f32 0.0, %v6671
        %6673 = vmatprep.mubr.bf16.mxu0 %v6327
        %6674 = vmatmul.mubr.bf16.gmra.mrb[0].mxu0 %v6326
        %v6675 = vpop.f32.mrb[0].mxu0
        %v6676 = vadd.f32 0.0, %v6675
        %v6677 = vpop.f32.mrb[0].mxu0
        %v6678 = vadd.f32 0.0, %v6677
        %v6679 = vpop.f32.mrb[0].mxu0
        %v6680 = vadd.f32 0.0, %v6679
        %v6681 = vpop.f32.mrb[0].mxu0
        %v6682 = vadd.f32 0.0, %v6681
        %6683 = vmatprep.mubr.bf16.mxu0 %v6330
        %6684 = vmatmul.mubr.bf16.gmra.mrb[0].mxu0 %v6329
        %v6685 = vpop.f32.mrb[0].mxu0
        %v6686 = vadd.f32 0.0, %v6685
        %v6687 = vpop.f32.mrb[0].mxu0
        %v6688 = vadd.f32 0.0, %v6687
        %v6689 = vpop.f32.mrb[0].mxu0
        %v6690 = vadd.f32 0.0, %v6689
        %v6691 = vpop.f32.mrb[0].mxu0
        %v6692 = vadd.f32 0.0, %v6691
        %6693 = vdwg.mxu0
        %6694 = vmatprep.subr.bf16.mxu0 %v6558
        %6695 = vmatpush1.bf16.msra.mxu0 %v6557
        %6696 = vmatprep.subr.bf16.mxu0 %v6560
        %6697 = vmatpush1.bf16.msra.mxu0 %v6559
        %6698 = vmatprep.subr.bf16.mxu0 %v6562
        %6699 = vmatpush1.bf16.msra.mxu0 %v6561
        %6700 = vmatprep.subr.bf16.mxu0 %v6564
        %6701 = vmatpush1.bf16.msra.mxu0 %v6563
        %6702 = vmatprep.subr.bf16.mxu0 %v6566
        %6703 = vmatpush1.bf16.msra.mxu0 %v6565
        %6704 = vmatprep.subr.bf16.mxu0 %v6568
        %6705 = vmatpush1.bf16.msra.mxu0 %v6567
        %6706 = vmatprep.subr.bf16.mxu0 %v6570
        %6707 = vmatpush1.bf16.msra.mxu0 %v6569
        %6708 = vmatprep.subr.bf16.mxu0 %v6572
        %6709 = vmatpush1.bf16.msra.mxu0 %v6571
        %6710 = vmatprep.subr.bf16.mxu0 0
        %6711 = vmatpush1.bf16.msra.mxu0 0
        %6712 = vmatprep.subr.bf16.mxu0 0
        %6713 = vmatpush1.bf16.msra.mxu0 0
        %6714 = vmatprep.subr.bf16.mxu0 0
        %6715 = vmatpush1.bf16.msra.mxu0 0
        %6716 = vmatprep.subr.bf16.mxu0 0
        %6717 = vmatpush1.bf16.msra.mxu0 0
        %6718 = vmatprep.subr.bf16.mxu0 0
        %6719 = vmatpush1.bf16.msra.mxu0 0
        %6720 = vmatprep.subr.bf16.mxu0 0
        %6721 = vmatpush1.bf16.msra.mxu0 0
        %6722 = vmatprep.subr.bf16.mxu0 0
        %6723 = vmatpush1.bf16.msra.mxu0 0
        %6724 = vmatprep.subr.bf16.mxu0 0
        %6725 = vmatpush1.bf16.msra.mxu0 0
        %6726 = vmatprep.mubr.bf16.mxu0 0
        %6727 = vmatmul.mubr.bf16.gmra.mrb[0].mxu0 %v6322
        %v6728 = vpop.f32.mrb[0].mxu0
        %v6729 = vadd.f32 %v6656, %v6728
        %v6730 = vpop.f32.mrb[0].mxu0
        %v6731 = vadd.f32 %v6658, %v6730
        %v6732 = vpop.f32.mrb[0].mxu0
        %v6733 = vadd.f32 %v6660, %v6732
        %v6734 = vpop.f32.mrb[0].mxu0
        %v6735 = vadd.f32 %v6662, %v6734
        %6736 = vmatprep.mubr.bf16.mxu0 0
        %6737 = vmatmul.mubr.bf16.gmra.mrb[0].mxu0 %v6325
        %v6738 = vpop.f32.mrb[0].mxu0
        %v6739 = vadd.f32 %v6666, %v6738
        %v6740 = vpop.f32.mrb[0].mxu0
        %v6741 = vadd.f32 %v6668, %v6740
        %v6742 = vpop.f32.mrb[0].mxu0
        %v6743 = vadd.f32 %v6670, %v6742
        %v6744 = vpop.f32.mrb[0].mxu0
        %v6745 = vadd.f32 %v6672, %v6744
        %6746 = vmatprep.mubr.bf16.mxu0 0
        %6747 = vmatmul.mubr.bf16.gmra.mrb[0].mxu0 %v6328
        %v6748 = vpop.f32.mrb[0].mxu0
        %v6749 = vadd.f32 %v6676, %v6748
        %v6750 = vpop.f32.mrb[0].mxu0
        %v6751 = vadd.f32 %v6678, %v6750
        %v6752 = vpop.f32.mrb[0].mxu0
        %v6753 = vadd.f32 %v6680, %v6752
        %v6754 = vpop.f32.mrb[0].mxu0
        %v6755 = vadd.f32 %v6682, %v6754
        %6756 = vmatprep.mubr.bf16.mxu0 0
        %6757 = vmatmul.mubr.bf16.gmra.mrb[0].mxu0 %v6331
        %v6758 = vpop.f32.mrb[0].mxu0
        %v6759 = vadd.f32 %v6686, %v6758
        %v6760 = vpop.f32.mrb[0].mxu0
        %v6761 = vadd.f32 %v6688, %v6760
        %v6762 = vpop.f32.mrb[0].mxu0
        %v6763 = vadd.f32 %v6690, %v6762
        %v6764 = vpop.f32.mrb[0].mxu0
        %v6765 = vadd.f32 %v6692, %v6764
        %6766 = vdwg.mxu0
        %v6767 = vadd.f32 %v6232, %v6729
        %v6768 = vadd.f32 %v6233, %v6731
        %v6769 = vadd.f32 %v6234, %v6733
        %v6770 = vadd.f32 %v6235, %v6735
        %v6771 = vadd.f32 %v6236, %v6739
        %v6772 = vadd.f32 %v6237, %v6741
        %v6773 = vadd.f32 %v6238, %v6743
        %v6774 = vadd.f32 %v6239, %v6745
        %v6775 = vadd.f32 %v6240, %v6749
        %v6776 = vadd.f32 %v6241, %v6751
        %v6777 = vadd.f32 %v6242, %v6753
        %v6778 = vadd.f32 %v6243, %v6755
        %v6779 = vadd.f32 %v6244, %v6759
        %v6780 = vadd.f32 %v6245, %v6761
        %v6781 = vadd.f32 %v6246, %v6763
        %v6782 = vadd.f32 %v6247, %v6765
        %6783 = vset.pattern.permute.xlu0 12
        %6784 = vperm.xlu0 %6783, %v384
        %v6785 = vpop.permute.xlu0 %6784
        %6786 = vset.pattern.permute.xlu0 12
        %6787 = vperm.xlu0 %6786, %v385
        %v6788 = vpop.permute.xlu0 %6787
        %6789 = vset.pattern.permute.xlu0 12
        %6790 = vperm.xlu0 %6789, %v386
        %v6791 = vpop.permute.xlu0 %6790
        %6792 = vset.pattern.permute.xlu0 12
        %6793 = vperm.xlu0 %6792, %v387
        %v6794 = vpop.permute.xlu0 %6793
        %6795 = vset.pattern.permute.xlu0 12
        %6796 = vperm.xlu0 %6795, %v388
        %v6797 = vpop.permute.xlu0 %6796
        %6798 = vset.pattern.permute.xlu0 12
        %6799 = vperm.xlu0 %6798, %v389
        %v6800 = vpop.permute.xlu0 %6799
        %6801 = vset.pattern.permute.xlu0 12
        %6802 = vperm.xlu0 %6801, %v390
        %v6803 = vpop.permute.xlu0 %6802
        %6804 = vset.pattern.permute.xlu0 12
        %6805 = vperm.xlu0 %6804, %v391
        %v6806 = vpop.permute.xlu0 %6805
        %vm6807 = vcmp.eq.s32.totalorder %v6785, %v393
        %vm6808 = vcmp.eq.s32.totalorder %v6785, %v394
        %vm6809 = vcmp.eq.s32.totalorder %v6785, %v395
        %vm6810 = vcmp.eq.s32.totalorder %v6788, %v393
        %vm6811 = vcmp.eq.s32.totalorder %v6788, %v394
        %vm6812 = vcmp.eq.s32.totalorder %v6788, %v395
        %vm6813 = vcmp.eq.s32.totalorder %v6791, %v393
        %vm6814 = vcmp.eq.s32.totalorder %v6791, %v394
        %vm6815 = vcmp.eq.s32.totalorder %v6791, %v395
        %vm6816 = vcmp.eq.s32.totalorder %v6794, %v393
        %vm6817 = vcmp.eq.s32.totalorder %v6794, %v394
        %vm6818 = vcmp.eq.s32.totalorder %v6794, %v395
        %vm6819 = vcmp.eq.s32.totalorder %v6797, %v393
        %vm6820 = vcmp.eq.s32.totalorder %v6797, %v394
        %vm6821 = vcmp.eq.s32.totalorder %v6797, %v395
        %vm6822 = vcmp.eq.s32.totalorder %v6800, %v393
        %vm6823 = vcmp.eq.s32.totalorder %v6800, %v394
        %vm6824 = vcmp.eq.s32.totalorder %v6800, %v395
        %vm6825 = vcmp.eq.s32.totalorder %v6803, %v393
        %vm6826 = vcmp.eq.s32.totalorder %v6803, %v394
        %vm6827 = vcmp.eq.s32.totalorder %v6803, %v395
        %vm6828 = vcmp.eq.s32.totalorder %v6806, %v393
        %vm6829 = vcmp.eq.s32.totalorder %v6806, %v394
        %vm6830 = vcmp.eq.s32.totalorder %v6806, %v395
        %v6831 = vsel %vm6807, 1.0, 0.0
        %v6832 = vsel %vm6808, 1.0, 0.0
        %v6833 = vsel %vm6809, 1.0, 0.0
        %v6834 = vsel %vm6810, 1.0, 0.0
        %v6835 = vsel %vm6811, 1.0, 0.0
        %v6836 = vsel %vm6812, 1.0, 0.0
        %v6837 = vsel %vm6813, 1.0, 0.0
        %v6838 = vsel %vm6814, 1.0, 0.0
        %v6839 = vsel %vm6815, 1.0, 0.0
        %v6840 = vsel %vm6816, 1.0, 0.0
        %v6841 = vsel %vm6817, 1.0, 0.0
        %v6842 = vsel %vm6818, 1.0, 0.0
        %v6843 = vsel %vm6819, 1.0, 0.0
        %v6844 = vsel %vm6820, 1.0, 0.0
        %v6845 = vsel %vm6821, 1.0, 0.0
        %v6846 = vsel %vm6822, 1.0, 0.0
        %v6847 = vsel %vm6823, 1.0, 0.0
        %v6848 = vsel %vm6824, 1.0, 0.0
        %v6849 = vsel %vm6825, 1.0, 0.0
        %v6850 = vsel %vm6826, 1.0, 0.0
        %v6851 = vsel %vm6827, 1.0, 0.0
        %v6852 = vsel %vm6828, 1.0, 0.0
        %v6853 = vsel %vm6829, 1.0, 0.0
        %v6854 = vsel %vm6830, 1.0, 0.0
        %v6855 = vpack.c.bf16 %v6834, %v6831
        %v6856 = vpack.c.bf16 %v6835, %v6832
        %v6857 = vpack.c.bf16 %v6836, %v6833
        %v6858 = vpack.c.bf16 %v6840, %v6837
        %v6859 = vpack.c.bf16 %v6841, %v6838
        %v6860 = vpack.c.bf16 %v6842, %v6839
        %v6861 = vpack.c.bf16 %v6846, %v6843
        %v6862 = vpack.c.bf16 %v6847, %v6844
        %v6863 = vpack.c.bf16 %v6848, %v6845
        %v6864 = vpack.c.bf16 %v6852, %v6849
        %v6865 = vpack.c.bf16 %v6853, %v6850
        %v6866 = vpack.c.bf16 %v6854, %v6851
        %s6867 = scalar_lea.vmem [#allocation3], 4608
        %v6868 = vld [vmem:[%s6867] sm:$0xff]
        %v6869 = vld [vmem:[%s6867 + $0x8] sm:$0xff]
        %v6870 = vld [vmem:[%s6867 + $0x10] sm:$0xff]
        %v6871 = vld [vmem:[%s6867 + $0x18] sm:$0xff]
        %v6872 = vld [vmem:[%s6867 + $0x20] sm:$0xff]
        %v6873 = vld [vmem:[%s6867 + $0x28] sm:$0xff]
        %v6874 = vld [vmem:[%s6867 + $0x30] sm:$0xff]
        %v6875 = vld [vmem:[%s6867 + $0x38] sm:$0xff]
        %v6876 = vld [vmem:[%s6867 + $0x40] sm:$0xff]
        %v6877 = vld [vmem:[%s6867 + $0x48] sm:$0xff]
        %v6878 = vld [vmem:[%s6867 + $0x50] sm:$0xff]
        %v6879 = vld [vmem:[%s6867 + $0x58] sm:$0xff]
        %v6880 = vld [vmem:[%s6867 + $0x60] sm:$0xff]
        %v6881 = vld [vmem:[%s6867 + $0x68] sm:$0xff]
        %v6882 = vld [vmem:[%s6867 + $0x70] sm:$0xff]
        %v6883 = vld [vmem:[%s6867 + $0x78] sm:$0xff]
        %v6884 = vld [vmem:[%s6867 + $0x80] sm:$0xff]
        %v6885 = vld [vmem:[%s6867 + $0x88] sm:$0xff]
        %v6886 = vld [vmem:[%s6867 + $0x90] sm:$0xff]
        %v6887 = vld [vmem:[%s6867 + $0x98] sm:$0xff]
        %v6888 = vld [vmem:[%s6867 + $0xa0] sm:$0xff]
        %v6889 = vld [vmem:[%s6867 + $0xa8] sm:$0xff]
        %v6890 = vld [vmem:[%s6867 + $0xb0] sm:$0xff]
        %v6891 = vld [vmem:[%s6867 + $0xb8] sm:$0xff]
        %v6892 = vld [vmem:[%s6867 + $0xc0] sm:$0xff]
        %v6893 = vld [vmem:[%s6867 + $0xc8] sm:$0xff]
        %v6894 = vld [vmem:[%s6867 + $0xd0] sm:$0xff]
        %v6895 = vld [vmem:[%s6867 + $0xd8] sm:$0xff]
        %v6896 = vld [vmem:[%s6867 + $0xe0] sm:$0xff]
        %v6897 = vld [vmem:[%s6867 + $0xe8] sm:$0xff]
        %v6898 = vld [vmem:[%s6867 + $0xf0] sm:$0xff]
        %v6899 = vld [vmem:[%s6867 + $0xf8] sm:$0xff]
        %v6900 = vld [vmem:[%s6867 + $0x100] sm:$0xff]
        %v6901 = vld [vmem:[%s6867 + $0x108] sm:$0xff]
        %v6902 = vld [vmem:[%s6867 + $0x110] sm:$0xff]
        %v6903 = vld [vmem:[%s6867 + $0x118] sm:$0xff]
        %v6904 = vld [vmem:[%s6867 + $0x120] sm:$0xff]
        %v6905 = vld [vmem:[%s6867 + $0x128] sm:$0xff]
        %v6906 = vld [vmem:[%s6867 + $0x130] sm:$0xff]
        %v6907 = vld [vmem:[%s6867 + $0x138] sm:$0xff]
        %v6908 = vld [vmem:[%s6867 + $0x140] sm:$0xff]
        %v6909 = vld [vmem:[%s6867 + $0x148] sm:$0xff]
        %v6910 = vld [vmem:[%s6867 + $0x150] sm:$0xff]
        %v6911 = vld [vmem:[%s6867 + $0x158] sm:$0xff]
        %v6912 = vld [vmem:[%s6867 + $0x160] sm:$0xff]
        %v6913 = vld [vmem:[%s6867 + $0x168] sm:$0xff]
        %v6914 = vld [vmem:[%s6867 + $0x170] sm:$0xff]
        %v6915 = vld [vmem:[%s6867 + $0x178] sm:$0xff]
        %v6964 = vunpack.c.l.b16 %v6868
        %v6965 = vunpack.c.h.b16 %v6868
        %v6966 = vunpack.c.l.b16 %v6869
        %v6967 = vunpack.c.h.b16 %v6869
        %v6968 = vunpack.c.l.b16 %v6870
        %v6969 = vunpack.c.h.b16 %v6870
        %v6970 = vunpack.c.l.b16 %v6871
        %v6971 = vunpack.c.h.b16 %v6871
        %v6972 = vunpack.c.l.b16 %v6872
        %v6973 = vunpack.c.h.b16 %v6872
        %v6974 = vunpack.c.l.b16 %v6873
        %v6975 = vunpack.c.h.b16 %v6873
        %v6976 = vunpack.c.l.b16 %v6874
        %v6977 = vunpack.c.h.b16 %v6874
        %v6978 = vunpack.c.l.b16 %v6875
        %v6979 = vunpack.c.h.b16 %v6875
        %v6980 = vunpack.c.l.b16 %v6876
        %v6981 = vunpack.c.h.b16 %v6876
        %v6982 = vunpack.c.l.b16 %v6877
        %v6983 = vunpack.c.h.b16 %v6877
        %v6984 = vunpack.c.l.b16 %v6878
        %v6985 = vunpack.c.h.b16 %v6878
        %v6986 = vunpack.c.l.b16 %v6879
        %v6987 = vunpack.c.h.b16 %v6879
        %v6988 = vunpack.c.l.b16 %v6880
        %v6989 = vunpack.c.h.b16 %v6880
        %v6990 = vunpack.c.l.b16 %v6881
        %v6991 = vunpack.c.h.b16 %v6881
        %v6992 = vunpack.c.l.b16 %v6882
        %v6993 = vunpack.c.h.b16 %v6882
        %v6994 = vunpack.c.l.b16 %v6883
        %v6995 = vunpack.c.h.b16 %v6883
        %v6996 = vunpack.c.l.b16 %v6884
        %v6997 = vunpack.c.h.b16 %v6884
        %v6998 = vunpack.c.l.b16 %v6885
        %v6999 = vunpack.c.h.b16 %v6885
        %v7000 = vunpack.c.l.b16 %v6886
        %v7001 = vunpack.c.h.b16 %v6886
        %v7002 = vunpack.c.l.b16 %v6887
        %v7003 = vunpack.c.h.b16 %v6887
        %v7004 = vunpack.c.l.b16 %v6888
        %v7005 = vunpack.c.h.b16 %v6888
        %v7006 = vunpack.c.l.b16 %v6889
        %v7007 = vunpack.c.h.b16 %v6889
        %v7008 = vunpack.c.l.b16 %v6890
        %v7009 = vunpack.c.h.b16 %v6890
        %v7010 = vunpack.c.l.b16 %v6891
        %v7011 = vunpack.c.h.b16 %v6891
        %v7012 = vunpack.c.l.b16 %v6892
        %v7013 = vunpack.c.h.b16 %v6892
        %v7014 = vunpack.c.l.b16 %v6893
        %v7015 = vunpack.c.h.b16 %v6893
        %v7016 = vunpack.c.l.b16 %v6894
        %v7017 = vunpack.c.h.b16 %v6894
        %v7018 = vunpack.c.l.b16 %v6895
        %v7019 = vunpack.c.h.b16 %v6895
        %v7020 = vunpack.c.l.b16 %v6896
        %v7021 = vunpack.c.h.b16 %v6896
        %v7022 = vunpack.c.l.b16 %v6897
        %v7023 = vunpack.c.h.b16 %v6897
        %v7024 = vunpack.c.l.b16 %v6898
        %v7025 = vunpack.c.h.b16 %v6898
        %v7026 = vunpack.c.l.b16 %v6899
        %v7027 = vunpack.c.h.b16 %v6899
        %v7028 = vunpack.c.l.b16 %v6900
        %v7029 = vunpack.c.h.b16 %v6900
        %v7030 = vunpack.c.l.b16 %v6901
        %v7031 = vunpack.c.h.b16 %v6901
        %v7032 = vunpack.c.l.b16 %v6902
        %v7033 = vunpack.c.h.b16 %v6902
        %v7034 = vunpack.c.l.b16 %v6903
        %v7035 = vunpack.c.h.b16 %v6903
        %v7036 = vunpack.c.l.b16 %v6904
        %v7037 = vunpack.c.h.b16 %v6904
        %v7038 = vunpack.c.l.b16 %v6905
        %v7039 = vunpack.c.h.b16 %v6905
        %v7040 = vunpack.c.l.b16 %v6906
        %v7041 = vunpack.c.h.b16 %v6906
        %v7042 = vunpack.c.l.b16 %v6907
        %v7043 = vunpack.c.h.b16 %v6907
        %v7044 = vunpack.c.l.b16 %v6908
        %v7045 = vunpack.c.h.b16 %v6908
        %v7046 = vunpack.c.l.b16 %v6909
        %v7047 = vunpack.c.h.b16 %v6909
        %v7048 = vunpack.c.l.b16 %v6910
        %v7049 = vunpack.c.h.b16 %v6910
        %v7050 = vunpack.c.l.b16 %v6911
        %v7051 = vunpack.c.h.b16 %v6911
        %v7052 = vunpack.c.l.b16 %v6912
        %v7053 = vunpack.c.h.b16 %v6912
        %v7054 = vunpack.c.l.b16 %v6913
        %v7055 = vunpack.c.h.b16 %v6913
        %v7056 = vunpack.c.l.b16 %v6914
        %v7057 = vunpack.c.h.b16 %v6914
        %v7058 = vunpack.c.l.b16 %v6915
        %v7059 = vunpack.c.h.b16 %v6915
        %v7060 = vpack.c.b16 %v6966, %v6964
        %v7061 = vpack.c.b16 %v6967, %v6965
        %v7062 = vpack.c.b16 %v6970, %v6968
        %v7063 = vpack.c.b16 %v6971, %v6969
        %v7064 = vpack.c.b16 %v6974, %v6972
        %v7065 = vpack.c.b16 %v6975, %v6973
        %v7066 = vpack.c.b16 %v6978, %v6976
        %v7067 = vpack.c.b16 %v6979, %v6977
        %v7068 = vpack.c.b16 %v6982, %v6980
        %v7069 = vpack.c.b16 %v6983, %v6981
        %v7070 = vpack.c.b16 %v6986, %v6984
        %v7071 = vpack.c.b16 %v6987, %v6985
        %v7072 = vpack.c.b16 %v6990, %v6988
        %v7073 = vpack.c.b16 %v6991, %v6989
        %v7074 = vpack.c.b16 %v6994, %v6992
        %v7075 = vpack.c.b16 %v6995, %v6993
        %v7076 = vpack.c.b16 %v6998, %v6996
        %v7077 = vpack.c.b16 %v6999, %v6997
        %v7078 = vpack.c.b16 %v7002, %v7000
        %v7079 = vpack.c.b16 %v7003, %v7001
        %v7080 = vpack.c.b16 %v7006, %v7004
        %v7081 = vpack.c.b16 %v7007, %v7005
        %v7082 = vpack.c.b16 %v7010, %v7008
        %v7083 = vpack.c.b16 %v7011, %v7009
        %v7084 = vpack.c.b16 %v7014, %v7012
        %v7085 = vpack.c.b16 %v7015, %v7013
        %v7086 = vpack.c.b16 %v7018, %v7016
        %v7087 = vpack.c.b16 %v7019, %v7017
        %v7088 = vpack.c.b16 %v7022, %v7020
        %v7089 = vpack.c.b16 %v7023, %v7021
        %v7090 = vpack.c.b16 %v7026, %v7024
        %v7091 = vpack.c.b16 %v7027, %v7025
        %v7092 = vpack.c.b16 %v7030, %v7028
        %v7093 = vpack.c.b16 %v7031, %v7029
        %v7094 = vpack.c.b16 %v7034, %v7032
        %v7095 = vpack.c.b16 %v7035, %v7033
        %v7096 = vpack.c.b16 %v7038, %v7036
        %v7097 = vpack.c.b16 %v7039, %v7037
        %v7098 = vpack.c.b16 %v7042, %v7040
        %v7099 = vpack.c.b16 %v7043, %v7041
        %v7100 = vpack.c.b16 %v7046, %v7044
        %v7101 = vpack.c.b16 %v7047, %v7045
        %v7102 = vpack.c.b16 %v7050, %v7048
        %v7103 = vpack.c.b16 %v7051, %v7049
        %v7104 = vpack.c.b16 %v7054, %v7052
        %v7105 = vpack.c.b16 %v7055, %v7053
        %v7106 = vpack.c.b16 %v7058, %v7056
        %v7107 = vpack.c.b16 %v7059, %v7057
        %7156 = vmatprep.subr.bf16.mxu0 %v7061
        %7157 = vmatpush1.bf16.msra.mxu0 %v7060
        %7158 = vmatprep.subr.bf16.mxu0 %v7063
        %7159 = vmatpush1.bf16.msra.mxu0 %v7062
        %7160 = vmatprep.subr.bf16.mxu0 %v7065
        %7161 = vmatpush1.bf16.msra.mxu0 %v7064
        %7162 = vmatprep.subr.bf16.mxu0 %v7067
        %7163 = vmatpush1.bf16.msra.mxu0 %v7066
        %7164 = vmatprep.subr.bf16.mxu0 %v7069
        %7165 = vmatpush1.bf16.msra.mxu0 %v7068
        %7166 = vmatprep.subr.bf16.mxu0 %v7071
        %7167 = vmatpush1.bf16.msra.mxu0 %v7070
        %7168 = vmatprep.subr.bf16.mxu0 %v7073
        %7169 = vmatpush1.bf16.msra.mxu0 %v7072
        %7170 = vmatprep.subr.bf16.mxu0 %v7075
        %7171 = vmatpush1.bf16.msra.mxu0 %v7074
        %7172 = vmatprep.subr.bf16.mxu0 %v7077
        %7173 = vmatpush1.bf16.msra.mxu0 %v7076
        %7174 = vmatprep.subr.bf16.mxu0 %v7079
        %7175 = vmatpush1.bf16.msra.mxu0 %v7078
        %7176 = vmatprep.subr.bf16.mxu0 %v7081
        %7177 = vmatpush1.bf16.msra.mxu0 %v7080
        %7178 = vmatprep.subr.bf16.mxu0 %v7083
        %7179 = vmatpush1.bf16.msra.mxu0 %v7082
        %7180 = vmatprep.subr.bf16.mxu0 %v7085
        %7181 = vmatpush1.bf16.msra.mxu0 %v7084
        %7182 = vmatprep.subr.bf16.mxu0 %v7087
        %7183 = vmatpush1.bf16.msra.mxu0 %v7086
        %7184 = vmatprep.subr.bf16.mxu0 %v7089
        %7185 = vmatpush1.bf16.msra.mxu0 %v7088
        %7186 = vmatprep.subr.bf16.mxu0 %v7091
        %7187 = vmatpush1.bf16.msra.mxu0 %v7090
        %7188 = vmatprep.mubr.bf16.mxu0 %v6856
        %7189 = vmatmul.mubr.bf16.gmra.mrb[0].mxu0 %v6855
        %v7190 = vpop.f32.mrb[0].mxu0
        %v7191 = vadd.f32 0.0, %v7190
        %v7192 = vpop.f32.mrb[0].mxu0
        %v7193 = vadd.f32 0.0, %v7192
        %v7194 = vpop.f32.mrb[0].mxu0
        %v7195 = vadd.f32 0.0, %v7194
        %v7196 = vpop.f32.mrb[0].mxu0
        %v7197 = vadd.f32 0.0, %v7196
        %7198 = vmatprep.mubr.bf16.mxu0 %v6859
        %7199 = vmatmul.mubr.bf16.gmra.mrb[0].mxu0 %v6858
        %v7200 = vpop.f32.mrb[0].mxu0
        %v7201 = vadd.f32 0.0, %v7200
        %v7202 = vpop.f32.mrb[0].mxu0
        %v7203 = vadd.f32 0.0, %v7202
        %v7204 = vpop.f32.mrb[0].mxu0
        %v7205 = vadd.f32 0.0, %v7204
        %v7206 = vpop.f32.mrb[0].mxu0
        %v7207 = vadd.f32 0.0, %v7206
        %7208 = vmatprep.mubr.bf16.mxu0 %v6862
        %7209 = vmatmul.mubr.bf16.gmra.mrb[0].mxu0 %v6861
        %v7210 = vpop.f32.mrb[0].mxu0
        %v7211 = vadd.f32 0.0, %v7210
        %v7212 = vpop.f32.mrb[0].mxu0
        %v7213 = vadd.f32 0.0, %v7212
        %v7214 = vpop.f32.mrb[0].mxu0
        %v7215 = vadd.f32 0.0, %v7214
        %v7216 = vpop.f32.mrb[0].mxu0
        %v7217 = vadd.f32 0.0, %v7216
        %7218 = vmatprep.mubr.bf16.mxu0 %v6865
        %7219 = vmatmul.mubr.bf16.gmra.mrb[0].mxu0 %v6864
        %v7220 = vpop.f32.mrb[0].mxu0
        %v7221 = vadd.f32 0.0, %v7220
        %v7222 = vpop.f32.mrb[0].mxu0
        %v7223 = vadd.f32 0.0, %v7222
        %v7224 = vpop.f32.mrb[0].mxu0
        %v7225 = vadd.f32 0.0, %v7224
        %v7226 = vpop.f32.mrb[0].mxu0
        %v7227 = vadd.f32 0.0, %v7226
        %7228 = vdwg.mxu0
        %7229 = vmatprep.subr.bf16.mxu0 %v7093
        %7230 = vmatpush1.bf16.msra.mxu0 %v7092
        %7231 = vmatprep.subr.bf16.mxu0 %v7095
        %7232 = vmatpush1.bf16.msra.mxu0 %v7094
        %7233 = vmatprep.subr.bf16.mxu0 %v7097
        %7234 = vmatpush1.bf16.msra.mxu0 %v7096
        %7235 = vmatprep.subr.bf16.mxu0 %v7099
        %7236 = vmatpush1.bf16.msra.mxu0 %v7098
        %7237 = vmatprep.subr.bf16.mxu0 %v7101
        %7238 = vmatpush1.bf16.msra.mxu0 %v7100
        %7239 = vmatprep.subr.bf16.mxu0 %v7103
        %7240 = vmatpush1.bf16.msra.mxu0 %v7102
        %7241 = vmatprep.subr.bf16.mxu0 %v7105
        %7242 = vmatpush1.bf16.msra.mxu0 %v7104
        %7243 = vmatprep.subr.bf16.mxu0 %v7107
        %7244 = vmatpush1.bf16.msra.mxu0 %v7106
        %7245 = vmatprep.subr.bf16.mxu0 0
        %7246 = vmatpush1.bf16.msra.mxu0 0
        %7247 = vmatprep.subr.bf16.mxu0 0
        %7248 = vmatpush1.bf16.msra.mxu0 0
        %7249 = vmatprep.subr.bf16.mxu0 0
        %7250 = vmatpush1.bf16.msra.mxu0 0
        %7251 = vmatprep.subr.bf16.mxu0 0
        %7252 = vmatpush1.bf16.msra.mxu0 0
        %7253 = vmatprep.subr.bf16.mxu0 0
        %7254 = vmatpush1.bf16.msra.mxu0 0
        %7255 = vmatprep.subr.bf16.mxu0 0
        %7256 = vmatpush1.bf16.msra.mxu0 0
        %7257 = vmatprep.subr.bf16.mxu0 0
        %7258 = vmatpush1.bf16.msra.mxu0 0
        %7259 = vmatprep.subr.bf16.mxu0 0
        %7260 = vmatpush1.bf16.msra.mxu0 0
        %7261 = vmatprep.mubr.bf16.mxu0 0
        %7262 = vmatmul.mubr.bf16.gmra.mrb[0].mxu0 %v6857
        %v7263 = vpop.f32.mrb[0].mxu0
        %v7264 = vadd.f32 %v7191, %v7263
        %v7265 = vpop.f32.mrb[0].mxu0
        %v7266 = vadd.f32 %v7193, %v7265
        %v7267 = vpop.f32.mrb[0].mxu0
        %v7268 = vadd.f32 %v7195, %v7267
        %v7269 = vpop.f32.mrb[0].mxu0
        %v7270 = vadd.f32 %v7197, %v7269
        %7271 = vmatprep.mubr.bf16.mxu0 0
        %7272 = vmatmul.mubr.bf16.gmra.mrb[0].mxu0 %v6860
        %v7273 = vpop.f32.mrb[0].mxu0
        %v7274 = vadd.f32 %v7201, %v7273
        %v7275 = vpop.f32.mrb[0].mxu0
        %v7276 = vadd.f32 %v7203, %v7275
        %v7277 = vpop.f32.mrb[0].mxu0
        %v7278 = vadd.f32 %v7205, %v7277
        %v7279 = vpop.f32.mrb[0].mxu0
        %v7280 = vadd.f32 %v7207, %v7279
        %7281 = vmatprep.mubr.bf16.mxu0 0
        %7282 = vmatmul.mubr.bf16.gmra.mrb[0].mxu0 %v6863
        %v7283 = vpop.f32.mrb[0].mxu0
        %v7284 = vadd.f32 %v7211, %v7283
        %v7285 = vpop.f32.mrb[0].mxu0
        %v7286 = vadd.f32 %v7213, %v7285
        %v7287 = vpop.f32.mrb[0].mxu0
        %v7288 = vadd.f32 %v7215, %v7287
        %v7289 = vpop.f32.mrb[0].mxu0
        %v7290 = vadd.f32 %v7217, %v7289
        %7291 = vmatprep.mubr.bf16.mxu0 0
        %7292 = vmatmul.mubr.bf16.gmra.mrb[0].mxu0 %v6866
        %v7293 = vpop.f32.mrb[0].mxu0
        %v7294 = vadd.f32 %v7221, %v7293
        %v7295 = vpop.f32.mrb[0].mxu0
        %v7296 = vadd.f32 %v7223, %v7295
        %v7297 = vpop.f32.mrb[0].mxu0
        %v7298 = vadd.f32 %v7225, %v7297
        %v7299 = vpop.f32.mrb[0].mxu0
        %v7300 = vadd.f32 %v7227, %v7299
        %7301 = vdwg.mxu0
        %v7302 = vadd.f32 %v6767, %v7264
        %v7303 = vadd.f32 %v6768, %v7266
        %v7304 = vadd.f32 %v6769, %v7268
        %v7305 = vadd.f32 %v6770, %v7270
        %v7306 = vadd.f32 %v6771, %v7274
        %v7307 = vadd.f32 %v6772, %v7276
        %v7308 = vadd.f32 %v6773, %v7278
        %v7309 = vadd.f32 %v6774, %v7280
        %v7310 = vadd.f32 %v6775, %v7284
        %v7311 = vadd.f32 %v6776, %v7286
        %v7312 = vadd.f32 %v6777, %v7288
        %v7313 = vadd.f32 %v6778, %v7290
        %v7314 = vadd.f32 %v6779, %v7294
        %v7315 = vadd.f32 %v6780, %v7296
        %v7316 = vadd.f32 %v6781, %v7298
        %v7317 = vadd.f32 %v6782, %v7300
        %7318 = vset.pattern.permute.xlu0 13
        %7319 = vperm.xlu0 %7318, %v384
        %v7320 = vpop.permute.xlu0 %7319
        %7321 = vset.pattern.permute.xlu0 13
        %7322 = vperm.xlu0 %7321, %v385
        %v7323 = vpop.permute.xlu0 %7322
        %7324 = vset.pattern.permute.xlu0 13
        %7325 = vperm.xlu0 %7324, %v386
        %v7326 = vpop.permute.xlu0 %7325
        %7327 = vset.pattern.permute.xlu0 13
        %7328 = vperm.xlu0 %7327, %v387
        %v7329 = vpop.permute.xlu0 %7328
        %7330 = vset.pattern.permute.xlu0 13
        %7331 = vperm.xlu0 %7330, %v388
        %v7332 = vpop.permute.xlu0 %7331
        %7333 = vset.pattern.permute.xlu0 13
        %7334 = vperm.xlu0 %7333, %v389
        %v7335 = vpop.permute.xlu0 %7334
        %7336 = vset.pattern.permute.xlu0 13
        %7337 = vperm.xlu0 %7336, %v390
        %v7338 = vpop.permute.xlu0 %7337
        %7339 = vset.pattern.permute.xlu0 13
        %7340 = vperm.xlu0 %7339, %v391
        %v7341 = vpop.permute.xlu0 %7340
        %vm7342 = vcmp.eq.s32.totalorder %v7320, %v393
        %vm7343 = vcmp.eq.s32.totalorder %v7320, %v394
        %vm7344 = vcmp.eq.s32.totalorder %v7320, %v395
        %vm7345 = vcmp.eq.s32.totalorder %v7323, %v393
        %vm7346 = vcmp.eq.s32.totalorder %v7323, %v394
        %vm7347 = vcmp.eq.s32.totalorder %v7323, %v395
        %vm7348 = vcmp.eq.s32.totalorder %v7326, %v393
        %vm7349 = vcmp.eq.s32.totalorder %v7326, %v394
        %vm7350 = vcmp.eq.s32.totalorder %v7326, %v395
        %vm7351 = vcmp.eq.s32.totalorder %v7329, %v393
        %vm7352 = vcmp.eq.s32.totalorder %v7329, %v394
        %vm7353 = vcmp.eq.s32.totalorder %v7329, %v395
        %vm7354 = vcmp.eq.s32.totalorder %v7332, %v393
        %vm7355 = vcmp.eq.s32.totalorder %v7332, %v394
        %vm7356 = vcmp.eq.s32.totalorder %v7332, %v395
        %vm7357 = vcmp.eq.s32.totalorder %v7335, %v393
        %vm7358 = vcmp.eq.s32.totalorder %v7335, %v394
        %vm7359 = vcmp.eq.s32.totalorder %v7335, %v395
        %vm7360 = vcmp.eq.s32.totalorder %v7338, %v393
        %vm7361 = vcmp.eq.s32.totalorder %v7338, %v394
        %vm7362 = vcmp.eq.s32.totalorder %v7338, %v395
        %vm7363 = vcmp.eq.s32.totalorder %v7341, %v393
        %vm7364 = vcmp.eq.s32.totalorder %v7341, %v394
        %vm7365 = vcmp.eq.s32.totalorder %v7341, %v395
        %v7366 = vsel %vm7342, 1.0, 0.0
        %v7367 = vsel %vm7343, 1.0, 0.0
        %v7368 = vsel %vm7344, 1.0, 0.0
        %v7369 = vsel %vm7345, 1.0, 0.0
        %v7370 = vsel %vm7346, 1.0, 0.0
        %v7371 = vsel %vm7347, 1.0, 0.0
        %v7372 = vsel %vm7348, 1.0, 0.0
        %v7373 = vsel %vm7349, 1.0, 0.0
        %v7374 = vsel %vm7350, 1.0, 0.0
        %v7375 = vsel %vm7351, 1.0, 0.0
        %v7376 = vsel %vm7352, 1.0, 0.0
        %v7377 = vsel %vm7353, 1.0, 0.0
        %v7378 = vsel %vm7354, 1.0, 0.0
        %v7379 = vsel %vm7355, 1.0, 0.0
        %v7380 = vsel %vm7356, 1.0, 0.0
        %v7381 = vsel %vm7357, 1.0, 0.0
        %v7382 = vsel %vm7358, 1.0, 0.0
        %v7383 = vsel %vm7359, 1.0, 0.0
        %v7384 = vsel %vm7360, 1.0, 0.0
        %v7385 = vsel %vm7361, 1.0, 0.0
        %v7386 = vsel %vm7362, 1.0, 0.0
        %v7387 = vsel %vm7363, 1.0, 0.0
        %v7388 = vsel %vm7364, 1.0, 0.0
        %v7389 = vsel %vm7365, 1.0, 0.0
        %v7390 = vpack.c.bf16 %v7369, %v7366
        %v7391 = vpack.c.bf16 %v7370, %v7367
        %v7392 = vpack.c.bf16 %v7371, %v7368
        %v7393 = vpack.c.bf16 %v7375, %v7372
        %v7394 = vpack.c.bf16 %v7376, %v7373
        %v7395 = vpack.c.bf16 %v7377, %v7374
        %v7396 = vpack.c.bf16 %v7381, %v7378
        %v7397 = vpack.c.bf16 %v7382, %v7379
        %v7398 = vpack.c.bf16 %v7383, %v7380
        %v7399 = vpack.c.bf16 %v7387, %v7384
        %v7400 = vpack.c.bf16 %v7388, %v7385
        %v7401 = vpack.c.bf16 %v7389, %v7386
        %s7402 = scalar_lea.vmem [#allocation3], 4992
        %v7403 = vld [vmem:[%s7402] sm:$0xff]
        %v7404 = vld [vmem:[%s7402 + $0x8] sm:$0xff]
        %v7405 = vld [vmem:[%s7402 + $0x10] sm:$0xff]
        %v7406 = vld [vmem:[%s7402 + $0x18] sm:$0xff]
        %v7407 = vld [vmem:[%s7402 + $0x20] sm:$0xff]
        %v7408 = vld [vmem:[%s7402 + $0x28] sm:$0xff]
        %v7409 = vld [vmem:[%s7402 + $0x30] sm:$0xff]
        %v7410 = vld [vmem:[%s7402 + $0x38] sm:$0xff]
        %v7411 = vld [vmem:[%s7402 + $0x40] sm:$0xff]
        %v7412 = vld [vmem:[%s7402 + $0x48] sm:$0xff]
        %v7413 = vld [vmem:[%s7402 + $0x50] sm:$0xff]
        %v7414 = vld [vmem:[%s7402 + $0x58] sm:$0xff]
        %v7415 = vld [vmem:[%s7402 + $0x60] sm:$0xff]
        %v7416 = vld [vmem:[%s7402 + $0x68] sm:$0xff]
        %v7417 = vld [vmem:[%s7402 + $0x70] sm:$0xff]
        %v7418 = vld [vmem:[%s7402 + $0x78] sm:$0xff]
        %v7419 = vld [vmem:[%s7402 + $0x80] sm:$0xff]
        %v7420 = vld [vmem:[%s7402 + $0x88] sm:$0xff]
        %v7421 = vld [vmem:[%s7402 + $0x90] sm:$0xff]
        %v7422 = vld [vmem:[%s7402 + $0x98] sm:$0xff]
        %v7423 = vld [vmem:[%s7402 + $0xa0] sm:$0xff]
        %v7424 = vld [vmem:[%s7402 + $0xa8] sm:$0xff]
        %v7425 = vld [vmem:[%s7402 + $0xb0] sm:$0xff]
        %v7426 = vld [vmem:[%s7402 + $0xb8] sm:$0xff]
        %v7427 = vld [vmem:[%s7402 + $0xc0] sm:$0xff]
        %v7428 = vld [vmem:[%s7402 + $0xc8] sm:$0xff]
        %v7429 = vld [vmem:[%s7402 + $0xd0] sm:$0xff]
        %v7430 = vld [vmem:[%s7402 + $0xd8] sm:$0xff]
        %v7431 = vld [vmem:[%s7402 + $0xe0] sm:$0xff]
        %v7432 = vld [vmem:[%s7402 + $0xe8] sm:$0xff]
        %v7433 = vld [vmem:[%s7402 + $0xf0] sm:$0xff]
        %v7434 = vld [vmem:[%s7402 + $0xf8] sm:$0xff]
        %v7435 = vld [vmem:[%s7402 + $0x100] sm:$0xff]
        %v7436 = vld [vmem:[%s7402 + $0x108] sm:$0xff]
        %v7437 = vld [vmem:[%s7402 + $0x110] sm:$0xff]
        %v7438 = vld [vmem:[%s7402 + $0x118] sm:$0xff]
        %v7439 = vld [vmem:[%s7402 + $0x120] sm:$0xff]
        %v7440 = vld [vmem:[%s7402 + $0x128] sm:$0xff]
        %v7441 = vld [vmem:[%s7402 + $0x130] sm:$0xff]
        %v7442 = vld [vmem:[%s7402 + $0x138] sm:$0xff]
        %v7443 = vld [vmem:[%s7402 + $0x140] sm:$0xff]
        %v7444 = vld [vmem:[%s7402 + $0x148] sm:$0xff]
        %v7445 = vld [vmem:[%s7402 + $0x150] sm:$0xff]
        %v7446 = vld [vmem:[%s7402 + $0x158] sm:$0xff]
        %v7447 = vld [vmem:[%s7402 + $0x160] sm:$0xff]
        %v7448 = vld [vmem:[%s7402 + $0x168] sm:$0xff]
        %v7449 = vld [vmem:[%s7402 + $0x170] sm:$0xff]
        %v7450 = vld [vmem:[%s7402 + $0x178] sm:$0xff]
        %v7499 = vunpack.c.l.b16 %v7403
        %v7500 = vunpack.c.h.b16 %v7403
        %v7501 = vunpack.c.l.b16 %v7404
        %v7502 = vunpack.c.h.b16 %v7404
        %v7503 = vunpack.c.l.b16 %v7405
        %v7504 = vunpack.c.h.b16 %v7405
        %v7505 = vunpack.c.l.b16 %v7406
        %v7506 = vunpack.c.h.b16 %v7406
        %v7507 = vunpack.c.l.b16 %v7407
        %v7508 = vunpack.c.h.b16 %v7407
        %v7509 = vunpack.c.l.b16 %v7408
        %v7510 = vunpack.c.h.b16 %v7408
        %v7511 = vunpack.c.l.b16 %v7409
        %v7512 = vunpack.c.h.b16 %v7409
        %v7513 = vunpack.c.l.b16 %v7410
        %v7514 = vunpack.c.h.b16 %v7410
        %v7515 = vunpack.c.l.b16 %v7411
        %v7516 = vunpack.c.h.b16 %v7411
        %v7517 = vunpack.c.l.b16 %v7412
        %v7518 = vunpack.c.h.b16 %v7412
        %v7519 = vunpack.c.l.b16 %v7413
        %v7520 = vunpack.c.h.b16 %v7413
        %v7521 = vunpack.c.l.b16 %v7414
        %v7522 = vunpack.c.h.b16 %v7414
        %v7523 = vunpack.c.l.b16 %v7415
        %v7524 = vunpack.c.h.b16 %v7415
        %v7525 = vunpack.c.l.b16 %v7416
        %v7526 = vunpack.c.h.b16 %v7416
        %v7527 = vunpack.c.l.b16 %v7417
        %v7528 = vunpack.c.h.b16 %v7417
        %v7529 = vunpack.c.l.b16 %v7418
        %v7530 = vunpack.c.h.b16 %v7418
        %v7531 = vunpack.c.l.b16 %v7419
        %v7532 = vunpack.c.h.b16 %v7419
        %v7533 = vunpack.c.l.b16 %v7420
        %v7534 = vunpack.c.h.b16 %v7420
        %v7535 = vunpack.c.l.b16 %v7421
        %v7536 = vunpack.c.h.b16 %v7421
        %v7537 = vunpack.c.l.b16 %v7422
        %v7538 = vunpack.c.h.b16 %v7422
        %v7539 = vunpack.c.l.b16 %v7423
        %v7540 = vunpack.c.h.b16 %v7423
        %v7541 = vunpack.c.l.b16 %v7424
        %v7542 = vunpack.c.h.b16 %v7424
        %v7543 = vunpack.c.l.b16 %v7425
        %v7544 = vunpack.c.h.b16 %v7425
        %v7545 = vunpack.c.l.b16 %v7426
        %v7546 = vunpack.c.h.b16 %v7426
        %v7547 = vunpack.c.l.b16 %v7427
        %v7548 = vunpack.c.h.b16 %v7427
        %v7549 = vunpack.c.l.b16 %v7428
        %v7550 = vunpack.c.h.b16 %v7428
        %v7551 = vunpack.c.l.b16 %v7429
        %v7552 = vunpack.c.h.b16 %v7429
        %v7553 = vunpack.c.l.b16 %v7430
        %v7554 = vunpack.c.h.b16 %v7430
        %v7555 = vunpack.c.l.b16 %v7431
        %v7556 = vunpack.c.h.b16 %v7431
        %v7557 = vunpack.c.l.b16 %v7432
        %v7558 = vunpack.c.h.b16 %v7432
        %v7559 = vunpack.c.l.b16 %v7433
        %v7560 = vunpack.c.h.b16 %v7433
        %v7561 = vunpack.c.l.b16 %v7434
        %v7562 = vunpack.c.h.b16 %v7434
        %v7563 = vunpack.c.l.b16 %v7435
        %v7564 = vunpack.c.h.b16 %v7435
        %v7565 = vunpack.c.l.b16 %v7436
        %v7566 = vunpack.c.h.b16 %v7436
        %v7567 = vunpack.c.l.b16 %v7437
        %v7568 = vunpack.c.h.b16 %v7437
        %v7569 = vunpack.c.l.b16 %v7438
        %v7570 = vunpack.c.h.b16 %v7438
        %v7571 = vunpack.c.l.b16 %v7439
        %v7572 = vunpack.c.h.b16 %v7439
        %v7573 = vunpack.c.l.b16 %v7440
        %v7574 = vunpack.c.h.b16 %v7440
        %v7575 = vunpack.c.l.b16 %v7441
        %v7576 = vunpack.c.h.b16 %v7441
        %v7577 = vunpack.c.l.b16 %v7442
        %v7578 = vunpack.c.h.b16 %v7442
        %v7579 = vunpack.c.l.b16 %v7443
        %v7580 = vunpack.c.h.b16 %v7443
        %v7581 = vunpack.c.l.b16 %v7444
        %v7582 = vunpack.c.h.b16 %v7444
        %v7583 = vunpack.c.l.b16 %v7445
        %v7584 = vunpack.c.h.b16 %v7445
        %v7585 = vunpack.c.l.b16 %v7446
        %v7586 = vunpack.c.h.b16 %v7446
        %v7587 = vunpack.c.l.b16 %v7447
        %v7588 = vunpack.c.h.b16 %v7447
        %v7589 = vunpack.c.l.b16 %v7448
        %v7590 = vunpack.c.h.b16 %v7448
        %v7591 = vunpack.c.l.b16 %v7449
        %v7592 = vunpack.c.h.b16 %v7449
        %v7593 = vunpack.c.l.b16 %v7450
        %v7594 = vunpack.c.h.b16 %v7450
        %v7595 = vpack.c.b16 %v7501, %v7499
        %v7596 = vpack.c.b16 %v7502, %v7500
        %v7597 = vpack.c.b16 %v7505, %v7503
        %v7598 = vpack.c.b16 %v7506, %v7504
        %v7599 = vpack.c.b16 %v7509, %v7507
        %v7600 = vpack.c.b16 %v7510, %v7508
        %v7601 = vpack.c.b16 %v7513, %v7511
        %v7602 = vpack.c.b16 %v7514, %v7512
        %v7603 = vpack.c.b16 %v7517, %v7515
        %v7604 = vpack.c.b16 %v7518, %v7516
        %v7605 = vpack.c.b16 %v7521, %v7519
        %v7606 = vpack.c.b16 %v7522, %v7520
        %v7607 = vpack.c.b16 %v7525, %v7523
        %v7608 = vpack.c.b16 %v7526, %v7524
        %v7609 = vpack.c.b16 %v7529, %v7527
        %v7610 = vpack.c.b16 %v7530, %v7528
        %v7611 = vpack.c.b16 %v7533, %v7531
        %v7612 = vpack.c.b16 %v7534, %v7532
        %v7613 = vpack.c.b16 %v7537, %v7535
        %v7614 = vpack.c.b16 %v7538, %v7536
        %v7615 = vpack.c.b16 %v7541, %v7539
        %v7616 = vpack.c.b16 %v7542, %v7540
        %v7617 = vpack.c.b16 %v7545, %v7543
        %v7618 = vpack.c.b16 %v7546, %v7544
        %v7619 = vpack.c.b16 %v7549, %v7547
        %v7620 = vpack.c.b16 %v7550, %v7548
        %v7621 = vpack.c.b16 %v7553, %v7551
        %v7622 = vpack.c.b16 %v7554, %v7552
        %v7623 = vpack.c.b16 %v7557, %v7555
        %v7624 = vpack.c.b16 %v7558, %v7556
        %v7625 = vpack.c.b16 %v7561, %v7559
        %v7626 = vpack.c.b16 %v7562, %v7560
        %v7627 = vpack.c.b16 %v7565, %v7563
        %v7628 = vpack.c.b16 %v7566, %v7564
        %v7629 = vpack.c.b16 %v7569, %v7567
        %v7630 = vpack.c.b16 %v7570, %v7568
        %v7631 = vpack.c.b16 %v7573, %v7571
        %v7632 = vpack.c.b16 %v7574, %v7572
        %v7633 = vpack.c.b16 %v7577, %v7575
        %v7634 = vpack.c.b16 %v7578, %v7576
        %v7635 = vpack.c.b16 %v7581, %v7579
        %v7636 = vpack.c.b16 %v7582, %v7580
        %v7637 = vpack.c.b16 %v7585, %v7583
        %v7638 = vpack.c.b16 %v7586, %v7584
        %v7639 = vpack.c.b16 %v7589, %v7587
        %v7640 = vpack.c.b16 %v7590, %v7588
        %v7641 = vpack.c.b16 %v7593, %v7591
        %v7642 = vpack.c.b16 %v7594, %v7592
        %7691 = vmatprep.subr.bf16.mxu0 %v7596
        %7692 = vmatpush1.bf16.msra.mxu0 %v7595
        %7693 = vmatprep.subr.bf16.mxu0 %v7598
        %7694 = vmatpush1.bf16.msra.mxu0 %v7597
        %7695 = vmatprep.subr.bf16.mxu0 %v7600
        %7696 = vmatpush1.bf16.msra.mxu0 %v7599
        %7697 = vmatprep.subr.bf16.mxu0 %v7602
        %7698 = vmatpush1.bf16.msra.mxu0 %v7601
        %7699 = vmatprep.subr.bf16.mxu0 %v7604
        %7700 = vmatpush1.bf16.msra.mxu0 %v7603
        %7701 = vmatprep.subr.bf16.mxu0 %v7606
        %7702 = vmatpush1.bf16.msra.mxu0 %v7605
        %7703 = vmatprep.subr.bf16.mxu0 %v7608
        %7704 = vmatpush1.bf16.msra.mxu0 %v7607
        %7705 = vmatprep.subr.bf16.mxu0 %v7610
        %7706 = vmatpush1.bf16.msra.mxu0 %v7609
        %7707 = vmatprep.subr.bf16.mxu0 %v7612
        %7708 = vmatpush1.bf16.msra.mxu0 %v7611
        %7709 = vmatprep.subr.bf16.mxu0 %v7614
        %7710 = vmatpush1.bf16.msra.mxu0 %v7613
        %7711 = vmatprep.subr.bf16.mxu0 %v7616
        %7712 = vmatpush1.bf16.msra.mxu0 %v7615
        %7713 = vmatprep.subr.bf16.mxu0 %v7618
        %7714 = vmatpush1.bf16.msra.mxu0 %v7617
        %7715 = vmatprep.subr.bf16.mxu0 %v7620
        %7716 = vmatpush1.bf16.msra.mxu0 %v7619
        %7717 = vmatprep.subr.bf16.mxu0 %v7622
        %7718 = vmatpush1.bf16.msra.mxu0 %v7621
        %7719 = vmatprep.subr.bf16.mxu0 %v7624
        %7720 = vmatpush1.bf16.msra.mxu0 %v7623
        %7721 = vmatprep.subr.bf16.mxu0 %v7626
        %7722 = vmatpush1.bf16.msra.mxu0 %v7625
        %7723 = vmatprep.mubr.bf16.mxu0 %v7391
        %7724 = vmatmul.mubr.bf16.gmra.mrb[0].mxu0 %v7390
        %v7725 = vpop.f32.mrb[0].mxu0
        %v7726 = vadd.f32 0.0, %v7725
        %v7727 = vpop.f32.mrb[0].mxu0
        %v7728 = vadd.f32 0.0, %v7727
        %v7729 = vpop.f32.mrb[0].mxu0
        %v7730 = vadd.f32 0.0, %v7729
        %v7731 = vpop.f32.mrb[0].mxu0
        %v7732 = vadd.f32 0.0, %v7731
        %7733 = vmatprep.mubr.bf16.mxu0 %v7394
        %7734 = vmatmul.mubr.bf16.gmra.mrb[0].mxu0 %v7393
        %v7735 = vpop.f32.mrb[0].mxu0
        %v7736 = vadd.f32 0.0, %v7735
        %v7737 = vpop.f32.mrb[0].mxu0
        %v7738 = vadd.f32 0.0, %v7737
        %v7739 = vpop.f32.mrb[0].mxu0
        %v7740 = vadd.f32 0.0, %v7739
        %v7741 = vpop.f32.mrb[0].mxu0
        %v7742 = vadd.f32 0.0, %v7741
        %7743 = vmatprep.mubr.bf16.mxu0 %v7397
        %7744 = vmatmul.mubr.bf16.gmra.mrb[0].mxu0 %v7396
        %v7745 = vpop.f32.mrb[0].mxu0
        %v7746 = vadd.f32 0.0, %v7745
        %v7747 = vpop.f32.mrb[0].mxu0
        %v7748 = vadd.f32 0.0, %v7747
        %v7749 = vpop.f32.mrb[0].mxu0
        %v7750 = vadd.f32 0.0, %v7749
        %v7751 = vpop.f32.mrb[0].mxu0
        %v7752 = vadd.f32 0.0, %v7751
        %7753 = vmatprep.mubr.bf16.mxu0 %v7400
        %7754 = vmatmul.mubr.bf16.gmra.mrb[0].mxu0 %v7399
        %v7755 = vpop.f32.mrb[0].mxu0
        %v7756 = vadd.f32 0.0, %v7755
        %v7757 = vpop.f32.mrb[0].mxu0
        %v7758 = vadd.f32 0.0, %v7757
        %v7759 = vpop.f32.mrb[0].mxu0
        %v7760 = vadd.f32 0.0, %v7759
        %v7761 = vpop.f32.mrb[0].mxu0
        %v7762 = vadd.f32 0.0, %v7761
        %7763 = vdwg.mxu0
        %7764 = vmatprep.subr.bf16.mxu0 %v7628
        %7765 = vmatpush1.bf16.msra.mxu0 %v7627
        %7766 = vmatprep.subr.bf16.mxu0 %v7630
        %7767 = vmatpush1.bf16.msra.mxu0 %v7629
        %7768 = vmatprep.subr.bf16.mxu0 %v7632
        %7769 = vmatpush1.bf16.msra.mxu0 %v7631
        %7770 = vmatprep.subr.bf16.mxu0 %v7634
        %7771 = vmatpush1.bf16.msra.mxu0 %v7633
        %7772 = vmatprep.subr.bf16.mxu0 %v7636
        %7773 = vmatpush1.bf16.msra.mxu0 %v7635
        %7774 = vmatprep.subr.bf16.mxu0 %v7638
        %7775 = vmatpush1.bf16.msra.mxu0 %v7637
        %7776 = vmatprep.subr.bf16.mxu0 %v7640
        %7777 = vmatpush1.bf16.msra.mxu0 %v7639
        %7778 = vmatprep.subr.bf16.mxu0 %v7642
        %7779 = vmatpush1.bf16.msra.mxu0 %v7641
        %7780 = vmatprep.subr.bf16.mxu0 0
        %7781 = vmatpush1.bf16.msra.mxu0 0
        %7782 = vmatprep.subr.bf16.mxu0 0
        %7783 = vmatpush1.bf16.msra.mxu0 0
        %7784 = vmatprep.subr.bf16.mxu0 0
        %7785 = vmatpush1.bf16.msra.mxu0 0
        %7786 = vmatprep.subr.bf16.mxu0 0
        %7787 = vmatpush1.bf16.msra.mxu0 0
        %7788 = vmatprep.subr.bf16.mxu0 0
        %7789 = vmatpush1.bf16.msra.mxu0 0
        %7790 = vmatprep.subr.bf16.mxu0 0
        %7791 = vmatpush1.bf16.msra.mxu0 0
        %7792 = vmatprep.subr.bf16.mxu0 0
        %7793 = vmatpush1.bf16.msra.mxu0 0
        %7794 = vmatprep.subr.bf16.mxu0 0
        %7795 = vmatpush1.bf16.msra.mxu0 0
        %7796 = vmatprep.mubr.bf16.mxu0 0
        %7797 = vmatmul.mubr.bf16.gmra.mrb[0].mxu0 %v7392
        %v7798 = vpop.f32.mrb[0].mxu0
        %v7799 = vadd.f32 %v7726, %v7798
        %v7800 = vpop.f32.mrb[0].mxu0
        %v7801 = vadd.f32 %v7728, %v7800
        %v7802 = vpop.f32.mrb[0].mxu0
        %v7803 = vadd.f32 %v7730, %v7802
        %v7804 = vpop.f32.mrb[0].mxu0
        %v7805 = vadd.f32 %v7732, %v7804
        %7806 = vmatprep.mubr.bf16.mxu0 0
        %7807 = vmatmul.mubr.bf16.gmra.mrb[0].mxu0 %v7395
        %v7808 = vpop.f32.mrb[0].mxu0
        %v7809 = vadd.f32 %v7736, %v7808
        %v7810 = vpop.f32.mrb[0].mxu0
        %v7811 = vadd.f32 %v7738, %v7810
        %v7812 = vpop.f32.mrb[0].mxu0
        %v7813 = vadd.f32 %v7740, %v7812
        %v7814 = vpop.f32.mrb[0].mxu0
        %v7815 = vadd.f32 %v7742, %v7814
        %7816 = vmatprep.mubr.bf16.mxu0 0
        %7817 = vmatmul.mubr.bf16.gmra.mrb[0].mxu0 %v7398
        %v7818 = vpop.f32.mrb[0].mxu0
        %v7819 = vadd.f32 %v7746, %v7818
        %v7820 = vpop.f32.mrb[0].mxu0
        %v7821 = vadd.f32 %v7748, %v7820
        %v7822 = vpop.f32.mrb[0].mxu0
        %v7823 = vadd.f32 %v7750, %v7822
        %v7824 = vpop.f32.mrb[0].mxu0
        %v7825 = vadd.f32 %v7752, %v7824
        %7826 = vmatprep.mubr.bf16.mxu0 0
        %7827 = vmatmul.mubr.bf16.gmra.mrb[0].mxu0 %v7401
        %v7828 = vpop.f32.mrb[0].mxu0
        %v7829 = vadd.f32 %v7756, %v7828
        %v7830 = vpop.f32.mrb[0].mxu0
        %v7831 = vadd.f32 %v7758, %v7830
        %v7832 = vpop.f32.mrb[0].mxu0
        %v7833 = vadd.f32 %v7760, %v7832
        %v7834 = vpop.f32.mrb[0].mxu0
        %v7835 = vadd.f32 %v7762, %v7834
        %7836 = vdwg.mxu0
        %v7837 = vadd.f32 %v7302, %v7799
        %v7838 = vadd.f32 %v7303, %v7801
        %v7839 = vadd.f32 %v7304, %v7803
        %v7840 = vadd.f32 %v7305, %v7805
        %v7841 = vadd.f32 %v7306, %v7809
        %v7842 = vadd.f32 %v7307, %v7811
        %v7843 = vadd.f32 %v7308, %v7813
        %v7844 = vadd.f32 %v7309, %v7815
        %v7845 = vadd.f32 %v7310, %v7819
        %v7846 = vadd.f32 %v7311, %v7821
        %v7847 = vadd.f32 %v7312, %v7823
        %v7848 = vadd.f32 %v7313, %v7825
        %v7849 = vadd.f32 %v7314, %v7829
        %v7850 = vadd.f32 %v7315, %v7831
        %v7851 = vadd.f32 %v7316, %v7833
        %v7852 = vadd.f32 %v7317, %v7835
        %7853 = vset.pattern.permute.xlu0 14
        %7854 = vperm.xlu0 %7853, %v384
        %v7855 = vpop.permute.xlu0 %7854
        %7856 = vset.pattern.permute.xlu0 14
        %7857 = vperm.xlu0 %7856, %v385
        %v7858 = vpop.permute.xlu0 %7857
        %7859 = vset.pattern.permute.xlu0 14
        %7860 = vperm.xlu0 %7859, %v386
        %v7861 = vpop.permute.xlu0 %7860
        %7862 = vset.pattern.permute.xlu0 14
        %7863 = vperm.xlu0 %7862, %v387
        %v7864 = vpop.permute.xlu0 %7863
        %7865 = vset.pattern.permute.xlu0 14
        %7866 = vperm.xlu0 %7865, %v388
        %v7867 = vpop.permute.xlu0 %7866
        %7868 = vset.pattern.permute.xlu0 14
        %7869 = vperm.xlu0 %7868, %v389
        %v7870 = vpop.permute.xlu0 %7869
        %7871 = vset.pattern.permute.xlu0 14
        %7872 = vperm.xlu0 %7871, %v390
        %v7873 = vpop.permute.xlu0 %7872
        %7874 = vset.pattern.permute.xlu0 14
        %7875 = vperm.xlu0 %7874, %v391
        %v7876 = vpop.permute.xlu0 %7875
        %vm7877 = vcmp.eq.s32.totalorder %v7855, %v393
        %vm7878 = vcmp.eq.s32.totalorder %v7855, %v394
        %vm7879 = vcmp.eq.s32.totalorder %v7855, %v395
        %vm7880 = vcmp.eq.s32.totalorder %v7858, %v393
        %vm7881 = vcmp.eq.s32.totalorder %v7858, %v394
        %vm7882 = vcmp.eq.s32.totalorder %v7858, %v395
        %vm7883 = vcmp.eq.s32.totalorder %v7861, %v393
        %vm7884 = vcmp.eq.s32.totalorder %v7861, %v394
        %vm7885 = vcmp.eq.s32.totalorder %v7861, %v395
        %vm7886 = vcmp.eq.s32.totalorder %v7864, %v393
        %vm7887 = vcmp.eq.s32.totalorder %v7864, %v394
        %vm7888 = vcmp.eq.s32.totalorder %v7864, %v395
        %vm7889 = vcmp.eq.s32.totalorder %v7867, %v393
        %vm7890 = vcmp.eq.s32.totalorder %v7867, %v394
        %vm7891 = vcmp.eq.s32.totalorder %v7867, %v395
        %vm7892 = vcmp.eq.s32.totalorder %v7870, %v393
        %vm7893 = vcmp.eq.s32.totalorder %v7870, %v394
        %vm7894 = vcmp.eq.s32.totalorder %v7870, %v395
        %vm7895 = vcmp.eq.s32.totalorder %v7873, %v393
        %vm7896 = vcmp.eq.s32.totalorder %v7873, %v394
        %vm7897 = vcmp.eq.s32.totalorder %v7873, %v395
        %vm7898 = vcmp.eq.s32.totalorder %v7876, %v393
        %vm7899 = vcmp.eq.s32.totalorder %v7876, %v394
        %vm7900 = vcmp.eq.s32.totalorder %v7876, %v395
        %v7901 = vsel %vm7877, 1.0, 0.0
        %v7902 = vsel %vm7878, 1.0, 0.0
        %v7903 = vsel %vm7879, 1.0, 0.0
        %v7904 = vsel %vm7880, 1.0, 0.0
        %v7905 = vsel %vm7881, 1.0, 0.0
        %v7906 = vsel %vm7882, 1.0, 0.0
        %v7907 = vsel %vm7883, 1.0, 0.0
        %v7908 = vsel %vm7884, 1.0, 0.0
        %v7909 = vsel %vm7885, 1.0, 0.0
        %v7910 = vsel %vm7886, 1.0, 0.0
        %v7911 = vsel %vm7887, 1.0, 0.0
        %v7912 = vsel %vm7888, 1.0, 0.0
        %v7913 = vsel %vm7889, 1.0, 0.0
        %v7914 = vsel %vm7890, 1.0, 0.0
        %v7915 = vsel %vm7891, 1.0, 0.0
        %v7916 = vsel %vm7892, 1.0, 0.0
        %v7917 = vsel %vm7893, 1.0, 0.0
        %v7918 = vsel %vm7894, 1.0, 0.0
        %v7919 = vsel %vm7895, 1.0, 0.0
        %v7920 = vsel %vm7896, 1.0, 0.0
        %v7921 = vsel %vm7897, 1.0, 0.0
        %v7922 = vsel %vm7898, 1.0, 0.0
        %v7923 = vsel %vm7899, 1.0, 0.0
        %v7924 = vsel %vm7900, 1.0, 0.0
        %v7925 = vpack.c.bf16 %v7904, %v7901
        %v7926 = vpack.c.bf16 %v7905, %v7902
        %v7927 = vpack.c.bf16 %v7906, %v7903
        %v7928 = vpack.c.bf16 %v7910, %v7907
        %v7929 = vpack.c.bf16 %v7911, %v7908
        %v7930 = vpack.c.bf16 %v7912, %v7909
        %v7931 = vpack.c.bf16 %v7916, %v7913
        %v7932 = vpack.c.bf16 %v7917, %v7914
        %v7933 = vpack.c.bf16 %v7918, %v7915
        %v7934 = vpack.c.bf16 %v7922, %v7919
        %v7935 = vpack.c.bf16 %v7923, %v7920
        %v7936 = vpack.c.bf16 %v7924, %v7921
        %s7937 = scalar_lea.vmem [#allocation3], 5376
        %v7938 = vld [vmem:[%s7937] sm:$0xff]
        %v7939 = vld [vmem:[%s7937 + $0x8] sm:$0xff]
        %v7940 = vld [vmem:[%s7937 + $0x10] sm:$0xff]
        %v7941 = vld [vmem:[%s7937 + $0x18] sm:$0xff]
        %v7942 = vld [vmem:[%s7937 + $0x20] sm:$0xff]
        %v7943 = vld [vmem:[%s7937 + $0x28] sm:$0xff]
        %v7944 = vld [vmem:[%s7937 + $0x30] sm:$0xff]
        %v7945 = vld [vmem:[%s7937 + $0x38] sm:$0xff]
        %v7946 = vld [vmem:[%s7937 + $0x40] sm:$0xff]
        %v7947 = vld [vmem:[%s7937 + $0x48] sm:$0xff]
        %v7948 = vld [vmem:[%s7937 + $0x50] sm:$0xff]
        %v7949 = vld [vmem:[%s7937 + $0x58] sm:$0xff]
        %v7950 = vld [vmem:[%s7937 + $0x60] sm:$0xff]
        %v7951 = vld [vmem:[%s7937 + $0x68] sm:$0xff]
        %v7952 = vld [vmem:[%s7937 + $0x70] sm:$0xff]
        %v7953 = vld [vmem:[%s7937 + $0x78] sm:$0xff]
        %v7954 = vld [vmem:[%s7937 + $0x80] sm:$0xff]
        %v7955 = vld [vmem:[%s7937 + $0x88] sm:$0xff]
        %v7956 = vld [vmem:[%s7937 + $0x90] sm:$0xff]
        %v7957 = vld [vmem:[%s7937 + $0x98] sm:$0xff]
        %v7958 = vld [vmem:[%s7937 + $0xa0] sm:$0xff]
        %v7959 = vld [vmem:[%s7937 + $0xa8] sm:$0xff]
        %v7960 = vld [vmem:[%s7937 + $0xb0] sm:$0xff]
        %v7961 = vld [vmem:[%s7937 + $0xb8] sm:$0xff]
        %v7962 = vld [vmem:[%s7937 + $0xc0] sm:$0xff]
        %v7963 = vld [vmem:[%s7937 + $0xc8] sm:$0xff]
        %v7964 = vld [vmem:[%s7937 + $0xd0] sm:$0xff]
        %v7965 = vld [vmem:[%s7937 + $0xd8] sm:$0xff]
        %v7966 = vld [vmem:[%s7937 + $0xe0] sm:$0xff]
        %v7967 = vld [vmem:[%s7937 + $0xe8] sm:$0xff]
        %v7968 = vld [vmem:[%s7937 + $0xf0] sm:$0xff]
        %v7969 = vld [vmem:[%s7937 + $0xf8] sm:$0xff]
        %v7970 = vld [vmem:[%s7937 + $0x100] sm:$0xff]
        %v7971 = vld [vmem:[%s7937 + $0x108] sm:$0xff]
        %v7972 = vld [vmem:[%s7937 + $0x110] sm:$0xff]
        %v7973 = vld [vmem:[%s7937 + $0x118] sm:$0xff]
        %v7974 = vld [vmem:[%s7937 + $0x120] sm:$0xff]
        %v7975 = vld [vmem:[%s7937 + $0x128] sm:$0xff]
        %v7976 = vld [vmem:[%s7937 + $0x130] sm:$0xff]
        %v7977 = vld [vmem:[%s7937 + $0x138] sm:$0xff]
        %v7978 = vld [vmem:[%s7937 + $0x140] sm:$0xff]
        %v7979 = vld [vmem:[%s7937 + $0x148] sm:$0xff]
        %v7980 = vld [vmem:[%s7937 + $0x150] sm:$0xff]
        %v7981 = vld [vmem:[%s7937 + $0x158] sm:$0xff]
        %v7982 = vld [vmem:[%s7937 + $0x160] sm:$0xff]
        %v7983 = vld [vmem:[%s7937 + $0x168] sm:$0xff]
        %v7984 = vld [vmem:[%s7937 + $0x170] sm:$0xff]
        %v7985 = vld [vmem:[%s7937 + $0x178] sm:$0xff]
        %v8034 = vunpack.c.l.b16 %v7938
        %v8035 = vunpack.c.h.b16 %v7938
        %v8036 = vunpack.c.l.b16 %v7939
        %v8037 = vunpack.c.h.b16 %v7939
        %v8038 = vunpack.c.l.b16 %v7940
        %v8039 = vunpack.c.h.b16 %v7940
        %v8040 = vunpack.c.l.b16 %v7941
        %v8041 = vunpack.c.h.b16 %v7941
        %v8042 = vunpack.c.l.b16 %v7942
        %v8043 = vunpack.c.h.b16 %v7942
        %v8044 = vunpack.c.l.b16 %v7943
        %v8045 = vunpack.c.h.b16 %v7943
        %v8046 = vunpack.c.l.b16 %v7944
        %v8047 = vunpack.c.h.b16 %v7944
        %v8048 = vunpack.c.l.b16 %v7945
        %v8049 = vunpack.c.h.b16 %v7945
        %v8050 = vunpack.c.l.b16 %v7946
        %v8051 = vunpack.c.h.b16 %v7946
        %v8052 = vunpack.c.l.b16 %v7947
        %v8053 = vunpack.c.h.b16 %v7947
        %v8054 = vunpack.c.l.b16 %v7948
        %v8055 = vunpack.c.h.b16 %v7948
        %v8056 = vunpack.c.l.b16 %v7949
        %v8057 = vunpack.c.h.b16 %v7949
        %v8058 = vunpack.c.l.b16 %v7950
        %v8059 = vunpack.c.h.b16 %v7950
        %v8060 = vunpack.c.l.b16 %v7951
        %v8061 = vunpack.c.h.b16 %v7951
        %v8062 = vunpack.c.l.b16 %v7952
        %v8063 = vunpack.c.h.b16 %v7952
        %v8064 = vunpack.c.l.b16 %v7953
        %v8065 = vunpack.c.h.b16 %v7953
        %v8066 = vunpack.c.l.b16 %v7954
        %v8067 = vunpack.c.h.b16 %v7954
        %v8068 = vunpack.c.l.b16 %v7955
        %v8069 = vunpack.c.h.b16 %v7955
        %v8070 = vunpack.c.l.b16 %v7956
        %v8071 = vunpack.c.h.b16 %v7956
        %v8072 = vunpack.c.l.b16 %v7957
        %v8073 = vunpack.c.h.b16 %v7957
        %v8074 = vunpack.c.l.b16 %v7958
        %v8075 = vunpack.c.h.b16 %v7958
        %v8076 = vunpack.c.l.b16 %v7959
        %v8077 = vunpack.c.h.b16 %v7959
        %v8078 = vunpack.c.l.b16 %v7960
        %v8079 = vunpack.c.h.b16 %v7960
        %v8080 = vunpack.c.l.b16 %v7961
        %v8081 = vunpack.c.h.b16 %v7961
        %v8082 = vunpack.c.l.b16 %v7962
        %v8083 = vunpack.c.h.b16 %v7962
        %v8084 = vunpack.c.l.b16 %v7963
        %v8085 = vunpack.c.h.b16 %v7963
        %v8086 = vunpack.c.l.b16 %v7964
        %v8087 = vunpack.c.h.b16 %v7964
        %v8088 = vunpack.c.l.b16 %v7965
        %v8089 = vunpack.c.h.b16 %v7965
        %v8090 = vunpack.c.l.b16 %v7966
        %v8091 = vunpack.c.h.b16 %v7966
        %v8092 = vunpack.c.l.b16 %v7967
        %v8093 = vunpack.c.h.b16 %v7967
        %v8094 = vunpack.c.l.b16 %v7968
        %v8095 = vunpack.c.h.b16 %v7968
        %v8096 = vunpack.c.l.b16 %v7969
        %v8097 = vunpack.c.h.b16 %v7969
        %v8098 = vunpack.c.l.b16 %v7970
        %v8099 = vunpack.c.h.b16 %v7970
        %v8100 = vunpack.c.l.b16 %v7971
        %v8101 = vunpack.c.h.b16 %v7971
        %v8102 = vunpack.c.l.b16 %v7972
        %v8103 = vunpack.c.h.b16 %v7972
        %v8104 = vunpack.c.l.b16 %v7973
        %v8105 = vunpack.c.h.b16 %v7973
        %v8106 = vunpack.c.l.b16 %v7974
        %v8107 = vunpack.c.h.b16 %v7974
        %v8108 = vunpack.c.l.b16 %v7975
        %v8109 = vunpack.c.h.b16 %v7975
        %v8110 = vunpack.c.l.b16 %v7976
        %v8111 = vunpack.c.h.b16 %v7976
        %v8112 = vunpack.c.l.b16 %v7977
        %v8113 = vunpack.c.h.b16 %v7977
        %v8114 = vunpack.c.l.b16 %v7978
        %v8115 = vunpack.c.h.b16 %v7978
        %v8116 = vunpack.c.l.b16 %v7979
        %v8117 = vunpack.c.h.b16 %v7979
        %v8118 = vunpack.c.l.b16 %v7980
        %v8119 = vunpack.c.h.b16 %v7980
        %v8120 = vunpack.c.l.b16 %v7981
        %v8121 = vunpack.c.h.b16 %v7981
        %v8122 = vunpack.c.l.b16 %v7982
        %v8123 = vunpack.c.h.b16 %v7982
        %v8124 = vunpack.c.l.b16 %v7983
        %v8125 = vunpack.c.h.b16 %v7983
        %v8126 = vunpack.c.l.b16 %v7984
        %v8127 = vunpack.c.h.b16 %v7984
        %v8128 = vunpack.c.l.b16 %v7985
        %v8129 = vunpack.c.h.b16 %v7985
        %v8130 = vpack.c.b16 %v8036, %v8034
        %v8131 = vpack.c.b16 %v8037, %v8035
        %v8132 = vpack.c.b16 %v8040, %v8038
        %v8133 = vpack.c.b16 %v8041, %v8039
        %v8134 = vpack.c.b16 %v8044, %v8042
        %v8135 = vpack.c.b16 %v8045, %v8043
        %v8136 = vpack.c.b16 %v8048, %v8046
        %v8137 = vpack.c.b16 %v8049, %v8047
        %v8138 = vpack.c.b16 %v8052, %v8050
        %v8139 = vpack.c.b16 %v8053, %v8051
        %v8140 = vpack.c.b16 %v8056, %v8054
        %v8141 = vpack.c.b16 %v8057, %v8055
        %v8142 = vpack.c.b16 %v8060, %v8058
        %v8143 = vpack.c.b16 %v8061, %v8059
        %v8144 = vpack.c.b16 %v8064, %v8062
        %v8145 = vpack.c.b16 %v8065, %v8063
        %v8146 = vpack.c.b16 %v8068, %v8066
        %v8147 = vpack.c.b16 %v8069, %v8067
        %v8148 = vpack.c.b16 %v8072, %v8070
        %v8149 = vpack.c.b16 %v8073, %v8071
        %v8150 = vpack.c.b16 %v8076, %v8074
        %v8151 = vpack.c.b16 %v8077, %v8075
        %v8152 = vpack.c.b16 %v8080, %v8078
        %v8153 = vpack.c.b16 %v8081, %v8079
        %v8154 = vpack.c.b16 %v8084, %v8082
        %v8155 = vpack.c.b16 %v8085, %v8083
        %v8156 = vpack.c.b16 %v8088, %v8086
        %v8157 = vpack.c.b16 %v8089, %v8087
        %v8158 = vpack.c.b16 %v8092, %v8090
        %v8159 = vpack.c.b16 %v8093, %v8091
        %v8160 = vpack.c.b16 %v8096, %v8094
        %v8161 = vpack.c.b16 %v8097, %v8095
        %v8162 = vpack.c.b16 %v8100, %v8098
        %v8163 = vpack.c.b16 %v8101, %v8099
        %v8164 = vpack.c.b16 %v8104, %v8102
        %v8165 = vpack.c.b16 %v8105, %v8103
        %v8166 = vpack.c.b16 %v8108, %v8106
        %v8167 = vpack.c.b16 %v8109, %v8107
        %v8168 = vpack.c.b16 %v8112, %v8110
        %v8169 = vpack.c.b16 %v8113, %v8111
        %v8170 = vpack.c.b16 %v8116, %v8114
        %v8171 = vpack.c.b16 %v8117, %v8115
        %v8172 = vpack.c.b16 %v8120, %v8118
        %v8173 = vpack.c.b16 %v8121, %v8119
        %v8174 = vpack.c.b16 %v8124, %v8122
        %v8175 = vpack.c.b16 %v8125, %v8123
        %v8176 = vpack.c.b16 %v8128, %v8126
        %v8177 = vpack.c.b16 %v8129, %v8127
        %8226 = vmatprep.subr.bf16.mxu0 %v8131
        %8227 = vmatpush1.bf16.msra.mxu0 %v8130
        %8228 = vmatprep.subr.bf16.mxu0 %v8133
        %8229 = vmatpush1.bf16.msra.mxu0 %v8132
        %8230 = vmatprep.subr.bf16.mxu0 %v8135
        %8231 = vmatpush1.bf16.msra.mxu0 %v8134
        %8232 = vmatprep.subr.bf16.mxu0 %v8137
        %8233 = vmatpush1.bf16.msra.mxu0 %v8136
        %8234 = vmatprep.subr.bf16.mxu0 %v8139
        %8235 = vmatpush1.bf16.msra.mxu0 %v8138
        %8236 = vmatprep.subr.bf16.mxu0 %v8141
        %8237 = vmatpush1.bf16.msra.mxu0 %v8140
        %8238 = vmatprep.subr.bf16.mxu0 %v8143
        %8239 = vmatpush1.bf16.msra.mxu0 %v8142
        %8240 = vmatprep.subr.bf16.mxu0 %v8145
        %8241 = vmatpush1.bf16.msra.mxu0 %v8144
        %8242 = vmatprep.subr.bf16.mxu0 %v8147
        %8243 = vmatpush1.bf16.msra.mxu0 %v8146
        %8244 = vmatprep.subr.bf16.mxu0 %v8149
        %8245 = vmatpush1.bf16.msra.mxu0 %v8148
        %8246 = vmatprep.subr.bf16.mxu0 %v8151
        %8247 = vmatpush1.bf16.msra.mxu0 %v8150
        %8248 = vmatprep.subr.bf16.mxu0 %v8153
        %8249 = vmatpush1.bf16.msra.mxu0 %v8152
        %8250 = vmatprep.subr.bf16.mxu0 %v8155
        %8251 = vmatpush1.bf16.msra.mxu0 %v8154
        %8252 = vmatprep.subr.bf16.mxu0 %v8157
        %8253 = vmatpush1.bf16.msra.mxu0 %v8156
        %8254 = vmatprep.subr.bf16.mxu0 %v8159
        %8255 = vmatpush1.bf16.msra.mxu0 %v8158
        %8256 = vmatprep.subr.bf16.mxu0 %v8161
        %8257 = vmatpush1.bf16.msra.mxu0 %v8160
        %8258 = vmatprep.mubr.bf16.mxu0 %v7926
        %8259 = vmatmul.mubr.bf16.gmra.mrb[0].mxu0 %v7925
        %v8260 = vpop.f32.mrb[0].mxu0
        %v8261 = vadd.f32 0.0, %v8260
        %v8262 = vpop.f32.mrb[0].mxu0
        %v8263 = vadd.f32 0.0, %v8262
        %v8264 = vpop.f32.mrb[0].mxu0
        %v8265 = vadd.f32 0.0, %v8264
        %v8266 = vpop.f32.mrb[0].mxu0
        %v8267 = vadd.f32 0.0, %v8266
        %8268 = vmatprep.mubr.bf16.mxu0 %v7929
        %8269 = vmatmul.mubr.bf16.gmra.mrb[0].mxu0 %v7928
        %v8270 = vpop.f32.mrb[0].mxu0
        %v8271 = vadd.f32 0.0, %v8270
        %v8272 = vpop.f32.mrb[0].mxu0
        %v8273 = vadd.f32 0.0, %v8272
        %v8274 = vpop.f32.mrb[0].mxu0
        %v8275 = vadd.f32 0.0, %v8274
        %v8276 = vpop.f32.mrb[0].mxu0
        %v8277 = vadd.f32 0.0, %v8276
        %8278 = vmatprep.mubr.bf16.mxu0 %v7932
        %8279 = vmatmul.mubr.bf16.gmra.mrb[0].mxu0 %v7931
        %v8280 = vpop.f32.mrb[0].mxu0
        %v8281 = vadd.f32 0.0, %v8280
        %v8282 = vpop.f32.mrb[0].mxu0
        %v8283 = vadd.f32 0.0, %v8282
        %v8284 = vpop.f32.mrb[0].mxu0
        %v8285 = vadd.f32 0.0, %v8284
        %v8286 = vpop.f32.mrb[0].mxu0
        %v8287 = vadd.f32 0.0, %v8286
        %8288 = vmatprep.mubr.bf16.mxu0 %v7935
        %8289 = vmatmul.mubr.bf16.gmra.mrb[0].mxu0 %v7934
        %v8290 = vpop.f32.mrb[0].mxu0
        %v8291 = vadd.f32 0.0, %v8290
        %v8292 = vpop.f32.mrb[0].mxu0
        %v8293 = vadd.f32 0.0, %v8292
        %v8294 = vpop.f32.mrb[0].mxu0
        %v8295 = vadd.f32 0.0, %v8294
        %v8296 = vpop.f32.mrb[0].mxu0
        %v8297 = vadd.f32 0.0, %v8296
        %8298 = vdwg.mxu0
        %8299 = vmatprep.subr.bf16.mxu0 %v8163
        %8300 = vmatpush1.bf16.msra.mxu0 %v8162
        %8301 = vmatprep.subr.bf16.mxu0 %v8165
        %8302 = vmatpush1.bf16.msra.mxu0 %v8164
        %8303 = vmatprep.subr.bf16.mxu0 %v8167
        %8304 = vmatpush1.bf16.msra.mxu0 %v8166
        %8305 = vmatprep.subr.bf16.mxu0 %v8169
        %8306 = vmatpush1.bf16.msra.mxu0 %v8168
        %8307 = vmatprep.subr.bf16.mxu0 %v8171
        %8308 = vmatpush1.bf16.msra.mxu0 %v8170
        %8309 = vmatprep.subr.bf16.mxu0 %v8173
        %8310 = vmatpush1.bf16.msra.mxu0 %v8172
        %8311 = vmatprep.subr.bf16.mxu0 %v8175
        %8312 = vmatpush1.bf16.msra.mxu0 %v8174
        %8313 = vmatprep.subr.bf16.mxu0 %v8177
        %8314 = vmatpush1.bf16.msra.mxu0 %v8176
        %8315 = vmatprep.subr.bf16.mxu0 0
        %8316 = vmatpush1.bf16.msra.mxu0 0
        %8317 = vmatprep.subr.bf16.mxu0 0
        %8318 = vmatpush1.bf16.msra.mxu0 0
        %8319 = vmatprep.subr.bf16.mxu0 0
        %8320 = vmatpush1.bf16.msra.mxu0 0
        %8321 = vmatprep.subr.bf16.mxu0 0
        %8322 = vmatpush1.bf16.msra.mxu0 0
        %8323 = vmatprep.subr.bf16.mxu0 0
        %8324 = vmatpush1.bf16.msra.mxu0 0
        %8325 = vmatprep.subr.bf16.mxu0 0
        %8326 = vmatpush1.bf16.msra.mxu0 0
        %8327 = vmatprep.subr.bf16.mxu0 0
        %8328 = vmatpush1.bf16.msra.mxu0 0
        %8329 = vmatprep.subr.bf16.mxu0 0
        %8330 = vmatpush1.bf16.msra.mxu0 0
        %8331 = vmatprep.mubr.bf16.mxu0 0
        %8332 = vmatmul.mubr.bf16.gmra.mrb[0].mxu0 %v7927
        %v8333 = vpop.f32.mrb[0].mxu0
        %v8334 = vadd.f32 %v8261, %v8333
        %v8335 = vpop.f32.mrb[0].mxu0
        %v8336 = vadd.f32 %v8263, %v8335
        %v8337 = vpop.f32.mrb[0].mxu0
        %v8338 = vadd.f32 %v8265, %v8337
        %v8339 = vpop.f32.mrb[0].mxu0
        %v8340 = vadd.f32 %v8267, %v8339
        %8341 = vmatprep.mubr.bf16.mxu0 0
        %8342 = vmatmul.mubr.bf16.gmra.mrb[0].mxu0 %v7930
        %v8343 = vpop.f32.mrb[0].mxu0
        %v8344 = vadd.f32 %v8271, %v8343
        %v8345 = vpop.f32.mrb[0].mxu0
        %v8346 = vadd.f32 %v8273, %v8345
        %v8347 = vpop.f32.mrb[0].mxu0
        %v8348 = vadd.f32 %v8275, %v8347
        %v8349 = vpop.f32.mrb[0].mxu0
        %v8350 = vadd.f32 %v8277, %v8349
        %8351 = vmatprep.mubr.bf16.mxu0 0
        %8352 = vmatmul.mubr.bf16.gmra.mrb[0].mxu0 %v7933
        %v8353 = vpop.f32.mrb[0].mxu0
        %v8354 = vadd.f32 %v8281, %v8353
        %v8355 = vpop.f32.mrb[0].mxu0
        %v8356 = vadd.f32 %v8283, %v8355
        %v8357 = vpop.f32.mrb[0].mxu0
        %v8358 = vadd.f32 %v8285, %v8357
        %v8359 = vpop.f32.mrb[0].mxu0
        %v8360 = vadd.f32 %v8287, %v8359
        %8361 = vmatprep.mubr.bf16.mxu0 0
        %8362 = vmatmul.mubr.bf16.gmra.mrb[0].mxu0 %v7936
        %v8363 = vpop.f32.mrb[0].mxu0
        %v8364 = vadd.f32 %v8291, %v8363
        %v8365 = vpop.f32.mrb[0].mxu0
        %v8366 = vadd.f32 %v8293, %v8365
        %v8367 = vpop.f32.mrb[0].mxu0
        %v8368 = vadd.f32 %v8295, %v8367
        %v8369 = vpop.f32.mrb[0].mxu0
        %v8370 = vadd.f32 %v8297, %v8369
        %8371 = vdwg.mxu0
        %v8372 = vadd.f32 %v7837, %v8334
        %v8373 = vadd.f32 %v7838, %v8336
        %v8374 = vadd.f32 %v7839, %v8338
        %v8375 = vadd.f32 %v7840, %v8340
        %v8376 = vadd.f32 %v7841, %v8344
        %v8377 = vadd.f32 %v7842, %v8346
        %v8378 = vadd.f32 %v7843, %v8348
        %v8379 = vadd.f32 %v7844, %v8350
        %v8380 = vadd.f32 %v7845, %v8354
        %v8381 = vadd.f32 %v7846, %v8356
        %v8382 = vadd.f32 %v7847, %v8358
        %v8383 = vadd.f32 %v7848, %v8360
        %v8384 = vadd.f32 %v7849, %v8364
        %v8385 = vadd.f32 %v7850, %v8366
        %v8386 = vadd.f32 %v7851, %v8368
        %v8387 = vadd.f32 %v7852, %v8370
        %8388 = vset.pattern.permute.xlu0 15
        %8389 = vperm.xlu0 %8388, %v384
        %v8390 = vpop.permute.xlu0 %8389
        %8391 = vset.pattern.permute.xlu0 15
        %8392 = vperm.xlu0 %8391, %v385
        %v8393 = vpop.permute.xlu0 %8392
        %8394 = vset.pattern.permute.xlu0 15
        %8395 = vperm.xlu0 %8394, %v386
        %v8396 = vpop.permute.xlu0 %8395
        %8397 = vset.pattern.permute.xlu0 15
        %8398 = vperm.xlu0 %8397, %v387
        %v8399 = vpop.permute.xlu0 %8398
        %8400 = vset.pattern.permute.xlu0 15
        %8401 = vperm.xlu0 %8400, %v388
        %v8402 = vpop.permute.xlu0 %8401
        %8403 = vset.pattern.permute.xlu0 15
        %8404 = vperm.xlu0 %8403, %v389
        %v8405 = vpop.permute.xlu0 %8404
        %8406 = vset.pattern.permute.xlu0 15
        %8407 = vperm.xlu0 %8406, %v390
        %v8408 = vpop.permute.xlu0 %8407
        %8409 = vset.pattern.permute.xlu0 15
        %8410 = vperm.xlu0 %8409, %v391
        %v8411 = vpop.permute.xlu0 %8410
        %vm8412 = vcmp.eq.s32.totalorder %v8390, %v393
        %vm8413 = vcmp.eq.s32.totalorder %v8390, %v394
        %vm8414 = vcmp.eq.s32.totalorder %v8390, %v395
        %vm8415 = vcmp.eq.s32.totalorder %v8393, %v393
        %vm8416 = vcmp.eq.s32.totalorder %v8393, %v394
        %vm8417 = vcmp.eq.s32.totalorder %v8393, %v395
        %vm8418 = vcmp.eq.s32.totalorder %v8396, %v393
        %vm8419 = vcmp.eq.s32.totalorder %v8396, %v394
        %vm8420 = vcmp.eq.s32.totalorder %v8396, %v395
        %vm8421 = vcmp.eq.s32.totalorder %v8399, %v393
        %vm8422 = vcmp.eq.s32.totalorder %v8399, %v394
        %vm8423 = vcmp.eq.s32.totalorder %v8399, %v395
        %vm8424 = vcmp.eq.s32.totalorder %v8402, %v393
        %vm8425 = vcmp.eq.s32.totalorder %v8402, %v394
        %vm8426 = vcmp.eq.s32.totalorder %v8402, %v395
        %vm8427 = vcmp.eq.s32.totalorder %v8405, %v393
        %vm8428 = vcmp.eq.s32.totalorder %v8405, %v394
        %vm8429 = vcmp.eq.s32.totalorder %v8405, %v395
        %vm8430 = vcmp.eq.s32.totalorder %v8408, %v393
        %vm8431 = vcmp.eq.s32.totalorder %v8408, %v394
        %vm8432 = vcmp.eq.s32.totalorder %v8408, %v395
        %vm8433 = vcmp.eq.s32.totalorder %v8411, %v393
        %vm8434 = vcmp.eq.s32.totalorder %v8411, %v394
        %vm8435 = vcmp.eq.s32.totalorder %v8411, %v395
        %v8436 = vsel %vm8412, 1.0, 0.0
        %v8437 = vsel %vm8413, 1.0, 0.0
        %v8438 = vsel %vm8414, 1.0, 0.0
        %v8439 = vsel %vm8415, 1.0, 0.0
        %v8440 = vsel %vm8416, 1.0, 0.0
        %v8441 = vsel %vm8417, 1.0, 0.0
        %v8442 = vsel %vm8418, 1.0, 0.0
        %v8443 = vsel %vm8419, 1.0, 0.0
        %v8444 = vsel %vm8420, 1.0, 0.0
        %v8445 = vsel %vm8421, 1.0, 0.0
        %v8446 = vsel %vm8422, 1.0, 0.0
        %v8447 = vsel %vm8423, 1.0, 0.0
        %v8448 = vsel %vm8424, 1.0, 0.0
        %v8449 = vsel %vm8425, 1.0, 0.0
        %v8450 = vsel %vm8426, 1.0, 0.0
        %v8451 = vsel %vm8427, 1.0, 0.0
        %v8452 = vsel %vm8428, 1.0, 0.0
        %v8453 = vsel %vm8429, 1.0, 0.0
        %v8454 = vsel %vm8430, 1.0, 0.0
        %v8455 = vsel %vm8431, 1.0, 0.0
        %v8456 = vsel %vm8432, 1.0, 0.0
        %v8457 = vsel %vm8433, 1.0, 0.0
        %v8458 = vsel %vm8434, 1.0, 0.0
        %v8459 = vsel %vm8435, 1.0, 0.0
        %v8460 = vpack.c.bf16 %v8439, %v8436
        %v8461 = vpack.c.bf16 %v8440, %v8437
        %v8462 = vpack.c.bf16 %v8441, %v8438
        %v8463 = vpack.c.bf16 %v8445, %v8442
        %v8464 = vpack.c.bf16 %v8446, %v8443
        %v8465 = vpack.c.bf16 %v8447, %v8444
        %v8466 = vpack.c.bf16 %v8451, %v8448
        %v8467 = vpack.c.bf16 %v8452, %v8449
        %v8468 = vpack.c.bf16 %v8453, %v8450
        %v8469 = vpack.c.bf16 %v8457, %v8454
        %v8470 = vpack.c.bf16 %v8458, %v8455
        %v8471 = vpack.c.bf16 %v8459, %v8456
        %s8472 = scalar_lea.vmem [#allocation3], 5760
        %v8473 = vld [vmem:[%s8472] sm:$0xff]
        %v8474 = vld [vmem:[%s8472 + $0x8] sm:$0xff]
        %v8475 = vld [vmem:[%s8472 + $0x10] sm:$0xff]
        %v8476 = vld [vmem:[%s8472 + $0x18] sm:$0xff]
        %v8477 = vld [vmem:[%s8472 + $0x20] sm:$0xff]
        %v8478 = vld [vmem:[%s8472 + $0x28] sm:$0xff]
        %v8479 = vld [vmem:[%s8472 + $0x30] sm:$0xff]
        %v8480 = vld [vmem:[%s8472 + $0x38] sm:$0xff]
        %v8481 = vld [vmem:[%s8472 + $0x40] sm:$0xff]
        %v8482 = vld [vmem:[%s8472 + $0x48] sm:$0xff]
        %v8483 = vld [vmem:[%s8472 + $0x50] sm:$0xff]
        %v8484 = vld [vmem:[%s8472 + $0x58] sm:$0xff]
        %v8485 = vld [vmem:[%s8472 + $0x60] sm:$0xff]
        %v8486 = vld [vmem:[%s8472 + $0x68] sm:$0xff]
        %v8487 = vld [vmem:[%s8472 + $0x70] sm:$0xff]
        %v8488 = vld [vmem:[%s8472 + $0x78] sm:$0xff]
        %v8489 = vld [vmem:[%s8472 + $0x80] sm:$0xff]
        %v8490 = vld [vmem:[%s8472 + $0x88] sm:$0xff]
        %v8491 = vld [vmem:[%s8472 + $0x90] sm:$0xff]
        %v8492 = vld [vmem:[%s8472 + $0x98] sm:$0xff]
        %v8493 = vld [vmem:[%s8472 + $0xa0] sm:$0xff]
        %v8494 = vld [vmem:[%s8472 + $0xa8] sm:$0xff]
        %v8495 = vld [vmem:[%s8472 + $0xb0] sm:$0xff]
        %v8496 = vld [vmem:[%s8472 + $0xb8] sm:$0xff]
        %v8497 = vld [vmem:[%s8472 + $0xc0] sm:$0xff]
        %v8498 = vld [vmem:[%s8472 + $0xc8] sm:$0xff]
        %v8499 = vld [vmem:[%s8472 + $0xd0] sm:$0xff]
        %v8500 = vld [vmem:[%s8472 + $0xd8] sm:$0xff]
        %v8501 = vld [vmem:[%s8472 + $0xe0] sm:$0xff]
        %v8502 = vld [vmem:[%s8472 + $0xe8] sm:$0xff]
        %v8503 = vld [vmem:[%s8472 + $0xf0] sm:$0xff]
        %v8504 = vld [vmem:[%s8472 + $0xf8] sm:$0xff]
        %v8505 = vld [vmem:[%s8472 + $0x100] sm:$0xff]
        %v8506 = vld [vmem:[%s8472 + $0x108] sm:$0xff]
        %v8507 = vld [vmem:[%s8472 + $0x110] sm:$0xff]
        %v8508 = vld [vmem:[%s8472 + $0x118] sm:$0xff]
        %v8509 = vld [vmem:[%s8472 + $0x120] sm:$0xff]
        %v8510 = vld [vmem:[%s8472 + $0x128] sm:$0xff]
        %v8511 = vld [vmem:[%s8472 + $0x130] sm:$0xff]
        %v8512 = vld [vmem:[%s8472 + $0x138] sm:$0xff]
        %v8513 = vld [vmem:[%s8472 + $0x140] sm:$0xff]
        %v8514 = vld [vmem:[%s8472 + $0x148] sm:$0xff]
        %v8515 = vld [vmem:[%s8472 + $0x150] sm:$0xff]
        %v8516 = vld [vmem:[%s8472 + $0x158] sm:$0xff]
        %v8517 = vld [vmem:[%s8472 + $0x160] sm:$0xff]
        %v8518 = vld [vmem:[%s8472 + $0x168] sm:$0xff]
        %v8519 = vld [vmem:[%s8472 + $0x170] sm:$0xff]
        %v8520 = vld [vmem:[%s8472 + $0x178] sm:$0xff]
        %v8569 = vunpack.c.l.b16 %v8473
        %v8570 = vunpack.c.h.b16 %v8473
        %v8571 = vunpack.c.l.b16 %v8474
        %v8572 = vunpack.c.h.b16 %v8474
        %v8573 = vunpack.c.l.b16 %v8475
        %v8574 = vunpack.c.h.b16 %v8475
        %v8575 = vunpack.c.l.b16 %v8476
        %v8576 = vunpack.c.h.b16 %v8476
        %v8577 = vunpack.c.l.b16 %v8477
        %v8578 = vunpack.c.h.b16 %v8477
        %v8579 = vunpack.c.l.b16 %v8478
        %v8580 = vunpack.c.h.b16 %v8478
        %v8581 = vunpack.c.l.b16 %v8479
        %v8582 = vunpack.c.h.b16 %v8479
        %v8583 = vunpack.c.l.b16 %v8480
        %v8584 = vunpack.c.h.b16 %v8480
        %v8585 = vunpack.c.l.b16 %v8481
        %v8586 = vunpack.c.h.b16 %v8481
        %v8587 = vunpack.c.l.b16 %v8482
        %v8588 = vunpack.c.h.b16 %v8482
        %v8589 = vunpack.c.l.b16 %v8483
        %v8590 = vunpack.c.h.b16 %v8483
        %v8591 = vunpack.c.l.b16 %v8484
        %v8592 = vunpack.c.h.b16 %v8484
        %v8593 = vunpack.c.l.b16 %v8485
        %v8594 = vunpack.c.h.b16 %v8485
        %v8595 = vunpack.c.l.b16 %v8486
        %v8596 = vunpack.c.h.b16 %v8486
        %v8597 = vunpack.c.l.b16 %v8487
        %v8598 = vunpack.c.h.b16 %v8487
        %v8599 = vunpack.c.l.b16 %v8488
        %v8600 = vunpack.c.h.b16 %v8488
        %v8601 = vunpack.c.l.b16 %v8489
        %v8602 = vunpack.c.h.b16 %v8489
        %v8603 = vunpack.c.l.b16 %v8490
        %v8604 = vunpack.c.h.b16 %v8490
        %v8605 = vunpack.c.l.b16 %v8491
        %v8606 = vunpack.c.h.b16 %v8491
        %v8607 = vunpack.c.l.b16 %v8492
        %v8608 = vunpack.c.h.b16 %v8492
        %v8609 = vunpack.c.l.b16 %v8493
        %v8610 = vunpack.c.h.b16 %v8493
        %v8611 = vunpack.c.l.b16 %v8494
        %v8612 = vunpack.c.h.b16 %v8494
        %v8613 = vunpack.c.l.b16 %v8495
        %v8614 = vunpack.c.h.b16 %v8495
        %v8615 = vunpack.c.l.b16 %v8496
        %v8616 = vunpack.c.h.b16 %v8496
        %v8617 = vunpack.c.l.b16 %v8497
        %v8618 = vunpack.c.h.b16 %v8497
        %v8619 = vunpack.c.l.b16 %v8498
        %v8620 = vunpack.c.h.b16 %v8498
        %v8621 = vunpack.c.l.b16 %v8499
        %v8622 = vunpack.c.h.b16 %v8499
        %v8623 = vunpack.c.l.b16 %v8500
        %v8624 = vunpack.c.h.b16 %v8500
        %v8625 = vunpack.c.l.b16 %v8501
        %v8626 = vunpack.c.h.b16 %v8501
        %v8627 = vunpack.c.l.b16 %v8502
        %v8628 = vunpack.c.h.b16 %v8502
        %v8629 = vunpack.c.l.b16 %v8503
        %v8630 = vunpack.c.h.b16 %v8503
        %v8631 = vunpack.c.l.b16 %v8504
        %v8632 = vunpack.c.h.b16 %v8504
        %v8633 = vunpack.c.l.b16 %v8505
        %v8634 = vunpack.c.h.b16 %v8505
        %v8635 = vunpack.c.l.b16 %v8506
        %v8636 = vunpack.c.h.b16 %v8506
        %v8637 = vunpack.c.l.b16 %v8507
        %v8638 = vunpack.c.h.b16 %v8507
        %v8639 = vunpack.c.l.b16 %v8508
        %v8640 = vunpack.c.h.b16 %v8508
        %v8641 = vunpack.c.l.b16 %v8509
        %v8642 = vunpack.c.h.b16 %v8509
        %v8643 = vunpack.c.l.b16 %v8510
        %v8644 = vunpack.c.h.b16 %v8510
        %v8645 = vunpack.c.l.b16 %v8511
        %v8646 = vunpack.c.h.b16 %v8511
        %v8647 = vunpack.c.l.b16 %v8512
        %v8648 = vunpack.c.h.b16 %v8512
        %v8649 = vunpack.c.l.b16 %v8513
        %v8650 = vunpack.c.h.b16 %v8513
        %v8651 = vunpack.c.l.b16 %v8514
        %v8652 = vunpack.c.h.b16 %v8514
        %v8653 = vunpack.c.l.b16 %v8515
        %v8654 = vunpack.c.h.b16 %v8515
        %v8655 = vunpack.c.l.b16 %v8516
        %v8656 = vunpack.c.h.b16 %v8516
        %v8657 = vunpack.c.l.b16 %v8517
        %v8658 = vunpack.c.h.b16 %v8517
        %v8659 = vunpack.c.l.b16 %v8518
        %v8660 = vunpack.c.h.b16 %v8518
        %v8661 = vunpack.c.l.b16 %v8519
        %v8662 = vunpack.c.h.b16 %v8519
        %v8663 = vunpack.c.l.b16 %v8520
        %v8664 = vunpack.c.h.b16 %v8520
        %v8665 = vpack.c.b16 %v8571, %v8569
        %v8666 = vpack.c.b16 %v8572, %v8570
        %v8667 = vpack.c.b16 %v8575, %v8573
        %v8668 = vpack.c.b16 %v8576, %v8574
        %v8669 = vpack.c.b16 %v8579, %v8577
        %v8670 = vpack.c.b16 %v8580, %v8578
        %v8671 = vpack.c.b16 %v8583, %v8581
        %v8672 = vpack.c.b16 %v8584, %v8582
        %v8673 = vpack.c.b16 %v8587, %v8585
        %v8674 = vpack.c.b16 %v8588, %v8586
        %v8675 = vpack.c.b16 %v8591, %v8589
        %v8676 = vpack.c.b16 %v8592, %v8590
        %v8677 = vpack.c.b16 %v8595, %v8593
        %v8678 = vpack.c.b16 %v8596, %v8594
        %v8679 = vpack.c.b16 %v8599, %v8597
        %v8680 = vpack.c.b16 %v8600, %v8598
        %v8681 = vpack.c.b16 %v8603, %v8601
        %v8682 = vpack.c.b16 %v8604, %v8602
        %v8683 = vpack.c.b16 %v8607, %v8605
        %v8684 = vpack.c.b16 %v8608, %v8606
        %v8685 = vpack.c.b16 %v8611, %v8609
        %v8686 = vpack.c.b16 %v8612, %v8610
        %v8687 = vpack.c.b16 %v8615, %v8613
        %v8688 = vpack.c.b16 %v8616, %v8614
        %v8689 = vpack.c.b16 %v8619, %v8617
        %v8690 = vpack.c.b16 %v8620, %v8618
        %v8691 = vpack.c.b16 %v8623, %v8621
        %v8692 = vpack.c.b16 %v8624, %v8622
        %v8693 = vpack.c.b16 %v8627, %v8625
        %v8694 = vpack.c.b16 %v8628, %v8626
        %v8695 = vpack.c.b16 %v8631, %v8629
        %v8696 = vpack.c.b16 %v8632, %v8630
        %v8697 = vpack.c.b16 %v8635, %v8633
        %v8698 = vpack.c.b16 %v8636, %v8634
        %v8699 = vpack.c.b16 %v8639, %v8637
        %v8700 = vpack.c.b16 %v8640, %v8638
        %v8701 = vpack.c.b16 %v8643, %v8641
        %v8702 = vpack.c.b16 %v8644, %v8642
        %v8703 = vpack.c.b16 %v8647, %v8645
        %v8704 = vpack.c.b16 %v8648, %v8646
        %v8705 = vpack.c.b16 %v8651, %v8649
        %v8706 = vpack.c.b16 %v8652, %v8650
        %v8707 = vpack.c.b16 %v8655, %v8653
        %v8708 = vpack.c.b16 %v8656, %v8654
        %v8709 = vpack.c.b16 %v8659, %v8657
        %v8710 = vpack.c.b16 %v8660, %v8658
        %v8711 = vpack.c.b16 %v8663, %v8661
        %v8712 = vpack.c.b16 %v8664, %v8662
        %8761 = vmatprep.subr.bf16.mxu0 %v8666
        %8762 = vmatpush1.bf16.msra.mxu0 %v8665
        %8763 = vmatprep.subr.bf16.mxu0 %v8668
        %8764 = vmatpush1.bf16.msra.mxu0 %v8667
        %8765 = vmatprep.subr.bf16.mxu0 %v8670
        %8766 = vmatpush1.bf16.msra.mxu0 %v8669
        %8767 = vmatprep.subr.bf16.mxu0 %v8672
        %8768 = vmatpush1.bf16.msra.mxu0 %v8671
        %8769 = vmatprep.subr.bf16.mxu0 %v8674
        %8770 = vmatpush1.bf16.msra.mxu0 %v8673
        %8771 = vmatprep.subr.bf16.mxu0 %v8676
        %8772 = vmatpush1.bf16.msra.mxu0 %v8675
        %8773 = vmatprep.subr.bf16.mxu0 %v8678
        %8774 = vmatpush1.bf16.msra.mxu0 %v8677
        %8775 = vmatprep.subr.bf16.mxu0 %v8680
        %8776 = vmatpush1.bf16.msra.mxu0 %v8679
        %8777 = vmatprep.subr.bf16.mxu0 %v8682
        %8778 = vmatpush1.bf16.msra.mxu0 %v8681
        %8779 = vmatprep.subr.bf16.mxu0 %v8684
        %8780 = vmatpush1.bf16.msra.mxu0 %v8683
        %8781 = vmatprep.subr.bf16.mxu0 %v8686
        %8782 = vmatpush1.bf16.msra.mxu0 %v8685
        %8783 = vmatprep.subr.bf16.mxu0 %v8688
        %8784 = vmatpush1.bf16.msra.mxu0 %v8687
        %8785 = vmatprep.subr.bf16.mxu0 %v8690
        %8786 = vmatpush1.bf16.msra.mxu0 %v8689
        %8787 = vmatprep.subr.bf16.mxu0 %v8692
        %8788 = vmatpush1.bf16.msra.mxu0 %v8691
        %8789 = vmatprep.subr.bf16.mxu0 %v8694
        %8790 = vmatpush1.bf16.msra.mxu0 %v8693
        %8791 = vmatprep.subr.bf16.mxu0 %v8696
        %8792 = vmatpush1.bf16.msra.mxu0 %v8695
        %8793 = vmatprep.mubr.bf16.mxu0 %v8461
        %8794 = vmatmul.mubr.bf16.gmra.mrb[0].mxu0 %v8460
        %v8795 = vpop.f32.mrb[0].mxu0
        %v8796 = vadd.f32 0.0, %v8795
        %v8797 = vpop.f32.mrb[0].mxu0
        %v8798 = vadd.f32 0.0, %v8797
        %v8799 = vpop.f32.mrb[0].mxu0
        %v8800 = vadd.f32 0.0, %v8799
        %v8801 = vpop.f32.mrb[0].mxu0
        %v8802 = vadd.f32 0.0, %v8801
        %8803 = vmatprep.mubr.bf16.mxu0 %v8464
        %8804 = vmatmul.mubr.bf16.gmra.mrb[0].mxu0 %v8463
        %v8805 = vpop.f32.mrb[0].mxu0
        %v8806 = vadd.f32 0.0, %v8805
        %v8807 = vpop.f32.mrb[0].mxu0
        %v8808 = vadd.f32 0.0, %v8807
        %v8809 = vpop.f32.mrb[0].mxu0
        %v8810 = vadd.f32 0.0, %v8809
        %v8811 = vpop.f32.mrb[0].mxu0
        %v8812 = vadd.f32 0.0, %v8811
        %8813 = vmatprep.mubr.bf16.mxu0 %v8467
        %8814 = vmatmul.mubr.bf16.gmra.mrb[0].mxu0 %v8466
        %v8815 = vpop.f32.mrb[0].mxu0
        %v8816 = vadd.f32 0.0, %v8815
        %v8817 = vpop.f32.mrb[0].mxu0
        %v8818 = vadd.f32 0.0, %v8817
        %v8819 = vpop.f32.mrb[0].mxu0
        %v8820 = vadd.f32 0.0, %v8819
        %v8821 = vpop.f32.mrb[0].mxu0
        %v8822 = vadd.f32 0.0, %v8821
        %8823 = vmatprep.mubr.bf16.mxu0 %v8470
        %8824 = vmatmul.mubr.bf16.gmra.mrb[0].mxu0 %v8469
        %v8825 = vpop.f32.mrb[0].mxu0
        %v8826 = vadd.f32 0.0, %v8825
        %v8827 = vpop.f32.mrb[0].mxu0
        %v8828 = vadd.f32 0.0, %v8827
        %v8829 = vpop.f32.mrb[0].mxu0
        %v8830 = vadd.f32 0.0, %v8829
        %v8831 = vpop.f32.mrb[0].mxu0
        %v8832 = vadd.f32 0.0, %v8831
        %8833 = vdwg.mxu0
        %8834 = vmatprep.subr.bf16.mxu0 %v8698
        %8835 = vmatpush1.bf16.msra.mxu0 %v8697
        %8836 = vmatprep.subr.bf16.mxu0 %v8700
        %8837 = vmatpush1.bf16.msra.mxu0 %v8699
        %8838 = vmatprep.subr.bf16.mxu0 %v8702
        %8839 = vmatpush1.bf16.msra.mxu0 %v8701
        %8840 = vmatprep.subr.bf16.mxu0 %v8704
        %8841 = vmatpush1.bf16.msra.mxu0 %v8703
        %8842 = vmatprep.subr.bf16.mxu0 %v8706
        %8843 = vmatpush1.bf16.msra.mxu0 %v8705
        %8844 = vmatprep.subr.bf16.mxu0 %v8708
        %8845 = vmatpush1.bf16.msra.mxu0 %v8707
        %8846 = vmatprep.subr.bf16.mxu0 %v8710
        %8847 = vmatpush1.bf16.msra.mxu0 %v8709
        %8848 = vmatprep.subr.bf16.mxu0 %v8712
        %8849 = vmatpush1.bf16.msra.mxu0 %v8711
        %8850 = vmatprep.subr.bf16.mxu0 0
        %8851 = vmatpush1.bf16.msra.mxu0 0
        %8852 = vmatprep.subr.bf16.mxu0 0
        %8853 = vmatpush1.bf16.msra.mxu0 0
        %8854 = vmatprep.subr.bf16.mxu0 0
        %8855 = vmatpush1.bf16.msra.mxu0 0
        %8856 = vmatprep.subr.bf16.mxu0 0
        %8857 = vmatpush1.bf16.msra.mxu0 0
        %8858 = vmatprep.subr.bf16.mxu0 0
        %8859 = vmatpush1.bf16.msra.mxu0 0
        %8860 = vmatprep.subr.bf16.mxu0 0
        %8861 = vmatpush1.bf16.msra.mxu0 0
        %8862 = vmatprep.subr.bf16.mxu0 0
        %8863 = vmatpush1.bf16.msra.mxu0 0
        %8864 = vmatprep.subr.bf16.mxu0 0
        %8865 = vmatpush1.bf16.msra.mxu0 0
        %8866 = vmatprep.mubr.bf16.mxu0 0
        %8867 = vmatmul.mubr.bf16.gmra.mrb[0].mxu0 %v8462
        %v8868 = vpop.f32.mrb[0].mxu0
        %v8869 = vadd.f32 %v8796, %v8868
        %v8870 = vpop.f32.mrb[0].mxu0
        %v8871 = vadd.f32 %v8798, %v8870
        %v8872 = vpop.f32.mrb[0].mxu0
        %v8873 = vadd.f32 %v8800, %v8872
        %v8874 = vpop.f32.mrb[0].mxu0
        %v8875 = vadd.f32 %v8802, %v8874
        %8876 = vmatprep.mubr.bf16.mxu0 0
        %8877 = vmatmul.mubr.bf16.gmra.mrb[0].mxu0 %v8465
        %v8878 = vpop.f32.mrb[0].mxu0
        %v8879 = vadd.f32 %v8806, %v8878
        %v8880 = vpop.f32.mrb[0].mxu0
        %v8881 = vadd.f32 %v8808, %v8880
        %v8882 = vpop.f32.mrb[0].mxu0
        %v8883 = vadd.f32 %v8810, %v8882
        %v8884 = vpop.f32.mrb[0].mxu0
        %v8885 = vadd.f32 %v8812, %v8884
        %8886 = vmatprep.mubr.bf16.mxu0 0
        %8887 = vmatmul.mubr.bf16.gmra.mrb[0].mxu0 %v8468
        %v8888 = vpop.f32.mrb[0].mxu0
        %v8889 = vadd.f32 %v8816, %v8888
        %v8890 = vpop.f32.mrb[0].mxu0
        %v8891 = vadd.f32 %v8818, %v8890
        %v8892 = vpop.f32.mrb[0].mxu0
        %v8893 = vadd.f32 %v8820, %v8892
        %v8894 = vpop.f32.mrb[0].mxu0
        %v8895 = vadd.f32 %v8822, %v8894
        %8896 = vmatprep.mubr.bf16.mxu0 0
        %8897 = vmatmul.mubr.bf16.gmra.mrb[0].mxu0 %v8471
        %v8898 = vpop.f32.mrb[0].mxu0
        %v8899 = vadd.f32 %v8826, %v8898
        %v8900 = vpop.f32.mrb[0].mxu0
        %v8901 = vadd.f32 %v8828, %v8900
        %v8902 = vpop.f32.mrb[0].mxu0
        %v8903 = vadd.f32 %v8830, %v8902
        %v8904 = vpop.f32.mrb[0].mxu0
        %v8905 = vadd.f32 %v8832, %v8904
        %8906 = vdwg.mxu0
        %v8907 = vadd.f32 %v8372, %v8869
        %v8908 = vadd.f32 %v8373, %v8871
        %v8909 = vadd.f32 %v8374, %v8873
        %v8910 = vadd.f32 %v8375, %v8875
        %v8911 = vadd.f32 %v8376, %v8879
        %v8912 = vadd.f32 %v8377, %v8881
        %v8913 = vadd.f32 %v8378, %v8883
        %v8914 = vadd.f32 %v8379, %v8885
        %v8915 = vadd.f32 %v8380, %v8889
        %v8916 = vadd.f32 %v8381, %v8891
        %v8917 = vadd.f32 %v8382, %v8893
        %v8918 = vadd.f32 %v8383, %v8895
        %v8919 = vadd.f32 %v8384, %v8899
        %v8920 = vadd.f32 %v8385, %v8901
        %v8921 = vadd.f32 %v8386, %v8903
        %v8922 = vadd.f32 %v8387, %v8905
        %v8923 = vld [vmem:[#allocation6] sm:$0x3]
        %v8925 = vlaneseq
        %v8926 = vshrl.u32 %v8925, 7
        %v8927 = vsub.s32 0, %v8926
        %v8928 = vrot.slane %v8923, %v8927
        %v8929 = vlaneseq
        %v8930 = vshrl.u32 %v8929, 7
        %v8931 = vsub.s32 1, %v8930
        %v8932 = vrot.slane %v8923, %v8931
        %v8935 = vadd.f32 %v8907, %v8928
        %v8936 = vadd.f32 %v8908, %v8932
        %v8937 = vadd.f32 %v8909, %v8928
        %v8938 = vadd.f32 %v8910, %v8932
        %v8939 = vadd.f32 %v8911, %v8928
        %v8940 = vadd.f32 %v8912, %v8932
        %v8941 = vadd.f32 %v8913, %v8928
        %v8942 = vadd.f32 %v8914, %v8932
        %v8943 = vadd.f32 %v8915, %v8928
        %v8944 = vadd.f32 %v8916, %v8932
        %v8945 = vadd.f32 %v8917, %v8928
        %v8946 = vadd.f32 %v8918, %v8932
        %v8947 = vadd.f32 %v8919, %v8928
        %v8948 = vadd.f32 %v8920, %v8932
        %v8949 = vadd.f32 %v8921, %v8928
        %v8950 = vadd.f32 %v8922, %v8932
        %v8951 = vxor.u32 %v8936, 2147483648
        %v8952 = vxor.u32 %v8938, 2147483648
        %v8953 = vxor.u32 %v8940, 2147483648
        %v8954 = vxor.u32 %v8942, 2147483648
        %v8955 = vxor.u32 %v8944, 2147483648
        %v8956 = vxor.u32 %v8946, 2147483648
        %v8957 = vxor.u32 %v8948, 2147483648
        %v8958 = vxor.u32 %v8950, 2147483648
        %v8959 = vmul.f32 %v8951, 1.442695
        %v8960 = vpow.pop %v8959
        %v8961 = vmul.f32 %v8952, 1.442695
        %v8962 = vpow.pop %v8961
        %v8963 = vmul.f32 %v8953, 1.442695
        %v8964 = vpow.pop %v8963
        %v8965 = vmul.f32 %v8954, 1.442695
        %v8966 = vpow.pop %v8965
        %v8967 = vmul.f32 %v8955, 1.442695
        %v8968 = vpow.pop %v8967
        %v8969 = vmul.f32 %v8956, 1.442695
        %v8970 = vpow.pop %v8969
        %v8971 = vmul.f32 %v8957, 1.442695
        %v8972 = vpow.pop %v8971
        %v8973 = vmul.f32 %v8958, 1.442695
        %v8974 = vpow.pop %v8973
        %v8975 = vadd.f32 %v8960, 1.0
        %v8976 = vadd.f32 %v8962, 1.0
        %v8977 = vadd.f32 %v8964, 1.0
        %v8978 = vadd.f32 %v8966, 1.0
        %v8979 = vadd.f32 %v8968, 1.0
        %v8980 = vadd.f32 %v8970, 1.0
        %v8981 = vadd.f32 %v8972, 1.0
        %v8982 = vadd.f32 %v8974, 1.0
        %v8983 = vrcp.pop %v8975
        %v8984 = vmul.f32 1.0, %v8983
        %v8985 = vrcp.pop %v8976
        %v8986 = vmul.f32 1.0, %v8985
        %v8987 = vrcp.pop %v8977
        %v8988 = vmul.f32 1.0, %v8987
        %v8989 = vrcp.pop %v8978
        %v8990 = vmul.f32 1.0, %v8989
        %v8991 = vrcp.pop %v8979
        %v8992 = vmul.f32 1.0, %v8991
        %v8993 = vrcp.pop %v8980
        %v8994 = vmul.f32 1.0, %v8993
        %v8995 = vrcp.pop %v8981
        %v8996 = vmul.f32 1.0, %v8995
        %v8997 = vrcp.pop %v8982
        %v8998 = vmul.f32 1.0, %v8997
        %v8999 = vmul.f32 %v8935, %v8984
        %v9000 = vmul.f32 %v8937, %v8986
        %v9001 = vmul.f32 %v8939, %v8988
        %v9002 = vmul.f32 %v8941, %v8990
        %v9003 = vmul.f32 %v8943, %v8992
        %v9004 = vmul.f32 %v8945, %v8994
        %v9005 = vmul.f32 %v8947, %v8996
        %v9006 = vmul.f32 %v8949, %v8998
        %v9007 = vld [vmem:[#allocation2] sm:$0xff]
        %v9008 = vrot.slane %v8999, 4
        %v9009 = vmax.f32 %v8999, %v9008
        %v9010 = vrot.slane %v9009, 2
        %v9011 = vmax.f32 %v9009, %v9010
        %v9012 = vrot.slane %v9011, 1
        %v9013 = vmax.f32 %v9011, %v9012
        %v9014 = vrot.slane %v9000, 4
        %v9015 = vmax.f32 %v9000, %v9014
        %v9016 = vrot.slane %v9015, 2
        %v9017 = vmax.f32 %v9015, %v9016
        %v9018 = vrot.slane %v9017, 1
        %v9019 = vmax.f32 %v9017, %v9018
        %v9020 = vrot.slane %v9001, 4
        %v9021 = vmax.f32 %v9001, %v9020
        %v9022 = vrot.slane %v9021, 2
        %v9023 = vmax.f32 %v9021, %v9022
        %v9024 = vrot.slane %v9023, 1
        %v9025 = vmax.f32 %v9023, %v9024
        %v9026 = vrot.slane %v9002, 4
        %v9027 = vmax.f32 %v9002, %v9026
        %v9028 = vrot.slane %v9027, 2
        %v9029 = vmax.f32 %v9027, %v9028
        %v9030 = vrot.slane %v9029, 1
        %v9031 = vmax.f32 %v9029, %v9030
        %v9032 = vrot.slane %v9003, 4
        %v9033 = vmax.f32 %v9003, %v9032
        %v9034 = vrot.slane %v9033, 2
        %v9035 = vmax.f32 %v9033, %v9034
        %v9036 = vrot.slane %v9035, 1
        %v9037 = vmax.f32 %v9035, %v9036
        %v9038 = vrot.slane %v9004, 4
        %v9039 = vmax.f32 %v9004, %v9038
        %v9040 = vrot.slane %v9039, 2
        %v9041 = vmax.f32 %v9039, %v9040
        %v9042 = vrot.slane %v9041, 1
        %v9043 = vmax.f32 %v9041, %v9042
        %v9044 = vrot.slane %v9005, 4
        %v9045 = vmax.f32 %v9005, %v9044
        %v9046 = vrot.slane %v9045, 2
        %v9047 = vmax.f32 %v9045, %v9046
        %v9048 = vrot.slane %v9047, 1
        %v9049 = vmax.f32 %v9047, %v9048
        %v9050 = vrot.slane %v9006, 4
        %v9051 = vmax.f32 %v9006, %v9050
        %v9052 = vrot.slane %v9051, 2
        %v9053 = vmax.f32 %v9051, %v9052
        %v9054 = vrot.slane %v9053, 1
        %v9055 = vmax.f32 %v9053, %v9054
        %vm9064 = vcmask 1041409
        %v9065 = vsel %vm9064, %v9019, %v9013
        %vm9066 = vcmask 1042434
        %v9067 = vsel %vm9066, %v9025, %v9065
        %vm9068 = vcmask 1043459
        %v9069 = vsel %vm9068, %v9031, %v9067
        %vm9070 = vcmask 1044484
        %v9071 = vsel %vm9070, %v9037, %v9069
        %vm9072 = vcmask 1045509
        %v9073 = vsel %vm9072, %v9043, %v9071
        %vm9074 = vcmask 1046534
        %v9075 = vsel %vm9074, %v9049, %v9073
        %vm9076 = vcmask 1047559
        %v9077 = vsel %vm9076, %v9055, %v9075
        %v9079 = vmax.f32 %v9007, %v9077
        %9080 = vst [vmem:[#allocation2] sm:$0xff] %v9079
        %p9081 = scmp.eq.s32.totalorder %s28, 1
        // Predicated region
        $region77: #{tpu_custom_call.1} parent=47 // pred_check
          %p9082 = pneg %p9081
        $region78: #{tpu_custom_call.1} parent=47 // pred_check_branch
          %9084 = sbr.rel (%p9082) target = $region80
        $region79: #{tpu_custom_call.1} parent=47 // pred_region
          %v9085 = vld [vmem:[#allocation2] sm:$0xff]
          %v9086 = vpack.c.bf16 %v9085, %v9085
          %v9087 = vld [vmem:[#allocation8] sm:$0xf]
          %v9088 = vld [vmem:[#allocation8 + $0x4] sm:$0xf]
          %v9089 = vld [vmem:[#allocation8 + $0x8] sm:$0xf]
          %v9090 = vld [vmem:[#allocation8 + $0xc] sm:$0xf]
          %v9091 = vld [vmem:[#allocation8 + $0x10] sm:$0xf]
          %v9092 = vld [vmem:[#allocation8 + $0x14] sm:$0xf]
          %v9093 = vld [vmem:[#allocation8 + $0x18] sm:$0xf]
          %v9094 = vld [vmem:[#allocation8 + $0x1c] sm:$0xf]
          %v9095 = vld [vmem:[#allocation8 + $0x20] sm:$0xf]
          %v9096 = vld [vmem:[#allocation8 + $0x24] sm:$0xf]
          %v9097 = vld [vmem:[#allocation8 + $0x28] sm:$0xf]
          %v9098 = vld [vmem:[#allocation8 + $0x2c] sm:$0xf]
          %v9099 = vld [vmem:[#allocation8 + $0x30] sm:$0xf]
          %v9100 = vld [vmem:[#allocation8 + $0x34] sm:$0xf]
          %v9101 = vld [vmem:[#allocation8 + $0x38] sm:$0xf]
          %v9102 = vld [vmem:[#allocation8 + $0x3c] sm:$0xf]
          %v9103 = vld [vmem:[#allocation9] sm:$0x1]
          %v9105 = vlaneseq
          %v9106 = vshrl.u32 %v9105, 7
          %v9107 = vsub.s32 0, %v9106
          %v9108 = vrot.slane %v9103, %v9107
          %v9126 = vunpack.c.l.b16 %v9087
          %v9127 = vunpack.c.l.b16 %v9088
          %v9128 = vunpack.c.l.b16 %v9089
          %v9129 = vunpack.c.l.b16 %v9090
          %v9130 = vunpack.c.l.b16 %v9091
          %v9131 = vunpack.c.l.b16 %v9092
          %v9132 = vunpack.c.l.b16 %v9093
          %v9133 = vunpack.c.l.b16 %v9094
          %v9134 = vunpack.c.l.b16 %v9095
          %v9135 = vunpack.c.l.b16 %v9096
          %v9136 = vunpack.c.l.b16 %v9097
          %v9137 = vunpack.c.l.b16 %v9098
          %v9138 = vunpack.c.l.b16 %v9099
          %v9139 = vunpack.c.l.b16 %v9100
          %v9140 = vunpack.c.l.b16 %v9101
          %v9141 = vunpack.c.l.b16 %v9102
          %v9142 = vpack.c.b16 %v9127, %v9126
          %v9143 = vpack.c.b16 %v9129, %v9128
          %v9144 = vpack.c.b16 %v9131, %v9130
          %v9145 = vpack.c.b16 %v9133, %v9132
          %v9146 = vpack.c.b16 %v9135, %v9134
          %v9147 = vpack.c.b16 %v9137, %v9136
          %v9148 = vpack.c.b16 %v9139, %v9138
          %v9149 = vpack.c.b16 %v9141, %v9140
          %9158 = vmatprep.subr.bf16.mxu0 0
          %9159 = vmatpush1.bf16.msra.mxu0 %v9142
          %9160 = vmatprep.subr.bf16.mxu0 0
          %9161 = vmatpush1.bf16.msra.mxu0 %v9143
          %9162 = vmatprep.subr.bf16.mxu0 0
          %9163 = vmatpush1.bf16.msra.mxu0 %v9144
          %9164 = vmatprep.subr.bf16.mxu0 0
          %9165 = vmatpush1.bf16.msra.mxu0 %v9145
          %9166 = vmatprep.subr.bf16.mxu0 0
          %9167 = vmatpush1.bf16.msra.mxu0 %v9146
          %9168 = vmatprep.subr.bf16.mxu0 0
          %9169 = vmatpush1.bf16.msra.mxu0 %v9147
          %9170 = vmatprep.subr.bf16.mxu0 0
          %9171 = vmatpush1.bf16.msra.mxu0 %v9148
          %9172 = vmatprep.subr.bf16.mxu0 0
          %9173 = vmatpush1.bf16.msra.mxu0 %v9149
          %9174 = vmatprep.subr.bf16.mxu0 0
          %9175 = vmatpush1.bf16.msra.mxu0 0
          %9176 = vmatprep.subr.bf16.mxu0 0
          %9177 = vmatpush1.bf16.msra.mxu0 0
          %9178 = vmatprep.subr.bf16.mxu0 0
          %9179 = vmatpush1.bf16.msra.mxu0 0
          %9180 = vmatprep.subr.bf16.mxu0 0
          %9181 = vmatpush1.bf16.msra.mxu0 0
          %9182 = vmatprep.subr.bf16.mxu0 0
          %9183 = vmatpush1.bf16.msra.mxu0 0
          %9184 = vmatprep.subr.bf16.mxu0 0
          %9185 = vmatpush1.bf16.msra.mxu0 0
          %9186 = vmatprep.subr.bf16.mxu0 0
          %9187 = vmatpush1.bf16.msra.mxu0 0
          %9188 = vmatprep.subr.bf16.mxu0 0
          %9189 = vmatpush1.bf16.msra.mxu0 0
          %9190 = vmatprep.mubr.bf16.mxu0 0
          %9191 = vmatmul.mubr.bf16.gmra.mrb[0].mxu0 %v9086
          %v9192 = vpop.f32.mrb[0].mxu0
          %v9193 = vadd.f32 %v9108, %v9192
          %v9194 = vpop.f32.mrb[0].mxu0
          %v9195 = vpop.f32.mrb[0].mxu0
          %v9196 = vpop.f32.mrb[0].mxu0
          %9197 = vdwg.mxu0
          %v9198 = vmax.f32 %v9193, 0.0
          %v9199 = vpack.c.bf16 %v9198, %v9198
          %v9200 = vld [vmem:[#allocation11] sm:$0xf]
          %v9201 = vld [vmem:[#allocation11 + $0x4] sm:$0xf]
          %v9202 = vld [vmem:[#allocation11 + $0x8] sm:$0xf]
          %v9203 = vld [vmem:[#allocation11 + $0xc] sm:$0xf]
          %v9204 = vld [vmem:[#allocation11 + $0x10] sm:$0xf]
          %v9205 = vld [vmem:[#allocation11 + $0x14] sm:$0xf]
          %v9206 = vld [vmem:[#allocation11 + $0x18] sm:$0xf]
          %v9207 = vld [vmem:[#allocation11 + $0x1c] sm:$0xf]
          %v9208 = vld [vmem:[#allocation11 + $0x20] sm:$0xf]
          %v9209 = vld [vmem:[#allocation11 + $0x24] sm:$0xf]
          %v9210 = vld [vmem:[#allocation11 + $0x28] sm:$0xf]
          %v9211 = vld [vmem:[#allocation11 + $0x2c] sm:$0xf]
          %v9212 = vld [vmem:[#allocation11 + $0x30] sm:$0xf]
          %v9213 = vld [vmem:[#allocation11 + $0x34] sm:$0xf]
          %v9214 = vld [vmem:[#allocation11 + $0x38] sm:$0xf]
          %v9215 = vld [vmem:[#allocation11 + $0x3c] sm:$0xf]
          %v9216 = vld [vmem:[#allocation12] sm:$0x1]
          %v9218 = vlaneseq
          %v9219 = vshrl.u32 %v9218, 7
          %v9220 = vsub.s32 0, %v9219
          %v9221 = vrot.slane %v9216, %v9220
          %v9239 = vunpack.c.l.b16 %v9200
          %v9240 = vunpack.c.l.b16 %v9201
          %v9241 = vunpack.c.l.b16 %v9202
          %v9242 = vunpack.c.l.b16 %v9203
          %v9243 = vunpack.c.l.b16 %v9204
          %v9244 = vunpack.c.l.b16 %v9205
          %v9245 = vunpack.c.l.b16 %v9206
          %v9246 = vunpack.c.l.b16 %v9207
          %v9247 = vunpack.c.l.b16 %v9208
          %v9248 = vunpack.c.l.b16 %v9209
          %v9249 = vunpack.c.l.b16 %v9210
          %v9250 = vunpack.c.l.b16 %v9211
          %v9251 = vunpack.c.l.b16 %v9212
          %v9252 = vunpack.c.l.b16 %v9213
          %v9253 = vunpack.c.l.b16 %v9214
          %v9254 = vunpack.c.l.b16 %v9215
          %v9255 = vpack.c.b16 %v9240, %v9239
          %v9256 = vpack.c.b16 %v9242, %v9241
          %v9257 = vpack.c.b16 %v9244, %v9243
          %v9258 = vpack.c.b16 %v9246, %v9245
          %v9259 = vpack.c.b16 %v9248, %v9247
          %v9260 = vpack.c.b16 %v9250, %v9249
          %v9261 = vpack.c.b16 %v9252, %v9251
          %v9262 = vpack.c.b16 %v9254, %v9253
          %9271 = vmatprep.subr.bf16.mxu0 0
          %9272 = vmatpush1.bf16.msra.mxu0 %v9255
          %9273 = vmatprep.subr.bf16.mxu0 0
          %9274 = vmatpush1.bf16.msra.mxu0 %v9256
          %9275 = vmatprep.subr.bf16.mxu0 0
          %9276 = vmatpush1.bf16.msra.mxu0 %v9257
          %9277 = vmatprep.subr.bf16.mxu0 0
          %9278 = vmatpush1.bf16.msra.mxu0 %v9258
          %9279 = vmatprep.subr.bf16.mxu0 0
          %9280 = vmatpush1.bf16.msra.mxu0 %v9259
          %9281 = vmatprep.subr.bf16.mxu0 0
          %9282 = vmatpush1.bf16.msra.mxu0 %v9260
          %9283 = vmatprep.subr.bf16.mxu0 0
          %9284 = vmatpush1.bf16.msra.mxu0 %v9261
          %9285 = vmatprep.subr.bf16.mxu0 0
          %9286 = vmatpush1.bf16.msra.mxu0 %v9262
          %9287 = vmatprep.subr.bf16.mxu0 0
          %9288 = vmatpush1.bf16.msra.mxu0 0
          %9289 = vmatprep.subr.bf16.mxu0 0
          %9290 = vmatpush1.bf16.msra.mxu0 0
          %9291 = vmatprep.subr.bf16.mxu0 0
          %9292 = vmatpush1.bf16.msra.mxu0 0
          %9293 = vmatprep.subr.bf16.mxu0 0
          %9294 = vmatpush1.bf16.msra.mxu0 0
          %9295 = vmatprep.subr.bf16.mxu0 0
          %9296 = vmatpush1.bf16.msra.mxu0 0
          %9297 = vmatprep.subr.bf16.mxu0 0
          %9298 = vmatpush1.bf16.msra.mxu0 0
          %9299 = vmatprep.subr.bf16.mxu0 0
          %9300 = vmatpush1.bf16.msra.mxu0 0
          %9301 = vmatprep.subr.bf16.mxu0 0
          %9302 = vmatpush1.bf16.msra.mxu0 0
          %9303 = vmatprep.mubr.bf16.mxu0 0
          %9304 = vmatmul.mubr.bf16.gmra.mrb[0].mxu0 %v9199
          %v9305 = vpop.f32.mrb[0].mxu0
          %v9306 = vadd.f32 %v9221, %v9305
          %v9307 = vpop.f32.mrb[0].mxu0
          %v9308 = vpop.f32.mrb[0].mxu0
          %v9309 = vpop.f32.mrb[0].mxu0
          %9310 = vdwg.mxu0
          %9311 = vst [vmem:[#allocation14] sm:$0xff] %v9306
        $region80: #{tpu_custom_call.1} parent=47 // pred_fallthru
          _
        // Predicated region
        $region81: #{tpu_custom_call.1} parent=47 // pred_check
          %p9312 = pneg %p207
        $region82: #{tpu_custom_call.1} parent=47 // pred_check_branch
          %9314 = sbr.rel (%p9312) target = $region84
        $region83: #{tpu_custom_call.1} parent=47 // pred_region
          %s9316 = ssub.s32 128, 128
          %9317 = vsyncadd [#allocation5], %s9316
          %s9318 = smul.addr %s27, 128
          %s9319 = scalar_lea.hbm %s7, %s9318
          %s9321 = sshll.u32 [#allocation14], 4
          %s9322 = int_to_ptr.vmem [resolvable:$true] %s9321
          %9324 = dma.vmem_to_hbm [thread:$0]  %s9322, 128, %s9319, [#allocation5]
        $region84: #{tpu_custom_call.1} parent=47 // pred_fallthru
          _
        // Predicated region
        $region85: #{tpu_custom_call.1} parent=47 // pred_check
          %p9325 = pneg %p207
        $region86: #{tpu_custom_call.1} parent=47 // pred_check_branch
          %9327 = sbr.rel (%p9325) target = $region88
        $region87: #{tpu_custom_call.1} parent=47 // pred_region
          %9328 = dma.done [#allocation5], 128
        $region88: #{tpu_custom_call.1} parent=47 // pred_fallthru
          _
      $region48: #{tpu_custom_call.1} parent=5 // pred_fallthru
        _
      %p9329 = scmp.le.s32.totalorder 2, %s18
      // Predicated region
      $region89: #{tpu_custom_call.1} parent=5 // pred_check
        %p9330 = pneg %p9329
      $region90: #{tpu_custom_call.1} parent=5 // pred_check_branch
        %9332 = sbr.rel (%p9330) target = $region92
      $region91: #{tpu_custom_call.1} parent=5 // pred_region
        %s9333 = ssub.s32 %s18, 2
      $region92: #{tpu_custom_call.1} parent=5 // pred_fallthru
        _
    $region6: #{tpu_custom_call.1} parent=1 // loop_footer
      %s22 = sadd.s32 1, %s18
    $region7: #{tpu_custom_call.1} parent=1 // loop_footer_branch
      %17 = sbr.rel target = $region3
    $region8: #{tpu_custom_call.1} parent=1 // loop_exit
      _
    %9334 = vsyncpa [#allocation4], 1
    %s9335 = scalar_lea.sflag [#allocation4], 1
    %9336 = vsyncpa %s9335, 1
    %9337 = vsyncpa [#allocation7], 1
    %9338 = vsyncpa [#allocation10], 1
    %9339 = vsyncpa [#allocation13], 1
    %9340 = vsyncpa [#allocation5], 1
    %s9341 = scalar_lea.sflag [#allocation5], 1
    %9342 = vsyncpa %s9341, 1

</llo_original>
